<compile_context>
chip_gen: v5e
topology: v5e:2x2
jax: 0.10.0
libtpu: 0.0.40
codegen_flags: <defaults>
</compile_context>

<pallas_src>
import functools
import numpy as np
import jax
import jax.numpy as jnp
from jax import lax
from jax.experimental import pallas as pl
from jax.experimental.pallas import tpu as pltpu

_VMEM = pltpu.MemorySpace.VMEM


def _vmem_specs(n):
  return [pl.BlockSpec(memory_space=_VMEM) for _ in range(n)]


# ---------------------------------------------------------------------------
# Fused forward kernel
# ---------------------------------------------------------------------------
def convcondgen_kernel(
    x_ref, w1_ref, b1_ref, w2_ref, b2_ref,          # MLP params
    u1_ref, u2_ref,                                  # padded bilinear operators
    cw1_ref, cb1_ref, cw2_ref, cb2_ref,              # conv params (im2col layout)
    o_ref,                                           # (c2, B*32*32) padded-space output
    stack1_ref, pad1_ref, col1_ref,                  # VMEM scratch
    stack2_ref, pad2_ref, col2_ref,
    *, B, c0, c1, c2, hw, kA, kB, use_sigmoid):
  eps = 1e-5
  pA, pB = (kA - 1) // 2, (kB - 1) // 2
  h1, h2 = 2 * hw, 4 * hw
  Hp1, Hp2 = h1 + 2 * pA, h2 + 2 * pB                # 18, 32
  NP1, NP2 = Hp1 * Hp1, Hp2 * Hp2                    # 324, 1024
  G1, G2 = pA * Hp1 + pA, pB * Hp2 + pB              # 38, 66  (flat-shift guards)
  NF1, NF2 = B * NP1, B * NP2
  hw2 = hw * hw

  # ---- fc1 -> BN(train) -> relu -> fc2 -> BN(train)   (full batch, 2-D only) ----------------
  h = jnp.dot(x_ref[...], w1_ref[...], preferred_element_type=jnp.float32) + b1_ref[...]
  mu = jnp.mean(h, axis=0, keepdims=True)
  var = jnp.mean((h - mu) * (h - mu), axis=0, keepdims=True)   # biased var, gamma=1, beta=0
  h = (h - mu) * lax.rsqrt(var + eps)
  h = jnp.maximum(h, 0.0)
  z = jnp.dot(h, w2_ref[...], preferred_element_type=jnp.float32) + b2_ref[...]
  mu2 = jnp.mean(z, axis=0, keepdims=True)
  var2 = jnp.mean((z - mu2) * (z - mu2), axis=0, keepdims=True)
  z = (z - mu2) * lax.rsqrt(var2 + eps)                         # (B, c0*hw*hw)

  # ---- relayout to per-image-channel rows (b-major) in VMEM, then upsample 7->14 ------------
  # u1 = kron(A1pad, A1pad).T already contains the conv1 zero halo -> rows come out as padded
  # 18x18 images (flattened), so no masks and no extra padding pass are needed.
  for b in range(B):
    for c in range(c0):
      r = b * c0 + c
      stack1_ref[r:r + 1, :] = z[b:b + 1, c * hw2:(c + 1) * hw2]
  y1 = jnp.dot(stack1_ref[...], u1_ref[...], preferred_element_type=jnp.float32)  # (B*c0, NP1)

  # ---- channel-major flat padded buffer for conv1: (c0, G1 | image0 | image1 | ... | G1) ----
  pad1_ref[:, 0:G1] = jnp.zeros((c0, G1), jnp.float32)                  # guard strips only
  pad1_ref[:, G1 + NF1:G1 + NF1 + G1] = jnp.zeros((c0, G1), jnp.float32)
  for b in range(B):
    pad1_ref[:, G1 + b * NP1:G1 + (b + 1) * NP1] = y1[b * c0:(b + 1) * c0, :]

  # ---- conv1: build im2col once, one MXU matmul, +bias, relu (padded output space) ----------
  for di in range(kA):
    for dj in range(kA):
      idx = di * kA + dj
      delta = (di - pA) * Hp1 + (dj - pA)
      col1_ref[idx * c0:(idx + 1) * c0, :] = pad1_ref[:, G1 + delta:G1 + delta + NF1]
  o1 = jnp.dot(cw1_ref[...], col1_ref[...], preferred_element_type=jnp.float32) + cb1_ref[...]
  o1 = jnp.maximum(o1, 0.0)                                             # (c1, B*NP1)

  # ---- upsample 14->28: interior extraction + zero halo both folded into u2 -----------------
  for b in range(B):
    stack2_ref[b * c1:(b + 1) * c1, :] = o1[:, b * NP1:(b + 1) * NP1]
  y2 = jnp.dot(stack2_ref[...], u2_ref[...], preferred_element_type=jnp.float32)  # (B*c1, NP2)

  pad2_ref[:, 0:G2] = jnp.zeros((c1, G2), jnp.float32)
  pad2_ref[:, G2 + NF2:G2 + NF2 + G2] = jnp.zeros((c1, G2), jnp.float32)
  for b in range(B):
    pad2_ref[:, G2 + b * NP2:G2 + (b + 1) * NP2] = y2[b * c1:(b + 1) * c1, :]

  # ---- conv2: im2col + one matmul, +bias, sigmoid; lane-dense (c2, B*1024) output -----------
  for di in range(kB):
    for dj in range(kB):
      idx = di * kB + dj
      delta = (di - pB) * Hp2 + (dj - pB)
      col2_ref[idx * c1:(idx + 1) * c1, :] = pad2_ref[:, G2 + delta:G2 + delta + NF2]
  o2 = jnp.dot(cw2_ref[...], col2_ref[...], preferred_element_type=jnp.float32) + cb2_ref[...]
  if use_sigmoid:
    o2 = jax.nn.sigmoid(o2)
  o_ref[...] = o2


# ---------------------------------------------------------------------------
# Constant construction (host-side parameter prep, not per-element data movement)
# ---------------------------------------------------------------------------
def bilinear_matrix(hin, hout):
  """nn.UpsamplingBilinear2d (align_corners=True) 1-D interpolation matrix (hout, hin)."""
  A = np.zeros((hout, hin), np.float32)
  for i in range(hout):
    src = i * (hin - 1) / (hout - 1)
    i0 = int(np.floor(src))
    if i0 > hin - 2:
      i0 = hin - 2
    frac = src - i0
    A[i, i0] += 1.0 - frac
    A[i, i0 + 1] += frac
  return A


def make_upsample_ops(hw, h1, h2, pA, pB):
  """Padded / fused bilinear operators.

  u1: (hw*hw, Hp1*Hp1)  flat 7x7 image -> flat 18x18 upsampled image with conv1's zero halo.
  u2: (Hp1*Hp1, Hp2*Hp2) flat padded 18x18 conv1 output -> flat 32x32 upsampled image with
      conv2's zero halo; halo input positions map to zero rows (interior extraction fused in).
  """
  Hp1, Hp2 = h1 + 2 * pA, h2 + 2 * pB
  A1 = bilinear_matrix(hw, h1)                       # (14, 7)
  A2 = bilinear_matrix(h1, h2)                       # (28, 14)
  A1p = np.zeros((Hp1, hw), np.float32)
  A1p[pA:pA + h1, :] = A1
  A2e = np.zeros((Hp2, Hp1), np.float32)
  A2e[pB:pB + h2, pA:pA + h1] = A2
  u1 = np.kron(A1p, A1p).T.astype(np.float32)        # (49, 324)
  u2 = np.kron(A2e, A2e).T.astype(np.float32)        # (324, 1024)
  return u1, u2


def conv_weight_im2col(w):
  """(Cout, Cin, k, k) -> (Cout, k*k*Cin) matching im2col row order (offset-major, cin-minor)."""
  cout, cin, k, _ = w.shape
  return jnp.transpose(w, (2, 3, 1, 0)).reshape(k * k * cin, cout).T


def init_params(key, d_in, d_h1, reshape_size, nc, ks):
  """Deterministic PyTorch-default-style uniform init."""
  keys = jax.random.split(key, 8)

  def unif(k, shape, fan_in):
    b = 1.0 / np.sqrt(fan_in)
    return jax.random.uniform(k, shape, jnp.float32, -b, b)

  return dict(
      w1=unif(keys[0], (d_in, d_h1), d_in),
      b1=unif(keys[1], (1, d_h1), d_in),
      w2=unif(keys[2], (d_h1, reshape_size), d_h1),
      b2=unif(keys[3], (1, reshape_size), d_h1),
      cw1=unif(keys[4], (nc[1], nc[0], ks[0], ks[0]), nc[0] * ks[0] * ks[0]),
      cb1=unif(keys[5], (nc[1],), nc[0] * ks[0] * ks[0]),
      cw2=unif(keys[6], (nc[2], nc[1], ks[1], ks[1]), nc[1] * ks[1] * ks[1]),
      cb2=unif(keys[7], (nc[2],), nc[1] * ks[1] * ks[1]),
  )


# ---------------------------------------------------------------------------
# Full ConvCondGen.forward (one pallas_call)
# ---------------------------------------------------------------------------
def conv_cond_gen_forward(x, params, nc, ks, hw=7, use_sigmoid=True):
  B = x.shape[0]
  c0, c1, c2 = nc
  kA, kB = ks
  pA, pB = (kA - 1) // 2, (kB - 1) // 2
  h1, h2 = 2 * hw, 4 * hw
  Hp1, Hp2 = h1 + 2 * pA, h2 + 2 * pB
  NP1, NP2 = Hp1 * Hp1, Hp2 * Hp2
  G1, G2 = pA * Hp1 + pA, pB * Hp2 + pB

  u1_np, u2_np = make_upsample_ops(hw, h1, h2, pA, pB)
  u1, u2 = jnp.asarray(u1_np), jnp.asarray(u2_np)
  cw1 = conv_weight_im2col(params['cw1'])            # (c1, kA*kA*c0)
  cb1 = params['cb1'].reshape(c1, 1)
  cw2 = conv_weight_im2col(params['cw2'])            # (c2, kB*kB*c1)
  cb2 = params['cb2'].reshape(c2, 1)

  kern = functools.partial(convcondgen_kernel, B=B, c0=c0, c1=c1, c2=c2,
                           hw=hw, kA=kA, kB=kB, use_sigmoid=use_sigmoid)

  out_pad = pl.pallas_call(
      kern,
      out_shape=jax.ShapeDtypeStruct((c2, B * NP2), jnp.float32),
      in_specs=_vmem_specs(11),
      out_specs=pl.BlockSpec(memory_space=_VMEM),
      scratch_shapes=[
          pltpu.VMEM((B * c0, hw * hw), jnp.float32),        # stack1: per-(b,c) 7x7 rows
          pltpu.VMEM((c0, 2 * G1 + B * NP1), jnp.float32),   # pad1: flat padded conv1 input
          pltpu.VMEM((kA * kA * c0, B * NP1), jnp.float32),  # col1: conv1 im2col
          pltpu.VMEM((B * c1, NP1), jnp.float32),            # stack2: per-(b,c) padded 18x18
          pltpu.VMEM((c1, 2 * G2 + B * NP2), jnp.float32),   # pad2: flat padded conv2 input
          pltpu.VMEM((kB * kB * c1, B * NP2), jnp.float32),  # col2: conv2 im2col
      ],
  )(x, params['w1'], params['b1'], params['w2'], params['b2'],
    u1, u2, cw1, cb1, cw2, cb2)

  # Crop the zero halo and go to the PyTorch (B, c2*h2*h2) layout (handles c2 > 1 correctly).
  out4 = out_pad.reshape(c2, B, Hp2, Hp2)[:, :, pB:pB + h2, pB:pB + h2]
  return out4.transpose(1, 0, 2, 3).reshape(B, c2 * h2 * h2)


# ---------------------------------------------------------------------------
# Pure-JAX reference (for correctness check)
# ---------------------------------------------------------------------------
def reference_forward(x, params, nc, ks, hw=7, use_sigmoid=True):
  eps = 1e-5
  B = x.shape[0]
  c0, c1, c2 = nc

  def bn(v):
    mu = v.mean(0, keepdims=True)
    var = ((v - mu) ** 2).mean(0, keepdims=True)
    return (v - mu) / jnp.sqrt(var + eps)

  h = bn(x @ params['w1'] + params['b1'])
  h = jnp.maximum(h, 0.0)
  z = bn(h @ params['w2'] + params['b2'])
  y = z.reshape(B, c0, hw, hw)
  A1 = jnp.asarray(bilinear_matrix(hw, 2 * hw))
  A2 = jnp.asarray(bilinear_matrix(2 * hw, 4 * hw))
  y = jnp.einsum('hp,bcpq,wq->bchw', A1, y, A1)
  pA = (ks[0] - 1) // 2
  y = lax.conv_general_dilated(y, params['cw1'], (1, 1), [(pA, pA), (pA, pA)],
                               dimension_numbers=('NCHW', 'OIHW', 'NCHW'))
  y = jnp.maximum(y + params['cb1'][None, :, None, None], 0.0)
  y = jnp.einsum('hp,bcpq,wq->bchw', A2, y, A2)
  pB = (ks[1] - 1) // 2
  y = lax.conv_general_dilated(y, params['cw2'], (1, 1), [(pB, pB), (pB, pB)],
                               dimension_numbers=('NCHW', 'OIHW', 'NCHW'))
  y = y + params['cb2'][None, :, None, None]
  y = y.reshape(B, -1)
  if use_sigmoid:
    y = jax.nn.sigmoid(y)
  return y


# ---------------------------------------------------------------------------
if __name__ == "__main__":
  # module config (small): ConvCondGen(d_code=8, d_hid="32", n_labels=4,
  #                                    nc_str="4,2", ks_str="5,5")
  d_code, n_labels = 8, 4
  d_hid = [int(s) for s in "32".split(',')]
  nc = [int(s) for s in "4,2".split(',')] + [1]
  ks = [int(s) for s in "5,5".split(',')]
  hw = 7
  reshape_size = nc[0] * hw * hw
  B = 2

  key = jax.random.PRNGKey(0)
  kp, kc, kl = jax.random.split(key, 3)
  params = init_params(kp, d_code + n_labels, d_hid[0], reshape_size, nc, ks)

  # input like get_code(): gaussian code concatenated with one-hot labels
  code = jax.random.normal(kc, (B, d_code), jnp.float32)
  labels = jax.random.randint(kl, (B,), 0, n_labels)
  onehot = jax.nn.one_hot(labels, n_labels, dtype=jnp.float32)
  x = jnp.concatenate([code, onehot], axis=1)           # (2, 12)

  out = conv_cond_gen_forward(x, params, nc, ks, hw=hw, use_sigmoid=True)
  out = jax.block_until_ready(out)

  ref = reference_forward(x, params, nc, ks, hw=hw, use_sigmoid=True)
  assert out.shape == (B, (4 * hw) ** 2)                # (2, 784)
  np.testing.assert_allclose(np.asarray(out), np.asarray(ref), atol=2e-3, rtol=2e-3)
  print("KERNEL_OK")
</pallas_src>

<mosaic_0001>
module attributes {stable_mosaic.version = 11 : i64} {
  func.func @convcondgen_kernel(%arg0: memref<2x12xf32, #tpu.memory_space<vmem>>, %arg1: memref<12x32xf32, #tpu.memory_space<vmem>>, %arg2: memref<1x32xf32, #tpu.memory_space<vmem>>, %arg3: memref<32x196xf32, #tpu.memory_space<vmem>>, %arg4: memref<1x196xf32, #tpu.memory_space<vmem>>, %arg5: memref<49x324xf32, #tpu.memory_space<vmem>>, %arg6: memref<324x1024xf32, #tpu.memory_space<vmem>>, %arg7: memref<2x100xf32, #tpu.memory_space<vmem>>, %arg8: memref<2x1xf32, #tpu.memory_space<vmem>>, %arg9: memref<1x50xf32, #tpu.memory_space<vmem>>, %arg10: memref<1x1xf32, #tpu.memory_space<vmem>>, %arg11: memref<1x2048xf32, #tpu.memory_space<vmem>>, %arg12: memref<8x49xf32, #tpu.memory_space<vmem>>, %arg13: memref<4x724xf32, #tpu.memory_space<vmem>>, %arg14: memref<100x648xf32, #tpu.memory_space<vmem>>, %arg15: memref<4x324xf32, #tpu.memory_space<vmem>>, %arg16: memref<2x2180xf32, #tpu.memory_space<vmem>>, %arg17: memref<50x2048xf32, #tpu.memory_space<vmem>>) attributes {dimension_semantics = [], scalar_prefetch = 0 : i64, scratch_operands = 6 : i64, tpu.core_type = #tpu.core_type<tc>} {
    %c0 = arith.constant 0 : index
    %c0_0 = arith.constant 0 : index
    %0 = vector.load %arg0[%c0, %c0_0] : memref<2x12xf32, #tpu.memory_space<vmem>>, vector<2x12xf32>
    %c0_1 = arith.constant 0 : index
    %c0_2 = arith.constant 0 : index
    %1 = vector.load %arg1[%c0_1, %c0_2] : memref<12x32xf32, #tpu.memory_space<vmem>>, vector<12x32xf32>
    %cst = arith.constant dense<0.000000e+00> : vector<2x32xf32>
    %2 = tpu.matmul %0, %1, %cst {dimension_numbers = #tpu.dot_dimension_numbers<[1], [0], [0], [1], [0, 0, 1, 1], [], []>} : vector<2x12xf32>, vector<12x32xf32>, vector<2x32xf32> -> vector<2x32xf32>
    %c0_3 = arith.constant 0 : index
    %c0_4 = arith.constant 0 : index
    %3 = vector.load %arg2[%c0_3, %c0_4] : memref<1x32xf32, #tpu.memory_space<vmem>>, vector<1x32xf32>
    %4 = vector.broadcast %3 : vector<1x32xf32> to vector<2x32xf32>
    %5 = arith.addf %2, %4 : vector<2x32xf32>
    %cst_5 = arith.constant dense<0.000000e+00> : vector<32xf32>
    %6 = vector.multi_reduction <add>, %5, %cst_5 [0] : vector<2x32xf32> to vector<32xf32>
    %7 = vector.shape_cast %6 : vector<32xf32> to vector<1x32xf32>
    %cst_6 = arith.constant 2.000000e+00 : f32
    %8 = vector.broadcast %cst_6 : f32 to vector<1x32xf32>
    %9 = arith.divf %7, %8 : vector<1x32xf32>
    %10 = vector.broadcast %9 : vector<1x32xf32> to vector<2x32xf32>
    %11 = arith.subf %5, %10 : vector<2x32xf32>
    %12 = vector.broadcast %9 : vector<1x32xf32> to vector<2x32xf32>
    %13 = arith.subf %5, %12 : vector<2x32xf32>
    %14 = arith.mulf %11, %13 : vector<2x32xf32>
    %cst_7 = arith.constant dense<0.000000e+00> : vector<32xf32>
    %15 = vector.multi_reduction <add>, %14, %cst_7 [0] : vector<2x32xf32> to vector<32xf32>
    %16 = vector.shape_cast %15 : vector<32xf32> to vector<1x32xf32>
    %cst_8 = arith.constant 2.000000e+00 : f32
    %17 = vector.broadcast %cst_8 : f32 to vector<1x32xf32>
    %18 = arith.divf %16, %17 : vector<1x32xf32>
    %19 = vector.broadcast %9 : vector<1x32xf32> to vector<2x32xf32>
    %20 = arith.subf %5, %19 : vector<2x32xf32>
    %cst_9 = arith.constant 9.99999974E-6 : f32
    %21 = vector.broadcast %cst_9 : f32 to vector<1x32xf32>
    %22 = arith.addf %18, %21 : vector<1x32xf32>
    %23 = math.rsqrt %22 : vector<1x32xf32>
    %24 = vector.broadcast %23 : vector<1x32xf32> to vector<2x32xf32>
    %25 = arith.mulf %20, %24 : vector<2x32xf32>
    %cst_10 = arith.constant 0.000000e+00 : f32
    %26 = vector.broadcast %cst_10 : f32 to vector<2x32xf32>
    %27 = arith.maximumf %25, %26 : vector<2x32xf32>
    %c0_11 = arith.constant 0 : index
    %c0_12 = arith.constant 0 : index
    %28 = vector.load %arg3[%c0_11, %c0_12] : memref<32x196xf32, #tpu.memory_space<vmem>>, vector<32x196xf32>
    %cst_13 = arith.constant dense<0.000000e+00> : vector<2x196xf32>
    %29 = tpu.matmul %27, %28, %cst_13 {dimension_numbers = #tpu.dot_dimension_numbers<[1], [0], [0], [1], [0, 0, 1, 1], [], []>} : vector<2x32xf32>, vector<32x196xf32>, vector<2x196xf32> -> vector<2x196xf32>
    %c0_14 = arith.constant 0 : index
    %c0_15 = arith.constant 0 : index
    %30 = vector.load %arg4[%c0_14, %c0_15] : memref<1x196xf32, #tpu.memory_space<vmem>>, vector<1x196xf32>
    %31 = vector.broadcast %30 : vector<1x196xf32> to vector<2x196xf32>
    %32 = arith.addf %29, %31 : vector<2x196xf32>
    %cst_16 = arith.constant dense<0.000000e+00> : vector<196xf32>
    %33 = vector.multi_reduction <add>, %32, %cst_16 [0] : vector<2x196xf32> to vector<196xf32>
    %34 = vector.shape_cast %33 : vector<196xf32> to vector<1x196xf32>
    %cst_17 = arith.constant 2.000000e+00 : f32
    %35 = vector.broadcast %cst_17 : f32 to vector<1x196xf32>
    %36 = arith.divf %34, %35 : vector<1x196xf32>
    %37 = vector.broadcast %36 : vector<1x196xf32> to vector<2x196xf32>
    %38 = arith.subf %32, %37 : vector<2x196xf32>
    %39 = vector.broadcast %36 : vector<1x196xf32> to vector<2x196xf32>
    %40 = arith.subf %32, %39 : vector<2x196xf32>
    %41 = arith.mulf %38, %40 : vector<2x196xf32>
    %cst_18 = arith.constant dense<0.000000e+00> : vector<196xf32>
    %42 = vector.multi_reduction <add>, %41, %cst_18 [0] : vector<2x196xf32> to vector<196xf32>
    %43 = vector.shape_cast %42 : vector<196xf32> to vector<1x196xf32>
    %cst_19 = arith.constant 2.000000e+00 : f32
    %44 = vector.broadcast %cst_19 : f32 to vector<1x196xf32>
    %45 = arith.divf %43, %44 : vector<1x196xf32>
    %46 = vector.broadcast %36 : vector<1x196xf32> to vector<2x196xf32>
    %47 = arith.subf %32, %46 : vector<2x196xf32>
    %cst_20 = arith.constant 9.99999974E-6 : f32
    %48 = vector.broadcast %cst_20 : f32 to vector<1x196xf32>
    %49 = arith.addf %45, %48 : vector<1x196xf32>
    %50 = math.rsqrt %49 : vector<1x196xf32>
    %51 = vector.broadcast %50 : vector<1x196xf32> to vector<2x196xf32>
    %52 = arith.mulf %47, %51 : vector<2x196xf32>
    %53 = vector.extract_strided_slice %52 {offsets = [0, 0], sizes = [1, 49], strides = [1, 1]} : vector<2x196xf32> to vector<1x49xf32>
    %c0_21 = arith.constant 0 : index
    %c0_22 = arith.constant 0 : index
    %54 = vector.load %arg12[%c0_21, %c0_22] : memref<8x49xf32, #tpu.memory_space<vmem>>, vector<1x49xf32>
    tpu.vector_store %arg12[%c0_21, %c0_22], %53 {strides = array<i32>} : memref<8x49xf32, #tpu.memory_space<vmem>>, vector<1x49xf32>,
    %55 = vector.extract_strided_slice %52 {offsets = [0, 49], sizes = [1, 49], strides = [1, 1]} : vector<2x196xf32> to vector<1x49xf32>
    %c1 = arith.constant 1 : index
    %c0_23 = arith.constant 0 : index
    %56 = vector.load %arg12[%c1, %c0_23] : memref<8x49xf32, #tpu.memory_space<vmem>>, vector<1x49xf32>
    tpu.vector_store %arg12[%c1, %c0_23], %55 {strides = array<i32>} : memref<8x49xf32, #tpu.memory_space<vmem>>, vector<1x49xf32>,
    %57 = vector.extract_strided_slice %52 {offsets = [0, 98], sizes = [1, 49], strides = [1, 1]} : vector<2x196xf32> to vector<1x49xf32>
    %c2 = arith.constant 2 : index
    %c0_24 = arith.constant 0 : index
    %58 = vector.load %arg12[%c2, %c0_24] : memref<8x49xf32, #tpu.memory_space<vmem>>, vector<1x49xf32>
    tpu.vector_store %arg12[%c2, %c0_24], %57 {strides = array<i32>} : memref<8x49xf32, #tpu.memory_space<vmem>>, vector<1x49xf32>,
    %59 = vector.extract_strided_slice %52 {offsets = [0, 147], sizes = [1, 49], strides = [1, 1]} : vector<2x196xf32> to vector<1x49xf32>
    %c3 = arith.constant 3 : index
    %c0_25 = arith.constant 0 : index
    %60 = vector.load %arg12[%c3, %c0_25] : memref<8x49xf32, #tpu.memory_space<vmem>>, vector<1x49xf32>
    tpu.vector_store %arg12[%c3, %c0_25], %59 {strides = array<i32>} : memref<8x49xf32, #tpu.memory_space<vmem>>, vector<1x49xf32>,
    %61 = vector.extract_strided_slice %52 {offsets = [1, 0], sizes = [1, 49], strides = [1, 1]} : vector<2x196xf32> to vector<1x49xf32>
    %c4 = arith.constant 4 : index
    %c0_26 = arith.constant 0 : index
    %62 = vector.load %arg12[%c4, %c0_26] : memref<8x49xf32, #tpu.memory_space<vmem>>, vector<1x49xf32>
    tpu.vector_store %arg12[%c4, %c0_26], %61 {strides = array<i32>} : memref<8x49xf32, #tpu.memory_space<vmem>>, vector<1x49xf32>,
    %63 = vector.extract_strided_slice %52 {offsets = [1, 49], sizes = [1, 49], strides = [1, 1]} : vector<2x196xf32> to vector<1x49xf32>
    %c5 = arith.constant 5 : index
    %c0_27 = arith.constant 0 : index
    %64 = vector.load %arg12[%c5, %c0_27] : memref<8x49xf32, #tpu.memory_space<vmem>>, vector<1x49xf32>
    tpu.vector_store %arg12[%c5, %c0_27], %63 {strides = array<i32>} : memref<8x49xf32, #tpu.memory_space<vmem>>, vector<1x49xf32>,
    %65 = vector.extract_strided_slice %52 {offsets = [1, 98], sizes = [1, 49], strides = [1, 1]} : vector<2x196xf32> to vector<1x49xf32>
    %c6 = arith.constant 6 : index
    %c0_28 = arith.constant 0 : index
    %66 = vector.load %arg12[%c6, %c0_28] : memref<8x49xf32, #tpu.memory_space<vmem>>, vector<1x49xf32>
    tpu.vector_store %arg12[%c6, %c0_28], %65 {strides = array<i32>} : memref<8x49xf32, #tpu.memory_space<vmem>>, vector<1x49xf32>,
    %67 = vector.extract_strided_slice %52 {offsets = [1, 147], sizes = [1, 49], strides = [1, 1]} : vector<2x196xf32> to vector<1x49xf32>
    %c7 = arith.constant 7 : index
    %c0_29 = arith.constant 0 : index
    %68 = vector.load %arg12[%c7, %c0_29] : memref<8x49xf32, #tpu.memory_space<vmem>>, vector<1x49xf32>
    tpu.vector_store %arg12[%c7, %c0_29], %67 {strides = array<i32>} : memref<8x49xf32, #tpu.memory_space<vmem>>, vector<1x49xf32>,
    %c0_30 = arith.constant 0 : index
    %c0_31 = arith.constant 0 : index
    %69 = vector.load %arg12[%c0_30, %c0_31] : memref<8x49xf32, #tpu.memory_space<vmem>>, vector<8x49xf32>
    %c0_32 = arith.constant 0 : index
    %c0_33 = arith.constant 0 : index
    %70 = vector.load %arg5[%c0_32, %c0_33] : memref<49x324xf32, #tpu.memory_space<vmem>>, vector<49x324xf32>
    %cst_34 = arith.constant dense<0.000000e+00> : vector<8x324xf32>
    %71 = tpu.matmul %69, %70, %cst_34 {dimension_numbers = #tpu.dot_dimension_numbers<[1], [0], [0], [1], [0, 0, 1, 1], [], []>} : vector<8x49xf32>, vector<49x324xf32>, vector<8x324xf32> -> vector<8x324xf32>
    %cst_35 = arith.constant 0.000000e+00 : f32
    %72 = vector.broadcast %cst_35 : f32 to vector<4x38xf32>
    %c0_36 = arith.constant 0 : index
    %c0_37 = arith.constant 0 : index
    %73 = vector.load %arg13[%c0_36, %c0_37] : memref<4x724xf32, #tpu.memory_space<vmem>>, vector<4x38xf32>
    tpu.vector_store %arg13[%c0_36, %c0_37], %72 {strides = array<i32>} : memref<4x724xf32, #tpu.memory_space<vmem>>, vector<4x38xf32>,
    %cst_38 = arith.constant 0.000000e+00 : f32
    %74 = vector.broadcast %cst_38 : f32 to vector<4x38xf32>
    %c0_39 = arith.constant 0 : index
    %c686 = arith.constant 686 : index
    %75 = vector.load %arg13[%c0_39, %c686] : memref<4x724xf32, #tpu.memory_space<vmem>>, vector<4x38xf32>
    tpu.vector_store %arg13[%c0_39, %c686], %74 {strides = array<i32>} : memref<4x724xf32, #tpu.memory_space<vmem>>, vector<4x38xf32>,
    %76 = vector.extract_strided_slice %71 {offsets = [0, 0], sizes = [4, 324], strides = [1, 1]} : vector<8x324xf32> to vector<4x324xf32>
    %c0_40 = arith.constant 0 : index
    %c38 = arith.constant 38 : index
    %77 = vector.load %arg13[%c0_40, %c38] : memref<4x724xf32, #tpu.memory_space<vmem>>, vector<4x324xf32>
    tpu.vector_store %arg13[%c0_40, %c38], %76 {strides = array<i32>} : memref<4x724xf32, #tpu.memory_space<vmem>>, vector<4x324xf32>,
    %78 = vector.extract_strided_slice %71 {offsets = [4, 0], sizes = [4, 324], strides = [1, 1]} : vector<8x324xf32> to vector<4x324xf32>
    %c0_41 = arith.constant 0 : index
    %c362 = arith.constant 362 : index
    %79 = vector.load %arg13[%c0_41, %c362] : memref<4x724xf32, #tpu.memory_space<vmem>>, vector<4x324xf32>
    tpu.vector_store %arg13[%c0_41, %c362], %78 {strides = array<i32>} : memref<4x724xf32, #tpu.memory_space<vmem>>, vector<4x324xf32>,
    %c0_42 = arith.constant 0 : index
    %c0_43 = arith.constant 0 : index
    %80 = vector.load %arg13[%c0_42, %c0_43] : memref<4x724xf32, #tpu.memory_space<vmem>>, vector<4x648xf32>
    %c0_44 = arith.constant 0 : index
    %c0_45 = arith.constant 0 : index
    %81 = vector.load %arg14[%c0_44, %c0_45] : memref<100x648xf32, #tpu.memory_space<vmem>>, vector<4x648xf32>
    tpu.vector_store %arg14[%c0_44, %c0_45], %80 {strides = array<i32>} : memref<100x648xf32, #tpu.memory_space<vmem>>, vector<4x648xf32>,
    %c0_46 = arith.constant 0 : index
    %c1_47 = arith.constant 1 : index
    %82 = vector.load %arg13[%c0_46, %c1_47] : memref<4x724xf32, #tpu.memory_space<vmem>>, vector<4x648xf32>
    %c4_48 = arith.constant 4 : index
    %c0_49 = arith.constant 0 : index
    %83 = vector.load %arg14[%c4_48, %c0_49] : memref<100x648xf32, #tpu.memory_space<vmem>>, vector<4x648xf32>
    tpu.vector_store %arg14[%c4_48, %c0_49], %82 {strides = array<i32>} : memref<100x648xf32, #tpu.memory_space<vmem>>, vector<4x648xf32>,
    %c0_50 = arith.constant 0 : index
    %c2_51 = arith.constant 2 : index
    %84 = vector.load %arg13[%c0_50, %c2_51] : memref<4x724xf32, #tpu.memory_space<vmem>>, vector<4x648xf32>
    %c8 = arith.constant 8 : index
    %c0_52 = arith.constant 0 : index
    %85 = vector.load %arg14[%c8, %c0_52] : memref<100x648xf32, #tpu.memory_space<vmem>>, vector<4x648xf32>
    tpu.vector_store %arg14[%c8, %c0_52], %84 {strides = array<i32>} : memref<100x648xf32, #tpu.memory_space<vmem>>, vector<4x648xf32>,
    %c0_53 = arith.constant 0 : index
    %c3_54 = arith.constant 3 : index
    %86 = vector.load %arg13[%c0_53, %c3_54] : memref<4x724xf32, #tpu.memory_space<vmem>>, vector<4x648xf32>
    %c12 = arith.constant 12 : index
    %c0_55 = arith.constant 0 : index
    %87 = vector.load %arg14[%c12, %c0_55] : memref<100x648xf32, #tpu.memory_space<vmem>>, vector<4x648xf32>
    tpu.vector_store %arg14[%c12, %c0_55], %86 {strides = array<i32>} : memref<100x648xf32, #tpu.memory_space<vmem>>, vector<4x648xf32>,
    %c0_56 = arith.constant 0 : index
    %c4_57 = arith.constant 4 : index
    %88 = vector.load %arg13[%c0_56, %c4_57] : memref<4x724xf32, #tpu.memory_space<vmem>>, vector<4x648xf32>
    %c16 = arith.constant 16 : index
    %c0_58 = arith.constant 0 : index
    %89 = vector.load %arg14[%c16, %c0_58] : memref<100x648xf32, #tpu.memory_space<vmem>>, vector<4x648xf32>
    tpu.vector_store %arg14[%c16, %c0_58], %88 {strides = array<i32>} : memref<100x648xf32, #tpu.memory_space<vmem>>, vector<4x648xf32>,
    %c0_59 = arith.constant 0 : index
    %c18 = arith.constant 18 : index
    %90 = vector.load %arg13[%c0_59, %c18] : memref<4x724xf32, #tpu.memory_space<vmem>>, vector<4x648xf32>
    %c20 = arith.constant 20 : index
    %c0_60 = arith.constant 0 : index
    %91 = vector.load %arg14[%c20, %c0_60] : memref<100x648xf32, #tpu.memory_space<vmem>>, vector<4x648xf32>
    tpu.vector_store %arg14[%c20, %c0_60], %90 {strides = array<i32>} : memref<100x648xf32, #tpu.memory_space<vmem>>, vector<4x648xf32>,
    %c0_61 = arith.constant 0 : index
    %c19 = arith.constant 19 : index
    %92 = vector.load %arg13[%c0_61, %c19] : memref<4x724xf32, #tpu.memory_space<vmem>>, vector<4x648xf32>
    %c24 = arith.constant 24 : index
    %c0_62 = arith.constant 0 : index
    %93 = vector.load %arg14[%c24, %c0_62] : memref<100x648xf32, #tpu.memory_space<vmem>>, vector<4x648xf32>
    tpu.vector_store %arg14[%c24, %c0_62], %92 {strides = array<i32>} : memref<100x648xf32, #tpu.memory_space<vmem>>, vector<4x648xf32>,
    %c0_63 = arith.constant 0 : index
    %c20_64 = arith.constant 20 : index
    %94 = vector.load %arg13[%c0_63, %c20_64] : memref<4x724xf32, #tpu.memory_space<vmem>>, vector<4x648xf32>
    %c28 = arith.constant 28 : index
    %c0_65 = arith.constant 0 : index
    %95 = vector.load %arg14[%c28, %c0_65] : memref<100x648xf32, #tpu.memory_space<vmem>>, vector<4x648xf32>
    tpu.vector_store %arg14[%c28, %c0_65], %94 {strides = array<i32>} : memref<100x648xf32, #tpu.memory_space<vmem>>, vector<4x648xf32>,
    %c0_66 = arith.constant 0 : index
    %c21 = arith.constant 21 : index
    %96 = vector.load %arg13[%c0_66, %c21] : memref<4x724xf32, #tpu.memory_space<vmem>>, vector<4x648xf32>
    %c32 = arith.constant 32 : index
    %c0_67 = arith.constant 0 : index
    %97 = vector.load %arg14[%c32, %c0_67] : memref<100x648xf32, #tpu.memory_space<vmem>>, vector<4x648xf32>
    tpu.vector_store %arg14[%c32, %c0_67], %96 {strides = array<i32>} : memref<100x648xf32, #tpu.memory_space<vmem>>, vector<4x648xf32>,
    %c0_68 = arith.constant 0 : index
    %c22 = arith.constant 22 : index
    %98 = vector.load %arg13[%c0_68, %c22] : memref<4x724xf32, #tpu.memory_space<vmem>>, vector<4x648xf32>
    %c36 = arith.constant 36 : index
    %c0_69 = arith.constant 0 : index
    %99 = vector.load %arg14[%c36, %c0_69] : memref<100x648xf32, #tpu.memory_space<vmem>>, vector<4x648xf32>
    tpu.vector_store %arg14[%c36, %c0_69], %98 {strides = array<i32>} : memref<100x648xf32, #tpu.memory_space<vmem>>, vector<4x648xf32>,
    %c0_70 = arith.constant 0 : index
    %c36_71 = arith.constant 36 : index
    %100 = vector.load %arg13[%c0_70, %c36_71] : memref<4x724xf32, #tpu.memory_space<vmem>>, vector<4x648xf32>
    %c40 = arith.constant 40 : index
    %c0_72 = arith.constant 0 : index
    %101 = vector.load %arg14[%c40, %c0_72] : memref<100x648xf32, #tpu.memory_space<vmem>>, vector<4x648xf32>
    tpu.vector_store %arg14[%c40, %c0_72], %100 {strides = array<i32>} : memref<100x648xf32, #tpu.memory_space<vmem>>, vector<4x648xf32>,
    %c0_73 = arith.constant 0 : index
    %c37 = arith.constant 37 : index
    %102 = vector.load %arg13[%c0_73, %c37] : memref<4x724xf32, #tpu.memory_space<vmem>>, vector<4x648xf32>
    %c44 = arith.constant 44 : index
    %c0_74 = arith.constant 0 : index
    %103 = vector.load %arg14[%c44, %c0_74] : memref<100x648xf32, #tpu.memory_space<vmem>>, vector<4x648xf32>
    tpu.vector_store %arg14[%c44, %c0_74], %102 {strides = array<i32>} : memref<100x648xf32, #tpu.memory_space<vmem>>, vector<4x648xf32>,
    %c0_75 = arith.constant 0 : index
    %c38_76 = arith.constant 38 : index
    %104 = vector.load %arg13[%c0_75, %c38_76] : memref<4x724xf32, #tpu.memory_space<vmem>>, vector<4x648xf32>
    %c48 = arith.constant 48 : index
    %c0_77 = arith.constant 0 : index
    %105 = vector.load %arg14[%c48, %c0_77] : memref<100x648xf32, #tpu.memory_space<vmem>>, vector<4x648xf32>
    tpu.vector_store %arg14[%c48, %c0_77], %104 {strides = array<i32>} : memref<100x648xf32, #tpu.memory_space<vmem>>, vector<4x648xf32>,
    %c0_78 = arith.constant 0 : index
    %c39 = arith.constant 39 : index
    %106 = vector.load %arg13[%c0_78, %c39] : memref<4x724xf32, #tpu.memory_space<vmem>>, vector<4x648xf32>
    %c52 = arith.constant 52 : index
    %c0_79 = arith.constant 0 : index
    %107 = vector.load %arg14[%c52, %c0_79] : memref<100x648xf32, #tpu.memory_space<vmem>>, vector<4x648xf32>
    tpu.vector_store %arg14[%c52, %c0_79], %106 {strides = array<i32>} : memref<100x648xf32, #tpu.memory_space<vmem>>, vector<4x648xf32>,
    %c0_80 = arith.constant 0 : index
    %c40_81 = arith.constant 40 : index
    %108 = vector.load %arg13[%c0_80, %c40_81] : memref<4x724xf32, #tpu.memory_space<vmem>>, vector<4x648xf32>
    %c56 = arith.constant 56 : index
    %c0_82 = arith.constant 0 : index
    %109 = vector.load %arg14[%c56, %c0_82] : memref<100x648xf32, #tpu.memory_space<vmem>>, vector<4x648xf32>
    tpu.vector_store %arg14[%c56, %c0_82], %108 {strides = array<i32>} : memref<100x648xf32, #tpu.memory_space<vmem>>, vector<4x648xf32>,
    %c0_83 = arith.constant 0 : index
    %c54 = arith.constant 54 : index
    %110 = vector.load %arg13[%c0_83, %c54] : memref<4x724xf32, #tpu.memory_space<vmem>>, vector<4x648xf32>
    %c60 = arith.constant 60 : index
    %c0_84 = arith.constant 0 : index
    %111 = vector.load %arg14[%c60, %c0_84] : memref<100x648xf32, #tpu.memory_space<vmem>>, vector<4x648xf32>
    tpu.vector_store %arg14[%c60, %c0_84], %110 {strides = array<i32>} : memref<100x648xf32, #tpu.memory_space<vmem>>, vector<4x648xf32>,
    %c0_85 = arith.constant 0 : index
    %c55 = arith.constant 55 : index
    %112 = vector.load %arg13[%c0_85, %c55] : memref<4x724xf32, #tpu.memory_space<vmem>>, vector<4x648xf32>
    %c64 = arith.constant 64 : index
    %c0_86 = arith.constant 0 : index
    %113 = vector.load %arg14[%c64, %c0_86] : memref<100x648xf32, #tpu.memory_space<vmem>>, vector<4x648xf32>
    tpu.vector_store %arg14[%c64, %c0_86], %112 {strides = array<i32>} : memref<100x648xf32, #tpu.memory_space<vmem>>, vector<4x648xf32>,
    %c0_87 = arith.constant 0 : index
    %c56_88 = arith.constant 56 : index
    %114 = vector.load %arg13[%c0_87, %c56_88] : memref<4x724xf32, #tpu.memory_space<vmem>>, vector<4x648xf32>
    %c68 = arith.constant 68 : index
    %c0_89 = arith.constant 0 : index
    %115 = vector.load %arg14[%c68, %c0_89] : memref<100x648xf32, #tpu.memory_space<vmem>>, vector<4x648xf32>
    tpu.vector_store %arg14[%c68, %c0_89], %114 {strides = array<i32>} : memref<100x648xf32, #tpu.memory_space<vmem>>, vector<4x648xf32>,
    %c0_90 = arith.constant 0 : index
    %c57 = arith.constant 57 : index
    %116 = vector.load %arg13[%c0_90, %c57] : memref<4x724xf32, #tpu.memory_space<vmem>>, vector<4x648xf32>
    %c72 = arith.constant 72 : index
    %c0_91 = arith.constant 0 : index
    %117 = vector.load %arg14[%c72, %c0_91] : memref<100x648xf32, #tpu.memory_space<vmem>>, vector<4x648xf32>
    tpu.vector_store %arg14[%c72, %c0_91], %116 {strides = array<i32>} : memref<100x648xf32, #tpu.memory_space<vmem>>, vector<4x648xf32>,
    %c0_92 = arith.constant 0 : index
    %c58 = arith.constant 58 : index
    %118 = vector.load %arg13[%c0_92, %c58] : memref<4x724xf32, #tpu.memory_space<vmem>>, vector<4x648xf32>
    %c76 = arith.constant 76 : index
    %c0_93 = arith.constant 0 : index
    %119 = vector.load %arg14[%c76, %c0_93] : memref<100x648xf32, #tpu.memory_space<vmem>>, vector<4x648xf32>
    tpu.vector_store %arg14[%c76, %c0_93], %118 {strides = array<i32>} : memref<100x648xf32, #tpu.memory_space<vmem>>, vector<4x648xf32>,
    %c0_94 = arith.constant 0 : index
    %c72_95 = arith.constant 72 : index
    %120 = vector.load %arg13[%c0_94, %c72_95] : memref<4x724xf32, #tpu.memory_space<vmem>>, vector<4x648xf32>
    %c80 = arith.constant 80 : index
    %c0_96 = arith.constant 0 : index
    %121 = vector.load %arg14[%c80, %c0_96] : memref<100x648xf32, #tpu.memory_space<vmem>>, vector<4x648xf32>
    tpu.vector_store %arg14[%c80, %c0_96], %120 {strides = array<i32>} : memref<100x648xf32, #tpu.memory_space<vmem>>, vector<4x648xf32>,
    %c0_97 = arith.constant 0 : index
    %c73 = arith.constant 73 : index
    %122 = vector.load %arg13[%c0_97, %c73] : memref<4x724xf32, #tpu.memory_space<vmem>>, vector<4x648xf32>
    %c84 = arith.constant 84 : index
    %c0_98 = arith.constant 0 : index
    %123 = vector.load %arg14[%c84, %c0_98] : memref<100x648xf32, #tpu.memory_space<vmem>>, vector<4x648xf32>
    tpu.vector_store %arg14[%c84, %c0_98], %122 {strides = array<i32>} : memref<100x648xf32, #tpu.memory_space<vmem>>, vector<4x648xf32>,
    %c0_99 = arith.constant 0 : index
    %c74 = arith.constant 74 : index
    %124 = vector.load %arg13[%c0_99, %c74] : memref<4x724xf32, #tpu.memory_space<vmem>>, vector<4x648xf32>
    %c88 = arith.constant 88 : index
    %c0_100 = arith.constant 0 : index
    %125 = vector.load %arg14[%c88, %c0_100] : memref<100x648xf32, #tpu.memory_space<vmem>>, vector<4x648xf32>
    tpu.vector_store %arg14[%c88, %c0_100], %124 {strides = array<i32>} : memref<100x648xf32, #tpu.memory_space<vmem>>, vector<4x648xf32>,
    %c0_101 = arith.constant 0 : index
    %c75 = arith.constant 75 : index
    %126 = vector.load %arg13[%c0_101, %c75] : memref<4x724xf32, #tpu.memory_space<vmem>>, vector<4x648xf32>
    %c92 = arith.constant 92 : index
    %c0_102 = arith.constant 0 : index
    %127 = vector.load %arg14[%c92, %c0_102] : memref<100x648xf32, #tpu.memory_space<vmem>>, vector<4x648xf32>
    tpu.vector_store %arg14[%c92, %c0_102], %126 {strides = array<i32>} : memref<100x648xf32, #tpu.memory_space<vmem>>, vector<4x648xf32>,
    %c0_103 = arith.constant 0 : index
    %c76_104 = arith.constant 76 : index
    %128 = vector.load %arg13[%c0_103, %c76_104] : memref<4x724xf32, #tpu.memory_space<vmem>>, vector<4x648xf32>
    %c96 = arith.constant 96 : index
    %c0_105 = arith.constant 0 : index
    %129 = vector.load %arg14[%c96, %c0_105] : memref<100x648xf32, #tpu.memory_space<vmem>>, vector<4x648xf32>
    tpu.vector_store %arg14[%c96, %c0_105], %128 {strides = array<i32>} : memref<100x648xf32, #tpu.memory_space<vmem>>, vector<4x648xf32>,
    %c0_106 = arith.constant 0 : index
    %c0_107 = arith.constant 0 : index
    %130 = vector.load %arg7[%c0_106, %c0_107] : memref<2x100xf32, #tpu.memory_space<vmem>>, vector<2x100xf32>
    %c0_108 = arith.constant 0 : index
    %c0_109 = arith.constant 0 : index
    %131 = vector.load %arg14[%c0_108, %c0_109] : memref<100x648xf32, #tpu.memory_space<vmem>>, vector<100x648xf32>
    %cst_110 = arith.constant dense<0.000000e+00> : vector<2x648xf32>
    %132 = tpu.matmul %130, %131, %cst_110 {dimension_numbers = #tpu.dot_dimension_numbers<[1], [0], [0], [1], [0, 0, 1, 1], [], []>} : vector<2x100xf32>, vector<100x648xf32>, vector<2x648xf32> -> vector<2x648xf32>
    %c0_111 = arith.constant 0 : index
    %c0_112 = arith.constant 0 : index
    %133 = vector.load %arg8[%c0_111, %c0_112] : memref<2x1xf32, #tpu.memory_space<vmem>>, vector<2x1xf32>
    %134 = vector.broadcast %133 : vector<2x1xf32> to vector<2x648xf32>
    %135 = arith.addf %132, %134 : vector<2x648xf32>
    %cst_113 = arith.constant 0.000000e+00 : f32
    %136 = vector.broadcast %cst_113 : f32 to vector<2x648xf32>
    %137 = arith.maximumf %135, %136 : vector<2x648xf32>
    %138 = vector.extract_strided_slice %137 {offsets = [0, 0], sizes = [2, 324], strides = [1, 1]} : vector<2x648xf32> to vector<2x324xf32>
    %c0_114 = arith.constant 0 : index
    %c0_115 = arith.constant 0 : index
    %139 = vector.load %arg15[%c0_114, %c0_115] : memref<4x324xf32, #tpu.memory_space<vmem>>, vector<2x324xf32>
    tpu.vector_store %arg15[%c0_114, %c0_115], %138 {strides = array<i32>} : memref<4x324xf32, #tpu.memory_space<vmem>>, vector<2x324xf32>,
    %140 = vector.extract_strided_slice %137 {offsets = [0, 324], sizes = [2, 324], strides = [1, 1]} : vector<2x648xf32> to vector<2x324xf32>
    %c2_116 = arith.constant 2 : index
    %c0_117 = arith.constant 0 : index
    %141 = vector.load %arg15[%c2_116, %c0_117] : memref<4x324xf32, #tpu.memory_space<vmem>>, vector<2x324xf32>
    tpu.vector_store %arg15[%c2_116, %c0_117], %140 {strides = array<i32>} : memref<4x324xf32, #tpu.memory_space<vmem>>, vector<2x324xf32>,
    %c0_118 = arith.constant 0 : index
    %c0_119 = arith.constant 0 : index
    %142 = vector.load %arg15[%c0_118, %c0_119] : memref<4x324xf32, #tpu.memory_space<vmem>>, vector<4x324xf32>
    %c0_120 = arith.constant 0 : index
    %c0_121 = arith.constant 0 : index
    %143 = vector.load %arg6[%c0_120, %c0_121] : memref<324x1024xf32, #tpu.memory_space<vmem>>, vector<324x1024xf32>
    %cst_122 = arith.constant dense<0.000000e+00> : vector<4x1024xf32>
    %144 = tpu.matmul %142, %143, %cst_122 {dimension_numbers = #tpu.dot_dimension_numbers<[1], [0], [0], [1], [0, 0, 1, 1], [], []>} : vector<4x324xf32>, vector<324x1024xf32>, vector<4x1024xf32> -> vector<4x1024xf32>
    %cst_123 = arith.constant 0.000000e+00 : f32
    %145 = vector.broadcast %cst_123 : f32 to vector<2x66xf32>
    %c0_124 = arith.constant 0 : index
    %c0_125 = arith.constant 0 : index
    %146 = vector.load %arg16[%c0_124, %c0_125] : memref<2x2180xf32, #tpu.memory_space<vmem>>, vector<2x66xf32>
    tpu.vector_store %arg16[%c0_124, %c0_125], %145 {strides = array<i32>} : memref<2x2180xf32, #tpu.memory_space<vmem>>, vector<2x66xf32>,
    %cst_126 = arith.constant 0.000000e+00 : f32
    %147 = vector.broadcast %cst_126 : f32 to vector<2x66xf32>
    %c0_127 = arith.constant 0 : index
    %c2114 = arith.constant 2114 : index
    %148 = vector.load %arg16[%c0_127, %c2114] : memref<2x2180xf32, #tpu.memory_space<vmem>>, vector<2x66xf32>
    tpu.vector_store %arg16[%c0_127, %c2114], %147 {strides = array<i32>} : memref<2x2180xf32, #tpu.memory_space<vmem>>, vector<2x66xf32>,
    %149 = vector.extract_strided_slice %144 {offsets = [0, 0], sizes = [2, 1024], strides = [1, 1]} : vector<4x1024xf32> to vector<2x1024xf32>
    %c0_128 = arith.constant 0 : index
    %c66 = arith.constant 66 : index
    %150 = vector.load %arg16[%c0_128, %c66] : memref<2x2180xf32, #tpu.memory_space<vmem>>, vector<2x1024xf32>
    tpu.vector_store %arg16[%c0_128, %c66], %149 {strides = array<i32>} : memref<2x2180xf32, #tpu.memory_space<vmem>>, vector<2x1024xf32>,
    %151 = vector.extract_strided_slice %144 {offsets = [2, 0], sizes = [2, 1024], strides = [1, 1]} : vector<4x1024xf32> to vector<2x1024xf32>
    %c0_129 = arith.constant 0 : index
    %c1090 = arith.constant 1090 : index
    %152 = vector.load %arg16[%c0_129, %c1090] : memref<2x2180xf32, #tpu.memory_space<vmem>>, vector<2x1024xf32>
    tpu.vector_store %arg16[%c0_129, %c1090], %151 {strides = array<i32>} : memref<2x2180xf32, #tpu.memory_space<vmem>>, vector<2x1024xf32>,
    %c0_130 = arith.constant 0 : index
    %c0_131 = arith.constant 0 : index
    %153 = vector.load %arg16[%c0_130, %c0_131] : memref<2x2180xf32, #tpu.memory_space<vmem>>, vector<2x2048xf32>
    %c0_132 = arith.constant 0 : index
    %c0_133 = arith.constant 0 : index
    %154 = vector.load %arg17[%c0_132, %c0_133] : memref<50x2048xf32, #tpu.memory_space<vmem>>, vector<2x2048xf32>
    tpu.vector_store %arg17[%c0_132, %c0_133], %153 {strides = array<i32>} : memref<50x2048xf32, #tpu.memory_space<vmem>>, vector<2x2048xf32>,
    %c0_134 = arith.constant 0 : index
    %c1_135 = arith.constant 1 : index
    %155 = vector.load %arg16[%c0_134, %c1_135] : memref<2x2180xf32, #tpu.memory_space<vmem>>, vector<2x2048xf32>
    %c2_136 = arith.constant 2 : index
    %c0_137 = arith.constant 0 : index
    %156 = vector.load %arg17[%c2_136, %c0_137] : memref<50x2048xf32, #tpu.memory_space<vmem>>, vector<2x2048xf32>
    tpu.vector_store %arg17[%c2_136, %c0_137], %155 {strides = array<i32>} : memref<50x2048xf32, #tpu.memory_space<vmem>>, vector<2x2048xf32>,
    %c0_138 = arith.constant 0 : index
    %c2_139 = arith.constant 2 : index
    %157 = vector.load %arg16[%c0_138, %c2_139] : memref<2x2180xf32, #tpu.memory_space<vmem>>, vector<2x2048xf32>
    %c4_140 = arith.constant 4 : index
    %c0_141 = arith.constant 0 : index
    %158 = vector.load %arg17[%c4_140, %c0_141] : memref<50x2048xf32, #tpu.memory_space<vmem>>, vector<2x2048xf32>
    tpu.vector_store %arg17[%c4_140, %c0_141], %157 {strides = array<i32>} : memref<50x2048xf32, #tpu.memory_space<vmem>>, vector<2x2048xf32>,
    %c0_142 = arith.constant 0 : index
    %c3_143 = arith.constant 3 : index
    %159 = vector.load %arg16[%c0_142, %c3_143] : memref<2x2180xf32, #tpu.memory_space<vmem>>, vector<2x2048xf32>
    %c6_144 = arith.constant 6 : index
    %c0_145 = arith.constant 0 : index
    %160 = vector.load %arg17[%c6_144, %c0_145] : memref<50x2048xf32, #tpu.memory_space<vmem>>, vector<2x2048xf32>
    tpu.vector_store %arg17[%c6_144, %c0_145], %159 {strides = array<i32>} : memref<50x2048xf32, #tpu.memory_space<vmem>>, vector<2x2048xf32>,
    %c0_146 = arith.constant 0 : index
    %c4_147 = arith.constant 4 : index
    %161 = vector.load %arg16[%c0_146, %c4_147] : memref<2x2180xf32, #tpu.memory_space<vmem>>, vector<2x2048xf32>
    %c8_148 = arith.constant 8 : index
    %c0_149 = arith.constant 0 : index
    %162 = vector.load %arg17[%c8_148, %c0_149] : memref<50x2048xf32, #tpu.memory_space<vmem>>, vector<2x2048xf32>
    tpu.vector_store %arg17[%c8_148, %c0_149], %161 {strides = array<i32>} : memref<50x2048xf32, #tpu.memory_space<vmem>>, vector<2x2048xf32>,
    %c0_150 = arith.constant 0 : index
    %c32_151 = arith.constant 32 : index
    %163 = vector.load %arg16[%c0_150, %c32_151] : memref<2x2180xf32, #tpu.memory_space<vmem>>, vector<2x2048xf32>
    %c10 = arith.constant 10 : index
    %c0_152 = arith.constant 0 : index
    %164 = vector.load %arg17[%c10, %c0_152] : memref<50x2048xf32, #tpu.memory_space<vmem>>, vector<2x2048xf32>
    tpu.vector_store %arg17[%c10, %c0_152], %163 {strides = array<i32>} : memref<50x2048xf32, #tpu.memory_space<vmem>>, vector<2x2048xf32>,
    %c0_153 = arith.constant 0 : index
    %c33 = arith.constant 33 : index
    %165 = vector.load %arg16[%c0_153, %c33] : memref<2x2180xf32, #tpu.memory_space<vmem>>, vector<2x2048xf32>
    %c12_154 = arith.constant 12 : index
    %c0_155 = arith.constant 0 : index
    %166 = vector.load %arg17[%c12_154, %c0_155] : memref<50x2048xf32, #tpu.memory_space<vmem>>, vector<2x2048xf32>
    tpu.vector_store %arg17[%c12_154, %c0_155], %165 {strides = array<i32>} : memref<50x2048xf32, #tpu.memory_space<vmem>>, vector<2x2048xf32>,
    %c0_156 = arith.constant 0 : index
    %c34 = arith.constant 34 : index
    %167 = vector.load %arg16[%c0_156, %c34] : memref<2x2180xf32, #tpu.memory_space<vmem>>, vector<2x2048xf32>
    %c14 = arith.constant 14 : index
    %c0_157 = arith.constant 0 : index
    %168 = vector.load %arg17[%c14, %c0_157] : memref<50x2048xf32, #tpu.memory_space<vmem>>, vector<2x2048xf32>
    tpu.vector_store %arg17[%c14, %c0_157], %167 {strides = array<i32>} : memref<50x2048xf32, #tpu.memory_space<vmem>>, vector<2x2048xf32>,
    %c0_158 = arith.constant 0 : index
    %c35 = arith.constant 35 : index
    %169 = vector.load %arg16[%c0_158, %c35] : memref<2x2180xf32, #tpu.memory_space<vmem>>, vector<2x2048xf32>
    %c16_159 = arith.constant 16 : index
    %c0_160 = arith.constant 0 : index
    %170 = vector.load %arg17[%c16_159, %c0_160] : memref<50x2048xf32, #tpu.memory_space<vmem>>, vector<2x2048xf32>
    tpu.vector_store %arg17[%c16_159, %c0_160], %169 {strides = array<i32>} : memref<50x2048xf32, #tpu.memory_space<vmem>>, vector<2x2048xf32>,
    %c0_161 = arith.constant 0 : index
    %c36_162 = arith.constant 36 : index
    %171 = vector.load %arg16[%c0_161, %c36_162] : memref<2x2180xf32, #tpu.memory_space<vmem>>, vector<2x2048xf32>
    %c18_163 = arith.constant 18 : index
    %c0_164 = arith.constant 0 : index
    %172 = vector.load %arg17[%c18_163, %c0_164] : memref<50x2048xf32, #tpu.memory_space<vmem>>, vector<2x2048xf32>
    tpu.vector_store %arg17[%c18_163, %c0_164], %171 {strides = array<i32>} : memref<50x2048xf32, #tpu.memory_space<vmem>>, vector<2x2048xf32>,
    %c0_165 = arith.constant 0 : index
    %c64_166 = arith.constant 64 : index
    %173 = vector.load %arg16[%c0_165, %c64_166] : memref<2x2180xf32, #tpu.memory_space<vmem>>, vector<2x2048xf32>
    %c20_167 = arith.constant 20 : index
    %c0_168 = arith.constant 0 : index
    %174 = vector.load %arg17[%c20_167, %c0_168] : memref<50x2048xf32, #tpu.memory_space<vmem>>, vector<2x2048xf32>
    tpu.vector_store %arg17[%c20_167, %c0_168], %173 {strides = array<i32>} : memref<50x2048xf32, #tpu.memory_space<vmem>>, vector<2x2048xf32>,
    %c0_169 = arith.constant 0 : index
    %c65 = arith.constant 65 : index
    %175 = vector.load %arg16[%c0_169, %c65] : memref<2x2180xf32, #tpu.memory_space<vmem>>, vector<2x2048xf32>
    %c22_170 = arith.constant 22 : index
    %c0_171 = arith.constant 0 : index
    %176 = vector.load %arg17[%c22_170, %c0_171] : memref<50x2048xf32, #tpu.memory_space<vmem>>, vector<2x2048xf32>
    tpu.vector_store %arg17[%c22_170, %c0_171], %175 {strides = array<i32>} : memref<50x2048xf32, #tpu.memory_space<vmem>>, vector<2x2048xf32>,
    %c0_172 = arith.constant 0 : index
    %c66_173 = arith.constant 66 : index
    %177 = vector.load %arg16[%c0_172, %c66_173] : memref<2x2180xf32, #tpu.memory_space<vmem>>, vector<2x2048xf32>
    %c24_174 = arith.constant 24 : index
    %c0_175 = arith.constant 0 : index
    %178 = vector.load %arg17[%c24_174, %c0_175] : memref<50x2048xf32, #tpu.memory_space<vmem>>, vector<2x2048xf32>
    tpu.vector_store %arg17[%c24_174, %c0_175], %177 {strides = array<i32>} : memref<50x2048xf32, #tpu.memory_space<vmem>>, vector<2x2048xf32>,
    %c0_176 = arith.constant 0 : index
    %c67 = arith.constant 67 : index
    %179 = vector.load %arg16[%c0_176, %c67] : memref<2x2180xf32, #tpu.memory_space<vmem>>, vector<2x2048xf32>
    %c26 = arith.constant 26 : index
    %c0_177 = arith.constant 0 : index
    %180 = vector.load %arg17[%c26, %c0_177] : memref<50x2048xf32, #tpu.memory_space<vmem>>, vector<2x2048xf32>
    tpu.vector_store %arg17[%c26, %c0_177], %179 {strides = array<i32>} : memref<50x2048xf32, #tpu.memory_space<vmem>>, vector<2x2048xf32>,
    %c0_178 = arith.constant 0 : index
    %c68_179 = arith.constant 68 : index
    %181 = vector.load %arg16[%c0_178, %c68_179] : memref<2x2180xf32, #tpu.memory_space<vmem>>, vector<2x2048xf32>
    %c28_180 = arith.constant 28 : index
    %c0_181 = arith.constant 0 : index
    %182 = vector.load %arg17[%c28_180, %c0_181] : memref<50x2048xf32, #tpu.memory_space<vmem>>, vector<2x2048xf32>
    tpu.vector_store %arg17[%c28_180, %c0_181], %181 {strides = array<i32>} : memref<50x2048xf32, #tpu.memory_space<vmem>>, vector<2x2048xf32>,
    %c0_182 = arith.constant 0 : index
    %c96_183 = arith.constant 96 : index
    %183 = vector.load %arg16[%c0_182, %c96_183] : memref<2x2180xf32, #tpu.memory_space<vmem>>, vector<2x2048xf32>
    %c30 = arith.constant 30 : index
    %c0_184 = arith.constant 0 : index
    %184 = vector.load %arg17[%c30, %c0_184] : memref<50x2048xf32, #tpu.memory_space<vmem>>, vector<2x2048xf32>
    tpu.vector_store %arg17[%c30, %c0_184], %183 {strides = array<i32>} : memref<50x2048xf32, #tpu.memory_space<vmem>>, vector<2x2048xf32>,
    %c0_185 = arith.constant 0 : index
    %c97 = arith.constant 97 : index
    %185 = vector.load %arg16[%c0_185, %c97] : memref<2x2180xf32, #tpu.memory_space<vmem>>, vector<2x2048xf32>
    %c32_186 = arith.constant 32 : index
    %c0_187 = arith.constant 0 : index
    %186 = vector.load %arg17[%c32_186, %c0_187] : memref<50x2048xf32, #tpu.memory_space<vmem>>, vector<2x2048xf32>
    tpu.vector_store %arg17[%c32_186, %c0_187], %185 {strides = array<i32>} : memref<50x2048xf32, #tpu.memory_space<vmem>>, vector<2x2048xf32>,
    %c0_188 = arith.constant 0 : index
    %c98 = arith.constant 98 : index
    %187 = vector.load %arg16[%c0_188, %c98] : memref<2x2180xf32, #tpu.memory_space<vmem>>, vector<2x2048xf32>
    %c34_189 = arith.constant 34 : index
    %c0_190 = arith.constant 0 : index
    %188 = vector.load %arg17[%c34_189, %c0_190] : memref<50x2048xf32, #tpu.memory_space<vmem>>, vector<2x2048xf32>
    tpu.vector_store %arg17[%c34_189, %c0_190], %187 {strides = array<i32>} : memref<50x2048xf32, #tpu.memory_space<vmem>>, vector<2x2048xf32>,
    %c0_191 = arith.constant 0 : index
    %c99 = arith.constant 99 : index
    %189 = vector.load %arg16[%c0_191, %c99] : memref<2x2180xf32, #tpu.memory_space<vmem>>, vector<2x2048xf32>
    %c36_192 = arith.constant 36 : index
    %c0_193 = arith.constant 0 : index
    %190 = vector.load %arg17[%c36_192, %c0_193] : memref<50x2048xf32, #tpu.memory_space<vmem>>, vector<2x2048xf32>
    tpu.vector_store %arg17[%c36_192, %c0_193], %189 {strides = array<i32>} : memref<50x2048xf32, #tpu.memory_space<vmem>>, vector<2x2048xf32>,
    %c0_194 = arith.constant 0 : index
    %c100 = arith.constant 100 : index
    %191 = vector.load %arg16[%c0_194, %c100] : memref<2x2180xf32, #tpu.memory_space<vmem>>, vector<2x2048xf32>
    %c38_195 = arith.constant 38 : index
    %c0_196 = arith.constant 0 : index
    %192 = vector.load %arg17[%c38_195, %c0_196] : memref<50x2048xf32, #tpu.memory_space<vmem>>, vector<2x2048xf32>
    tpu.vector_store %arg17[%c38_195, %c0_196], %191 {strides = array<i32>} : memref<50x2048xf32, #tpu.memory_space<vmem>>, vector<2x2048xf32>,
    %c0_197 = arith.constant 0 : index
    %c128 = arith.constant 128 : index
    %193 = vector.load %arg16[%c0_197, %c128] : memref<2x2180xf32, #tpu.memory_space<vmem>>, vector<2x2048xf32>
    %c40_198 = arith.constant 40 : index
    %c0_199 = arith.constant 0 : index
    %194 = vector.load %arg17[%c40_198, %c0_199] : memref<50x2048xf32, #tpu.memory_space<vmem>>, vector<2x2048xf32>
    tpu.vector_store %arg17[%c40_198, %c0_199], %193 {strides = array<i32>} : memref<50x2048xf32, #tpu.memory_space<vmem>>, vector<2x2048xf32>,
    %c0_200 = arith.constant 0 : index
    %c129 = arith.constant 129 : index
    %195 = vector.load %arg16[%c0_200, %c129] : memref<2x2180xf32, #tpu.memory_space<vmem>>, vector<2x2048xf32>
    %c42 = arith.constant 42 : index
    %c0_201 = arith.constant 0 : index
    %196 = vector.load %arg17[%c42, %c0_201] : memref<50x2048xf32, #tpu.memory_space<vmem>>, vector<2x2048xf32>
    tpu.vector_store %arg17[%c42, %c0_201], %195 {strides = array<i32>} : memref<50x2048xf32, #tpu.memory_space<vmem>>, vector<2x2048xf32>,
    %c0_202 = arith.constant 0 : index
    %c130 = arith.constant 130 : index
    %197 = vector.load %arg16[%c0_202, %c130] : memref<2x2180xf32, #tpu.memory_space<vmem>>, vector<2x2048xf32>
    %c44_203 = arith.constant 44 : index
    %c0_204 = arith.constant 0 : index
    %198 = vector.load %arg17[%c44_203, %c0_204] : memref<50x2048xf32, #tpu.memory_space<vmem>>, vector<2x2048xf32>
    tpu.vector_store %arg17[%c44_203, %c0_204], %197 {strides = array<i32>} : memref<50x2048xf32, #tpu.memory_space<vmem>>, vector<2x2048xf32>,
    %c0_205 = arith.constant 0 : index
    %c131 = arith.constant 131 : index
    %199 = vector.load %arg16[%c0_205, %c131] : memref<2x2180xf32, #tpu.memory_space<vmem>>, vector<2x2048xf32>
    %c46 = arith.constant 46 : index
    %c0_206 = arith.constant 0 : index
    %200 = vector.load %arg17[%c46, %c0_206] : memref<50x2048xf32, #tpu.memory_space<vmem>>, vector<2x2048xf32>
    tpu.vector_store %arg17[%c46, %c0_206], %199 {strides = array<i32>} : memref<50x2048xf32, #tpu.memory_space<vmem>>, vector<2x2048xf32>,
    %c0_207 = arith.constant 0 : index
    %c132 = arith.constant 132 : index
    %201 = vector.load %arg16[%c0_207, %c132] : memref<2x2180xf32, #tpu.memory_space<vmem>>, vector<2x2048xf32>
    %c48_208 = arith.constant 48 : index
    %c0_209 = arith.constant 0 : index
    %202 = vector.load %arg17[%c48_208, %c0_209] : memref<50x2048xf32, #tpu.memory_space<vmem>>, vector<2x2048xf32>
    tpu.vector_store %arg17[%c48_208, %c0_209], %201 {strides = array<i32>} : memref<50x2048xf32, #tpu.memory_space<vmem>>, vector<2x2048xf32>,
    %c0_210 = arith.constant 0 : index
    %c0_211 = arith.constant 0 : index
    %203 = vector.load %arg9[%c0_210, %c0_211] : memref<1x50xf32, #tpu.memory_space<vmem>>, vector<1x50xf32>
    %c0_212 = arith.constant 0 : index
    %c0_213 = arith.constant 0 : index
    %204 = vector.load %arg17[%c0_212, %c0_213] : memref<50x2048xf32, #tpu.memory_space<vmem>>, vector<50x2048xf32>
    %cst_214 = arith.constant dense<0.000000e+00> : vector<1x2048xf32>
    %205 = tpu.matmul %203, %204, %cst_214 {dimension_numbers = #tpu.dot_dimension_numbers<[1], [0], [0], [1], [0, 0, 1, 1], [], []>} : vector<1x50xf32>, vector<50x2048xf32>, vector<1x2048xf32> -> vector<1x2048xf32>
    %c0_215 = arith.constant 0 : index
    %c0_216 = arith.constant 0 : index
    %206 = vector.load %arg10[%c0_215, %c0_216] : memref<1x1xf32, #tpu.memory_space<vmem>>, vector<1x1xf32>
    %207 = vector.broadcast %206 : vector<1x1xf32> to vector<1x2048xf32>
    %208 = arith.addf %205, %207 : vector<1x2048xf32>
    %209 = arith.negf %208 : vector<1x2048xf32>
    %210 = math.exp %209 : vector<1x2048xf32>
    %cst_217 = arith.constant 1.000000e+00 : f32
    %211 = vector.broadcast %cst_217 : f32 to vector<1x2048xf32>
    %212 = arith.addf %211, %210 : vector<1x2048xf32>
    %213 = arith.divf %211, %212 : vector<1x2048xf32>
    %c0_218 = arith.constant 0 : index
    %c0_219 = arith.constant 0 : index
    %214 = vector.load %arg11[%c0_218, %c0_219] : memref<1x2048xf32, #tpu.memory_space<vmem>>, vector<1x2048xf32>
    tpu.vector_store %arg11[%c0_218, %c0_219], %213 {strides = array<i32>} : memref<1x2048xf32, #tpu.memory_space<vmem>>, vector<1x2048xf32>,
    return
  }
}

</mosaic_0001>

<llo_original>
// kernel: tpu_custom_call.1
$region0: #{tpu_custom_call.1}
  #allocation0 [shape = 'u32[]', space=smem, size = 0x4, offset = 0x4, fixed_abs, tag = 'smem constant byte address 0x4 - core index']
  #allocation1 [shape = 'u32[72,128]{1,0:T(1,128)}', space=vmem, size = 0x9000, scoped, tag = 'internal scratch']
  #allocation2 [shape = 'f32[8,49]{1,0:T(8,128)}', space=vmem, size = 0x1000, scoped, tag = 'scratch operand']
  #allocation3 [shape = 'f32[4,724]{1,0:T(4,128)}', space=vmem, size = 0x3000, scoped, tag = 'scratch operand']
  #allocation4 [shape = 'f32[100,648]{1,0:T(8,128)}', space=vmem, size = 0x4e000, scoped, tag = 'scratch operand']
  #allocation5 [shape = 'f32[4,324]{1,0:T(4,128)}', space=vmem, size = 0x1800, scoped, tag = 'scratch operand']
  #allocation6 [shape = 'f32[2,2180]{1,0:T(2,128)}', space=vmem, size = 0x4800, scoped, tag = 'scratch operand']
  #allocation7 [shape = 'f32[50,2048]{1,0:T(8,128)}', space=vmem, size = 0x70000, scoped, tag = 'scratch operand']
  #allocation8 [shape = 'f32[1,1]{1,0:T(1,128)S(1)}', space=vmem, size = 0x200, scoped, tag = 'scoped memory for tpu_custom_call.1']
  %s0 = inlined_call_operand.hbm [shape: f32[2,12], index: 0, kind: input, shape index: {}]
  %s1 = inlined_call_operand.hbm [shape: f32[12,32], index: 1, kind: input, shape index: {}]
  %s2 = inlined_call_operand.hbm [shape: f32[1,32], index: 2, kind: input, shape index: {}]
  %s3 = inlined_call_operand.hbm [shape: f32[32,196], index: 3, kind: input, shape index: {}]
  %s4 = inlined_call_operand.hbm [shape: f32[1,196], index: 4, kind: input, shape index: {}]
  %s5 = inlined_call_operand.hbm [shape: f32[49,324], index: 5, kind: input, shape index: {}]
  %s6 = inlined_call_operand.hbm [shape: f32[324,1024], index: 6, kind: input, shape index: {}]
  %s7 = inlined_call_operand.hbm [shape: f32[2,100], index: 7, kind: input, shape index: {}]
  %s8 = inlined_call_operand.vmem [shape: f32[2,1], index: 8, kind: input, shape index: {}]
  %s9 = inlined_call_operand.hbm [shape: f32[1,50], index: 9, kind: input, shape index: {}]
  %s10 = inlined_call_operand.<no memory space> [shape: f32[1,1], index: 10, kind: input, shape index: {}]
  %s11 = inlined_call_operand.hbm [shape: f32[1,2048], index: 11, kind: output, shape index: {}]
  %s12 = sld [smem:[#allocation0]]
  $region90: #{tpu_custom_call.1} parent=0
    _
  %s14 = ssub.s32 1, %s12
  %s15 = scalar_select 0, %s14, %s12
  %v16 = vstv %s10
  %17 = vst [vmem:[#allocation8] sm:$0x1] %v16
  $region1: #{tpu_custom_call.1} parent=0
    #allocation9 [shape = 'u8[1024]{0}', space=vmem, size = 0x400, scoped, tag = 'input window, operand 0, single buffered']
    #allocation10 [shape = 's32[1]{0}', space=sflag, size = 0x4, scoped, tag = 'scoped memory for tpu_custom_call.1']
    #allocation11 [shape = 's32[1]{0}', space=sflag, size = 0x4, scoped, tag = 'scoped memory for tpu_custom_call.1']
    #allocation12 [shape = 'u8[8192]{0}', space=vmem, size = 0x2000, scoped, tag = 'input window, operand 1, single buffered']
    #allocation13 [shape = 's32[1]{0}', space=sflag, size = 0x4, scoped, tag = 'scoped memory for tpu_custom_call.1']
    #allocation14 [shape = 'u8[512]{0}', space=vmem, size = 0x400, scoped, tag = 'input window, operand 2, single buffered']
    #allocation15 [shape = 'u8[32768]{0}', space=vmem, size = 0x8000, scoped, tag = 'input window, operand 3, single buffered']
    #allocation16 [shape = 's32[1]{0}', space=sflag, size = 0x4, scoped, tag = 'scoped memory for tpu_custom_call.1']
    #allocation17 [shape = 'u8[1024]{0}', space=vmem, size = 0x400, scoped, tag = 'input window, operand 4, single buffered']
    #allocation18 [shape = 'u8[86016]{0}', space=vmem, size = 0x15000, scoped, tag = 'input window, operand 5, single buffered']
    #allocation19 [shape = 's32[1]{0}', space=sflag, size = 0x4, scoped, tag = 'scoped memory for tpu_custom_call.1']
    #allocation20 [shape = 'u8[1343488]{0}', space=vmem, size = 0x148000, scoped, tag = 'input window, operand 6, single buffered']
    #allocation21 [shape = 'u8[1024]{0}', space=vmem, size = 0x400, scoped, tag = 'input window, operand 7, single buffered']
    #allocation22 [shape = 's32[1]{0}', space=sflag, size = 0x4, scoped, tag = 'scoped memory for tpu_custom_call.1']
    #allocation23 [shape = 'u8[512]{0}', space=vmem, size = 0x400, scoped, tag = 'input window, operand 9, single buffered']
    #allocation24 [shape = 'u8[8192]{0}', space=vmem, size = 0x2000, scoped, tag = 'output window, operand 0, single buffered']
    %18 = vsyncpa [#allocation10], 0
    %19 = vsyncpa [#allocation13], 0
    %20 = vsyncpa [#allocation16], 0
    %21 = vsyncpa [#allocation19], 0
    %22 = vsyncpa [#allocation22], 0
    %23 = vsyncpa [#allocation11], 0
    // Predicated region
    $region2: #{tpu_custom_call.1} parent=1 // pred_check
      _
    $region3: #{tpu_custom_call.1} parent=1 // pred_check_branch
      %25 = sbr.rel (0) target = $region5
    $region4: #{tpu_custom_call.1} parent=1 // pred_region
      %27 = vsyncadd [#allocation10], 0
      %s29 = sshll.u32 %s0, 4
      %s30 = int_to_ptr.hbm [resolvable:$true] %s29
      %s31 = sshll.u32 [#allocation9], 4
      %s32 = int_to_ptr.vmem [resolvable:$true] %s31
      %34 = dma.hbm_to_vmem [thread:$0]  %s30, 32, %s32, [#allocation10]
    $region5: #{tpu_custom_call.1} parent=1 // pred_fallthru
      _
    // Predicated region
    $region6: #{tpu_custom_call.1} parent=1 // pred_check
      _
    $region7: #{tpu_custom_call.1} parent=1 // pred_check_branch
      %36 = sbr.rel (0) target = $region9
    $region8: #{tpu_custom_call.1} parent=1 // pred_region
      %38 = vsyncadd [#allocation13], 0
      %s39 = sshll.u32 %s1, 4
      %s40 = int_to_ptr.hbm [resolvable:$true] %s39
      %s41 = sshll.u32 [#allocation12], 4
      %s42 = int_to_ptr.vmem [resolvable:$true] %s41
      %47 = dma.hbm_to_vmem [thread:$0]  %s40, 256, %s42, [#allocation13], 128, 128, 8
    $region9: #{tpu_custom_call.1} parent=1 // pred_fallthru
      _
    // Predicated region
    $region10: #{tpu_custom_call.1} parent=1 // pred_check
      _
    $region11: #{tpu_custom_call.1} parent=1 // pred_check_branch
      %49 = sbr.rel (0) target = $region13
    $region12: #{tpu_custom_call.1} parent=1 // pred_region
      %51 = vsyncadd [#allocation13], 0
      %s53 = sshll.u32 %s2, 4
      %s54 = int_to_ptr.hbm [resolvable:$true] %s53
      %s55 = sshll.u32 [#allocation14], 4
      %s56 = int_to_ptr.vmem [resolvable:$true] %s55
      %58 = dma.hbm_to_vmem [thread:$0]  %s54, 16, %s56, [#allocation13]
    $region13: #{tpu_custom_call.1} parent=1 // pred_fallthru
      _
    // Predicated region
    $region14: #{tpu_custom_call.1} parent=1 // pred_check
      _
    $region15: #{tpu_custom_call.1} parent=1 // pred_check_branch
      %60 = sbr.rel (0) target = $region17
    $region16: #{tpu_custom_call.1} parent=1 // pred_region
      %62 = vsyncadd [#allocation16], 0
      %s63 = sshll.u32 %s3, 4
      %s64 = int_to_ptr.hbm [resolvable:$true] %s63
      %s65 = sshll.u32 [#allocation15], 4
      %s66 = int_to_ptr.vmem [resolvable:$true] %s65
      %71 = dma.hbm_to_vmem [thread:$0]  %s64, 1024, %s66, [#allocation16], 256, 256, 16
    $region17: #{tpu_custom_call.1} parent=1 // pred_fallthru
      _
    // Predicated region
    $region18: #{tpu_custom_call.1} parent=1 // pred_check
      _
    $region19: #{tpu_custom_call.1} parent=1 // pred_check_branch
      %73 = sbr.rel (0) target = $region21
    $region20: #{tpu_custom_call.1} parent=1 // pred_region
      %75 = vsyncadd [#allocation16], 0
      %s77 = sshll.u32 %s4, 4
      %s78 = int_to_ptr.hbm [resolvable:$true] %s77
      %s79 = sshll.u32 [#allocation17], 4
      %s80 = int_to_ptr.vmem [resolvable:$true] %s79
      %82 = dma.hbm_to_vmem [thread:$0]  %s78, 32, %s80, [#allocation16]
    $region21: #{tpu_custom_call.1} parent=1 // pred_fallthru
      _
    // Predicated region
    $region22: #{tpu_custom_call.1} parent=1 // pred_check
      _
    $region23: #{tpu_custom_call.1} parent=1 // pred_check_branch
      %84 = sbr.rel (0) target = $region25
    $region24: #{tpu_custom_call.1} parent=1 // pred_region
      %86 = vsyncadd [#allocation19], 0
      %s87 = sshll.u32 %s5, 4
      %s88 = int_to_ptr.hbm [resolvable:$true] %s87
      %s89 = sshll.u32 [#allocation18], 4
      %s90 = int_to_ptr.vmem [resolvable:$true] %s89
      %95 = dma.hbm_to_vmem [thread:$0]  %s88, 2688, %s90, [#allocation19], 384, 384, 24
    $region25: #{tpu_custom_call.1} parent=1 // pred_fallthru
      _
    // Predicated region
    $region26: #{tpu_custom_call.1} parent=1 // pred_check
      _
    $region27: #{tpu_custom_call.1} parent=1 // pred_check_branch
      %97 = sbr.rel (0) target = $region29
    $region28: #{tpu_custom_call.1} parent=1 // pred_region
      %99 = vsyncadd [#allocation19], 0
      %s100 = sshll.u32 %s6, 4
      %s101 = int_to_ptr.hbm [resolvable:$true] %s100
      %s102 = sshll.u32 [#allocation20], 4
      %s103 = int_to_ptr.vmem [resolvable:$true] %s102
      %108 = dma.hbm_to_vmem [thread:$0]  %s101, 41984, %s103, [#allocation19], 1024, 1024, 64
    $region29: #{tpu_custom_call.1} parent=1 // pred_fallthru
      _
    // Predicated region
    $region30: #{tpu_custom_call.1} parent=1 // pred_check
      _
    $region31: #{tpu_custom_call.1} parent=1 // pred_check_branch
      %110 = sbr.rel (0) target = $region33
    $region32: #{tpu_custom_call.1} parent=1 // pred_region
      %112 = vsyncadd [#allocation22], 0
      %s114 = sshll.u32 %s7, 4
      %s115 = int_to_ptr.hbm [resolvable:$true] %s114
      %s116 = sshll.u32 [#allocation21], 4
      %s117 = int_to_ptr.vmem [resolvable:$true] %s116
      %119 = dma.hbm_to_vmem [thread:$0]  %s115, 32, %s117, [#allocation22]
    $region33: #{tpu_custom_call.1} parent=1 // pred_fallthru
      _
    // Predicated region
    $region34: #{tpu_custom_call.1} parent=1 // pred_check
      _
    $region35: #{tpu_custom_call.1} parent=1 // pred_check_branch
      %121 = sbr.rel (0) target = $region37
    $region36: #{tpu_custom_call.1} parent=1 // pred_region
      _
    $region37: #{tpu_custom_call.1} parent=1 // pred_fallthru
      _
    // Predicated region
    $region38: #{tpu_custom_call.1} parent=1 // pred_check
      _
    $region39: #{tpu_custom_call.1} parent=1 // pred_check_branch
      %123 = sbr.rel (0) target = $region41
    $region40: #{tpu_custom_call.1} parent=1 // pred_region
      %125 = vsyncadd [#allocation22], 0
      %s127 = sshll.u32 %s9, 4
      %s128 = int_to_ptr.hbm [resolvable:$true] %s127
      %s129 = sshll.u32 [#allocation23], 4
      %s130 = int_to_ptr.vmem [resolvable:$true] %s129
      %132 = dma.hbm_to_vmem [thread:$0]  %s128, 16, %s130, [#allocation22]
    $region41: #{tpu_custom_call.1} parent=1 // pred_fallthru
      _
    // Predicated region
    $region42: #{tpu_custom_call.1} parent=1 // pred_check
      _
    $region43: #{tpu_custom_call.1} parent=1 // pred_check_branch
      %134 = sbr.rel (0) target = $region45
    $region44: #{tpu_custom_call.1} parent=1 // pred_region
      _
    $region45: #{tpu_custom_call.1} parent=1 // pred_fallthru
      _
    // Predicated region
    $region46: #{tpu_custom_call.1} parent=1 // pred_check
      _
    $region47: #{tpu_custom_call.1} parent=1 // pred_check_branch
      %136 = sbr.rel (0) target = $region49
    $region48: #{tpu_custom_call.1} parent=1 // pred_region
      %138 = dma.done [#allocation10], 32
    $region49: #{tpu_custom_call.1} parent=1 // pred_fallthru
      _
    // Predicated region
    $region50: #{tpu_custom_call.1} parent=1 // pred_check
      _
    $region51: #{tpu_custom_call.1} parent=1 // pred_check_branch
      %140 = sbr.rel (0) target = $region53
    $region52: #{tpu_custom_call.1} parent=1 // pred_region
      %142 = dma.done [#allocation13], 256
    $region53: #{tpu_custom_call.1} parent=1 // pred_fallthru
      _
    // Predicated region
    $region54: #{tpu_custom_call.1} parent=1 // pred_check
      _
    $region55: #{tpu_custom_call.1} parent=1 // pred_check_branch
      %144 = sbr.rel (0) target = $region57
    $region56: #{tpu_custom_call.1} parent=1 // pred_region
      %146 = dma.done [#allocation13], 16
    $region57: #{tpu_custom_call.1} parent=1 // pred_fallthru
      _
    // Predicated region
    $region58: #{tpu_custom_call.1} parent=1 // pred_check
      _
    $region59: #{tpu_custom_call.1} parent=1 // pred_check_branch
      %148 = sbr.rel (0) target = $region61
    $region60: #{tpu_custom_call.1} parent=1 // pred_region
      %150 = dma.done [#allocation16], 1024
    $region61: #{tpu_custom_call.1} parent=1 // pred_fallthru
      _
    // Predicated region
    $region62: #{tpu_custom_call.1} parent=1 // pred_check
      _
    $region63: #{tpu_custom_call.1} parent=1 // pred_check_branch
      %152 = sbr.rel (0) target = $region65
    $region64: #{tpu_custom_call.1} parent=1 // pred_region
      %154 = dma.done [#allocation16], 32
    $region65: #{tpu_custom_call.1} parent=1 // pred_fallthru
      _
    // Predicated region
    $region66: #{tpu_custom_call.1} parent=1 // pred_check
      _
    $region67: #{tpu_custom_call.1} parent=1 // pred_check_branch
      %156 = sbr.rel (0) target = $region69
    $region68: #{tpu_custom_call.1} parent=1 // pred_region
      %158 = dma.done [#allocation19], 2688
    $region69: #{tpu_custom_call.1} parent=1 // pred_fallthru
      _
    // Predicated region
    $region70: #{tpu_custom_call.1} parent=1 // pred_check
      _
    $region71: #{tpu_custom_call.1} parent=1 // pred_check_branch
      %160 = sbr.rel (0) target = $region73
    $region72: #{tpu_custom_call.1} parent=1 // pred_region
      %162 = dma.done [#allocation19], 41984
    $region73: #{tpu_custom_call.1} parent=1 // pred_fallthru
      _
    // Predicated region
    $region74: #{tpu_custom_call.1} parent=1 // pred_check
      _
    $region75: #{tpu_custom_call.1} parent=1 // pred_check_branch
      %164 = sbr.rel (0) target = $region77
    $region76: #{tpu_custom_call.1} parent=1 // pred_region
      %166 = dma.done [#allocation22], 32
    $region77: #{tpu_custom_call.1} parent=1 // pred_fallthru
      _
    // Predicated region
    $region78: #{tpu_custom_call.1} parent=1 // pred_check
      _
    $region79: #{tpu_custom_call.1} parent=1 // pred_check_branch
      %168 = sbr.rel (0) target = $region81
    $region80: #{tpu_custom_call.1} parent=1 // pred_region
      %170 = dma.done [#allocation22], 16
    $region81: #{tpu_custom_call.1} parent=1 // pred_fallthru
      _
    %v171 = vld [vmem:[#allocation9] sm:$0x3]
    %v172 = vld [vmem:[#allocation12] sm:$0xff]
    %v173 = vld [vmem:[#allocation12 + $0x8] sm:$0xf]
    %v174 = vld [vmem:[#allocation14] sm:$0x1]
    %v176 = vperm.slane %v174, 0
    %vm178 = vcmask 97280
    %v180 = vsel %vm178, %v171, 0
    %vm182 = vcmask 1043456
    %v184 = vsel %vm182, %v173, 0
    %186 = vmatpush.msra.mxu0 0.0
    %187 = vmatpush.msra.mxu0 0.0
    %188 = vmatpush.msra.mxu0 0.0
    %189 = vmatpush.msra.mxu0 0.0
    %190 = vmatpush.msra.mxu0 0.0
    %191 = vmatpush.msra.mxu0 0.0
    %192 = vmatpush.msra.mxu0 0.0
    %193 = vmatpush.msra.mxu0 0.0
    %194 = vmatpush.msra.mxu0 0.0
    %195 = vmatpush.msra.mxu0 0.0
    %196 = vmatpush.msra.mxu0 0.0
    %197 = vmatpush.msra.mxu0 0.0
    %198 = vmatpush.msra.mxu0 0.0
    %199 = vmatpush.msra.mxu0 0.0
    %200 = vmatpush.msra.mxu0 %v184
    %201 = vmatpush.msra.mxu0 %v172
    %202 = vmatmul.f32.gmra.mxu0 %v180
    %v203 = vpop.f32.mrf.mxu0
    %v204 = vadd.f32 %v176, %v203
    %205 = vdwg.mxu0
    %vm206 = vcmask 254976
    %v207 = vsel %vm206, %v204, 0.0
    %v208 = vrot.slane %v207, 4
    %v209 = vadd.f32 %v207, %v208
    %v210 = vrot.slane %v209, 2
    %v211 = vadd.f32 %v209, %v210
    %v212 = vrot.slane %v211, 1
    %v213 = vadd.f32 %v211, %v212
    %v214 = vrcp.pop 2.0
    %v215 = vmul.f32 2.0, %v214
    %v216 = vsub.f32 1.0, %v215
    %v217 = vmul.f32 %v214, %v216
    %v218 = vadd.f32 %v214, %v217
    %vm219 = vweird.f32 %v214
    %v220 = vsel %vm219, %v214, %v218
    %v221 = vmul.f32 %v213, %v220
    %v222 = vsub.f32 %v204, %v221
    %v223 = vmul.f32 %v222, %v222
    %v224 = vsel %vm206, %v223, 0.0
    %v225 = vrot.slane %v224, 4
    %v226 = vadd.f32 %v224, %v225
    %v227 = vrot.slane %v226, 2
    %v228 = vadd.f32 %v226, %v227
    %v229 = vrot.slane %v228, 1
    %v230 = vadd.f32 %v228, %v229
    %v231 = vmul.f32 %v230, %v220
    %v232 = vadd.f32 %v231, 1e-05
    %v233 = vrsqrt.pop %v232
    %v234 = vmul.f32 %v233, %v232
    %v235 = vmul.f32 %v234, %v233
    %v236 = vmul.f32 0.5, %v235
    %v237 = vsub.f32 1.5, %v236
    %v238 = vmul.f32 %v233, %v237
    %vm239 = vweird.f32 %v232
    %vm240 = vweird.f32 %v233
    %vm241 = vmor %vm239, %vm240
    %v242 = vsel %vm241, %v233, %v238
    %v243 = vmul.f32 %v222, %v242
    %v244 = vmax.f32 %v243, 0.0
    %v245 = vld [vmem:[#allocation15] sm:$0xff]
    %v246 = vld [vmem:[#allocation15 + $0x8] sm:$0xff]
    %v247 = vld [vmem:[#allocation15 + $0x10] sm:$0xff]
    %v248 = vld [vmem:[#allocation15 + $0x18] sm:$0xff]
    %v249 = vld [vmem:[#allocation15 + $0x20] sm:$0xff]
    %v250 = vld [vmem:[#allocation15 + $0x28] sm:$0xff]
    %v251 = vld [vmem:[#allocation15 + $0x30] sm:$0xff]
    %v252 = vld [vmem:[#allocation15 + $0x38] sm:$0xff]
    %v253 = vld [vmem:[#allocation17] sm:$0x3]
    %v255 = vperm.slane %v253, 0
    %v256 = vperm.slane %v253, 1
    %vm259 = vcmask 261120
    %v261 = vsel %vm259, %v244, 0
    %263 = vmatpush.msra.mxu0 0.0
    %264 = vmatpush.msra.mxu0 0.0
    %265 = vmatpush.msra.mxu0 0.0
    %266 = vmatpush.msra.mxu0 0.0
    %267 = vmatpush.msra.mxu0 0.0
    %268 = vmatpush.msra.mxu0 0.0
    %269 = vmatpush.msra.mxu0 0.0
    %270 = vmatpush.msra.mxu0 0.0
    %271 = vmatpush.msra.mxu0 0.0
    %272 = vmatpush.msra.mxu0 0.0
    %273 = vmatpush.msra.mxu0 0.0
    %274 = vmatpush.msra.mxu0 0.0
    %275 = vmatpush.msra.mxu0 %v251
    %276 = vmatpush.msra.mxu0 %v249
    %277 = vmatpush.msra.mxu0 %v247
    %278 = vmatpush.msra.mxu0 %v245
    %279 = vmatmul.f32.gmra.mxu0 %v261
    %v280 = vpop.f32.mrf.mxu0
    %v281 = vadd.f32 %v255, %v280
    %282 = vdwg.mxu0
    %283 = vmatpush.msra.mxu0 0.0
    %284 = vmatpush.msra.mxu0 0.0
    %285 = vmatpush.msra.mxu0 0.0
    %286 = vmatpush.msra.mxu0 0.0
    %287 = vmatpush.msra.mxu0 0.0
    %288 = vmatpush.msra.mxu0 0.0
    %289 = vmatpush.msra.mxu0 0.0
    %290 = vmatpush.msra.mxu0 0.0
    %291 = vmatpush.msra.mxu0 0.0
    %292 = vmatpush.msra.mxu0 0.0
    %293 = vmatpush.msra.mxu0 0.0
    %294 = vmatpush.msra.mxu0 0.0
    %295 = vmatpush.msra.mxu0 %v252
    %296 = vmatpush.msra.mxu0 %v250
    %297 = vmatpush.msra.mxu0 %v248
    %298 = vmatpush.msra.mxu0 %v246
    %299 = vmatmul.f32.gmra.mxu0 %v261
    %v300 = vpop.f32.mrf.mxu0
    %v301 = vadd.f32 %v256, %v300
    %302 = vdwg.mxu0
    %vm303 = vcmask 1041408
    %v304 = vsel %vm303, %v281, 0.0
    %v305 = vrot.slane %v304, 4
    %v306 = vadd.f32 %v304, %v305
    %v307 = vrot.slane %v306, 2
    %v308 = vadd.f32 %v306, %v307
    %v309 = vrot.slane %v308, 1
    %v310 = vadd.f32 %v308, %v309
    %vm311 = vcmask 549888
    %v312 = vsel %vm311, %v301, 0.0
    %v313 = vrot.slane %v312, 4
    %v314 = vadd.f32 %v312, %v313
    %v315 = vrot.slane %v314, 2
    %v316 = vadd.f32 %v314, %v315
    %v317 = vrot.slane %v316, 1
    %v318 = vadd.f32 %v316, %v317
    %v319 = vmul.f32 %v310, %v220
    %v320 = vmul.f32 %v318, %v220
    %v321 = vsub.f32 %v281, %v319
    %v322 = vsub.f32 %v301, %v320
    %v323 = vmul.f32 %v321, %v321
    %v324 = vmul.f32 %v322, %v322
    %v325 = vsel %vm303, %v323, 0.0
    %v326 = vrot.slane %v325, 4
    %v327 = vadd.f32 %v325, %v326
    %v328 = vrot.slane %v327, 2
    %v329 = vadd.f32 %v327, %v328
    %v330 = vrot.slane %v329, 1
    %v331 = vadd.f32 %v329, %v330
    %v332 = vsel %vm311, %v324, 0.0
    %v333 = vrot.slane %v332, 4
    %v334 = vadd.f32 %v332, %v333
    %v335 = vrot.slane %v334, 2
    %v336 = vadd.f32 %v334, %v335
    %v337 = vrot.slane %v336, 1
    %v338 = vadd.f32 %v336, %v337
    %v339 = vmul.f32 %v331, %v220
    %v340 = vmul.f32 %v338, %v220
    %v341 = vadd.f32 %v339, 1e-05
    %v342 = vadd.f32 %v340, 1e-05
    %v343 = vrsqrt.pop %v341
    %v344 = vmul.f32 %v343, %v341
    %v345 = vmul.f32 %v344, %v343
    %v346 = vmul.f32 0.5, %v345
    %v347 = vsub.f32 1.5, %v346
    %v348 = vmul.f32 %v343, %v347
    %vm349 = vweird.f32 %v341
    %vm350 = vweird.f32 %v343
    %vm351 = vmor %vm349, %vm350
    %v352 = vsel %vm351, %v343, %v348
    %v353 = vrsqrt.pop %v342
    %v354 = vmul.f32 %v353, %v342
    %v355 = vmul.f32 %v354, %v353
    %v356 = vmul.f32 0.5, %v355
    %v357 = vsub.f32 1.5, %v356
    %v358 = vmul.f32 %v353, %v357
    %vm359 = vweird.f32 %v342
    %vm360 = vweird.f32 %v353
    %vm361 = vmor %vm359, %vm360
    %v362 = vsel %vm361, %v353, %v358
    %v363 = vmul.f32 %v321, %v352
    %v364 = vmul.f32 %v322, %v362
    %vm365 = vcmask 393216
    %366 = vst.msk [vmem:[#allocation2] sm:$0x1] %vm365, %v363
    %368 = vrot.lane.b32.xlu0 %v363, 79
    %v369 = vpop.permute.xlu0 %368
    %371 = vst.msk [vmem:[#allocation2 + $0x1] sm:$0x1] %vm365, %v369
    %373 = vrot.lane.b32.xlu0 %v363, 30
    %v374 = vpop.permute.xlu0 %373
    %375 = vrot.lane.b32.xlu0 %v364, 30
    %v376 = vpop.permute.xlu0 %375
    %vm377 = vcmask 244736
    %v378 = vsel %vm377, %v374, %v376
    %380 = vst.msk [vmem:[#allocation2 + $0x2] sm:$0x1] %vm365, %v378
    %381 = vrot.lane.b32.xlu0 %v364, 109
    %v382 = vpop.permute.xlu0 %381
    %384 = vst.msk [vmem:[#allocation2 + $0x3] sm:$0x1] %vm365, %v382
    %vm385 = vcmask 394241
    %386 = vst.msk [vmem:[#allocation2 + $0x3] sm:$0x2] %vm385, %v363
    %387 = vst.msk [vmem:[#allocation2 + $0x4] sm:$0x2] %vm385, %v369
    %388 = vst.msk [vmem:[#allocation2 + $0x5] sm:$0x2] %vm385, %v378
    %389 = vst.msk [vmem:[#allocation2 + $0x6] sm:$0x2] %vm385, %v382
    %v390 = vld [vmem:[#allocation2] sm:$0xff]
    %v391 = vld [vmem:[#allocation18] sm:$0xff]
    %v392 = vld [vmem:[#allocation18 + $0x8] sm:$0xff]
    %v393 = vld [vmem:[#allocation18 + $0x10] sm:$0xff]
    %v394 = vld [vmem:[#allocation18 + $0x18] sm:$0xff]
    %v395 = vld [vmem:[#allocation18 + $0x20] sm:$0xff]
    %v396 = vld [vmem:[#allocation18 + $0x28] sm:$0xff]
    %v397 = vld [vmem:[#allocation18 + $0x30] sm:$0xff]
    %v398 = vld [vmem:[#allocation18 + $0x38] sm:$0xff]
    %v399 = vld [vmem:[#allocation18 + $0x40] sm:$0xff]
    %v400 = vld [vmem:[#allocation18 + $0x48] sm:$0xff]
    %v401 = vld [vmem:[#allocation18 + $0x50] sm:$0xff]
    %v402 = vld [vmem:[#allocation18 + $0x58] sm:$0xff]
    %v403 = vld [vmem:[#allocation18 + $0x60] sm:$0xff]
    %v404 = vld [vmem:[#allocation18 + $0x68] sm:$0xff]
    %v405 = vld [vmem:[#allocation18 + $0x70] sm:$0xff]
    %v406 = vld [vmem:[#allocation18 + $0x78] sm:$0xff]
    %v407 = vld [vmem:[#allocation18 + $0x80] sm:$0xff]
    %v408 = vld [vmem:[#allocation18 + $0x88] sm:$0xff]
    %v409 = vld [vmem:[#allocation18 + $0x90] sm:$0x1]
    %v410 = vld [vmem:[#allocation18 + $0x98] sm:$0x1]
    %v411 = vld [vmem:[#allocation18 + $0xa0] sm:$0x1]
    %vm412 = vcmask 400384
    %v414 = vsel %vm412, %v390, 0
    %vm416 = vcmask 1040384
    %v418 = vsel %vm416, %v409, 0
    %v421 = vsel %vm416, %v410, 0
    %v424 = vsel %vm416, %v411, 0
    %426 = vmatpush.msra.mxu0 0.0
    %427 = vmatpush.msra.mxu0 0.0
    %428 = vmatpush.msra.mxu0 0.0
    %429 = vmatpush.msra.mxu0 0.0
    %430 = vmatpush.msra.mxu0 0.0
    %431 = vmatpush.msra.mxu0 0.0
    %432 = vmatpush.msra.mxu0 0.0
    %433 = vmatpush.msra.mxu0 0.0
    %434 = vmatpush.msra.mxu0 0.0
    %435 = vmatpush.msra.mxu0 %v418
    %436 = vmatpush.msra.mxu0 %v406
    %437 = vmatpush.msra.mxu0 %v403
    %438 = vmatpush.msra.mxu0 %v400
    %439 = vmatpush.msra.mxu0 %v397
    %440 = vmatpush.msra.mxu0 %v394
    %441 = vmatpush.msra.mxu0 %v391
    %442 = vmatmul.f32.gmra.mxu0 %v414
    %v443 = vpop.f32.mrf.mxu0
    %v444 = vadd.f32 0.0, %v443
    %445 = vdwg.mxu0
    %446 = vmatpush.msra.mxu0 0.0
    %447 = vmatpush.msra.mxu0 0.0
    %448 = vmatpush.msra.mxu0 0.0
    %449 = vmatpush.msra.mxu0 0.0
    %450 = vmatpush.msra.mxu0 0.0
    %451 = vmatpush.msra.mxu0 0.0
    %452 = vmatpush.msra.mxu0 0.0
    %453 = vmatpush.msra.mxu0 0.0
    %454 = vmatpush.msra.mxu0 0.0
    %455 = vmatpush.msra.mxu0 %v421
    %456 = vmatpush.msra.mxu0 %v407
    %457 = vmatpush.msra.mxu0 %v404
    %458 = vmatpush.msra.mxu0 %v401
    %459 = vmatpush.msra.mxu0 %v398
    %460 = vmatpush.msra.mxu0 %v395
    %461 = vmatpush.msra.mxu0 %v392
    %462 = vmatmul.f32.gmra.mxu0 %v414
    %v463 = vpop.f32.mrf.mxu0
    %v464 = vadd.f32 0.0, %v463
    %465 = vdwg.mxu0
    %466 = vmatpush.msra.mxu0 0.0
    %467 = vmatpush.msra.mxu0 0.0
    %468 = vmatpush.msra.mxu0 0.0
    %469 = vmatpush.msra.mxu0 0.0
    %470 = vmatpush.msra.mxu0 0.0
    %471 = vmatpush.msra.mxu0 0.0
    %472 = vmatpush.msra.mxu0 0.0
    %473 = vmatpush.msra.mxu0 0.0
    %474 = vmatpush.msra.mxu0 0.0
    %475 = vmatpush.msra.mxu0 %v424
    %476 = vmatpush.msra.mxu0 %v408
    %477 = vmatpush.msra.mxu0 %v405
    %478 = vmatpush.msra.mxu0 %v402
    %479 = vmatpush.msra.mxu0 %v399
    %480 = vmatpush.msra.mxu0 %v396
    %481 = vmatpush.msra.mxu0 %v393
    %482 = vmatmul.f32.gmra.mxu0 %v414
    %v483 = vpop.f32.mrf.mxu0
    %v484 = vadd.f32 0.0, %v483
    %485 = vdwg.mxu0
    %vm486 = vcmask 306176
    %487 = vst.msk [vmem:[#allocation3] sm:$0xf] %vm486, 0.0
    %vm488 = vcmask 683376
    %489 = vst.msk [vmem:[#allocation3 + $0x14] sm:$0xf] %vm488, 0.0
    %v493 = vrot.slane %v464, 4
    %v494 = vsel %vm182, %v444, %v493
    %495 = vrot.lane.b32.xlu0 %v494, 38
    %v496 = vpop.permute.xlu0 %495
    %497 = vrot.lane.b32.xlu0 %v484, 38
    %v498 = vpop.permute.xlu0 %497
    %v499 = vrot.slane %v496, 4
    %vm500 = vcmask 310272
    %v501 = vsel %vm500, %v499, %v496
    %v502 = vsel %vm500, %v499, %v498
    %vm505 = vcmask 1043760
    %vm506 = vcmask 1047556
    %vm507 = vmor %vm506, %vm505
    %508 = vst.msk [vmem:[#allocation3] sm:$0xff] %vm507, %v501
    %vm509 = vcmask 863232
    %510 = vst.msk [vmem:[#allocation3 + $0x8] sm:$0xf] %vm509, %v502
    %511 = vst.sshfl [vmem:[#allocation1] sm:$0xff pattern:$0x75316420] %v444
    %512 = vst.sshfl [vmem:[#allocation1 + $0x8] sm:$0xff pattern:$0x75316420] %v464
    %513 = vst.sshfl [vmem:[#allocation1 + $0x10] sm:$0xff pattern:$0x75316420] %v484
    %s514 = scalar_lea.vmem [#allocation1], 1
    %v515 = vld [vmem:[%s514] ss:$2 sm:$0xff]
    %s516 = scalar_lea.vmem [#allocation1], 17
    %v517 = vld [vmem:[%s516] ss:$2 sm:$0xff]
    %518 = vrot.lane.b32.xlu0 %v515, 106
    %v519 = vpop.permute.xlu0 %518
    %520 = vrot.lane.b32.xlu0 %v517, 106
    %v521 = vpop.permute.xlu0 %520
    %v522 = vrot.slane %v519, 4
    %v523 = vrot.slane %v521, 4
    %vm524 = vcmask 867328
    %v525 = vsel %vm524, %v522, %v519
    %v526 = vsel %vm182, %v522, %v523
    %v527 = vsel %vm524, %v526, %v521
    %vm530 = vcmask 1044304
    %vm531 = vmor %vm506, %vm530
    %532 = vst.msk [vmem:[#allocation3 + $0x8] sm:$0xff] %vm531, %v525
    %vm533 = vcmask 375812
    %vm534 = vmor %vm533, %vm182
    %535 = vst.msk [vmem:[#allocation3 + $0x10] sm:$0xff] %vm534, %v527
    %v536 = vld [vmem:[#allocation3] sm:$0xff]
    %v537 = vld [vmem:[#allocation3 + $0x8] sm:$0xff]
    %v538 = vld [vmem:[#allocation3 + $0x10] sm:$0xff]
    %542 = vst [vmem:[#allocation1] ss:$2 sm:$0xff] %v536
    %s543 = scalar_lea.vmem [#allocation1], 16
    %544 = vst [vmem:[%s543] ss:$2 sm:$0xff] %v537
    %s545 = scalar_lea.vmem [#allocation1], 32
    %546 = vst [vmem:[%s545] ss:$2 sm:$0xff] %v538
    %v547 = vld.sshfl [vmem:[#allocation1] sm:$0xff pattern:$0x75316420]
    %v548 = vld.sshfl [vmem:[#allocation1 + $0x8] sm:$0xff pattern:$0x75316420]
    %v549 = vld.sshfl [vmem:[#allocation1 + $0x10] sm:$0xff pattern:$0x75316420]
    %v550 = vld.sshfl [vmem:[#allocation1 + $0x18] sm:$0xff pattern:$0x75316420]
    %v551 = vld.sshfl [vmem:[#allocation1 + $0x20] sm:$0xff pattern:$0x75316420]
    %v552 = vld.sshfl [vmem:[#allocation1 + $0x28] sm:$0xff pattern:$0x75316420]
    %559 = vst [vmem:[#allocation4] sm:$0xf] %v547
    %560 = vst [vmem:[#allocation4 + $0x8] sm:$0xf] %v548
    %561 = vst [vmem:[#allocation4 + $0x10] sm:$0xf] %v549
    %562 = vst [vmem:[#allocation4 + $0x18] sm:$0xf] %v550
    %563 = vst [vmem:[#allocation4 + $0x20] sm:$0xf] %v551
    %vm564 = vcmask 60416
    %565 = vst.msk [vmem:[#allocation4 + $0x28] sm:$0xf] %vm564, %v552
    %v566 = vld [vmem:[#allocation3] sm:$0xff]
    %v567 = vld [vmem:[#allocation3 + $0x8] sm:$0xff]
    %v568 = vld [vmem:[#allocation3 + $0x10] sm:$0xff]
    %s572 = scalar_lea.vmem [#allocation1], 1
    %573 = vst [vmem:[%s572] ss:$2 sm:$0xff] %v566
    %s574 = scalar_lea.vmem [#allocation1], 17
    %575 = vst [vmem:[%s574] ss:$2 sm:$0xff] %v567
    %s576 = scalar_lea.vmem [#allocation1], 33
    %577 = vst [vmem:[%s576] ss:$2 sm:$0xff] %v568
    %v578 = vld.sshfl [vmem:[#allocation1] sm:$0xff pattern:$0x75316420]
    %v579 = vld.sshfl [vmem:[#allocation1 + $0x8] sm:$0xff pattern:$0x75316420]
    %v580 = vld.sshfl [vmem:[#allocation1 + $0x10] sm:$0xff pattern:$0x75316420]
    %v581 = vld.sshfl [vmem:[#allocation1 + $0x18] sm:$0xff pattern:$0x75316420]
    %v582 = vld.sshfl [vmem:[#allocation1 + $0x20] sm:$0xff pattern:$0x75316420]
    %v583 = vld.sshfl [vmem:[#allocation1 + $0x28] sm:$0xff pattern:$0x75316420]
    %584 = vrot.lane.b32.xlu0 %v578, 127
    %v585 = vpop.permute.xlu0 %584
    %586 = vrot.lane.b32.xlu0 %v579, 127
    %v587 = vpop.permute.xlu0 %586
    %588 = vrot.lane.b32.xlu0 %v580, 127
    %v589 = vpop.permute.xlu0 %588
    %590 = vrot.lane.b32.xlu0 %v581, 127
    %v591 = vpop.permute.xlu0 %590
    %592 = vrot.lane.b32.xlu0 %v582, 127
    %v593 = vpop.permute.xlu0 %592
    %594 = vrot.lane.b32.xlu0 %v583, 127
    %v595 = vpop.permute.xlu0 %594
    %vm596 = vcmask 1039360
    %v597 = vsel %vm596, %v585, %v587
    %v598 = vsel %vm596, %v587, %v589
    %v599 = vsel %vm596, %v589, %v591
    %v600 = vsel %vm596, %v591, %v593
    %v601 = vsel %vm596, %v593, %v595
    %608 = vst [vmem:[#allocation4] sm:$0xf0] %v597
    %609 = vst [vmem:[#allocation4 + $0x8] sm:$0xf0] %v598
    %610 = vst [vmem:[#allocation4 + $0x10] sm:$0xf0] %v599
    %611 = vst [vmem:[#allocation4 + $0x18] sm:$0xf0] %v600
    %612 = vst [vmem:[#allocation4 + $0x20] sm:$0xf0] %v601
    %vm613 = vcmask 64516
    %614 = vst.msk [vmem:[#allocation4 + $0x28] sm:$0xf0] %vm613, %v595
    %v615 = vld [vmem:[#allocation3] sm:$0xff]
    %v616 = vld [vmem:[#allocation3 + $0x8] sm:$0xff]
    %v617 = vld [vmem:[#allocation3 + $0x10] sm:$0xff]
    %621 = vst [vmem:[#allocation1] ss:$2 sm:$0xff] %v615
    %s622 = scalar_lea.vmem [#allocation1], 16
    %623 = vst [vmem:[%s622] ss:$2 sm:$0xff] %v616
    %s624 = scalar_lea.vmem [#allocation1], 32
    %625 = vst [vmem:[%s624] ss:$2 sm:$0xff] %v617
    %v626 = vld.sshfl [vmem:[#allocation1] sm:$0xff pattern:$0x75316420]
    %v627 = vld.sshfl [vmem:[#allocation1 + $0x8] sm:$0xff pattern:$0x75316420]
    %v628 = vld.sshfl [vmem:[#allocation1 + $0x10] sm:$0xff pattern:$0x75316420]
    %v629 = vld.sshfl [vmem:[#allocation1 + $0x18] sm:$0xff pattern:$0x75316420]
    %v630 = vld.sshfl [vmem:[#allocation1 + $0x20] sm:$0xff pattern:$0x75316420]
    %v631 = vld.sshfl [vmem:[#allocation1 + $0x28] sm:$0xff pattern:$0x75316420]
    %632 = vrot.lane.b32.xlu0 %v626, 126
    %v633 = vpop.permute.xlu0 %632
    %634 = vrot.lane.b32.xlu0 %v627, 126
    %v635 = vpop.permute.xlu0 %634
    %636 = vrot.lane.b32.xlu0 %v628, 126
    %v637 = vpop.permute.xlu0 %636
    %638 = vrot.lane.b32.xlu0 %v629, 126
    %v639 = vpop.permute.xlu0 %638
    %640 = vrot.lane.b32.xlu0 %v630, 126
    %v641 = vpop.permute.xlu0 %640
    %642 = vrot.lane.b32.xlu0 %v631, 126
    %v643 = vpop.permute.xlu0 %642
    %vm644 = vcmask 1031168
    %v645 = vsel %vm644, %v633, %v635
    %v646 = vsel %vm644, %v635, %v637
    %v647 = vsel %vm644, %v637, %v639
    %v648 = vsel %vm644, %v639, %v641
    %v649 = vsel %vm644, %v641, %v643
    %656 = vst [vmem:[#allocation4 + $0x30] sm:$0xf] %v645
    %657 = vst [vmem:[#allocation4 + $0x38] sm:$0xf] %v646
    %658 = vst [vmem:[#allocation4 + $0x40] sm:$0xf] %v647
    %659 = vst [vmem:[#allocation4 + $0x48] sm:$0xf] %v648
    %660 = vst [vmem:[#allocation4 + $0x50] sm:$0xf] %v649
    %661 = vst.msk [vmem:[#allocation4 + $0x58] sm:$0xf] %vm564, %v643
    %v662 = vld [vmem:[#allocation3] sm:$0xff]
    %v663 = vld [vmem:[#allocation3 + $0x8] sm:$0xff]
    %v664 = vld [vmem:[#allocation3 + $0x10] sm:$0xff]
    %s668 = scalar_lea.vmem [#allocation1], 1
    %669 = vst [vmem:[%s668] ss:$2 sm:$0xff] %v662
    %s670 = scalar_lea.vmem [#allocation1], 17
    %671 = vst [vmem:[%s670] ss:$2 sm:$0xff] %v663
    %s672 = scalar_lea.vmem [#allocation1], 33
    %673 = vst [vmem:[%s672] ss:$2 sm:$0xff] %v664
    %v674 = vld.sshfl [vmem:[#allocation1] sm:$0xff pattern:$0x75316420]
    %v675 = vld.sshfl [vmem:[#allocation1 + $0x8] sm:$0xff pattern:$0x75316420]
    %v676 = vld.sshfl [vmem:[#allocation1 + $0x10] sm:$0xff pattern:$0x75316420]
    %v677 = vld.sshfl [vmem:[#allocation1 + $0x18] sm:$0xff pattern:$0x75316420]
    %v678 = vld.sshfl [vmem:[#allocation1 + $0x20] sm:$0xff pattern:$0x75316420]
    %v679 = vld.sshfl [vmem:[#allocation1 + $0x28] sm:$0xff pattern:$0x75316420]
    %680 = vrot.lane.b32.xlu0 %v674, 125
    %v681 = vpop.permute.xlu0 %680
    %682 = vrot.lane.b32.xlu0 %v675, 125
    %v683 = vpop.permute.xlu0 %682
    %684 = vrot.lane.b32.xlu0 %v676, 125
    %v685 = vpop.permute.xlu0 %684
    %686 = vrot.lane.b32.xlu0 %v677, 125
    %v687 = vpop.permute.xlu0 %686
    %688 = vrot.lane.b32.xlu0 %v678, 125
    %v689 = vpop.permute.xlu0 %688
    %690 = vrot.lane.b32.xlu0 %v679, 125
    %v691 = vpop.permute.xlu0 %690
    %vm692 = vcmask 1022976
    %v693 = vsel %vm692, %v681, %v683
    %v694 = vsel %vm692, %v683, %v685
    %v695 = vsel %vm692, %v685, %v687
    %v696 = vsel %vm692, %v687, %v689
    %v697 = vsel %vm692, %v689, %v691
    %704 = vst [vmem:[#allocation4 + $0x30] sm:$0xf0] %v693
    %705 = vst [vmem:[#allocation4 + $0x38] sm:$0xf0] %v694
    %706 = vst [vmem:[#allocation4 + $0x40] sm:$0xf0] %v695
    %707 = vst [vmem:[#allocation4 + $0x48] sm:$0xf0] %v696
    %708 = vst [vmem:[#allocation4 + $0x50] sm:$0xf0] %v697
    %709 = vst.msk [vmem:[#allocation4 + $0x58] sm:$0xf0] %vm613, %v691
    %v710 = vld [vmem:[#allocation3] sm:$0xff]
    %v711 = vld [vmem:[#allocation3 + $0x8] sm:$0xff]
    %v712 = vld [vmem:[#allocation3 + $0x10] sm:$0xff]
    %716 = vst [vmem:[#allocation1] ss:$2 sm:$0xff] %v710
    %s717 = scalar_lea.vmem [#allocation1], 16
    %718 = vst [vmem:[%s717] ss:$2 sm:$0xff] %v711
    %s719 = scalar_lea.vmem [#allocation1], 32
    %720 = vst [vmem:[%s719] ss:$2 sm:$0xff] %v712
    %v721 = vld.sshfl [vmem:[#allocation1] sm:$0xff pattern:$0x75316420]
    %v722 = vld.sshfl [vmem:[#allocation1 + $0x8] sm:$0xff pattern:$0x75316420]
    %v723 = vld.sshfl [vmem:[#allocation1 + $0x10] sm:$0xff pattern:$0x75316420]
    %v724 = vld.sshfl [vmem:[#allocation1 + $0x18] sm:$0xff pattern:$0x75316420]
    %v725 = vld.sshfl [vmem:[#allocation1 + $0x20] sm:$0xff pattern:$0x75316420]
    %v726 = vld.sshfl [vmem:[#allocation1 + $0x28] sm:$0xff pattern:$0x75316420]
    %727 = vrot.lane.b32.xlu0 %v721, 124
    %v728 = vpop.permute.xlu0 %727
    %729 = vrot.lane.b32.xlu0 %v722, 124
    %v730 = vpop.permute.xlu0 %729
    %731 = vrot.lane.b32.xlu0 %v723, 124
    %v732 = vpop.permute.xlu0 %731
    %733 = vrot.lane.b32.xlu0 %v724, 124
    %v734 = vpop.permute.xlu0 %733
    %735 = vrot.lane.b32.xlu0 %v725, 124
    %v736 = vpop.permute.xlu0 %735
    %737 = vrot.lane.b32.xlu0 %v726, 124
    %v738 = vpop.permute.xlu0 %737
    %vm739 = vcmask 1014784
    %v740 = vsel %vm739, %v728, %v730
    %v741 = vsel %vm739, %v730, %v732
    %v742 = vsel %vm739, %v732, %v734
    %v743 = vsel %vm739, %v734, %v736
    %v744 = vsel %vm739, %v736, %v738
    %751 = vst [vmem:[#allocation4 + $0x60] sm:$0xf] %v740
    %752 = vst [vmem:[#allocation4 + $0x68] sm:$0xf] %v741
    %753 = vst [vmem:[#allocation4 + $0x70] sm:$0xf] %v742
    %754 = vst [vmem:[#allocation4 + $0x78] sm:$0xf] %v743
    %755 = vst [vmem:[#allocation4 + $0x80] sm:$0xf] %v744
    %756 = vst.msk [vmem:[#allocation4 + $0x88] sm:$0xf] %vm564, %v738
    %v757 = vld [vmem:[#allocation3] sm:$0xff]
    %v758 = vld [vmem:[#allocation3 + $0x8] sm:$0xff]
    %v759 = vld [vmem:[#allocation3 + $0x10] sm:$0xff]
    %s763 = scalar_lea.vmem [#allocation1], 1
    %764 = vst [vmem:[%s763] ss:$2 sm:$0xff] %v757
    %s765 = scalar_lea.vmem [#allocation1], 17
    %766 = vst [vmem:[%s765] ss:$2 sm:$0xff] %v758
    %s767 = scalar_lea.vmem [#allocation1], 33
    %768 = vst [vmem:[%s767] ss:$2 sm:$0xff] %v759
    %v769 = vld.sshfl [vmem:[#allocation1] sm:$0xff pattern:$0x75316420]
    %v770 = vld.sshfl [vmem:[#allocation1 + $0x8] sm:$0xff pattern:$0x75316420]
    %v771 = vld.sshfl [vmem:[#allocation1 + $0x10] sm:$0xff pattern:$0x75316420]
    %v772 = vld.sshfl [vmem:[#allocation1 + $0x18] sm:$0xff pattern:$0x75316420]
    %v773 = vld.sshfl [vmem:[#allocation1 + $0x20] sm:$0xff pattern:$0x75316420]
    %v774 = vld.sshfl [vmem:[#allocation1 + $0x28] sm:$0xff pattern:$0x75316420]
    %775 = vrot.lane.b32.xlu0 %v769, 110
    %v776 = vpop.permute.xlu0 %775
    %777 = vrot.lane.b32.xlu0 %v770, 110
    %v778 = vpop.permute.xlu0 %777
    %779 = vrot.lane.b32.xlu0 %v771, 110
    %v780 = vpop.permute.xlu0 %779
    %781 = vrot.lane.b32.xlu0 %v772, 110
    %v782 = vpop.permute.xlu0 %781
    %783 = vrot.lane.b32.xlu0 %v773, 110
    %v784 = vpop.permute.xlu0 %783
    %785 = vrot.lane.b32.xlu0 %v774, 110
    %v786 = vpop.permute.xlu0 %785
    %vm787 = vcmask 900096
    %v788 = vsel %vm787, %v776, %v778
    %v789 = vsel %vm787, %v778, %v780
    %v790 = vsel %vm787, %v780, %v782
    %v791 = vsel %vm787, %v782, %v784
    %v792 = vsel %vm787, %v784, %v786
    %799 = vst [vmem:[#allocation4 + $0x60] sm:$0xf0] %v788
    %800 = vst [vmem:[#allocation4 + $0x68] sm:$0xf0] %v789
    %801 = vst [vmem:[#allocation4 + $0x70] sm:$0xf0] %v790
    %802 = vst [vmem:[#allocation4 + $0x78] sm:$0xf0] %v791
    %803 = vst [vmem:[#allocation4 + $0x80] sm:$0xf0] %v792
    %804 = vst.msk [vmem:[#allocation4 + $0x88] sm:$0xf0] %vm613, %v786
    %v805 = vld [vmem:[#allocation3] sm:$0xff]
    %v806 = vld [vmem:[#allocation3 + $0x8] sm:$0xff]
    %v807 = vld [vmem:[#allocation3 + $0x10] sm:$0xff]
    %811 = vst [vmem:[#allocation1] ss:$2 sm:$0xff] %v805
    %s812 = scalar_lea.vmem [#allocation1], 16
    %813 = vst [vmem:[%s812] ss:$2 sm:$0xff] %v806
    %s814 = scalar_lea.vmem [#allocation1], 32
    %815 = vst [vmem:[%s814] ss:$2 sm:$0xff] %v807
    %v816 = vld.sshfl [vmem:[#allocation1] sm:$0xff pattern:$0x75316420]
    %v817 = vld.sshfl [vmem:[#allocation1 + $0x8] sm:$0xff pattern:$0x75316420]
    %v818 = vld.sshfl [vmem:[#allocation1 + $0x10] sm:$0xff pattern:$0x75316420]
    %v819 = vld.sshfl [vmem:[#allocation1 + $0x18] sm:$0xff pattern:$0x75316420]
    %v820 = vld.sshfl [vmem:[#allocation1 + $0x20] sm:$0xff pattern:$0x75316420]
    %v821 = vld.sshfl [vmem:[#allocation1 + $0x28] sm:$0xff pattern:$0x75316420]
    %822 = vrot.lane.b32.xlu0 %v816, 109
    %v823 = vpop.permute.xlu0 %822
    %824 = vrot.lane.b32.xlu0 %v817, 109
    %v825 = vpop.permute.xlu0 %824
    %826 = vrot.lane.b32.xlu0 %v818, 109
    %v827 = vpop.permute.xlu0 %826
    %828 = vrot.lane.b32.xlu0 %v819, 109
    %v829 = vpop.permute.xlu0 %828
    %830 = vrot.lane.b32.xlu0 %v820, 109
    %v831 = vpop.permute.xlu0 %830
    %832 = vrot.lane.b32.xlu0 %v821, 109
    %v833 = vpop.permute.xlu0 %832
    %vm834 = vcmask 891904
    %v835 = vsel %vm834, %v823, %v825
    %v836 = vsel %vm834, %v825, %v827
    %v837 = vsel %vm834, %v827, %v829
    %v838 = vsel %vm834, %v829, %v831
    %v839 = vsel %vm834, %v831, %v833
    %846 = vst [vmem:[#allocation4 + $0x90] sm:$0xf] %v835
    %847 = vst [vmem:[#allocation4 + $0x98] sm:$0xf] %v836
    %848 = vst [vmem:[#allocation4 + $0xa0] sm:$0xf] %v837
    %849 = vst [vmem:[#allocation4 + $0xa8] sm:$0xf] %v838
    %850 = vst [vmem:[#allocation4 + $0xb0] sm:$0xf] %v839
    %851 = vst.msk [vmem:[#allocation4 + $0xb8] sm:$0xf] %vm564, %v833
    %v852 = vld [vmem:[#allocation3] sm:$0xff]
    %v853 = vld [vmem:[#allocation3 + $0x8] sm:$0xff]
    %v854 = vld [vmem:[#allocation3 + $0x10] sm:$0xff]
    %s858 = scalar_lea.vmem [#allocation1], 1
    %859 = vst [vmem:[%s858] ss:$2 sm:$0xff] %v852
    %s860 = scalar_lea.vmem [#allocation1], 17
    %861 = vst [vmem:[%s860] ss:$2 sm:$0xff] %v853
    %s862 = scalar_lea.vmem [#allocation1], 33
    %863 = vst [vmem:[%s862] ss:$2 sm:$0xff] %v854
    %v864 = vld.sshfl [vmem:[#allocation1] sm:$0xff pattern:$0x75316420]
    %v865 = vld.sshfl [vmem:[#allocation1 + $0x8] sm:$0xff pattern:$0x75316420]
    %v866 = vld.sshfl [vmem:[#allocation1 + $0x10] sm:$0xff pattern:$0x75316420]
    %v867 = vld.sshfl [vmem:[#allocation1 + $0x18] sm:$0xff pattern:$0x75316420]
    %v868 = vld.sshfl [vmem:[#allocation1 + $0x20] sm:$0xff pattern:$0x75316420]
    %v869 = vld.sshfl [vmem:[#allocation1 + $0x28] sm:$0xff pattern:$0x75316420]
    %870 = vrot.lane.b32.xlu0 %v864, 108
    %v871 = vpop.permute.xlu0 %870
    %872 = vrot.lane.b32.xlu0 %v865, 108
    %v873 = vpop.permute.xlu0 %872
    %874 = vrot.lane.b32.xlu0 %v866, 108
    %v875 = vpop.permute.xlu0 %874
    %876 = vrot.lane.b32.xlu0 %v867, 108
    %v877 = vpop.permute.xlu0 %876
    %878 = vrot.lane.b32.xlu0 %v868, 108
    %v879 = vpop.permute.xlu0 %878
    %880 = vrot.lane.b32.xlu0 %v869, 108
    %v881 = vpop.permute.xlu0 %880
    %vm882 = vcmask 883712
    %v883 = vsel %vm882, %v871, %v873
    %v884 = vsel %vm882, %v873, %v875
    %v885 = vsel %vm882, %v875, %v877
    %v886 = vsel %vm882, %v877, %v879
    %v887 = vsel %vm882, %v879, %v881
    %894 = vst [vmem:[#allocation4 + $0x90] sm:$0xf0] %v883
    %895 = vst [vmem:[#allocation4 + $0x98] sm:$0xf0] %v884
    %896 = vst [vmem:[#allocation4 + $0xa0] sm:$0xf0] %v885
    %897 = vst [vmem:[#allocation4 + $0xa8] sm:$0xf0] %v886
    %898 = vst [vmem:[#allocation4 + $0xb0] sm:$0xf0] %v887
    %899 = vst.msk [vmem:[#allocation4 + $0xb8] sm:$0xf0] %vm613, %v881
    %v900 = vld [vmem:[#allocation3] sm:$0xff]
    %v901 = vld [vmem:[#allocation3 + $0x8] sm:$0xff]
    %v902 = vld [vmem:[#allocation3 + $0x10] sm:$0xff]
    %906 = vst [vmem:[#allocation1] ss:$2 sm:$0xff] %v900
    %s907 = scalar_lea.vmem [#allocation1], 16
    %908 = vst [vmem:[%s907] ss:$2 sm:$0xff] %v901
    %s909 = scalar_lea.vmem [#allocation1], 32
    %910 = vst [vmem:[%s909] ss:$2 sm:$0xff] %v902
    %v911 = vld.sshfl [vmem:[#allocation1] sm:$0xff pattern:$0x75316420]
    %v912 = vld.sshfl [vmem:[#allocation1 + $0x8] sm:$0xff pattern:$0x75316420]
    %v913 = vld.sshfl [vmem:[#allocation1 + $0x10] sm:$0xff pattern:$0x75316420]
    %v914 = vld.sshfl [vmem:[#allocation1 + $0x18] sm:$0xff pattern:$0x75316420]
    %v915 = vld.sshfl [vmem:[#allocation1 + $0x20] sm:$0xff pattern:$0x75316420]
    %v916 = vld.sshfl [vmem:[#allocation1 + $0x28] sm:$0xff pattern:$0x75316420]
    %917 = vrot.lane.b32.xlu0 %v911, 107
    %v918 = vpop.permute.xlu0 %917
    %919 = vrot.lane.b32.xlu0 %v912, 107
    %v920 = vpop.permute.xlu0 %919
    %921 = vrot.lane.b32.xlu0 %v913, 107
    %v922 = vpop.permute.xlu0 %921
    %923 = vrot.lane.b32.xlu0 %v914, 107
    %v924 = vpop.permute.xlu0 %923
    %925 = vrot.lane.b32.xlu0 %v915, 107
    %v926 = vpop.permute.xlu0 %925
    %927 = vrot.lane.b32.xlu0 %v916, 107
    %v928 = vpop.permute.xlu0 %927
    %vm929 = vcmask 875520
    %v930 = vsel %vm929, %v918, %v920
    %v931 = vsel %vm929, %v920, %v922
    %v932 = vsel %vm929, %v922, %v924
    %v933 = vsel %vm929, %v924, %v926
    %v934 = vsel %vm929, %v926, %v928
    %941 = vst [vmem:[#allocation4 + $0xc0] sm:$0xf] %v930
    %942 = vst [vmem:[#allocation4 + $0xc8] sm:$0xf] %v931
    %943 = vst [vmem:[#allocation4 + $0xd0] sm:$0xf] %v932
    %944 = vst [vmem:[#allocation4 + $0xd8] sm:$0xf] %v933
    %945 = vst [vmem:[#allocation4 + $0xe0] sm:$0xf] %v934
    %946 = vst.msk [vmem:[#allocation4 + $0xe8] sm:$0xf] %vm564, %v928
    %v947 = vld [vmem:[#allocation3] sm:$0xff]
    %v948 = vld [vmem:[#allocation3 + $0x8] sm:$0xff]
    %v949 = vld [vmem:[#allocation3 + $0x10] sm:$0xff]
    %s953 = scalar_lea.vmem [#allocation1], 1
    %954 = vst [vmem:[%s953] ss:$2 sm:$0xff] %v947
    %s955 = scalar_lea.vmem [#allocation1], 17
    %956 = vst [vmem:[%s955] ss:$2 sm:$0xff] %v948
    %s957 = scalar_lea.vmem [#allocation1], 33
    %958 = vst [vmem:[%s957] ss:$2 sm:$0xff] %v949
    %v959 = vld.sshfl [vmem:[#allocation1] sm:$0xff pattern:$0x75316420]
    %v960 = vld.sshfl [vmem:[#allocation1 + $0x8] sm:$0xff pattern:$0x75316420]
    %v961 = vld.sshfl [vmem:[#allocation1 + $0x10] sm:$0xff pattern:$0x75316420]
    %v962 = vld.sshfl [vmem:[#allocation1 + $0x18] sm:$0xff pattern:$0x75316420]
    %v963 = vld.sshfl [vmem:[#allocation1 + $0x20] sm:$0xff pattern:$0x75316420]
    %v964 = vld.sshfl [vmem:[#allocation1 + $0x28] sm:$0xff pattern:$0x75316420]
    %965 = vrot.lane.b32.xlu0 %v959, 106
    %v966 = vpop.permute.xlu0 %965
    %967 = vrot.lane.b32.xlu0 %v960, 106
    %v968 = vpop.permute.xlu0 %967
    %969 = vrot.lane.b32.xlu0 %v961, 106
    %v970 = vpop.permute.xlu0 %969
    %971 = vrot.lane.b32.xlu0 %v962, 106
    %v972 = vpop.permute.xlu0 %971
    %973 = vrot.lane.b32.xlu0 %v963, 106
    %v974 = vpop.permute.xlu0 %973
    %975 = vrot.lane.b32.xlu0 %v964, 106
    %v976 = vpop.permute.xlu0 %975
    %v977 = vsel %vm524, %v966, %v968
    %v978 = vsel %vm524, %v968, %v970
    %v979 = vsel %vm524, %v970, %v972
    %v980 = vsel %vm524, %v972, %v974
    %v981 = vsel %vm524, %v974, %v976
    %988 = vst [vmem:[#allocation4 + $0xc0] sm:$0xf0] %v977
    %989 = vst [vmem:[#allocation4 + $0xc8] sm:$0xf0] %v978
    %990 = vst [vmem:[#allocation4 + $0xd0] sm:$0xf0] %v979
    %991 = vst [vmem:[#allocation4 + $0xd8] sm:$0xf0] %v980
    %992 = vst [vmem:[#allocation4 + $0xe0] sm:$0xf0] %v981
    %993 = vst.msk [vmem:[#allocation4 + $0xe8] sm:$0xf0] %vm613, %v976
    %v994 = vld [vmem:[#allocation3] sm:$0xff]
    %v995 = vld [vmem:[#allocation3 + $0x8] sm:$0xff]
    %v996 = vld [vmem:[#allocation3 + $0x10] sm:$0xff]
    %1000 = vst [vmem:[#allocation1] ss:$2 sm:$0xff] %v994
    %s1001 = scalar_lea.vmem [#allocation1], 16
    %1002 = vst [vmem:[%s1001] ss:$2 sm:$0xff] %v995
    %s1003 = scalar_lea.vmem [#allocation1], 32
    %1004 = vst [vmem:[%s1003] ss:$2 sm:$0xff] %v996
    %v1005 = vld.sshfl [vmem:[#allocation1] sm:$0xff pattern:$0x75316420]
    %v1006 = vld.sshfl [vmem:[#allocation1 + $0x8] sm:$0xff pattern:$0x75316420]
    %v1007 = vld.sshfl [vmem:[#allocation1 + $0x10] sm:$0xff pattern:$0x75316420]
    %v1008 = vld.sshfl [vmem:[#allocation1 + $0x18] sm:$0xff pattern:$0x75316420]
    %v1009 = vld.sshfl [vmem:[#allocation1 + $0x20] sm:$0xff pattern:$0x75316420]
    %v1010 = vld.sshfl [vmem:[#allocation1 + $0x28] sm:$0xff pattern:$0x75316420]
    %1011 = vrot.lane.b32.xlu0 %v1005, 92
    %v1012 = vpop.permute.xlu0 %1011
    %1013 = vrot.lane.b32.xlu0 %v1006, 92
    %v1014 = vpop.permute.xlu0 %1013
    %1015 = vrot.lane.b32.xlu0 %v1007, 92
    %v1016 = vpop.permute.xlu0 %1015
    %1017 = vrot.lane.b32.xlu0 %v1008, 92
    %v1018 = vpop.permute.xlu0 %1017
    %1019 = vrot.lane.b32.xlu0 %v1009, 92
    %v1020 = vpop.permute.xlu0 %1019
    %1021 = vrot.lane.b32.xlu0 %v1010, 92
    %v1022 = vpop.permute.xlu0 %1021
    %vm1023 = vcmask 752640
    %v1024 = vsel %vm1023, %v1012, %v1014
    %v1025 = vsel %vm1023, %v1014, %v1016
    %v1026 = vsel %vm1023, %v1016, %v1018
    %v1027 = vsel %vm1023, %v1018, %v1020
    %v1028 = vsel %vm1023, %v1020, %v1022
    %1035 = vst [vmem:[#allocation4 + $0xf0] sm:$0xf] %v1024
    %1036 = vst [vmem:[#allocation4 + $0xf8] sm:$0xf] %v1025
    %1037 = vst [vmem:[#allocation4 + $0x100] sm:$0xf] %v1026
    %1038 = vst [vmem:[#allocation4 + $0x108] sm:$0xf] %v1027
    %1039 = vst [vmem:[#allocation4 + $0x110] sm:$0xf] %v1028
    %1040 = vst.msk [vmem:[#allocation4 + $0x118] sm:$0xf] %vm564, %v1022
    %v1041 = vld [vmem:[#allocation3] sm:$0xff]
    %v1042 = vld [vmem:[#allocation3 + $0x8] sm:$0xff]
    %v1043 = vld [vmem:[#allocation3 + $0x10] sm:$0xff]
    %s1047 = scalar_lea.vmem [#allocation1], 1
    %1048 = vst [vmem:[%s1047] ss:$2 sm:$0xff] %v1041
    %s1049 = scalar_lea.vmem [#allocation1], 17
    %1050 = vst [vmem:[%s1049] ss:$2 sm:$0xff] %v1042
    %s1051 = scalar_lea.vmem [#allocation1], 33
    %1052 = vst [vmem:[%s1051] ss:$2 sm:$0xff] %v1043
    %v1053 = vld.sshfl [vmem:[#allocation1] sm:$0xff pattern:$0x75316420]
    %v1054 = vld.sshfl [vmem:[#allocation1 + $0x8] sm:$0xff pattern:$0x75316420]
    %v1055 = vld.sshfl [vmem:[#allocation1 + $0x10] sm:$0xff pattern:$0x75316420]
    %v1056 = vld.sshfl [vmem:[#allocation1 + $0x18] sm:$0xff pattern:$0x75316420]
    %v1057 = vld.sshfl [vmem:[#allocation1 + $0x20] sm:$0xff pattern:$0x75316420]
    %v1058 = vld.sshfl [vmem:[#allocation1 + $0x28] sm:$0xff pattern:$0x75316420]
    %1059 = vrot.lane.b32.xlu0 %v1053, 91
    %v1060 = vpop.permute.xlu0 %1059
    %1061 = vrot.lane.b32.xlu0 %v1054, 91
    %v1062 = vpop.permute.xlu0 %1061
    %1063 = vrot.lane.b32.xlu0 %v1055, 91
    %v1064 = vpop.permute.xlu0 %1063
    %1065 = vrot.lane.b32.xlu0 %v1056, 91
    %v1066 = vpop.permute.xlu0 %1065
    %1067 = vrot.lane.b32.xlu0 %v1057, 91
    %v1068 = vpop.permute.xlu0 %1067
    %1069 = vrot.lane.b32.xlu0 %v1058, 91
    %v1070 = vpop.permute.xlu0 %1069
    %vm1071 = vcmask 744448
    %v1072 = vsel %vm1071, %v1060, %v1062
    %v1073 = vsel %vm1071, %v1062, %v1064
    %v1074 = vsel %vm1071, %v1064, %v1066
    %v1075 = vsel %vm1071, %v1066, %v1068
    %v1076 = vsel %vm1071, %v1068, %v1070
    %1083 = vst [vmem:[#allocation4 + $0xf0] sm:$0xf0] %v1072
    %1084 = vst [vmem:[#allocation4 + $0xf8] sm:$0xf0] %v1073
    %1085 = vst [vmem:[#allocation4 + $0x100] sm:$0xf0] %v1074
    %1086 = vst [vmem:[#allocation4 + $0x108] sm:$0xf0] %v1075
    %1087 = vst [vmem:[#allocation4 + $0x110] sm:$0xf0] %v1076
    %1088 = vst.msk [vmem:[#allocation4 + $0x118] sm:$0xf0] %vm613, %v1070
    %v1089 = vld [vmem:[#allocation3] sm:$0xff]
    %v1090 = vld [vmem:[#allocation3 + $0x8] sm:$0xff]
    %v1091 = vld [vmem:[#allocation3 + $0x10] sm:$0xff]
    %1095 = vst [vmem:[#allocation1] ss:$2 sm:$0xff] %v1089
    %s1096 = scalar_lea.vmem [#allocation1], 16
    %1097 = vst [vmem:[%s1096] ss:$2 sm:$0xff] %v1090
    %s1098 = scalar_lea.vmem [#allocation1], 32
    %1099 = vst [vmem:[%s1098] ss:$2 sm:$0xff] %v1091
    %v1100 = vld.sshfl [vmem:[#allocation1] sm:$0xff pattern:$0x75316420]
    %v1101 = vld.sshfl [vmem:[#allocation1 + $0x8] sm:$0xff pattern:$0x75316420]
    %v1102 = vld.sshfl [vmem:[#allocation1 + $0x10] sm:$0xff pattern:$0x75316420]
    %v1103 = vld.sshfl [vmem:[#allocation1 + $0x18] sm:$0xff pattern:$0x75316420]
    %v1104 = vld.sshfl [vmem:[#allocation1 + $0x20] sm:$0xff pattern:$0x75316420]
    %v1105 = vld.sshfl [vmem:[#allocation1 + $0x28] sm:$0xff pattern:$0x75316420]
    %1106 = vrot.lane.b32.xlu0 %v1100, 90
    %v1107 = vpop.permute.xlu0 %1106
    %1108 = vrot.lane.b32.xlu0 %v1101, 90
    %v1109 = vpop.permute.xlu0 %1108
    %1110 = vrot.lane.b32.xlu0 %v1102, 90
    %v1111 = vpop.permute.xlu0 %1110
    %1112 = vrot.lane.b32.xlu0 %v1103, 90
    %v1113 = vpop.permute.xlu0 %1112
    %1114 = vrot.lane.b32.xlu0 %v1104, 90
    %v1115 = vpop.permute.xlu0 %1114
    %1116 = vrot.lane.b32.xlu0 %v1105, 90
    %v1117 = vpop.permute.xlu0 %1116
    %vm1118 = vcmask 736256
    %v1119 = vsel %vm1118, %v1107, %v1109
    %v1120 = vsel %vm1118, %v1109, %v1111
    %v1121 = vsel %vm1118, %v1111, %v1113
    %v1122 = vsel %vm1118, %v1113, %v1115
    %v1123 = vsel %vm1118, %v1115, %v1117
    %1130 = vst [vmem:[#allocation4 + $0x120] sm:$0xf] %v1119
    %1131 = vst [vmem:[#allocation4 + $0x128] sm:$0xf] %v1120
    %1132 = vst [vmem:[#allocation4 + $0x130] sm:$0xf] %v1121
    %1133 = vst [vmem:[#allocation4 + $0x138] sm:$0xf] %v1122
    %1134 = vst [vmem:[#allocation4 + $0x140] sm:$0xf] %v1123
    %1135 = vst.msk [vmem:[#allocation4 + $0x148] sm:$0xf] %vm564, %v1117
    %v1136 = vld [vmem:[#allocation3] sm:$0xff]
    %v1137 = vld [vmem:[#allocation3 + $0x8] sm:$0xff]
    %v1138 = vld [vmem:[#allocation3 + $0x10] sm:$0xff]
    %s1142 = scalar_lea.vmem [#allocation1], 1
    %1143 = vst [vmem:[%s1142] ss:$2 sm:$0xff] %v1136
    %s1144 = scalar_lea.vmem [#allocation1], 17
    %1145 = vst [vmem:[%s1144] ss:$2 sm:$0xff] %v1137
    %s1146 = scalar_lea.vmem [#allocation1], 33
    %1147 = vst [vmem:[%s1146] ss:$2 sm:$0xff] %v1138
    %v1148 = vld.sshfl [vmem:[#allocation1] sm:$0xff pattern:$0x75316420]
    %v1149 = vld.sshfl [vmem:[#allocation1 + $0x8] sm:$0xff pattern:$0x75316420]
    %v1150 = vld.sshfl [vmem:[#allocation1 + $0x10] sm:$0xff pattern:$0x75316420]
    %v1151 = vld.sshfl [vmem:[#allocation1 + $0x18] sm:$0xff pattern:$0x75316420]
    %v1152 = vld.sshfl [vmem:[#allocation1 + $0x20] sm:$0xff pattern:$0x75316420]
    %v1153 = vld.sshfl [vmem:[#allocation1 + $0x28] sm:$0xff pattern:$0x75316420]
    %1154 = vrot.lane.b32.xlu0 %v1148, 89
    %v1155 = vpop.permute.xlu0 %1154
    %1156 = vrot.lane.b32.xlu0 %v1149, 89
    %v1157 = vpop.permute.xlu0 %1156
    %1158 = vrot.lane.b32.xlu0 %v1150, 89
    %v1159 = vpop.permute.xlu0 %1158
    %1160 = vrot.lane.b32.xlu0 %v1151, 89
    %v1161 = vpop.permute.xlu0 %1160
    %1162 = vrot.lane.b32.xlu0 %v1152, 89
    %v1163 = vpop.permute.xlu0 %1162
    %1164 = vrot.lane.b32.xlu0 %v1153, 89
    %v1165 = vpop.permute.xlu0 %1164
    %vm1166 = vcmask 728064
    %v1167 = vsel %vm1166, %v1155, %v1157
    %v1168 = vsel %vm1166, %v1157, %v1159
    %v1169 = vsel %vm1166, %v1159, %v1161
    %v1170 = vsel %vm1166, %v1161, %v1163
    %v1171 = vsel %vm1166, %v1163, %v1165
    %1178 = vst [vmem:[#allocation4 + $0x120] sm:$0xf0] %v1167
    %1179 = vst [vmem:[#allocation4 + $0x128] sm:$0xf0] %v1168
    %1180 = vst [vmem:[#allocation4 + $0x130] sm:$0xf0] %v1169
    %1181 = vst [vmem:[#allocation4 + $0x138] sm:$0xf0] %v1170
    %1182 = vst [vmem:[#allocation4 + $0x140] sm:$0xf0] %v1171
    %1183 = vst.msk [vmem:[#allocation4 + $0x148] sm:$0xf0] %vm613, %v1165
    %v1184 = vld [vmem:[#allocation3] sm:$0xff]
    %v1185 = vld [vmem:[#allocation3 + $0x8] sm:$0xff]
    %v1186 = vld [vmem:[#allocation3 + $0x10] sm:$0xff]
    %1190 = vst [vmem:[#allocation1] ss:$2 sm:$0xff] %v1184
    %s1191 = scalar_lea.vmem [#allocation1], 16
    %1192 = vst [vmem:[%s1191] ss:$2 sm:$0xff] %v1185
    %s1193 = scalar_lea.vmem [#allocation1], 32
    %1194 = vst [vmem:[%s1193] ss:$2 sm:$0xff] %v1186
    %v1195 = vld.sshfl [vmem:[#allocation1] sm:$0xff pattern:$0x75316420]
    %v1196 = vld.sshfl [vmem:[#allocation1 + $0x8] sm:$0xff pattern:$0x75316420]
    %v1197 = vld.sshfl [vmem:[#allocation1 + $0x10] sm:$0xff pattern:$0x75316420]
    %v1198 = vld.sshfl [vmem:[#allocation1 + $0x18] sm:$0xff pattern:$0x75316420]
    %v1199 = vld.sshfl [vmem:[#allocation1 + $0x20] sm:$0xff pattern:$0x75316420]
    %v1200 = vld.sshfl [vmem:[#allocation1 + $0x28] sm:$0xff pattern:$0x75316420]
    %1201 = vrot.lane.b32.xlu0 %v1195, 88
    %v1202 = vpop.permute.xlu0 %1201
    %1203 = vrot.lane.b32.xlu0 %v1196, 88
    %v1204 = vpop.permute.xlu0 %1203
    %1205 = vrot.lane.b32.xlu0 %v1197, 88
    %v1206 = vpop.permute.xlu0 %1205
    %1207 = vrot.lane.b32.xlu0 %v1198, 88
    %v1208 = vpop.permute.xlu0 %1207
    %1209 = vrot.lane.b32.xlu0 %v1199, 88
    %v1210 = vpop.permute.xlu0 %1209
    %1211 = vrot.lane.b32.xlu0 %v1200, 88
    %v1212 = vpop.permute.xlu0 %1211
    %vm1213 = vcmask 719872
    %v1214 = vsel %vm1213, %v1202, %v1204
    %v1215 = vsel %vm1213, %v1204, %v1206
    %v1216 = vsel %vm1213, %v1206, %v1208
    %v1217 = vsel %vm1213, %v1208, %v1210
    %v1218 = vsel %vm1213, %v1210, %v1212
    %1225 = vst [vmem:[#allocation4 + $0x150] sm:$0xf] %v1214
    %1226 = vst [vmem:[#allocation4 + $0x158] sm:$0xf] %v1215
    %1227 = vst [vmem:[#allocation4 + $0x160] sm:$0xf] %v1216
    %1228 = vst [vmem:[#allocation4 + $0x168] sm:$0xf] %v1217
    %1229 = vst [vmem:[#allocation4 + $0x170] sm:$0xf] %v1218
    %1230 = vst.msk [vmem:[#allocation4 + $0x178] sm:$0xf] %vm564, %v1212
    %v1231 = vld [vmem:[#allocation3] sm:$0xff]
    %v1232 = vld [vmem:[#allocation3 + $0x8] sm:$0xff]
    %v1233 = vld [vmem:[#allocation3 + $0x10] sm:$0xff]
    %s1237 = scalar_lea.vmem [#allocation1], 1
    %1238 = vst [vmem:[%s1237] ss:$2 sm:$0xff] %v1231
    %s1239 = scalar_lea.vmem [#allocation1], 17
    %1240 = vst [vmem:[%s1239] ss:$2 sm:$0xff] %v1232
    %s1241 = scalar_lea.vmem [#allocation1], 33
    %1242 = vst [vmem:[%s1241] ss:$2 sm:$0xff] %v1233
    %v1243 = vld.sshfl [vmem:[#allocation1] sm:$0xff pattern:$0x75316420]
    %v1244 = vld.sshfl [vmem:[#allocation1 + $0x8] sm:$0xff pattern:$0x75316420]
    %v1245 = vld.sshfl [vmem:[#allocation1 + $0x10] sm:$0xff pattern:$0x75316420]
    %v1246 = vld.sshfl [vmem:[#allocation1 + $0x18] sm:$0xff pattern:$0x75316420]
    %v1247 = vld.sshfl [vmem:[#allocation1 + $0x20] sm:$0xff pattern:$0x75316420]
    %v1248 = vld.sshfl [vmem:[#allocation1 + $0x28] sm:$0xff pattern:$0x75316420]
    %1249 = vrot.lane.b32.xlu0 %v1243, 74
    %v1250 = vpop.permute.xlu0 %1249
    %1251 = vrot.lane.b32.xlu0 %v1244, 74
    %v1252 = vpop.permute.xlu0 %1251
    %1253 = vrot.lane.b32.xlu0 %v1245, 74
    %v1254 = vpop.permute.xlu0 %1253
    %1255 = vrot.lane.b32.xlu0 %v1246, 74
    %v1256 = vpop.permute.xlu0 %1255
    %1257 = vrot.lane.b32.xlu0 %v1247, 74
    %v1258 = vpop.permute.xlu0 %1257
    %1259 = vrot.lane.b32.xlu0 %v1248, 74
    %v1260 = vpop.permute.xlu0 %1259
    %vm1261 = vcmask 605184
    %v1262 = vsel %vm1261, %v1250, %v1252
    %v1263 = vsel %vm1261, %v1252, %v1254
    %v1264 = vsel %vm1261, %v1254, %v1256
    %v1265 = vsel %vm1261, %v1256, %v1258
    %v1266 = vsel %vm1261, %v1258, %v1260
    %1273 = vst [vmem:[#allocation4 + $0x150] sm:$0xf0] %v1262
    %1274 = vst [vmem:[#allocation4 + $0x158] sm:$0xf0] %v1263
    %1275 = vst [vmem:[#allocation4 + $0x160] sm:$0xf0] %v1264
    %1276 = vst [vmem:[#allocation4 + $0x168] sm:$0xf0] %v1265
    %1277 = vst [vmem:[#allocation4 + $0x170] sm:$0xf0] %v1266
    %1278 = vst.msk [vmem:[#allocation4 + $0x178] sm:$0xf0] %vm613, %v1260
    %v1279 = vld [vmem:[#allocation3] sm:$0xff]
    %v1280 = vld [vmem:[#allocation3 + $0x8] sm:$0xff]
    %v1281 = vld [vmem:[#allocation3 + $0x10] sm:$0xff]
    %1285 = vst [vmem:[#allocation1] ss:$2 sm:$0xff] %v1279
    %s1286 = scalar_lea.vmem [#allocation1], 16
    %1287 = vst [vmem:[%s1286] ss:$2 sm:$0xff] %v1280
    %s1288 = scalar_lea.vmem [#allocation1], 32
    %1289 = vst [vmem:[%s1288] ss:$2 sm:$0xff] %v1281
    %v1290 = vld.sshfl [vmem:[#allocation1] sm:$0xff pattern:$0x75316420]
    %v1291 = vld.sshfl [vmem:[#allocation1 + $0x8] sm:$0xff pattern:$0x75316420]
    %v1292 = vld.sshfl [vmem:[#allocation1 + $0x10] sm:$0xff pattern:$0x75316420]
    %v1293 = vld.sshfl [vmem:[#allocation1 + $0x18] sm:$0xff pattern:$0x75316420]
    %v1294 = vld.sshfl [vmem:[#allocation1 + $0x20] sm:$0xff pattern:$0x75316420]
    %v1295 = vld.sshfl [vmem:[#allocation1 + $0x28] sm:$0xff pattern:$0x75316420]
    %1296 = vrot.lane.b32.xlu0 %v1290, 73
    %v1297 = vpop.permute.xlu0 %1296
    %1298 = vrot.lane.b32.xlu0 %v1291, 73
    %v1299 = vpop.permute.xlu0 %1298
    %1300 = vrot.lane.b32.xlu0 %v1292, 73
    %v1301 = vpop.permute.xlu0 %1300
    %1302 = vrot.lane.b32.xlu0 %v1293, 73
    %v1303 = vpop.permute.xlu0 %1302
    %1304 = vrot.lane.b32.xlu0 %v1294, 73
    %v1305 = vpop.permute.xlu0 %1304
    %1306 = vrot.lane.b32.xlu0 %v1295, 73
    %v1307 = vpop.permute.xlu0 %1306
    %vm1308 = vcmask 596992
    %v1309 = vsel %vm1308, %v1297, %v1299
    %v1310 = vsel %vm1308, %v1299, %v1301
    %v1311 = vsel %vm1308, %v1301, %v1303
    %v1312 = vsel %vm1308, %v1303, %v1305
    %v1313 = vsel %vm1308, %v1305, %v1307
    %1320 = vst [vmem:[#allocation4 + $0x180] sm:$0xf] %v1309
    %1321 = vst [vmem:[#allocation4 + $0x188] sm:$0xf] %v1310
    %1322 = vst [vmem:[#allocation4 + $0x190] sm:$0xf] %v1311
    %1323 = vst [vmem:[#allocation4 + $0x198] sm:$0xf] %v1312
    %1324 = vst [vmem:[#allocation4 + $0x1a0] sm:$0xf] %v1313
    %1325 = vst.msk [vmem:[#allocation4 + $0x1a8] sm:$0xf] %vm564, %v1307
    %v1326 = vld [vmem:[#allocation3] sm:$0xff]
    %v1327 = vld [vmem:[#allocation3 + $0x8] sm:$0xff]
    %v1328 = vld [vmem:[#allocation3 + $0x10] sm:$0xff]
    %s1332 = scalar_lea.vmem [#allocation1], 1
    %1333 = vst [vmem:[%s1332] ss:$2 sm:$0xff] %v1326
    %s1334 = scalar_lea.vmem [#allocation1], 17
    %1335 = vst [vmem:[%s1334] ss:$2 sm:$0xff] %v1327
    %s1336 = scalar_lea.vmem [#allocation1], 33
    %1337 = vst [vmem:[%s1336] ss:$2 sm:$0xff] %v1328
    %v1338 = vld.sshfl [vmem:[#allocation1] sm:$0xff pattern:$0x75316420]
    %v1339 = vld.sshfl [vmem:[#allocation1 + $0x8] sm:$0xff pattern:$0x75316420]
    %v1340 = vld.sshfl [vmem:[#allocation1 + $0x10] sm:$0xff pattern:$0x75316420]
    %v1341 = vld.sshfl [vmem:[#allocation1 + $0x18] sm:$0xff pattern:$0x75316420]
    %v1342 = vld.sshfl [vmem:[#allocation1 + $0x20] sm:$0xff pattern:$0x75316420]
    %v1343 = vld.sshfl [vmem:[#allocation1 + $0x28] sm:$0xff pattern:$0x75316420]
    %1344 = vrot.lane.b32.xlu0 %v1338, 72
    %v1345 = vpop.permute.xlu0 %1344
    %1346 = vrot.lane.b32.xlu0 %v1339, 72
    %v1347 = vpop.permute.xlu0 %1346
    %1348 = vrot.lane.b32.xlu0 %v1340, 72
    %v1349 = vpop.permute.xlu0 %1348
    %1350 = vrot.lane.b32.xlu0 %v1341, 72
    %v1351 = vpop.permute.xlu0 %1350
    %1352 = vrot.lane.b32.xlu0 %v1342, 72
    %v1353 = vpop.permute.xlu0 %1352
    %1354 = vrot.lane.b32.xlu0 %v1343, 72
    %v1355 = vpop.permute.xlu0 %1354
    %vm1356 = vcmask 588800
    %v1357 = vsel %vm1356, %v1345, %v1347
    %v1358 = vsel %vm1356, %v1347, %v1349
    %v1359 = vsel %vm1356, %v1349, %v1351
    %v1360 = vsel %vm1356, %v1351, %v1353
    %v1361 = vsel %vm1356, %v1353, %v1355
    %1368 = vst [vmem:[#allocation4 + $0x180] sm:$0xf0] %v1357
    %1369 = vst [vmem:[#allocation4 + $0x188] sm:$0xf0] %v1358
    %1370 = vst [vmem:[#allocation4 + $0x190] sm:$0xf0] %v1359
    %1371 = vst [vmem:[#allocation4 + $0x198] sm:$0xf0] %v1360
    %1372 = vst [vmem:[#allocation4 + $0x1a0] sm:$0xf0] %v1361
    %1373 = vst.msk [vmem:[#allocation4 + $0x1a8] sm:$0xf0] %vm613, %v1355
    %v1374 = vld [vmem:[#allocation3] sm:$0xff]
    %v1375 = vld [vmem:[#allocation3 + $0x8] sm:$0xff]
    %v1376 = vld [vmem:[#allocation3 + $0x10] sm:$0xff]
    %1380 = vst [vmem:[#allocation1] ss:$2 sm:$0xff] %v1374
    %s1381 = scalar_lea.vmem [#allocation1], 16
    %1382 = vst [vmem:[%s1381] ss:$2 sm:$0xff] %v1375
    %s1383 = scalar_lea.vmem [#allocation1], 32
    %1384 = vst [vmem:[%s1383] ss:$2 sm:$0xff] %v1376
    %v1385 = vld.sshfl [vmem:[#allocation1] sm:$0xff pattern:$0x75316420]
    %v1386 = vld.sshfl [vmem:[#allocation1 + $0x8] sm:$0xff pattern:$0x75316420]
    %v1387 = vld.sshfl [vmem:[#allocation1 + $0x10] sm:$0xff pattern:$0x75316420]
    %v1388 = vld.sshfl [vmem:[#allocation1 + $0x18] sm:$0xff pattern:$0x75316420]
    %v1389 = vld.sshfl [vmem:[#allocation1 + $0x20] sm:$0xff pattern:$0x75316420]
    %v1390 = vld.sshfl [vmem:[#allocation1 + $0x28] sm:$0xff pattern:$0x75316420]
    %1391 = vrot.lane.b32.xlu0 %v1385, 71
    %v1392 = vpop.permute.xlu0 %1391
    %1393 = vrot.lane.b32.xlu0 %v1386, 71
    %v1394 = vpop.permute.xlu0 %1393
    %1395 = vrot.lane.b32.xlu0 %v1387, 71
    %v1396 = vpop.permute.xlu0 %1395
    %1397 = vrot.lane.b32.xlu0 %v1388, 71
    %v1398 = vpop.permute.xlu0 %1397
    %1399 = vrot.lane.b32.xlu0 %v1389, 71
    %v1400 = vpop.permute.xlu0 %1399
    %1401 = vrot.lane.b32.xlu0 %v1390, 71
    %v1402 = vpop.permute.xlu0 %1401
    %vm1403 = vcmask 580608
    %v1404 = vsel %vm1403, %v1392, %v1394
    %v1405 = vsel %vm1403, %v1394, %v1396
    %v1406 = vsel %vm1403, %v1396, %v1398
    %v1407 = vsel %vm1403, %v1398, %v1400
    %v1408 = vsel %vm1403, %v1400, %v1402
    %1415 = vst [vmem:[#allocation4 + $0x1b0] sm:$0xf] %v1404
    %1416 = vst [vmem:[#allocation4 + $0x1b8] sm:$0xf] %v1405
    %1417 = vst [vmem:[#allocation4 + $0x1c0] sm:$0xf] %v1406
    %1418 = vst [vmem:[#allocation4 + $0x1c8] sm:$0xf] %v1407
    %1419 = vst [vmem:[#allocation4 + $0x1d0] sm:$0xf] %v1408
    %1420 = vst.msk [vmem:[#allocation4 + $0x1d8] sm:$0xf] %vm564, %v1402
    %v1421 = vld [vmem:[#allocation3] sm:$0xff]
    %v1422 = vld [vmem:[#allocation3 + $0x8] sm:$0xff]
    %v1423 = vld [vmem:[#allocation3 + $0x10] sm:$0xff]
    %s1427 = scalar_lea.vmem [#allocation1], 1
    %1428 = vst [vmem:[%s1427] ss:$2 sm:$0xff] %v1421
    %s1429 = scalar_lea.vmem [#allocation1], 17
    %1430 = vst [vmem:[%s1429] ss:$2 sm:$0xff] %v1422
    %s1431 = scalar_lea.vmem [#allocation1], 33
    %1432 = vst [vmem:[%s1431] ss:$2 sm:$0xff] %v1423
    %v1433 = vld.sshfl [vmem:[#allocation1] sm:$0xff pattern:$0x75316420]
    %v1434 = vld.sshfl [vmem:[#allocation1 + $0x8] sm:$0xff pattern:$0x75316420]
    %v1435 = vld.sshfl [vmem:[#allocation1 + $0x10] sm:$0xff pattern:$0x75316420]
    %v1436 = vld.sshfl [vmem:[#allocation1 + $0x18] sm:$0xff pattern:$0x75316420]
    %v1437 = vld.sshfl [vmem:[#allocation1 + $0x20] sm:$0xff pattern:$0x75316420]
    %v1438 = vld.sshfl [vmem:[#allocation1 + $0x28] sm:$0xff pattern:$0x75316420]
    %1439 = vrot.lane.b32.xlu0 %v1433, 70
    %v1440 = vpop.permute.xlu0 %1439
    %1441 = vrot.lane.b32.xlu0 %v1434, 70
    %v1442 = vpop.permute.xlu0 %1441
    %1443 = vrot.lane.b32.xlu0 %v1435, 70
    %v1444 = vpop.permute.xlu0 %1443
    %1445 = vrot.lane.b32.xlu0 %v1436, 70
    %v1446 = vpop.permute.xlu0 %1445
    %1447 = vrot.lane.b32.xlu0 %v1437, 70
    %v1448 = vpop.permute.xlu0 %1447
    %1449 = vrot.lane.b32.xlu0 %v1438, 70
    %v1450 = vpop.permute.xlu0 %1449
    %vm1451 = vcmask 572416
    %v1452 = vsel %vm1451, %v1440, %v1442
    %v1453 = vsel %vm1451, %v1442, %v1444
    %v1454 = vsel %vm1451, %v1444, %v1446
    %v1455 = vsel %vm1451, %v1446, %v1448
    %v1456 = vsel %vm1451, %v1448, %v1450
    %1463 = vst [vmem:[#allocation4 + $0x1b0] sm:$0xf0] %v1452
    %1464 = vst [vmem:[#allocation4 + $0x1b8] sm:$0xf0] %v1453
    %1465 = vst [vmem:[#allocation4 + $0x1c0] sm:$0xf0] %v1454
    %1466 = vst [vmem:[#allocation4 + $0x1c8] sm:$0xf0] %v1455
    %1467 = vst [vmem:[#allocation4 + $0x1d0] sm:$0xf0] %v1456
    %1468 = vst.msk [vmem:[#allocation4 + $0x1d8] sm:$0xf0] %vm613, %v1450
    %v1469 = vld [vmem:[#allocation3] sm:$0xff]
    %v1470 = vld [vmem:[#allocation3 + $0x8] sm:$0xff]
    %v1471 = vld [vmem:[#allocation3 + $0x10] sm:$0xff]
    %1475 = vst [vmem:[#allocation1] ss:$2 sm:$0xff] %v1469
    %s1476 = scalar_lea.vmem [#allocation1], 16
    %1477 = vst [vmem:[%s1476] ss:$2 sm:$0xff] %v1470
    %s1478 = scalar_lea.vmem [#allocation1], 32
    %1479 = vst [vmem:[%s1478] ss:$2 sm:$0xff] %v1471
    %v1480 = vld.sshfl [vmem:[#allocation1] sm:$0xff pattern:$0x75316420]
    %v1481 = vld.sshfl [vmem:[#allocation1 + $0x8] sm:$0xff pattern:$0x75316420]
    %v1482 = vld.sshfl [vmem:[#allocation1 + $0x10] sm:$0xff pattern:$0x75316420]
    %v1483 = vld.sshfl [vmem:[#allocation1 + $0x18] sm:$0xff pattern:$0x75316420]
    %v1484 = vld.sshfl [vmem:[#allocation1 + $0x20] sm:$0xff pattern:$0x75316420]
    %v1485 = vld.sshfl [vmem:[#allocation1 + $0x28] sm:$0xff pattern:$0x75316420]
    %1486 = vrot.lane.b32.xlu0 %v1480, 56
    %v1487 = vpop.permute.xlu0 %1486
    %1488 = vrot.lane.b32.xlu0 %v1481, 56
    %v1489 = vpop.permute.xlu0 %1488
    %1490 = vrot.lane.b32.xlu0 %v1482, 56
    %v1491 = vpop.permute.xlu0 %1490
    %1492 = vrot.lane.b32.xlu0 %v1483, 56
    %v1493 = vpop.permute.xlu0 %1492
    %1494 = vrot.lane.b32.xlu0 %v1484, 56
    %v1495 = vpop.permute.xlu0 %1494
    %1496 = vrot.lane.b32.xlu0 %v1485, 56
    %v1497 = vpop.permute.xlu0 %1496
    %vm1498 = vcmask 457728
    %v1499 = vsel %vm1498, %v1487, %v1489
    %v1500 = vsel %vm1498, %v1489, %v1491
    %v1501 = vsel %vm1498, %v1491, %v1493
    %v1502 = vsel %vm1498, %v1493, %v1495
    %v1503 = vsel %vm1498, %v1495, %v1497
    %1510 = vst [vmem:[#allocation4 + $0x1e0] sm:$0xf] %v1499
    %1511 = vst [vmem:[#allocation4 + $0x1e8] sm:$0xf] %v1500
    %1512 = vst [vmem:[#allocation4 + $0x1f0] sm:$0xf] %v1501
    %1513 = vst [vmem:[#allocation4 + $0x1f8] sm:$0xf] %v1502
    %1514 = vst [vmem:[#allocation4 + $0x200] sm:$0xf] %v1503
    %1515 = vst.msk [vmem:[#allocation4 + $0x208] sm:$0xf] %vm564, %v1497
    %v1516 = vld [vmem:[#allocation3] sm:$0xff]
    %v1517 = vld [vmem:[#allocation3 + $0x8] sm:$0xff]
    %v1518 = vld [vmem:[#allocation3 + $0x10] sm:$0xff]
    %s1522 = scalar_lea.vmem [#allocation1], 1
    %1523 = vst [vmem:[%s1522] ss:$2 sm:$0xff] %v1516
    %s1524 = scalar_lea.vmem [#allocation1], 17
    %1525 = vst [vmem:[%s1524] ss:$2 sm:$0xff] %v1517
    %s1526 = scalar_lea.vmem [#allocation1], 33
    %1527 = vst [vmem:[%s1526] ss:$2 sm:$0xff] %v1518
    %v1528 = vld.sshfl [vmem:[#allocation1] sm:$0xff pattern:$0x75316420]
    %v1529 = vld.sshfl [vmem:[#allocation1 + $0x8] sm:$0xff pattern:$0x75316420]
    %v1530 = vld.sshfl [vmem:[#allocation1 + $0x10] sm:$0xff pattern:$0x75316420]
    %v1531 = vld.sshfl [vmem:[#allocation1 + $0x18] sm:$0xff pattern:$0x75316420]
    %v1532 = vld.sshfl [vmem:[#allocation1 + $0x20] sm:$0xff pattern:$0x75316420]
    %v1533 = vld.sshfl [vmem:[#allocation1 + $0x28] sm:$0xff pattern:$0x75316420]
    %1534 = vrot.lane.b32.xlu0 %v1528, 55
    %v1535 = vpop.permute.xlu0 %1534
    %1536 = vrot.lane.b32.xlu0 %v1529, 55
    %v1537 = vpop.permute.xlu0 %1536
    %1538 = vrot.lane.b32.xlu0 %v1530, 55
    %v1539 = vpop.permute.xlu0 %1538
    %1540 = vrot.lane.b32.xlu0 %v1531, 55
    %v1541 = vpop.permute.xlu0 %1540
    %1542 = vrot.lane.b32.xlu0 %v1532, 55
    %v1543 = vpop.permute.xlu0 %1542
    %1544 = vrot.lane.b32.xlu0 %v1533, 55
    %v1545 = vpop.permute.xlu0 %1544
    %vm1546 = vcmask 449536
    %v1547 = vsel %vm1546, %v1535, %v1537
    %v1548 = vsel %vm1546, %v1537, %v1539
    %v1549 = vsel %vm1546, %v1539, %v1541
    %v1550 = vsel %vm1546, %v1541, %v1543
    %v1551 = vsel %vm1546, %v1543, %v1545
    %1558 = vst [vmem:[#allocation4 + $0x1e0] sm:$0xf0] %v1547
    %1559 = vst [vmem:[#allocation4 + $0x1e8] sm:$0xf0] %v1548
    %1560 = vst [vmem:[#allocation4 + $0x1f0] sm:$0xf0] %v1549
    %1561 = vst [vmem:[#allocation4 + $0x1f8] sm:$0xf0] %v1550
    %1562 = vst [vmem:[#allocation4 + $0x200] sm:$0xf0] %v1551
    %1563 = vst.msk [vmem:[#allocation4 + $0x208] sm:$0xf0] %vm613, %v1545
    %v1564 = vld [vmem:[#allocation3] sm:$0xff]
    %v1565 = vld [vmem:[#allocation3 + $0x8] sm:$0xff]
    %v1566 = vld [vmem:[#allocation3 + $0x10] sm:$0xff]
    %1570 = vst [vmem:[#allocation1] ss:$2 sm:$0xff] %v1564
    %s1571 = scalar_lea.vmem [#allocation1], 16
    %1572 = vst [vmem:[%s1571] ss:$2 sm:$0xff] %v1565
    %s1573 = scalar_lea.vmem [#allocation1], 32
    %1574 = vst [vmem:[%s1573] ss:$2 sm:$0xff] %v1566
    %v1575 = vld.sshfl [vmem:[#allocation1] sm:$0xff pattern:$0x75316420]
    %v1576 = vld.sshfl [vmem:[#allocation1 + $0x8] sm:$0xff pattern:$0x75316420]
    %v1577 = vld.sshfl [vmem:[#allocation1 + $0x10] sm:$0xff pattern:$0x75316420]
    %v1578 = vld.sshfl [vmem:[#allocation1 + $0x18] sm:$0xff pattern:$0x75316420]
    %v1579 = vld.sshfl [vmem:[#allocation1 + $0x20] sm:$0xff pattern:$0x75316420]
    %v1580 = vld.sshfl [vmem:[#allocation1 + $0x28] sm:$0xff pattern:$0x75316420]
    %1581 = vrot.lane.b32.xlu0 %v1575, 54
    %v1582 = vpop.permute.xlu0 %1581
    %1583 = vrot.lane.b32.xlu0 %v1576, 54
    %v1584 = vpop.permute.xlu0 %1583
    %1585 = vrot.lane.b32.xlu0 %v1577, 54
    %v1586 = vpop.permute.xlu0 %1585
    %1587 = vrot.lane.b32.xlu0 %v1578, 54
    %v1588 = vpop.permute.xlu0 %1587
    %1589 = vrot.lane.b32.xlu0 %v1579, 54
    %v1590 = vpop.permute.xlu0 %1589
    %1591 = vrot.lane.b32.xlu0 %v1580, 54
    %v1592 = vpop.permute.xlu0 %1591
    %vm1593 = vcmask 441344
    %v1594 = vsel %vm1593, %v1582, %v1584
    %v1595 = vsel %vm1593, %v1584, %v1586
    %v1596 = vsel %vm1593, %v1586, %v1588
    %v1597 = vsel %vm1593, %v1588, %v1590
    %v1598 = vsel %vm1593, %v1590, %v1592
    %1605 = vst [vmem:[#allocation4 + $0x210] sm:$0xf] %v1594
    %1606 = vst [vmem:[#allocation4 + $0x218] sm:$0xf] %v1595
    %1607 = vst [vmem:[#allocation4 + $0x220] sm:$0xf] %v1596
    %1608 = vst [vmem:[#allocation4 + $0x228] sm:$0xf] %v1597
    %1609 = vst [vmem:[#allocation4 + $0x230] sm:$0xf] %v1598
    %1610 = vst.msk [vmem:[#allocation4 + $0x238] sm:$0xf] %vm564, %v1592
    %v1611 = vld [vmem:[#allocation3] sm:$0xff]
    %v1612 = vld [vmem:[#allocation3 + $0x8] sm:$0xff]
    %v1613 = vld [vmem:[#allocation3 + $0x10] sm:$0xff]
    %s1617 = scalar_lea.vmem [#allocation1], 1
    %1618 = vst [vmem:[%s1617] ss:$2 sm:$0xff] %v1611
    %s1619 = scalar_lea.vmem [#allocation1], 17
    %1620 = vst [vmem:[%s1619] ss:$2 sm:$0xff] %v1612
    %s1621 = scalar_lea.vmem [#allocation1], 33
    %1622 = vst [vmem:[%s1621] ss:$2 sm:$0xff] %v1613
    %v1623 = vld.sshfl [vmem:[#allocation1] sm:$0xff pattern:$0x75316420]
    %v1624 = vld.sshfl [vmem:[#allocation1 + $0x8] sm:$0xff pattern:$0x75316420]
    %v1625 = vld.sshfl [vmem:[#allocation1 + $0x10] sm:$0xff pattern:$0x75316420]
    %v1626 = vld.sshfl [vmem:[#allocation1 + $0x18] sm:$0xff pattern:$0x75316420]
    %v1627 = vld.sshfl [vmem:[#allocation1 + $0x20] sm:$0xff pattern:$0x75316420]
    %v1628 = vld.sshfl [vmem:[#allocation1 + $0x28] sm:$0xff pattern:$0x75316420]
    %1629 = vrot.lane.b32.xlu0 %v1623, 53
    %v1630 = vpop.permute.xlu0 %1629
    %1631 = vrot.lane.b32.xlu0 %v1624, 53
    %v1632 = vpop.permute.xlu0 %1631
    %1633 = vrot.lane.b32.xlu0 %v1625, 53
    %v1634 = vpop.permute.xlu0 %1633
    %1635 = vrot.lane.b32.xlu0 %v1626, 53
    %v1636 = vpop.permute.xlu0 %1635
    %1637 = vrot.lane.b32.xlu0 %v1627, 53
    %v1638 = vpop.permute.xlu0 %1637
    %1639 = vrot.lane.b32.xlu0 %v1628, 53
    %v1640 = vpop.permute.xlu0 %1639
    %vm1641 = vcmask 433152
    %v1642 = vsel %vm1641, %v1630, %v1632
    %v1643 = vsel %vm1641, %v1632, %v1634
    %v1644 = vsel %vm1641, %v1634, %v1636
    %v1645 = vsel %vm1641, %v1636, %v1638
    %v1646 = vsel %vm1641, %v1638, %v1640
    %1653 = vst [vmem:[#allocation4 + $0x210] sm:$0xf0] %v1642
    %1654 = vst [vmem:[#allocation4 + $0x218] sm:$0xf0] %v1643
    %1655 = vst [vmem:[#allocation4 + $0x220] sm:$0xf0] %v1644
    %1656 = vst [vmem:[#allocation4 + $0x228] sm:$0xf0] %v1645
    %1657 = vst [vmem:[#allocation4 + $0x230] sm:$0xf0] %v1646
    %1658 = vst.msk [vmem:[#allocation4 + $0x238] sm:$0xf0] %vm613, %v1640
    %v1659 = vld [vmem:[#allocation3] sm:$0xff]
    %v1660 = vld [vmem:[#allocation3 + $0x8] sm:$0xff]
    %v1661 = vld [vmem:[#allocation3 + $0x10] sm:$0xff]
    %1665 = vst [vmem:[#allocation1] ss:$2 sm:$0xff] %v1659
    %s1666 = scalar_lea.vmem [#allocation1], 16
    %1667 = vst [vmem:[%s1666] ss:$2 sm:$0xff] %v1660
    %s1668 = scalar_lea.vmem [#allocation1], 32
    %1669 = vst [vmem:[%s1668] ss:$2 sm:$0xff] %v1661
    %v1670 = vld.sshfl [vmem:[#allocation1] sm:$0xff pattern:$0x75316420]
    %v1671 = vld.sshfl [vmem:[#allocation1 + $0x8] sm:$0xff pattern:$0x75316420]
    %v1672 = vld.sshfl [vmem:[#allocation1 + $0x10] sm:$0xff pattern:$0x75316420]
    %v1673 = vld.sshfl [vmem:[#allocation1 + $0x18] sm:$0xff pattern:$0x75316420]
    %v1674 = vld.sshfl [vmem:[#allocation1 + $0x20] sm:$0xff pattern:$0x75316420]
    %v1675 = vld.sshfl [vmem:[#allocation1 + $0x28] sm:$0xff pattern:$0x75316420]
    %1676 = vrot.lane.b32.xlu0 %v1670, 52
    %v1677 = vpop.permute.xlu0 %1676
    %1678 = vrot.lane.b32.xlu0 %v1671, 52
    %v1679 = vpop.permute.xlu0 %1678
    %1680 = vrot.lane.b32.xlu0 %v1672, 52
    %v1681 = vpop.permute.xlu0 %1680
    %1682 = vrot.lane.b32.xlu0 %v1673, 52
    %v1683 = vpop.permute.xlu0 %1682
    %1684 = vrot.lane.b32.xlu0 %v1674, 52
    %v1685 = vpop.permute.xlu0 %1684
    %1686 = vrot.lane.b32.xlu0 %v1675, 52
    %v1687 = vpop.permute.xlu0 %1686
    %vm1688 = vcmask 424960
    %v1689 = vsel %vm1688, %v1677, %v1679
    %v1690 = vsel %vm1688, %v1679, %v1681
    %v1691 = vsel %vm1688, %v1681, %v1683
    %v1692 = vsel %vm1688, %v1683, %v1685
    %v1693 = vsel %vm1688, %v1685, %v1687
    %1700 = vst [vmem:[#allocation4 + $0x240] sm:$0xf] %v1689
    %1701 = vst [vmem:[#allocation4 + $0x248] sm:$0xf] %v1690
    %1702 = vst [vmem:[#allocation4 + $0x250] sm:$0xf] %v1691
    %1703 = vst [vmem:[#allocation4 + $0x258] sm:$0xf] %v1692
    %1704 = vst [vmem:[#allocation4 + $0x260] sm:$0xf] %v1693
    %1705 = vst.msk [vmem:[#allocation4 + $0x268] sm:$0xf] %vm564, %v1687
    %v1706 = vld [vmem:[#allocation21] sm:$0x3]
    %v1707 = vld [vmem:[#allocation4] sm:$0xff]
    %v1708 = vld [vmem:[#allocation4 + $0x8] sm:$0xff]
    %v1709 = vld [vmem:[#allocation4 + $0x10] sm:$0xff]
    %v1710 = vld [vmem:[#allocation4 + $0x18] sm:$0xff]
    %v1711 = vld [vmem:[#allocation4 + $0x20] sm:$0xff]
    %v1712 = vld [vmem:[#allocation4 + $0x28] sm:$0xff]
    %v1713 = vld [vmem:[#allocation4 + $0x30] sm:$0xff]
    %v1714 = vld [vmem:[#allocation4 + $0x38] sm:$0xff]
    %v1715 = vld [vmem:[#allocation4 + $0x40] sm:$0xff]
    %v1716 = vld [vmem:[#allocation4 + $0x48] sm:$0xff]
    %v1717 = vld [vmem:[#allocation4 + $0x50] sm:$0xff]
    %v1718 = vld [vmem:[#allocation4 + $0x58] sm:$0xff]
    %v1719 = vld [vmem:[#allocation4 + $0x60] sm:$0xff]
    %v1720 = vld [vmem:[#allocation4 + $0x68] sm:$0xff]
    %v1721 = vld [vmem:[#allocation4 + $0x70] sm:$0xff]
    %v1722 = vld [vmem:[#allocation4 + $0x78] sm:$0xff]
    %v1723 = vld [vmem:[#allocation4 + $0x80] sm:$0xff]
    %v1724 = vld [vmem:[#allocation4 + $0x88] sm:$0xff]
    %v1725 = vld [vmem:[#allocation4 + $0x90] sm:$0xff]
    %v1726 = vld [vmem:[#allocation4 + $0x98] sm:$0xff]
    %v1727 = vld [vmem:[#allocation4 + $0xa0] sm:$0xff]
    %v1728 = vld [vmem:[#allocation4 + $0xa8] sm:$0xff]
    %v1729 = vld [vmem:[#allocation4 + $0xb0] sm:$0xff]
    %v1730 = vld [vmem:[#allocation4 + $0xb8] sm:$0xff]
    %v1731 = vld [vmem:[#allocation4 + $0xc0] sm:$0xff]
    %v1732 = vld [vmem:[#allocation4 + $0xc8] sm:$0xff]
    %v1733 = vld [vmem:[#allocation4 + $0xd0] sm:$0xff]
    %v1734 = vld [vmem:[#allocation4 + $0xd8] sm:$0xff]
    %v1735 = vld [vmem:[#allocation4 + $0xe0] sm:$0xff]
    %v1736 = vld [vmem:[#allocation4 + $0xe8] sm:$0xff]
    %v1737 = vld [vmem:[#allocation4 + $0xf0] sm:$0xff]
    %v1738 = vld [vmem:[#allocation4 + $0xf8] sm:$0xff]
    %v1739 = vld [vmem:[#allocation4 + $0x100] sm:$0xff]
    %v1740 = vld [vmem:[#allocation4 + $0x108] sm:$0xff]
    %v1741 = vld [vmem:[#allocation4 + $0x110] sm:$0xff]
    %v1742 = vld [vmem:[#allocation4 + $0x118] sm:$0xff]
    %v1743 = vld [vmem:[#allocation4 + $0x120] sm:$0xff]
    %v1744 = vld [vmem:[#allocation4 + $0x128] sm:$0xff]
    %v1745 = vld [vmem:[#allocation4 + $0x130] sm:$0xff]
    %v1746 = vld [vmem:[#allocation4 + $0x138] sm:$0xff]
    %v1747 = vld [vmem:[#allocation4 + $0x140] sm:$0xff]
    %v1748 = vld [vmem:[#allocation4 + $0x148] sm:$0xff]
    %v1749 = vld [vmem:[#allocation4 + $0x150] sm:$0xff]
    %v1750 = vld [vmem:[#allocation4 + $0x158] sm:$0xff]
    %v1751 = vld [vmem:[#allocation4 + $0x160] sm:$0xff]
    %v1752 = vld [vmem:[#allocation4 + $0x168] sm:$0xff]
    %v1753 = vld [vmem:[#allocation4 + $0x170] sm:$0xff]
    %v1754 = vld [vmem:[#allocation4 + $0x178] sm:$0xff]
    %v1755 = vld [vmem:[#allocation4 + $0x180] sm:$0xff]
    %v1756 = vld [vmem:[#allocation4 + $0x188] sm:$0xff]
    %v1757 = vld [vmem:[#allocation4 + $0x190] sm:$0xff]
    %v1758 = vld [vmem:[#allocation4 + $0x198] sm:$0xff]
    %v1759 = vld [vmem:[#allocation4 + $0x1a0] sm:$0xff]
    %v1760 = vld [vmem:[#allocation4 + $0x1a8] sm:$0xff]
    %v1761 = vld [vmem:[#allocation4 + $0x1b0] sm:$0xff]
    %v1762 = vld [vmem:[#allocation4 + $0x1b8] sm:$0xff]
    %v1763 = vld [vmem:[#allocation4 + $0x1c0] sm:$0xff]
    %v1764 = vld [vmem:[#allocation4 + $0x1c8] sm:$0xff]
    %v1765 = vld [vmem:[#allocation4 + $0x1d0] sm:$0xff]
    %v1766 = vld [vmem:[#allocation4 + $0x1d8] sm:$0xff]
    %v1767 = vld [vmem:[#allocation4 + $0x1e0] sm:$0xff]
    %v1768 = vld [vmem:[#allocation4 + $0x1e8] sm:$0xff]
    %v1769 = vld [vmem:[#allocation4 + $0x1f0] sm:$0xff]
    %v1770 = vld [vmem:[#allocation4 + $0x1f8] sm:$0xff]
    %v1771 = vld [vmem:[#allocation4 + $0x200] sm:$0xff]
    %v1772 = vld [vmem:[#allocation4 + $0x208] sm:$0xff]
    %v1773 = vld [vmem:[#allocation4 + $0x210] sm:$0xff]
    %v1774 = vld [vmem:[#allocation4 + $0x218] sm:$0xff]
    %v1775 = vld [vmem:[#allocation4 + $0x220] sm:$0xff]
    %v1776 = vld [vmem:[#allocation4 + $0x228] sm:$0xff]
    %v1777 = vld [vmem:[#allocation4 + $0x230] sm:$0xff]
    %v1778 = vld [vmem:[#allocation4 + $0x238] sm:$0xff]
    %v1779 = vld [vmem:[#allocation4 + $0x240] sm:$0xf]
    %v1780 = vld [vmem:[#allocation4 + $0x248] sm:$0xf]
    %v1781 = vld [vmem:[#allocation4 + $0x250] sm:$0xf]
    %v1782 = vld [vmem:[#allocation4 + $0x258] sm:$0xf]
    %v1783 = vld [vmem:[#allocation4 + $0x260] sm:$0xf]
    %v1784 = vld [vmem:[#allocation4 + $0x268] sm:$0xf]
    %v1785 = vld [vmem:[%s8] sm:$0x3]
    %1787 = vset.pattern.permute.xlu0 0
    %1788 = vperm.xlu0 %1787, %v1785
    %v1789 = vpop.permute.xlu0 %1788
    %vm1791 = vcmask 818176
    %v1793 = vsel %vm1791, %v1706, 0
    %v1796 = vsel %vm182, %v1779, 0
    %v1799 = vsel %vm182, %v1780, 0
    %v1802 = vsel %vm182, %v1781, 0
    %v1805 = vsel %vm182, %v1782, 0
    %v1808 = vsel %vm182, %v1783, 0
    %v1811 = vsel %vm182, %v1784, 0
    %1813 = vmatpush.msra.mxu0 0.0
    %1814 = vmatpush.msra.mxu0 0.0
    %1815 = vmatpush.msra.mxu0 0.0
    %1816 = vmatpush.msra.mxu0 %v1796
    %1817 = vmatpush.msra.mxu0 %v1773
    %1818 = vmatpush.msra.mxu0 %v1767
    %1819 = vmatpush.msra.mxu0 %v1761
    %1820 = vmatpush.msra.mxu0 %v1755
    %1821 = vmatpush.msra.mxu0 %v1749
    %1822 = vmatpush.msra.mxu0 %v1743
    %1823 = vmatpush.msra.mxu0 %v1737
    %1824 = vmatpush.msra.mxu0 %v1731
    %1825 = vmatpush.msra.mxu0 %v1725
    %1826 = vmatpush.msra.mxu0 %v1719
    %1827 = vmatpush.msra.mxu0 %v1713
    %1828 = vmatpush.msra.mxu0 %v1707
    %1829 = vmatmul.f32.gmra.mxu0 %v1793
    %v1830 = vpop.f32.mrf.mxu0
    %v1831 = vadd.f32 %v1789, %v1830
    %1832 = vdwg.mxu0
    %1833 = vmatpush.msra.mxu0 0.0
    %1834 = vmatpush.msra.mxu0 0.0
    %1835 = vmatpush.msra.mxu0 0.0
    %1836 = vmatpush.msra.mxu0 %v1799
    %1837 = vmatpush.msra.mxu0 %v1774
    %1838 = vmatpush.msra.mxu0 %v1768
    %1839 = vmatpush.msra.mxu0 %v1762
    %1840 = vmatpush.msra.mxu0 %v1756
    %1841 = vmatpush.msra.mxu0 %v1750
    %1842 = vmatpush.msra.mxu0 %v1744
    %1843 = vmatpush.msra.mxu0 %v1738
    %1844 = vmatpush.msra.mxu0 %v1732
    %1845 = vmatpush.msra.mxu0 %v1726
    %1846 = vmatpush.msra.mxu0 %v1720
    %1847 = vmatpush.msra.mxu0 %v1714
    %1848 = vmatpush.msra.mxu0 %v1708
    %1849 = vmatmul.f32.gmra.mxu0 %v1793
    %v1850 = vpop.f32.mrf.mxu0
    %v1851 = vadd.f32 %v1789, %v1850
    %1852 = vdwg.mxu0
    %1853 = vmatpush.msra.mxu0 0.0
    %1854 = vmatpush.msra.mxu0 0.0
    %1855 = vmatpush.msra.mxu0 0.0
    %1856 = vmatpush.msra.mxu0 %v1802
    %1857 = vmatpush.msra.mxu0 %v1775
    %1858 = vmatpush.msra.mxu0 %v1769
    %1859 = vmatpush.msra.mxu0 %v1763
    %1860 = vmatpush.msra.mxu0 %v1757
    %1861 = vmatpush.msra.mxu0 %v1751
    %1862 = vmatpush.msra.mxu0 %v1745
    %1863 = vmatpush.msra.mxu0 %v1739
    %1864 = vmatpush.msra.mxu0 %v1733
    %1865 = vmatpush.msra.mxu0 %v1727
    %1866 = vmatpush.msra.mxu0 %v1721
    %1867 = vmatpush.msra.mxu0 %v1715
    %1868 = vmatpush.msra.mxu0 %v1709
    %1869 = vmatmul.f32.gmra.mxu0 %v1793
    %v1870 = vpop.f32.mrf.mxu0
    %v1871 = vadd.f32 %v1789, %v1870
    %1872 = vdwg.mxu0
    %1873 = vmatpush.msra.mxu0 0.0
    %1874 = vmatpush.msra.mxu0 0.0
    %1875 = vmatpush.msra.mxu0 0.0
    %1876 = vmatpush.msra.mxu0 %v1805
    %1877 = vmatpush.msra.mxu0 %v1776
    %1878 = vmatpush.msra.mxu0 %v1770
    %1879 = vmatpush.msra.mxu0 %v1764
    %1880 = vmatpush.msra.mxu0 %v1758
    %1881 = vmatpush.msra.mxu0 %v1752
    %1882 = vmatpush.msra.mxu0 %v1746
    %1883 = vmatpush.msra.mxu0 %v1740
    %1884 = vmatpush.msra.mxu0 %v1734
    %1885 = vmatpush.msra.mxu0 %v1728
    %1886 = vmatpush.msra.mxu0 %v1722
    %1887 = vmatpush.msra.mxu0 %v1716
    %1888 = vmatpush.msra.mxu0 %v1710
    %1889 = vmatmul.f32.gmra.mxu0 %v1793
    %v1890 = vpop.f32.mrf.mxu0
    %v1891 = vadd.f32 %v1789, %v1890
    %1892 = vdwg.mxu0
    %1893 = vmatpush.msra.mxu0 0.0
    %1894 = vmatpush.msra.mxu0 0.0
    %1895 = vmatpush.msra.mxu0 0.0
    %1896 = vmatpush.msra.mxu0 %v1808
    %1897 = vmatpush.msra.mxu0 %v1777
    %1898 = vmatpush.msra.mxu0 %v1771
    %1899 = vmatpush.msra.mxu0 %v1765
    %1900 = vmatpush.msra.mxu0 %v1759
    %1901 = vmatpush.msra.mxu0 %v1753
    %1902 = vmatpush.msra.mxu0 %v1747
    %1903 = vmatpush.msra.mxu0 %v1741
    %1904 = vmatpush.msra.mxu0 %v1735
    %1905 = vmatpush.msra.mxu0 %v1729
    %1906 = vmatpush.msra.mxu0 %v1723
    %1907 = vmatpush.msra.mxu0 %v1717
    %1908 = vmatpush.msra.mxu0 %v1711
    %1909 = vmatmul.f32.gmra.mxu0 %v1793
    %v1910 = vpop.f32.mrf.mxu0
    %v1911 = vadd.f32 %v1789, %v1910
    %1912 = vdwg.mxu0
    %1913 = vmatpush.msra.mxu0 0.0
    %1914 = vmatpush.msra.mxu0 0.0
    %1915 = vmatpush.msra.mxu0 0.0
    %1916 = vmatpush.msra.mxu0 %v1811
    %1917 = vmatpush.msra.mxu0 %v1778
    %1918 = vmatpush.msra.mxu0 %v1772
    %1919 = vmatpush.msra.mxu0 %v1766
    %1920 = vmatpush.msra.mxu0 %v1760
    %1921 = vmatpush.msra.mxu0 %v1754
    %1922 = vmatpush.msra.mxu0 %v1748
    %1923 = vmatpush.msra.mxu0 %v1742
    %1924 = vmatpush.msra.mxu0 %v1736
    %1925 = vmatpush.msra.mxu0 %v1730
    %1926 = vmatpush.msra.mxu0 %v1724
    %1927 = vmatpush.msra.mxu0 %v1718
    %1928 = vmatpush.msra.mxu0 %v1712
    %1929 = vmatmul.f32.gmra.mxu0 %v1793
    %v1930 = vpop.f32.mrf.mxu0
    %v1931 = vadd.f32 %v1789, %v1930
    %1932 = vdwg.mxu0
    %v1933 = vmax.f32 %v1831, 0.0
    %v1934 = vmax.f32 %v1851, 0.0
    %v1935 = vmax.f32 %v1871, 0.0
    %v1936 = vmax.f32 %v1891, 0.0
    %v1937 = vmax.f32 %v1911, 0.0
    %v1938 = vmax.f32 %v1931, 0.0
    %v1941 = vrot.slane %v1934, 4
    %v1942 = vsel %vm182, %v1933, %v1941
    %1944 = vst [vmem:[#allocation5] sm:$0x33] %v1942
    %1945 = vst.msk [vmem:[#allocation5 + $0x8] sm:$0x3] %vm311, %v1935
    %v1950 = vrot.slane %v1936, 4
    %v1951 = vrot.slane %v1938, 4
    %v1952 = vsel %vm182, %v1935, %v1950
    %v1953 = vsel %vm182, %v1937, %v1951
    %v1954 = vrot.slane %v1952, 6
    %v1955 = vrot.slane %v1953, 6
    %1956 = vrot.lane.b32.xlu0 %v1954, 60
    %v1957 = vpop.permute.xlu0 %1956
    %1958 = vrot.lane.b32.xlu0 %v1955, 60
    %v1959 = vpop.permute.xlu0 %1958
    %v1960 = vrot.slane %v1957, 4
    %v1961 = vrot.slane %v1959, 4
    %v1962 = vsel %vm182, %v1960, %v1961
    %vm1963 = vcmask 490496
    %v1964 = vsel %vm1963, %v1957, %v1962
    %v1965 = vsel %vm1963, %v1959, %v1961
    %1968 = vst [vmem:[#allocation5] sm:$0xcc] %v1964
    %vm1969 = vcmask 551938
    %1970 = vst.msk [vmem:[#allocation5 + $0x8] sm:$0xc] %vm1969, %v1965
    %v1971 = vld [vmem:[#allocation5] sm:$0xff]
    %v1972 = vld [vmem:[#allocation5 + $0x8] sm:$0xf]
    %v1973 = vld [vmem:[#allocation20] sm:$0xff]
    %v1974 = vld [vmem:[#allocation20 + $0x8] sm:$0xff]
    %v1975 = vld [vmem:[#allocation20 + $0x10] sm:$0xff]
    %v1976 = vld [vmem:[#allocation20 + $0x18] sm:$0xff]
    %v1977 = vld [vmem:[#allocation20 + $0x20] sm:$0xff]
    %v1978 = vld [vmem:[#allocation20 + $0x28] sm:$0xff]
    %v1979 = vld [vmem:[#allocation20 + $0x30] sm:$0xff]
    %v1980 = vld [vmem:[#allocation20 + $0x38] sm:$0xff]
    %v1981 = vld [vmem:[#allocation20 + $0x40] sm:$0xff]
    %v1982 = vld [vmem:[#allocation20 + $0x48] sm:$0xff]
    %v1983 = vld [vmem:[#allocation20 + $0x50] sm:$0xff]
    %v1984 = vld [vmem:[#allocation20 + $0x58] sm:$0xff]
    %v1985 = vld [vmem:[#allocation20 + $0x60] sm:$0xff]
    %v1986 = vld [vmem:[#allocation20 + $0x68] sm:$0xff]
    %v1987 = vld [vmem:[#allocation20 + $0x70] sm:$0xff]
    %v1988 = vld [vmem:[#allocation20 + $0x78] sm:$0xff]
    %v1989 = vld [vmem:[#allocation20 + $0x80] sm:$0xff]
    %v1990 = vld [vmem:[#allocation20 + $0x88] sm:$0xff]
    %v1991 = vld [vmem:[#allocation20 + $0x90] sm:$0xff]
    %v1992 = vld [vmem:[#allocation20 + $0x98] sm:$0xff]
    %v1993 = vld [vmem:[#allocation20 + $0xa0] sm:$0xff]
    %v1994 = vld [vmem:[#allocation20 + $0xa8] sm:$0xff]
    %v1995 = vld [vmem:[#allocation20 + $0xb0] sm:$0xff]
    %v1996 = vld [vmem:[#allocation20 + $0xb8] sm:$0xff]
    %v1997 = vld [vmem:[#allocation20 + $0xc0] sm:$0xff]
    %v1998 = vld [vmem:[#allocation20 + $0xc8] sm:$0xff]
    %v1999 = vld [vmem:[#allocation20 + $0xd0] sm:$0xff]
    %v2000 = vld [vmem:[#allocation20 + $0xd8] sm:$0xff]
    %v2001 = vld [vmem:[#allocation20 + $0xe0] sm:$0xff]
    %v2002 = vld [vmem:[#allocation20 + $0xe8] sm:$0xff]
    %v2003 = vld [vmem:[#allocation20 + $0xf0] sm:$0xff]
    %v2004 = vld [vmem:[#allocation20 + $0xf8] sm:$0xff]
    %v2005 = vld [vmem:[#allocation20 + $0x100] sm:$0xff]
    %v2006 = vld [vmem:[#allocation20 + $0x108] sm:$0xff]
    %v2007 = vld [vmem:[#allocation20 + $0x110] sm:$0xff]
    %v2008 = vld [vmem:[#allocation20 + $0x118] sm:$0xff]
    %v2009 = vld [vmem:[#allocation20 + $0x120] sm:$0xff]
    %v2010 = vld [vmem:[#allocation20 + $0x128] sm:$0xff]
    %v2011 = vld [vmem:[#allocation20 + $0x130] sm:$0xff]
    %v2012 = vld [vmem:[#allocation20 + $0x138] sm:$0xff]
    %v2013 = vld [vmem:[#allocation20 + $0x140] sm:$0xff]
    %v2014 = vld [vmem:[#allocation20 + $0x148] sm:$0xff]
    %v2015 = vld [vmem:[#allocation20 + $0x150] sm:$0xff]
    %v2016 = vld [vmem:[#allocation20 + $0x158] sm:$0xff]
    %v2017 = vld [vmem:[#allocation20 + $0x160] sm:$0xff]
    %v2018 = vld [vmem:[#allocation20 + $0x168] sm:$0xff]
    %v2019 = vld [vmem:[#allocation20 + $0x170] sm:$0xff]
    %v2020 = vld [vmem:[#allocation20 + $0x178] sm:$0xff]
    %v2021 = vld [vmem:[#allocation20 + $0x180] sm:$0xff]
    %v2022 = vld [vmem:[#allocation20 + $0x188] sm:$0xff]
    %v2023 = vld [vmem:[#allocation20 + $0x190] sm:$0xff]
    %v2024 = vld [vmem:[#allocation20 + $0x198] sm:$0xff]
    %v2025 = vld [vmem:[#allocation20 + $0x1a0] sm:$0xff]
    %v2026 = vld [vmem:[#allocation20 + $0x1a8] sm:$0xff]
    %v2027 = vld [vmem:[#allocation20 + $0x1b0] sm:$0xff]
    %v2028 = vld [vmem:[#allocation20 + $0x1b8] sm:$0xff]
    %v2029 = vld [vmem:[#allocation20 + $0x1c0] sm:$0xff]
    %v2030 = vld [vmem:[#allocation20 + $0x1c8] sm:$0xff]
    %v2031 = vld [vmem:[#allocation20 + $0x1d0] sm:$0xff]
    %v2032 = vld [vmem:[#allocation20 + $0x1d8] sm:$0xff]
    %v2033 = vld [vmem:[#allocation20 + $0x1e0] sm:$0xff]
    %v2034 = vld [vmem:[#allocation20 + $0x1e8] sm:$0xff]
    %v2035 = vld [vmem:[#allocation20 + $0x1f0] sm:$0xff]
    %v2036 = vld [vmem:[#allocation20 + $0x1f8] sm:$0xff]
    %v2037 = vld [vmem:[#allocation20 + $0x200] sm:$0xff]
    %v2038 = vld [vmem:[#allocation20 + $0x208] sm:$0xff]
    %v2039 = vld [vmem:[#allocation20 + $0x210] sm:$0xff]
    %v2040 = vld [vmem:[#allocation20 + $0x218] sm:$0xff]
    %v2041 = vld [vmem:[#allocation20 + $0x220] sm:$0xff]
    %v2042 = vld [vmem:[#allocation20 + $0x228] sm:$0xff]
    %v2043 = vld [vmem:[#allocation20 + $0x230] sm:$0xff]
    %v2044 = vld [vmem:[#allocation20 + $0x238] sm:$0xff]
    %v2045 = vld [vmem:[#allocation20 + $0x240] sm:$0xff]
    %v2046 = vld [vmem:[#allocation20 + $0x248] sm:$0xff]
    %v2047 = vld [vmem:[#allocation20 + $0x250] sm:$0xff]
    %v2048 = vld [vmem:[#allocation20 + $0x258] sm:$0xff]
    %v2049 = vld [vmem:[#allocation20 + $0x260] sm:$0xff]
    %v2050 = vld [vmem:[#allocation20 + $0x268] sm:$0xff]
    %v2051 = vld [vmem:[#allocation20 + $0x270] sm:$0xff]
    %v2052 = vld [vmem:[#allocation20 + $0x278] sm:$0xff]
    %v2053 = vld [vmem:[#allocation20 + $0x280] sm:$0xff]
    %v2054 = vld [vmem:[#allocation20 + $0x288] sm:$0xff]
    %v2055 = vld [vmem:[#allocation20 + $0x290] sm:$0xff]
    %v2056 = vld [vmem:[#allocation20 + $0x298] sm:$0xff]
    %v2057 = vld [vmem:[#allocation20 + $0x2a0] sm:$0xff]
    %v2058 = vld [vmem:[#allocation20 + $0x2a8] sm:$0xff]
    %v2059 = vld [vmem:[#allocation20 + $0x2b0] sm:$0xff]
    %v2060 = vld [vmem:[#allocation20 + $0x2b8] sm:$0xff]
    %v2061 = vld [vmem:[#allocation20 + $0x2c0] sm:$0xff]
    %v2062 = vld [vmem:[#allocation20 + $0x2c8] sm:$0xff]
    %v2063 = vld [vmem:[#allocation20 + $0x2d0] sm:$0xff]
    %v2064 = vld [vmem:[#allocation20 + $0x2d8] sm:$0xff]
    %v2065 = vld [vmem:[#allocation20 + $0x2e0] sm:$0xff]
    %v2066 = vld [vmem:[#allocation20 + $0x2e8] sm:$0xff]
    %v2067 = vld [vmem:[#allocation20 + $0x2f0] sm:$0xff]
    %v2068 = vld [vmem:[#allocation20 + $0x2f8] sm:$0xff]
    %v2069 = vld [vmem:[#allocation20 + $0x300] sm:$0xff]
    %v2070 = vld [vmem:[#allocation20 + $0x308] sm:$0xff]
    %v2071 = vld [vmem:[#allocation20 + $0x310] sm:$0xff]
    %v2072 = vld [vmem:[#allocation20 + $0x318] sm:$0xff]
    %v2073 = vld [vmem:[#allocation20 + $0x320] sm:$0xff]
    %v2074 = vld [vmem:[#allocation20 + $0x328] sm:$0xff]
    %v2075 = vld [vmem:[#allocation20 + $0x330] sm:$0xff]
    %v2076 = vld [vmem:[#allocation20 + $0x338] sm:$0xff]
    %v2077 = vld [vmem:[#allocation20 + $0x340] sm:$0xff]
    %v2078 = vld [vmem:[#allocation20 + $0x348] sm:$0xff]
    %v2079 = vld [vmem:[#allocation20 + $0x350] sm:$0xff]
    %v2080 = vld [vmem:[#allocation20 + $0x358] sm:$0xff]
    %v2081 = vld [vmem:[#allocation20 + $0x360] sm:$0xff]
    %v2082 = vld [vmem:[#allocation20 + $0x368] sm:$0xff]
    %v2083 = vld [vmem:[#allocation20 + $0x370] sm:$0xff]
    %v2084 = vld [vmem:[#allocation20 + $0x378] sm:$0xff]
    %v2085 = vld [vmem:[#allocation20 + $0x380] sm:$0xff]
    %v2086 = vld [vmem:[#allocation20 + $0x388] sm:$0xff]
    %v2087 = vld [vmem:[#allocation20 + $0x390] sm:$0xff]
    %v2088 = vld [vmem:[#allocation20 + $0x398] sm:$0xff]
    %v2089 = vld [vmem:[#allocation20 + $0x3a0] sm:$0xff]
    %v2090 = vld [vmem:[#allocation20 + $0x3a8] sm:$0xff]
    %v2091 = vld [vmem:[#allocation20 + $0x3b0] sm:$0xff]
    %v2092 = vld [vmem:[#allocation20 + $0x3b8] sm:$0xff]
    %v2093 = vld [vmem:[#allocation20 + $0x3c0] sm:$0xff]
    %v2094 = vld [vmem:[#allocation20 + $0x3c8] sm:$0xff]
    %v2095 = vld [vmem:[#allocation20 + $0x3d0] sm:$0xff]
    %v2096 = vld [vmem:[#allocation20 + $0x3d8] sm:$0xff]
    %v2097 = vld [vmem:[#allocation20 + $0x3e0] sm:$0xff]
    %v2098 = vld [vmem:[#allocation20 + $0x3e8] sm:$0xff]
    %v2099 = vld [vmem:[#allocation20 + $0x3f0] sm:$0xff]
    %v2100 = vld [vmem:[#allocation20 + $0x3f8] sm:$0xff]
    %v2101 = vld [vmem:[#allocation20 + $0x400] sm:$0xff]
    %v2102 = vld [vmem:[#allocation20 + $0x408] sm:$0xff]
    %v2103 = vld [vmem:[#allocation20 + $0x410] sm:$0xff]
    %v2104 = vld [vmem:[#allocation20 + $0x418] sm:$0xff]
    %v2105 = vld [vmem:[#allocation20 + $0x420] sm:$0xff]
    %v2106 = vld [vmem:[#allocation20 + $0x428] sm:$0xff]
    %v2107 = vld [vmem:[#allocation20 + $0x430] sm:$0xff]
    %v2108 = vld [vmem:[#allocation20 + $0x438] sm:$0xff]
    %v2109 = vld [vmem:[#allocation20 + $0x440] sm:$0xff]
    %v2110 = vld [vmem:[#allocation20 + $0x448] sm:$0xff]
    %v2111 = vld [vmem:[#allocation20 + $0x450] sm:$0xff]
    %v2112 = vld [vmem:[#allocation20 + $0x458] sm:$0xff]
    %v2113 = vld [vmem:[#allocation20 + $0x460] sm:$0xff]
    %v2114 = vld [vmem:[#allocation20 + $0x468] sm:$0xff]
    %v2115 = vld [vmem:[#allocation20 + $0x470] sm:$0xff]
    %v2116 = vld [vmem:[#allocation20 + $0x478] sm:$0xff]
    %v2117 = vld [vmem:[#allocation20 + $0x480] sm:$0xff]
    %v2118 = vld [vmem:[#allocation20 + $0x488] sm:$0xff]
    %v2119 = vld [vmem:[#allocation20 + $0x490] sm:$0xff]
    %v2120 = vld [vmem:[#allocation20 + $0x498] sm:$0xff]
    %v2121 = vld [vmem:[#allocation20 + $0x4a0] sm:$0xff]
    %v2122 = vld [vmem:[#allocation20 + $0x4a8] sm:$0xff]
    %v2123 = vld [vmem:[#allocation20 + $0x4b0] sm:$0xff]
    %v2124 = vld [vmem:[#allocation20 + $0x4b8] sm:$0xff]
    %v2125 = vld [vmem:[#allocation20 + $0x4c0] sm:$0xff]
    %v2126 = vld [vmem:[#allocation20 + $0x4c8] sm:$0xff]
    %v2127 = vld [vmem:[#allocation20 + $0x4d0] sm:$0xff]
    %v2128 = vld [vmem:[#allocation20 + $0x4d8] sm:$0xff]
    %v2129 = vld [vmem:[#allocation20 + $0x4e0] sm:$0xff]
    %v2130 = vld [vmem:[#allocation20 + $0x4e8] sm:$0xff]
    %v2131 = vld [vmem:[#allocation20 + $0x4f0] sm:$0xff]
    %v2132 = vld [vmem:[#allocation20 + $0x4f8] sm:$0xff]
    %v2133 = vld [vmem:[#allocation20 + $0x500] sm:$0xff]
    %v2134 = vld [vmem:[#allocation20 + $0x508] sm:$0xff]
    %v2135 = vld [vmem:[#allocation20 + $0x510] sm:$0xff]
    %v2136 = vld [vmem:[#allocation20 + $0x518] sm:$0xff]
    %v2137 = vld [vmem:[#allocation20 + $0x520] sm:$0xff]
    %v2138 = vld [vmem:[#allocation20 + $0x528] sm:$0xff]
    %v2139 = vld [vmem:[#allocation20 + $0x530] sm:$0xff]
    %v2140 = vld [vmem:[#allocation20 + $0x538] sm:$0xff]
    %v2141 = vld [vmem:[#allocation20 + $0x540] sm:$0xff]
    %v2142 = vld [vmem:[#allocation20 + $0x548] sm:$0xff]
    %v2143 = vld [vmem:[#allocation20 + $0x550] sm:$0xff]
    %v2144 = vld [vmem:[#allocation20 + $0x558] sm:$0xff]
    %v2145 = vld [vmem:[#allocation20 + $0x560] sm:$0xff]
    %v2146 = vld [vmem:[#allocation20 + $0x568] sm:$0xff]
    %v2147 = vld [vmem:[#allocation20 + $0x570] sm:$0xff]
    %v2148 = vld [vmem:[#allocation20 + $0x578] sm:$0xff]
    %v2149 = vld [vmem:[#allocation20 + $0x580] sm:$0xff]
    %v2150 = vld [vmem:[#allocation20 + $0x588] sm:$0xff]
    %v2151 = vld [vmem:[#allocation20 + $0x590] sm:$0xff]
    %v2152 = vld [vmem:[#allocation20 + $0x598] sm:$0xff]
    %v2153 = vld [vmem:[#allocation20 + $0x5a0] sm:$0xff]
    %v2154 = vld [vmem:[#allocation20 + $0x5a8] sm:$0xff]
    %v2155 = vld [vmem:[#allocation20 + $0x5b0] sm:$0xff]
    %v2156 = vld [vmem:[#allocation20 + $0x5b8] sm:$0xff]
    %v2157 = vld [vmem:[#allocation20 + $0x5c0] sm:$0xff]
    %v2158 = vld [vmem:[#allocation20 + $0x5c8] sm:$0xff]
    %v2159 = vld [vmem:[#allocation20 + $0x5d0] sm:$0xff]
    %v2160 = vld [vmem:[#allocation20 + $0x5d8] sm:$0xff]
    %v2161 = vld [vmem:[#allocation20 + $0x5e0] sm:$0xff]
    %v2162 = vld [vmem:[#allocation20 + $0x5e8] sm:$0xff]
    %v2163 = vld [vmem:[#allocation20 + $0x5f0] sm:$0xff]
    %v2164 = vld [vmem:[#allocation20 + $0x5f8] sm:$0xff]
    %v2165 = vld [vmem:[#allocation20 + $0x600] sm:$0xff]
    %v2166 = vld [vmem:[#allocation20 + $0x608] sm:$0xff]
    %v2167 = vld [vmem:[#allocation20 + $0x610] sm:$0xff]
    %v2168 = vld [vmem:[#allocation20 + $0x618] sm:$0xff]
    %v2169 = vld [vmem:[#allocation20 + $0x620] sm:$0xff]
    %v2170 = vld [vmem:[#allocation20 + $0x628] sm:$0xff]
    %v2171 = vld [vmem:[#allocation20 + $0x630] sm:$0xff]
    %v2172 = vld [vmem:[#allocation20 + $0x638] sm:$0xff]
    %v2173 = vld [vmem:[#allocation20 + $0x640] sm:$0xff]
    %v2174 = vld [vmem:[#allocation20 + $0x648] sm:$0xff]
    %v2175 = vld [vmem:[#allocation20 + $0x650] sm:$0xff]
    %v2176 = vld [vmem:[#allocation20 + $0x658] sm:$0xff]
    %v2177 = vld [vmem:[#allocation20 + $0x660] sm:$0xff]
    %v2178 = vld [vmem:[#allocation20 + $0x668] sm:$0xff]
    %v2179 = vld [vmem:[#allocation20 + $0x670] sm:$0xff]
    %v2180 = vld [vmem:[#allocation20 + $0x678] sm:$0xff]
    %v2181 = vld [vmem:[#allocation20 + $0x680] sm:$0xff]
    %v2182 = vld [vmem:[#allocation20 + $0x688] sm:$0xff]
    %v2183 = vld [vmem:[#allocation20 + $0x690] sm:$0xff]
    %v2184 = vld [vmem:[#allocation20 + $0x698] sm:$0xff]
    %v2185 = vld [vmem:[#allocation20 + $0x6a0] sm:$0xff]
    %v2186 = vld [vmem:[#allocation20 + $0x6a8] sm:$0xff]
    %v2187 = vld [vmem:[#allocation20 + $0x6b0] sm:$0xff]
    %v2188 = vld [vmem:[#allocation20 + $0x6b8] sm:$0xff]
    %v2189 = vld [vmem:[#allocation20 + $0x6c0] sm:$0xff]
    %v2190 = vld [vmem:[#allocation20 + $0x6c8] sm:$0xff]
    %v2191 = vld [vmem:[#allocation20 + $0x6d0] sm:$0xff]
    %v2192 = vld [vmem:[#allocation20 + $0x6d8] sm:$0xff]
    %v2193 = vld [vmem:[#allocation20 + $0x6e0] sm:$0xff]
    %v2194 = vld [vmem:[#allocation20 + $0x6e8] sm:$0xff]
    %v2195 = vld [vmem:[#allocation20 + $0x6f0] sm:$0xff]
    %v2196 = vld [vmem:[#allocation20 + $0x6f8] sm:$0xff]
    %v2197 = vld [vmem:[#allocation20 + $0x700] sm:$0xff]
    %v2198 = vld [vmem:[#allocation20 + $0x708] sm:$0xff]
    %v2199 = vld [vmem:[#allocation20 + $0x710] sm:$0xff]
    %v2200 = vld [vmem:[#allocation20 + $0x718] sm:$0xff]
    %v2201 = vld [vmem:[#allocation20 + $0x720] sm:$0xff]
    %v2202 = vld [vmem:[#allocation20 + $0x728] sm:$0xff]
    %v2203 = vld [vmem:[#allocation20 + $0x730] sm:$0xff]
    %v2204 = vld [vmem:[#allocation20 + $0x738] sm:$0xff]
    %v2205 = vld [vmem:[#allocation20 + $0x740] sm:$0xff]
    %v2206 = vld [vmem:[#allocation20 + $0x748] sm:$0xff]
    %v2207 = vld [vmem:[#allocation20 + $0x750] sm:$0xff]
    %v2208 = vld [vmem:[#allocation20 + $0x758] sm:$0xff]
    %v2209 = vld [vmem:[#allocation20 + $0x760] sm:$0xff]
    %v2210 = vld [vmem:[#allocation20 + $0x768] sm:$0xff]
    %v2211 = vld [vmem:[#allocation20 + $0x770] sm:$0xff]
    %v2212 = vld [vmem:[#allocation20 + $0x778] sm:$0xff]
    %v2213 = vld [vmem:[#allocation20 + $0x780] sm:$0xff]
    %v2214 = vld [vmem:[#allocation20 + $0x788] sm:$0xff]
    %v2215 = vld [vmem:[#allocation20 + $0x790] sm:$0xff]
    %v2216 = vld [vmem:[#allocation20 + $0x798] sm:$0xff]
    %v2217 = vld [vmem:[#allocation20 + $0x7a0] sm:$0xff]
    %v2218 = vld [vmem:[#allocation20 + $0x7a8] sm:$0xff]
    %v2219 = vld [vmem:[#allocation20 + $0x7b0] sm:$0xff]
    %v2220 = vld [vmem:[#allocation20 + $0x7b8] sm:$0xff]
    %v2221 = vld [vmem:[#allocation20 + $0x7c0] sm:$0xff]
    %v2222 = vld [vmem:[#allocation20 + $0x7c8] sm:$0xff]
    %v2223 = vld [vmem:[#allocation20 + $0x7d0] sm:$0xff]
    %v2224 = vld [vmem:[#allocation20 + $0x7d8] sm:$0xff]
    %v2225 = vld [vmem:[#allocation20 + $0x7e0] sm:$0xff]
    %v2226 = vld [vmem:[#allocation20 + $0x7e8] sm:$0xff]
    %v2227 = vld [vmem:[#allocation20 + $0x7f0] sm:$0xff]
    %v2228 = vld [vmem:[#allocation20 + $0x7f8] sm:$0xff]
    %v2229 = vld [vmem:[#allocation20 + $0x800] sm:$0xff]
    %v2230 = vld [vmem:[#allocation20 + $0x808] sm:$0xff]
    %v2231 = vld [vmem:[#allocation20 + $0x810] sm:$0xff]
    %v2232 = vld [vmem:[#allocation20 + $0x818] sm:$0xff]
    %v2233 = vld [vmem:[#allocation20 + $0x820] sm:$0xff]
    %v2234 = vld [vmem:[#allocation20 + $0x828] sm:$0xff]
    %v2235 = vld [vmem:[#allocation20 + $0x830] sm:$0xff]
    %v2236 = vld [vmem:[#allocation20 + $0x838] sm:$0xff]
    %v2237 = vld [vmem:[#allocation20 + $0x840] sm:$0xff]
    %v2238 = vld [vmem:[#allocation20 + $0x848] sm:$0xff]
    %v2239 = vld [vmem:[#allocation20 + $0x850] sm:$0xff]
    %v2240 = vld [vmem:[#allocation20 + $0x858] sm:$0xff]
    %v2241 = vld [vmem:[#allocation20 + $0x860] sm:$0xff]
    %v2242 = vld [vmem:[#allocation20 + $0x868] sm:$0xff]
    %v2243 = vld [vmem:[#allocation20 + $0x870] sm:$0xff]
    %v2244 = vld [vmem:[#allocation20 + $0x878] sm:$0xff]
    %v2245 = vld [vmem:[#allocation20 + $0x880] sm:$0xff]
    %v2246 = vld [vmem:[#allocation20 + $0x888] sm:$0xff]
    %v2247 = vld [vmem:[#allocation20 + $0x890] sm:$0xff]
    %v2248 = vld [vmem:[#allocation20 + $0x898] sm:$0xff]
    %v2249 = vld [vmem:[#allocation20 + $0x8a0] sm:$0xff]
    %v2250 = vld [vmem:[#allocation20 + $0x8a8] sm:$0xff]
    %v2251 = vld [vmem:[#allocation20 + $0x8b0] sm:$0xff]
    %v2252 = vld [vmem:[#allocation20 + $0x8b8] sm:$0xff]
    %v2253 = vld [vmem:[#allocation20 + $0x8c0] sm:$0xff]
    %v2254 = vld [vmem:[#allocation20 + $0x8c8] sm:$0xff]
    %v2255 = vld [vmem:[#allocation20 + $0x8d0] sm:$0xff]
    %v2256 = vld [vmem:[#allocation20 + $0x8d8] sm:$0xff]
    %v2257 = vld [vmem:[#allocation20 + $0x8e0] sm:$0xff]
    %v2258 = vld [vmem:[#allocation20 + $0x8e8] sm:$0xff]
    %v2259 = vld [vmem:[#allocation20 + $0x8f0] sm:$0xff]
    %v2260 = vld [vmem:[#allocation20 + $0x8f8] sm:$0xff]
    %v2261 = vld [vmem:[#allocation20 + $0x900] sm:$0xff]
    %v2262 = vld [vmem:[#allocation20 + $0x908] sm:$0xff]
    %v2263 = vld [vmem:[#allocation20 + $0x910] sm:$0xff]
    %v2264 = vld [vmem:[#allocation20 + $0x918] sm:$0xff]
    %v2265 = vld [vmem:[#allocation20 + $0x920] sm:$0xff]
    %v2266 = vld [vmem:[#allocation20 + $0x928] sm:$0xff]
    %v2267 = vld [vmem:[#allocation20 + $0x930] sm:$0xff]
    %v2268 = vld [vmem:[#allocation20 + $0x938] sm:$0xff]
    %v2269 = vld [vmem:[#allocation20 + $0x940] sm:$0xff]
    %v2270 = vld [vmem:[#allocation20 + $0x948] sm:$0xff]
    %v2271 = vld [vmem:[#allocation20 + $0x950] sm:$0xff]
    %v2272 = vld [vmem:[#allocation20 + $0x958] sm:$0xff]
    %v2273 = vld [vmem:[#allocation20 + $0x960] sm:$0xff]
    %v2274 = vld [vmem:[#allocation20 + $0x968] sm:$0xff]
    %v2275 = vld [vmem:[#allocation20 + $0x970] sm:$0xff]
    %v2276 = vld [vmem:[#allocation20 + $0x978] sm:$0xff]
    %v2277 = vld [vmem:[#allocation20 + $0x980] sm:$0xff]
    %v2278 = vld [vmem:[#allocation20 + $0x988] sm:$0xff]
    %v2279 = vld [vmem:[#allocation20 + $0x990] sm:$0xff]
    %v2280 = vld [vmem:[#allocation20 + $0x998] sm:$0xff]
    %v2281 = vld [vmem:[#allocation20 + $0x9a0] sm:$0xff]
    %v2282 = vld [vmem:[#allocation20 + $0x9a8] sm:$0xff]
    %v2283 = vld [vmem:[#allocation20 + $0x9b0] sm:$0xff]
    %v2284 = vld [vmem:[#allocation20 + $0x9b8] sm:$0xff]
    %v2285 = vld [vmem:[#allocation20 + $0x9c0] sm:$0xff]
    %v2286 = vld [vmem:[#allocation20 + $0x9c8] sm:$0xff]
    %v2287 = vld [vmem:[#allocation20 + $0x9d0] sm:$0xff]
    %v2288 = vld [vmem:[#allocation20 + $0x9d8] sm:$0xff]
    %v2289 = vld [vmem:[#allocation20 + $0x9e0] sm:$0xff]
    %v2290 = vld [vmem:[#allocation20 + $0x9e8] sm:$0xff]
    %v2291 = vld [vmem:[#allocation20 + $0x9f0] sm:$0xff]
    %v2292 = vld [vmem:[#allocation20 + $0x9f8] sm:$0xff]
    %v2293 = vld [vmem:[#allocation20 + $0xa00] sm:$0xf]
    %v2294 = vld [vmem:[#allocation20 + $0xa08] sm:$0xf]
    %v2295 = vld [vmem:[#allocation20 + $0xa10] sm:$0xf]
    %v2296 = vld [vmem:[#allocation20 + $0xa18] sm:$0xf]
    %v2297 = vld [vmem:[#allocation20 + $0xa20] sm:$0xf]
    %v2298 = vld [vmem:[#allocation20 + $0xa28] sm:$0xf]
    %v2299 = vld [vmem:[#allocation20 + $0xa30] sm:$0xf]
    %v2300 = vld [vmem:[#allocation20 + $0xa38] sm:$0xf]
    %2303 = vst [vmem:[#allocation1] ss:$2 sm:$0xff] %v1971
    %s2304 = scalar_lea.vmem [#allocation1], 16
    %2305 = vst [vmem:[%s2304] ss:$2 sm:$0xff] %v1972
    %v2306 = vld.sshfl [vmem:[#allocation1] sm:$0xff pattern:$0x75316420]
    %v2307 = vld.sshfl [vmem:[#allocation1 + $0x8] sm:$0xff pattern:$0x75316420]
    %v2308 = vld.sshfl [vmem:[#allocation1 + $0x10] sm:$0xff pattern:$0x75316420]
    %vm2311 = vcmask 556032
    %v2312 = vsel %vm2311, %v2308, 0
    %v2315 = vsel %vm182, %v2293, 0
    %v2318 = vsel %vm182, %v2294, 0
    %v2321 = vsel %vm182, %v2295, 0
    %v2324 = vsel %vm182, %v2296, 0
    %v2327 = vsel %vm182, %v2297, 0
    %v2330 = vsel %vm182, %v2298, 0
    %v2333 = vsel %vm182, %v2299, 0
    %v2336 = vsel %vm182, %v2300, 0
    %2338 = vmatpush.msra.mxu0 %v2093
    %2339 = vmatpush.msra.mxu0 %v2085
    %2340 = vmatpush.msra.mxu0 %v2077
    %2341 = vmatpush.msra.mxu0 %v2069
    %2342 = vmatpush.msra.mxu0 %v2061
    %2343 = vmatpush.msra.mxu0 %v2053
    %2344 = vmatpush.msra.mxu0 %v2045
    %2345 = vmatpush.msra.mxu0 %v2037
    %2346 = vmatpush.msra.mxu0 %v2029
    %2347 = vmatpush.msra.mxu0 %v2021
    %2348 = vmatpush.msra.mxu0 %v2013
    %2349 = vmatpush.msra.mxu0 %v2005
    %2350 = vmatpush.msra.mxu0 %v1997
    %2351 = vmatpush.msra.mxu0 %v1989
    %2352 = vmatpush.msra.mxu0 %v1981
    %2353 = vmatpush.msra.mxu0 %v1973
    %2354 = vmatmul.f32.gmra.mxu0 %v2306
    %v2355 = vpop.f32.mrf.mxu0
    %v2356 = vadd.f32 0.0, %v2355
    %2357 = vdwg.mxu0
    %2358 = vmatpush.msra.mxu0 %v2221
    %2359 = vmatpush.msra.mxu0 %v2213
    %2360 = vmatpush.msra.mxu0 %v2205
    %2361 = vmatpush.msra.mxu0 %v2197
    %2362 = vmatpush.msra.mxu0 %v2189
    %2363 = vmatpush.msra.mxu0 %v2181
    %2364 = vmatpush.msra.mxu0 %v2173
    %2365 = vmatpush.msra.mxu0 %v2165
    %2366 = vmatpush.msra.mxu0 %v2157
    %2367 = vmatpush.msra.mxu0 %v2149
    %2368 = vmatpush.msra.mxu0 %v2141
    %2369 = vmatpush.msra.mxu0 %v2133
    %2370 = vmatpush.msra.mxu0 %v2125
    %2371 = vmatpush.msra.mxu0 %v2117
    %2372 = vmatpush.msra.mxu0 %v2109
    %2373 = vmatpush.msra.mxu0 %v2101
    %2374 = vmatmul.f32.gmra.mxu0 %v2307
    %v2375 = vpop.f32.mrf.mxu0
    %v2376 = vadd.f32 %v2356, %v2375
    %2377 = vdwg.mxu0
    %2378 = vmatpush.msra.mxu0 0.0
    %2379 = vmatpush.msra.mxu0 0.0
    %2380 = vmatpush.msra.mxu0 0.0
    %2381 = vmatpush.msra.mxu0 0.0
    %2382 = vmatpush.msra.mxu0 0.0
    %2383 = vmatpush.msra.mxu0 0.0
    %2384 = vmatpush.msra.mxu0 0.0
    %2385 = vmatpush.msra.mxu0 %v2315
    %2386 = vmatpush.msra.mxu0 %v2285
    %2387 = vmatpush.msra.mxu0 %v2277
    %2388 = vmatpush.msra.mxu0 %v2269
    %2389 = vmatpush.msra.mxu0 %v2261
    %2390 = vmatpush.msra.mxu0 %v2253
    %2391 = vmatpush.msra.mxu0 %v2245
    %2392 = vmatpush.msra.mxu0 %v2237
    %2393 = vmatpush.msra.mxu0 %v2229
    %2394 = vmatmul.f32.gmra.mxu0 %v2312
    %v2395 = vpop.f32.mrf.mxu0
    %v2396 = vadd.f32 %v2376, %v2395
    %2397 = vdwg.mxu0
    %2398 = vmatpush.msra.mxu0 %v2094
    %2399 = vmatpush.msra.mxu0 %v2086
    %2400 = vmatpush.msra.mxu0 %v2078
    %2401 = vmatpush.msra.mxu0 %v2070
    %2402 = vmatpush.msra.mxu0 %v2062
    %2403 = vmatpush.msra.mxu0 %v2054
    %2404 = vmatpush.msra.mxu0 %v2046
    %2405 = vmatpush.msra.mxu0 %v2038
    %2406 = vmatpush.msra.mxu0 %v2030
    %2407 = vmatpush.msra.mxu0 %v2022
    %2408 = vmatpush.msra.mxu0 %v2014
    %2409 = vmatpush.msra.mxu0 %v2006
    %2410 = vmatpush.msra.mxu0 %v1998
    %2411 = vmatpush.msra.mxu0 %v1990
    %2412 = vmatpush.msra.mxu0 %v1982
    %2413 = vmatpush.msra.mxu0 %v1974
    %2414 = vmatmul.f32.gmra.mxu0 %v2306
    %v2415 = vpop.f32.mrf.mxu0
    %v2416 = vadd.f32 0.0, %v2415
    %2417 = vdwg.mxu0
    %2418 = vmatpush.msra.mxu0 %v2222
    %2419 = vmatpush.msra.mxu0 %v2214
    %2420 = vmatpush.msra.mxu0 %v2206
    %2421 = vmatpush.msra.mxu0 %v2198
    %2422 = vmatpush.msra.mxu0 %v2190
    %2423 = vmatpush.msra.mxu0 %v2182
    %2424 = vmatpush.msra.mxu0 %v2174
    %2425 = vmatpush.msra.mxu0 %v2166
    %2426 = vmatpush.msra.mxu0 %v2158
    %2427 = vmatpush.msra.mxu0 %v2150
    %2428 = vmatpush.msra.mxu0 %v2142
    %2429 = vmatpush.msra.mxu0 %v2134
    %2430 = vmatpush.msra.mxu0 %v2126
    %2431 = vmatpush.msra.mxu0 %v2118
    %2432 = vmatpush.msra.mxu0 %v2110
    %2433 = vmatpush.msra.mxu0 %v2102
    %2434 = vmatmul.f32.gmra.mxu0 %v2307
    %v2435 = vpop.f32.mrf.mxu0
    %v2436 = vadd.f32 %v2416, %v2435
    %2437 = vdwg.mxu0
    %2438 = vmatpush.msra.mxu0 0.0
    %2439 = vmatpush.msra.mxu0 0.0
    %2440 = vmatpush.msra.mxu0 0.0
    %2441 = vmatpush.msra.mxu0 0.0
    %2442 = vmatpush.msra.mxu0 0.0
    %2443 = vmatpush.msra.mxu0 0.0
    %2444 = vmatpush.msra.mxu0 0.0
    %2445 = vmatpush.msra.mxu0 %v2318
    %2446 = vmatpush.msra.mxu0 %v2286
    %2447 = vmatpush.msra.mxu0 %v2278
    %2448 = vmatpush.msra.mxu0 %v2270
    %2449 = vmatpush.msra.mxu0 %v2262
    %2450 = vmatpush.msra.mxu0 %v2254
    %2451 = vmatpush.msra.mxu0 %v2246
    %2452 = vmatpush.msra.mxu0 %v2238
    %2453 = vmatpush.msra.mxu0 %v2230
    %2454 = vmatmul.f32.gmra.mxu0 %v2312
    %v2455 = vpop.f32.mrf.mxu0
    %v2456 = vadd.f32 %v2436, %v2455
    %2457 = vdwg.mxu0
    %2458 = vmatpush.msra.mxu0 %v2095
    %2459 = vmatpush.msra.mxu0 %v2087
    %2460 = vmatpush.msra.mxu0 %v2079
    %2461 = vmatpush.msra.mxu0 %v2071
    %2462 = vmatpush.msra.mxu0 %v2063
    %2463 = vmatpush.msra.mxu0 %v2055
    %2464 = vmatpush.msra.mxu0 %v2047
    %2465 = vmatpush.msra.mxu0 %v2039
    %2466 = vmatpush.msra.mxu0 %v2031
    %2467 = vmatpush.msra.mxu0 %v2023
    %2468 = vmatpush.msra.mxu0 %v2015
    %2469 = vmatpush.msra.mxu0 %v2007
    %2470 = vmatpush.msra.mxu0 %v1999
    %2471 = vmatpush.msra.mxu0 %v1991
    %2472 = vmatpush.msra.mxu0 %v1983
    %2473 = vmatpush.msra.mxu0 %v1975
    %2474 = vmatmul.f32.gmra.mxu0 %v2306
    %v2475 = vpop.f32.mrf.mxu0
    %v2476 = vadd.f32 0.0, %v2475
    %2477 = vdwg.mxu0
    %2478 = vmatpush.msra.mxu0 %v2223
    %2479 = vmatpush.msra.mxu0 %v2215
    %2480 = vmatpush.msra.mxu0 %v2207
    %2481 = vmatpush.msra.mxu0 %v2199
    %2482 = vmatpush.msra.mxu0 %v2191
    %2483 = vmatpush.msra.mxu0 %v2183
    %2484 = vmatpush.msra.mxu0 %v2175
    %2485 = vmatpush.msra.mxu0 %v2167
    %2486 = vmatpush.msra.mxu0 %v2159
    %2487 = vmatpush.msra.mxu0 %v2151
    %2488 = vmatpush.msra.mxu0 %v2143
    %2489 = vmatpush.msra.mxu0 %v2135
    %2490 = vmatpush.msra.mxu0 %v2127
    %2491 = vmatpush.msra.mxu0 %v2119
    %2492 = vmatpush.msra.mxu0 %v2111
    %2493 = vmatpush.msra.mxu0 %v2103
    %2494 = vmatmul.f32.gmra.mxu0 %v2307
    %v2495 = vpop.f32.mrf.mxu0
    %v2496 = vadd.f32 %v2476, %v2495
    %2497 = vdwg.mxu0
    %2498 = vmatpush.msra.mxu0 0.0
    %2499 = vmatpush.msra.mxu0 0.0
    %2500 = vmatpush.msra.mxu0 0.0
    %2501 = vmatpush.msra.mxu0 0.0
    %2502 = vmatpush.msra.mxu0 0.0
    %2503 = vmatpush.msra.mxu0 0.0
    %2504 = vmatpush.msra.mxu0 0.0
    %2505 = vmatpush.msra.mxu0 %v2321
    %2506 = vmatpush.msra.mxu0 %v2287
    %2507 = vmatpush.msra.mxu0 %v2279
    %2508 = vmatpush.msra.mxu0 %v2271
    %2509 = vmatpush.msra.mxu0 %v2263
    %2510 = vmatpush.msra.mxu0 %v2255
    %2511 = vmatpush.msra.mxu0 %v2247
    %2512 = vmatpush.msra.mxu0 %v2239
    %2513 = vmatpush.msra.mxu0 %v2231
    %2514 = vmatmul.f32.gmra.mxu0 %v2312
    %v2515 = vpop.f32.mrf.mxu0
    %v2516 = vadd.f32 %v2496, %v2515
    %2517 = vdwg.mxu0
    %2518 = vmatpush.msra.mxu0 %v2096
    %2519 = vmatpush.msra.mxu0 %v2088
    %2520 = vmatpush.msra.mxu0 %v2080
    %2521 = vmatpush.msra.mxu0 %v2072
    %2522 = vmatpush.msra.mxu0 %v2064
    %2523 = vmatpush.msra.mxu0 %v2056
    %2524 = vmatpush.msra.mxu0 %v2048
    %2525 = vmatpush.msra.mxu0 %v2040
    %2526 = vmatpush.msra.mxu0 %v2032
    %2527 = vmatpush.msra.mxu0 %v2024
    %2528 = vmatpush.msra.mxu0 %v2016
    %2529 = vmatpush.msra.mxu0 %v2008
    %2530 = vmatpush.msra.mxu0 %v2000
    %2531 = vmatpush.msra.mxu0 %v1992
    %2532 = vmatpush.msra.mxu0 %v1984
    %2533 = vmatpush.msra.mxu0 %v1976
    %2534 = vmatmul.f32.gmra.mxu0 %v2306
    %v2535 = vpop.f32.mrf.mxu0
    %v2536 = vadd.f32 0.0, %v2535
    %2537 = vdwg.mxu0
    %2538 = vmatpush.msra.mxu0 %v2224
    %2539 = vmatpush.msra.mxu0 %v2216
    %2540 = vmatpush.msra.mxu0 %v2208
    %2541 = vmatpush.msra.mxu0 %v2200
    %2542 = vmatpush.msra.mxu0 %v2192
    %2543 = vmatpush.msra.mxu0 %v2184
    %2544 = vmatpush.msra.mxu0 %v2176
    %2545 = vmatpush.msra.mxu0 %v2168
    %2546 = vmatpush.msra.mxu0 %v2160
    %2547 = vmatpush.msra.mxu0 %v2152
    %2548 = vmatpush.msra.mxu0 %v2144
    %2549 = vmatpush.msra.mxu0 %v2136
    %2550 = vmatpush.msra.mxu0 %v2128
    %2551 = vmatpush.msra.mxu0 %v2120
    %2552 = vmatpush.msra.mxu0 %v2112
    %2553 = vmatpush.msra.mxu0 %v2104
    %2554 = vmatmul.f32.gmra.mxu0 %v2307
    %v2555 = vpop.f32.mrf.mxu0
    %v2556 = vadd.f32 %v2536, %v2555
    %2557 = vdwg.mxu0
    %2558 = vmatpush.msra.mxu0 0.0
    %2559 = vmatpush.msra.mxu0 0.0
    %2560 = vmatpush.msra.mxu0 0.0
    %2561 = vmatpush.msra.mxu0 0.0
    %2562 = vmatpush.msra.mxu0 0.0
    %2563 = vmatpush.msra.mxu0 0.0
    %2564 = vmatpush.msra.mxu0 0.0
    %2565 = vmatpush.msra.mxu0 %v2324
    %2566 = vmatpush.msra.mxu0 %v2288
    %2567 = vmatpush.msra.mxu0 %v2280
    %2568 = vmatpush.msra.mxu0 %v2272
    %2569 = vmatpush.msra.mxu0 %v2264
    %2570 = vmatpush.msra.mxu0 %v2256
    %2571 = vmatpush.msra.mxu0 %v2248
    %2572 = vmatpush.msra.mxu0 %v2240
    %2573 = vmatpush.msra.mxu0 %v2232
    %2574 = vmatmul.f32.gmra.mxu0 %v2312
    %v2575 = vpop.f32.mrf.mxu0
    %v2576 = vadd.f32 %v2556, %v2575
    %2577 = vdwg.mxu0
    %2578 = vmatpush.msra.mxu0 %v2097
    %2579 = vmatpush.msra.mxu0 %v2089
    %2580 = vmatpush.msra.mxu0 %v2081
    %2581 = vmatpush.msra.mxu0 %v2073
    %2582 = vmatpush.msra.mxu0 %v2065
    %2583 = vmatpush.msra.mxu0 %v2057
    %2584 = vmatpush.msra.mxu0 %v2049
    %2585 = vmatpush.msra.mxu0 %v2041
    %2586 = vmatpush.msra.mxu0 %v2033
    %2587 = vmatpush.msra.mxu0 %v2025
    %2588 = vmatpush.msra.mxu0 %v2017
    %2589 = vmatpush.msra.mxu0 %v2009
    %2590 = vmatpush.msra.mxu0 %v2001
    %2591 = vmatpush.msra.mxu0 %v1993
    %2592 = vmatpush.msra.mxu0 %v1985
    %2593 = vmatpush.msra.mxu0 %v1977
    %2594 = vmatmul.f32.gmra.mxu0 %v2306
    %v2595 = vpop.f32.mrf.mxu0
    %v2596 = vadd.f32 0.0, %v2595
    %2597 = vdwg.mxu0
    %2598 = vmatpush.msra.mxu0 %v2225
    %2599 = vmatpush.msra.mxu0 %v2217
    %2600 = vmatpush.msra.mxu0 %v2209
    %2601 = vmatpush.msra.mxu0 %v2201
    %2602 = vmatpush.msra.mxu0 %v2193
    %2603 = vmatpush.msra.mxu0 %v2185
    %2604 = vmatpush.msra.mxu0 %v2177
    %2605 = vmatpush.msra.mxu0 %v2169
    %2606 = vmatpush.msra.mxu0 %v2161
    %2607 = vmatpush.msra.mxu0 %v2153
    %2608 = vmatpush.msra.mxu0 %v2145
    %2609 = vmatpush.msra.mxu0 %v2137
    %2610 = vmatpush.msra.mxu0 %v2129
    %2611 = vmatpush.msra.mxu0 %v2121
    %2612 = vmatpush.msra.mxu0 %v2113
    %2613 = vmatpush.msra.mxu0 %v2105
    %2614 = vmatmul.f32.gmra.mxu0 %v2307
    %v2615 = vpop.f32.mrf.mxu0
    %v2616 = vadd.f32 %v2596, %v2615
    %2617 = vdwg.mxu0
    %2618 = vmatpush.msra.mxu0 0.0
    %2619 = vmatpush.msra.mxu0 0.0
    %2620 = vmatpush.msra.mxu0 0.0
    %2621 = vmatpush.msra.mxu0 0.0
    %2622 = vmatpush.msra.mxu0 0.0
    %2623 = vmatpush.msra.mxu0 0.0
    %2624 = vmatpush.msra.mxu0 0.0
    %2625 = vmatpush.msra.mxu0 %v2327
    %2626 = vmatpush.msra.mxu0 %v2289
    %2627 = vmatpush.msra.mxu0 %v2281
    %2628 = vmatpush.msra.mxu0 %v2273
    %2629 = vmatpush.msra.mxu0 %v2265
    %2630 = vmatpush.msra.mxu0 %v2257
    %2631 = vmatpush.msra.mxu0 %v2249
    %2632 = vmatpush.msra.mxu0 %v2241
    %2633 = vmatpush.msra.mxu0 %v2233
    %2634 = vmatmul.f32.gmra.mxu0 %v2312
    %v2635 = vpop.f32.mrf.mxu0
    %v2636 = vadd.f32 %v2616, %v2635
    %2637 = vdwg.mxu0
    %2638 = vmatpush.msra.mxu0 %v2098
    %2639 = vmatpush.msra.mxu0 %v2090
    %2640 = vmatpush.msra.mxu0 %v2082
    %2641 = vmatpush.msra.mxu0 %v2074
    %2642 = vmatpush.msra.mxu0 %v2066
    %2643 = vmatpush.msra.mxu0 %v2058
    %2644 = vmatpush.msra.mxu0 %v2050
    %2645 = vmatpush.msra.mxu0 %v2042
    %2646 = vmatpush.msra.mxu0 %v2034
    %2647 = vmatpush.msra.mxu0 %v2026
    %2648 = vmatpush.msra.mxu0 %v2018
    %2649 = vmatpush.msra.mxu0 %v2010
    %2650 = vmatpush.msra.mxu0 %v2002
    %2651 = vmatpush.msra.mxu0 %v1994
    %2652 = vmatpush.msra.mxu0 %v1986
    %2653 = vmatpush.msra.mxu0 %v1978
    %2654 = vmatmul.f32.gmra.mxu0 %v2306
    %v2655 = vpop.f32.mrf.mxu0
    %v2656 = vadd.f32 0.0, %v2655
    %2657 = vdwg.mxu0
    %2658 = vmatpush.msra.mxu0 %v2226
    %2659 = vmatpush.msra.mxu0 %v2218
    %2660 = vmatpush.msra.mxu0 %v2210
    %2661 = vmatpush.msra.mxu0 %v2202
    %2662 = vmatpush.msra.mxu0 %v2194
    %2663 = vmatpush.msra.mxu0 %v2186
    %2664 = vmatpush.msra.mxu0 %v2178
    %2665 = vmatpush.msra.mxu0 %v2170
    %2666 = vmatpush.msra.mxu0 %v2162
    %2667 = vmatpush.msra.mxu0 %v2154
    %2668 = vmatpush.msra.mxu0 %v2146
    %2669 = vmatpush.msra.mxu0 %v2138
    %2670 = vmatpush.msra.mxu0 %v2130
    %2671 = vmatpush.msra.mxu0 %v2122
    %2672 = vmatpush.msra.mxu0 %v2114
    %2673 = vmatpush.msra.mxu0 %v2106
    %2674 = vmatmul.f32.gmra.mxu0 %v2307
    %v2675 = vpop.f32.mrf.mxu0
    %v2676 = vadd.f32 %v2656, %v2675
    %2677 = vdwg.mxu0
    %2678 = vmatpush.msra.mxu0 0.0
    %2679 = vmatpush.msra.mxu0 0.0
    %2680 = vmatpush.msra.mxu0 0.0
    %2681 = vmatpush.msra.mxu0 0.0
    %2682 = vmatpush.msra.mxu0 0.0
    %2683 = vmatpush.msra.mxu0 0.0
    %2684 = vmatpush.msra.mxu0 0.0
    %2685 = vmatpush.msra.mxu0 %v2330
    %2686 = vmatpush.msra.mxu0 %v2290
    %2687 = vmatpush.msra.mxu0 %v2282
    %2688 = vmatpush.msra.mxu0 %v2274
    %2689 = vmatpush.msra.mxu0 %v2266
    %2690 = vmatpush.msra.mxu0 %v2258
    %2691 = vmatpush.msra.mxu0 %v2250
    %2692 = vmatpush.msra.mxu0 %v2242
    %2693 = vmatpush.msra.mxu0 %v2234
    %2694 = vmatmul.f32.gmra.mxu0 %v2312
    %v2695 = vpop.f32.mrf.mxu0
    %v2696 = vadd.f32 %v2676, %v2695
    %2697 = vdwg.mxu0
    %2698 = vmatpush.msra.mxu0 %v2099
    %2699 = vmatpush.msra.mxu0 %v2091
    %2700 = vmatpush.msra.mxu0 %v2083
    %2701 = vmatpush.msra.mxu0 %v2075
    %2702 = vmatpush.msra.mxu0 %v2067
    %2703 = vmatpush.msra.mxu0 %v2059
    %2704 = vmatpush.msra.mxu0 %v2051
    %2705 = vmatpush.msra.mxu0 %v2043
    %2706 = vmatpush.msra.mxu0 %v2035
    %2707 = vmatpush.msra.mxu0 %v2027
    %2708 = vmatpush.msra.mxu0 %v2019
    %2709 = vmatpush.msra.mxu0 %v2011
    %2710 = vmatpush.msra.mxu0 %v2003
    %2711 = vmatpush.msra.mxu0 %v1995
    %2712 = vmatpush.msra.mxu0 %v1987
    %2713 = vmatpush.msra.mxu0 %v1979
    %2714 = vmatmul.f32.gmra.mxu0 %v2306
    %v2715 = vpop.f32.mrf.mxu0
    %v2716 = vadd.f32 0.0, %v2715
    %2717 = vdwg.mxu0
    %2718 = vmatpush.msra.mxu0 %v2227
    %2719 = vmatpush.msra.mxu0 %v2219
    %2720 = vmatpush.msra.mxu0 %v2211
    %2721 = vmatpush.msra.mxu0 %v2203
    %2722 = vmatpush.msra.mxu0 %v2195
    %2723 = vmatpush.msra.mxu0 %v2187
    %2724 = vmatpush.msra.mxu0 %v2179
    %2725 = vmatpush.msra.mxu0 %v2171
    %2726 = vmatpush.msra.mxu0 %v2163
    %2727 = vmatpush.msra.mxu0 %v2155
    %2728 = vmatpush.msra.mxu0 %v2147
    %2729 = vmatpush.msra.mxu0 %v2139
    %2730 = vmatpush.msra.mxu0 %v2131
    %2731 = vmatpush.msra.mxu0 %v2123
    %2732 = vmatpush.msra.mxu0 %v2115
    %2733 = vmatpush.msra.mxu0 %v2107
    %2734 = vmatmul.f32.gmra.mxu0 %v2307
    %v2735 = vpop.f32.mrf.mxu0
    %v2736 = vadd.f32 %v2716, %v2735
    %2737 = vdwg.mxu0
    %2738 = vmatpush.msra.mxu0 0.0
    %2739 = vmatpush.msra.mxu0 0.0
    %2740 = vmatpush.msra.mxu0 0.0
    %2741 = vmatpush.msra.mxu0 0.0
    %2742 = vmatpush.msra.mxu0 0.0
    %2743 = vmatpush.msra.mxu0 0.0
    %2744 = vmatpush.msra.mxu0 0.0
    %2745 = vmatpush.msra.mxu0 %v2333
    %2746 = vmatpush.msra.mxu0 %v2291
    %2747 = vmatpush.msra.mxu0 %v2283
    %2748 = vmatpush.msra.mxu0 %v2275
    %2749 = vmatpush.msra.mxu0 %v2267
    %2750 = vmatpush.msra.mxu0 %v2259
    %2751 = vmatpush.msra.mxu0 %v2251
    %2752 = vmatpush.msra.mxu0 %v2243
    %2753 = vmatpush.msra.mxu0 %v2235
    %2754 = vmatmul.f32.gmra.mxu0 %v2312
    %v2755 = vpop.f32.mrf.mxu0
    %v2756 = vadd.f32 %v2736, %v2755
    %2757 = vdwg.mxu0
    %2758 = vmatpush.msra.mxu0 %v2100
    %2759 = vmatpush.msra.mxu0 %v2092
    %2760 = vmatpush.msra.mxu0 %v2084
    %2761 = vmatpush.msra.mxu0 %v2076
    %2762 = vmatpush.msra.mxu0 %v2068
    %2763 = vmatpush.msra.mxu0 %v2060
    %2764 = vmatpush.msra.mxu0 %v2052
    %2765 = vmatpush.msra.mxu0 %v2044
    %2766 = vmatpush.msra.mxu0 %v2036
    %2767 = vmatpush.msra.mxu0 %v2028
    %2768 = vmatpush.msra.mxu0 %v2020
    %2769 = vmatpush.msra.mxu0 %v2012
    %2770 = vmatpush.msra.mxu0 %v2004
    %2771 = vmatpush.msra.mxu0 %v1996
    %2772 = vmatpush.msra.mxu0 %v1988
    %2773 = vmatpush.msra.mxu0 %v1980
    %2774 = vmatmul.f32.gmra.mxu0 %v2306
    %v2775 = vpop.f32.mrf.mxu0
    %v2776 = vadd.f32 0.0, %v2775
    %2777 = vdwg.mxu0
    %2778 = vmatpush.msra.mxu0 %v2228
    %2779 = vmatpush.msra.mxu0 %v2220
    %2780 = vmatpush.msra.mxu0 %v2212
    %2781 = vmatpush.msra.mxu0 %v2204
    %2782 = vmatpush.msra.mxu0 %v2196
    %2783 = vmatpush.msra.mxu0 %v2188
    %2784 = vmatpush.msra.mxu0 %v2180
    %2785 = vmatpush.msra.mxu0 %v2172
    %2786 = vmatpush.msra.mxu0 %v2164
    %2787 = vmatpush.msra.mxu0 %v2156
    %2788 = vmatpush.msra.mxu0 %v2148
    %2789 = vmatpush.msra.mxu0 %v2140
    %2790 = vmatpush.msra.mxu0 %v2132
    %2791 = vmatpush.msra.mxu0 %v2124
    %2792 = vmatpush.msra.mxu0 %v2116
    %2793 = vmatpush.msra.mxu0 %v2108
    %2794 = vmatmul.f32.gmra.mxu0 %v2307
    %v2795 = vpop.f32.mrf.mxu0
    %v2796 = vadd.f32 %v2776, %v2795
    %2797 = vdwg.mxu0
    %2798 = vmatpush.msra.mxu0 0.0
    %2799 = vmatpush.msra.mxu0 0.0
    %2800 = vmatpush.msra.mxu0 0.0
    %2801 = vmatpush.msra.mxu0 0.0
    %2802 = vmatpush.msra.mxu0 0.0
    %2803 = vmatpush.msra.mxu0 0.0
    %2804 = vmatpush.msra.mxu0 0.0
    %2805 = vmatpush.msra.mxu0 %v2336
    %2806 = vmatpush.msra.mxu0 %v2292
    %2807 = vmatpush.msra.mxu0 %v2284
    %2808 = vmatpush.msra.mxu0 %v2276
    %2809 = vmatpush.msra.mxu0 %v2268
    %2810 = vmatpush.msra.mxu0 %v2260
    %2811 = vmatpush.msra.mxu0 %v2252
    %2812 = vmatpush.msra.mxu0 %v2244
    %2813 = vmatpush.msra.mxu0 %v2236
    %2814 = vmatmul.f32.gmra.mxu0 %v2312
    %v2815 = vpop.f32.mrf.mxu0
    %v2816 = vadd.f32 %v2796, %v2815
    %2817 = vdwg.mxu0
    %vm2818 = vcmask 533504
    %2819 = vst.msk [vmem:[#allocation6] sm:$0x3] %vm2818, 0.0
    %vm2820 = vcmask 1041936
    %vm2821 = vcmask 27650
    %vm2822 = vmor %vm2821, %vm2820
    %2823 = vst.msk [vmem:[#allocation6 + $0x20] sm:$0xf] %vm2822, 0.0
    %v2832 = vrot.slane %v2456, 6
    %v2833 = vrot.slane %v2516, 4
    %v2834 = vrot.slane %v2576, 2
    %v2835 = vrot.slane %v2696, 6
    %v2836 = vrot.slane %v2756, 4
    %v2837 = vrot.slane %v2816, 2
    %v2838 = vsel %vm303, %v2396, %v2832
    %vm2839 = vcmask 1045508
    %v2840 = vsel %vm2839, %v2833, %v2834
    %v2841 = vsel %vm182, %v2838, %v2840
    %v2842 = vsel %vm303, %v2636, %v2835
    %v2843 = vsel %vm2839, %v2836, %v2837
    %v2844 = vsel %vm182, %v2842, %v2843
    %2845 = vrot.lane.b32.xlu0 %v2841, 66
    %v2846 = vpop.permute.xlu0 %2845
    %2847 = vrot.lane.b32.xlu0 %v2844, 66
    %v2848 = vpop.permute.xlu0 %2847
    %v2849 = vrot.slane %v2846, 6
    %v2850 = vrot.slane %v2848, 6
    %vm2851 = vcmask 539648
    %v2852 = vsel %vm2851, %v2849, %v2846
    %v2853 = vsel %vm303, %v2849, %v2850
    %v2854 = vsel %vm2851, %v2853, %v2848
    %vm2858 = vcmask 1043458
    %vm2859 = vmor %vm2858, %vm2820
    %vm2860 = vmor %vm2839, %vm2859
    %vm2861 = vcmask 1047558
    %vm2862 = vmor %vm2861, %vm2860
    %2863 = vst.msk [vmem:[#allocation6] sm:$0xff] %vm2862, %v2852
    %2864 = vst [vmem:[#allocation6 + $0x8] sm:$0xff] %v2854
    %2865 = vst.msk [vmem:[#allocation6 + $0x10] sm:$0x3] %vm2818, %v2850
    %2866 = vst.sshfl [vmem:[#allocation1] sm:$0xff pattern:$0x73625140] %v2396
    %2867 = vst.sshfl [vmem:[#allocation1 + $0x8] sm:$0xff pattern:$0x73625140] %v2456
    %2868 = vst.sshfl [vmem:[#allocation1 + $0x10] sm:$0xff pattern:$0x73625140] %v2516
    %2869 = vst.sshfl [vmem:[#allocation1 + $0x18] sm:$0xff pattern:$0x73625140] %v2576
    %2870 = vst.sshfl [vmem:[#allocation1 + $0x20] sm:$0xff pattern:$0x73625140] %v2636
    %2871 = vst.sshfl [vmem:[#allocation1 + $0x28] sm:$0xff pattern:$0x73625140] %v2696
    %2872 = vst.sshfl [vmem:[#allocation1 + $0x30] sm:$0xff pattern:$0x73625140] %v2756
    %2873 = vst.sshfl [vmem:[#allocation1 + $0x38] sm:$0xff pattern:$0x73625140] %v2816
    %s2874 = scalar_lea.vmem [#allocation1], 1
    %v2875 = vld [vmem:[%s2874] ss:$4 sm:$0xff]
    %s2876 = scalar_lea.vmem [#allocation1], 33
    %v2877 = vld [vmem:[%s2876] ss:$4 sm:$0xff]
    %2878 = vrot.lane.b32.xlu0 %v2875, 66
    %v2879 = vpop.permute.xlu0 %2878
    %2880 = vrot.lane.b32.xlu0 %v2877, 66
    %v2881 = vpop.permute.xlu0 %2880
    %v2882 = vrot.slane %v2879, 6
    %v2883 = vrot.slane %v2881, 6
    %v2884 = vsel %vm2851, %v2882, %v2879
    %v2885 = vsel %vm303, %v2882, %v2883
    %v2886 = vsel %vm2851, %v2885, %v2881
    %2890 = vst.msk [vmem:[#allocation6 + $0x10] sm:$0xff] %vm2862, %v2884
    %2891 = vst [vmem:[#allocation6 + $0x18] sm:$0xff] %v2886
    %2892 = vst.msk [vmem:[#allocation6 + $0x20] sm:$0x3] %vm2818, %v2883
    %v2893 = vld [vmem:[#allocation6] sm:$0xff]
    %v2894 = vld [vmem:[#allocation6 + $0x8] sm:$0xff]
    %v2895 = vld [vmem:[#allocation6 + $0x10] sm:$0xff]
    %v2896 = vld [vmem:[#allocation6 + $0x18] sm:$0xff]
    %2901 = vst [vmem:[#allocation1] ss:$4 sm:$0xff] %v2893
    %s2902 = scalar_lea.vmem [#allocation1], 32
    %2903 = vst [vmem:[%s2902] ss:$4 sm:$0xff] %v2894
    %v2904 = vld.sshfl [vmem:[#allocation1] sm:$0xff pattern:$0x73625140]
    %v2905 = vld.sshfl [vmem:[#allocation1 + $0x8] sm:$0xff pattern:$0x73625140]
    %v2906 = vld.sshfl [vmem:[#allocation1 + $0x10] sm:$0xff pattern:$0x73625140]
    %v2907 = vld.sshfl [vmem:[#allocation1 + $0x18] sm:$0xff pattern:$0x73625140]
    %v2908 = vld.sshfl [vmem:[#allocation1 + $0x20] sm:$0xff pattern:$0x73625140]
    %v2909 = vld.sshfl [vmem:[#allocation1 + $0x28] sm:$0xff pattern:$0x73625140]
    %v2910 = vld.sshfl [vmem:[#allocation1 + $0x30] sm:$0xff pattern:$0x73625140]
    %v2911 = vld.sshfl [vmem:[#allocation1 + $0x38] sm:$0xff pattern:$0x73625140]
    %2912 = vst [vmem:[#allocation1] ss:$4 sm:$0xff] %v2895
    %2913 = vst [vmem:[%s2902] ss:$4 sm:$0xff] %v2896
    %v2914 = vld.sshfl [vmem:[#allocation1] sm:$0xff pattern:$0x73625140]
    %v2915 = vld.sshfl [vmem:[#allocation1 + $0x8] sm:$0xff pattern:$0x73625140]
    %v2916 = vld.sshfl [vmem:[#allocation1 + $0x10] sm:$0xff pattern:$0x73625140]
    %v2917 = vld.sshfl [vmem:[#allocation1 + $0x18] sm:$0xff pattern:$0x73625140]
    %v2918 = vld.sshfl [vmem:[#allocation1 + $0x20] sm:$0xff pattern:$0x73625140]
    %v2919 = vld.sshfl [vmem:[#allocation1 + $0x28] sm:$0xff pattern:$0x73625140]
    %v2920 = vld.sshfl [vmem:[#allocation1 + $0x30] sm:$0xff pattern:$0x73625140]
    %v2921 = vld.sshfl [vmem:[#allocation1 + $0x38] sm:$0xff pattern:$0x73625140]
    %2938 = vst [vmem:[#allocation7] sm:$0x3] %v2904
    %2939 = vst [vmem:[#allocation7 + $0x8] sm:$0x3] %v2905
    %2940 = vst [vmem:[#allocation7 + $0x10] sm:$0x3] %v2906
    %2941 = vst [vmem:[#allocation7 + $0x18] sm:$0x3] %v2907
    %2942 = vst [vmem:[#allocation7 + $0x20] sm:$0x3] %v2908
    %2943 = vst [vmem:[#allocation7 + $0x28] sm:$0x3] %v2909
    %2944 = vst [vmem:[#allocation7 + $0x30] sm:$0x3] %v2910
    %2945 = vst [vmem:[#allocation7 + $0x38] sm:$0x3] %v2911
    %2946 = vst [vmem:[#allocation7 + $0x40] sm:$0x3] %v2914
    %2947 = vst [vmem:[#allocation7 + $0x48] sm:$0x3] %v2915
    %2948 = vst [vmem:[#allocation7 + $0x50] sm:$0x3] %v2916
    %2949 = vst [vmem:[#allocation7 + $0x58] sm:$0x3] %v2917
    %2950 = vst [vmem:[#allocation7 + $0x60] sm:$0x3] %v2918
    %2951 = vst [vmem:[#allocation7 + $0x68] sm:$0x3] %v2919
    %2952 = vst [vmem:[#allocation7 + $0x70] sm:$0x3] %v2920
    %2953 = vst [vmem:[#allocation7 + $0x78] sm:$0x3] %v2921
    %v2954 = vld [vmem:[#allocation6] sm:$0xff]
    %v2955 = vld [vmem:[#allocation6 + $0x8] sm:$0xff]
    %v2956 = vld [vmem:[#allocation6 + $0x10] sm:$0xff]
    %v2957 = vld [vmem:[#allocation6 + $0x18] sm:$0xff]
    %v2958 = vld [vmem:[#allocation6 + $0x20] sm:$0x3]
    %s2964 = scalar_lea.vmem [#allocation1], 1
    %2965 = vst [vmem:[%s2964] ss:$4 sm:$0xff] %v2954
    %s2966 = scalar_lea.vmem [#allocation1], 33
    %2967 = vst [vmem:[%s2966] ss:$4 sm:$0xff] %v2955
    %v2968 = vld.sshfl [vmem:[#allocation1] sm:$0xff pattern:$0x73625140]
    %v2969 = vld.sshfl [vmem:[#allocation1 + $0x8] sm:$0xff pattern:$0x73625140]
    %v2970 = vld.sshfl [vmem:[#allocation1 + $0x10] sm:$0xff pattern:$0x73625140]
    %v2971 = vld.sshfl [vmem:[#allocation1 + $0x18] sm:$0xff pattern:$0x73625140]
    %v2972 = vld.sshfl [vmem:[#allocation1 + $0x20] sm:$0xff pattern:$0x73625140]
    %v2973 = vld.sshfl [vmem:[#allocation1 + $0x28] sm:$0xff pattern:$0x73625140]
    %v2974 = vld.sshfl [vmem:[#allocation1 + $0x30] sm:$0xff pattern:$0x73625140]
    %v2975 = vld.sshfl [vmem:[#allocation1 + $0x38] sm:$0xff pattern:$0x73625140]
    %2976 = vst [vmem:[%s2964] ss:$4 sm:$0xff] %v2956
    %2977 = vst [vmem:[%s2966] ss:$4 sm:$0xff] %v2957
    %v2978 = vld.sshfl [vmem:[#allocation1] sm:$0xff pattern:$0x73625140]
    %v2979 = vld.sshfl [vmem:[#allocation1 + $0x8] sm:$0xff pattern:$0x73625140]
    %v2980 = vld.sshfl [vmem:[#allocation1 + $0x10] sm:$0xff pattern:$0x73625140]
    %v2981 = vld.sshfl [vmem:[#allocation1 + $0x18] sm:$0xff pattern:$0x73625140]
    %v2982 = vld.sshfl [vmem:[#allocation1 + $0x20] sm:$0xff pattern:$0x73625140]
    %v2983 = vld.sshfl [vmem:[#allocation1 + $0x28] sm:$0xff pattern:$0x73625140]
    %v2984 = vld.sshfl [vmem:[#allocation1 + $0x30] sm:$0xff pattern:$0x73625140]
    %v2985 = vld.sshfl [vmem:[#allocation1 + $0x38] sm:$0xff pattern:$0x73625140]
    %2986 = vst [vmem:[%s2964] ss:$4 sm:$0xff] %v2958
    %v2987 = vld.sshfl [vmem:[#allocation1] sm:$0xff pattern:$0x73625140]
    %2988 = vrot.lane.b32.xlu0 %v2968, 127
    %v2989 = vpop.permute.xlu0 %2988
    %2990 = vrot.lane.b32.xlu0 %v2969, 127
    %v2991 = vpop.permute.xlu0 %2990
    %2992 = vrot.lane.b32.xlu0 %v2970, 127
    %v2993 = vpop.permute.xlu0 %2992
    %2994 = vrot.lane.b32.xlu0 %v2971, 127
    %v2995 = vpop.permute.xlu0 %2994
    %2996 = vrot.lane.b32.xlu0 %v2972, 127
    %v2997 = vpop.permute.xlu0 %2996
    %2998 = vrot.lane.b32.xlu0 %v2973, 127
    %v2999 = vpop.permute.xlu0 %2998
    %3000 = vrot.lane.b32.xlu0 %v2974, 127
    %v3001 = vpop.permute.xlu0 %3000
    %3002 = vrot.lane.b32.xlu0 %v2975, 127
    %v3003 = vpop.permute.xlu0 %3002
    %3004 = vrot.lane.b32.xlu0 %v2978, 127
    %v3005 = vpop.permute.xlu0 %3004
    %3006 = vrot.lane.b32.xlu0 %v2979, 127
    %v3007 = vpop.permute.xlu0 %3006
    %3008 = vrot.lane.b32.xlu0 %v2980, 127
    %v3009 = vpop.permute.xlu0 %3008
    %3010 = vrot.lane.b32.xlu0 %v2981, 127
    %v3011 = vpop.permute.xlu0 %3010
    %3012 = vrot.lane.b32.xlu0 %v2982, 127
    %v3013 = vpop.permute.xlu0 %3012
    %3014 = vrot.lane.b32.xlu0 %v2983, 127
    %v3015 = vpop.permute.xlu0 %3014
    %3016 = vrot.lane.b32.xlu0 %v2984, 127
    %v3017 = vpop.permute.xlu0 %3016
    %3018 = vrot.lane.b32.xlu0 %v2985, 127
    %v3019 = vpop.permute.xlu0 %3018
    %3020 = vrot.lane.b32.xlu0 %v2987, 127
    %v3021 = vpop.permute.xlu0 %3020
    %v3022 = vsel %vm596, %v2989, %v2991
    %v3023 = vsel %vm596, %v2991, %v2993
    %v3024 = vsel %vm596, %v2993, %v2995
    %v3025 = vsel %vm596, %v2995, %v2997
    %v3026 = vsel %vm596, %v2997, %v2999
    %v3027 = vsel %vm596, %v2999, %v3001
    %v3028 = vsel %vm596, %v3001, %v3003
    %v3029 = vsel %vm596, %v3003, %v3005
    %v3030 = vsel %vm596, %v3005, %v3007
    %v3031 = vsel %vm596, %v3007, %v3009
    %v3032 = vsel %vm596, %v3009, %v3011
    %v3033 = vsel %vm596, %v3011, %v3013
    %v3034 = vsel %vm596, %v3013, %v3015
    %v3035 = vsel %vm596, %v3015, %v3017
    %v3036 = vsel %vm596, %v3017, %v3019
    %v3037 = vsel %vm596, %v3019, %v3021
    %3054 = vst [vmem:[#allocation7] sm:$0xc] %v3022
    %3055 = vst [vmem:[#allocation7 + $0x8] sm:$0xc] %v3023
    %3056 = vst [vmem:[#allocation7 + $0x10] sm:$0xc] %v3024
    %3057 = vst [vmem:[#allocation7 + $0x18] sm:$0xc] %v3025
    %3058 = vst [vmem:[#allocation7 + $0x20] sm:$0xc] %v3026
    %3059 = vst [vmem:[#allocation7 + $0x28] sm:$0xc] %v3027
    %3060 = vst [vmem:[#allocation7 + $0x30] sm:$0xc] %v3028
    %3061 = vst [vmem:[#allocation7 + $0x38] sm:$0xc] %v3029
    %3062 = vst [vmem:[#allocation7 + $0x40] sm:$0xc] %v3030
    %3063 = vst [vmem:[#allocation7 + $0x48] sm:$0xc] %v3031
    %3064 = vst [vmem:[#allocation7 + $0x50] sm:$0xc] %v3032
    %3065 = vst [vmem:[#allocation7 + $0x58] sm:$0xc] %v3033
    %3066 = vst [vmem:[#allocation7 + $0x60] sm:$0xc] %v3034
    %3067 = vst [vmem:[#allocation7 + $0x68] sm:$0xc] %v3035
    %3068 = vst [vmem:[#allocation7 + $0x70] sm:$0xc] %v3036
    %3069 = vst [vmem:[#allocation7 + $0x78] sm:$0xc] %v3037
    %v3070 = vld [vmem:[#allocation6] sm:$0xff]
    %v3071 = vld [vmem:[#allocation6 + $0x8] sm:$0xff]
    %v3072 = vld [vmem:[#allocation6 + $0x10] sm:$0xff]
    %v3073 = vld [vmem:[#allocation6 + $0x18] sm:$0xff]
    %v3074 = vld [vmem:[#allocation6 + $0x20] sm:$0x3]
    %s3080 = scalar_lea.vmem [#allocation1], 2
    %3081 = vst [vmem:[%s3080] ss:$4 sm:$0xff] %v3070
    %s3082 = scalar_lea.vmem [#allocation1], 34
    %3083 = vst [vmem:[%s3082] ss:$4 sm:$0xff] %v3071
    %v3084 = vld.sshfl [vmem:[#allocation1] sm:$0xff pattern:$0x73625140]
    %v3085 = vld.sshfl [vmem:[#allocation1 + $0x8] sm:$0xff pattern:$0x73625140]
    %v3086 = vld.sshfl [vmem:[#allocation1 + $0x10] sm:$0xff pattern:$0x73625140]
    %v3087 = vld.sshfl [vmem:[#allocation1 + $0x18] sm:$0xff pattern:$0x73625140]
    %v3088 = vld.sshfl [vmem:[#allocation1 + $0x20] sm:$0xff pattern:$0x73625140]
    %v3089 = vld.sshfl [vmem:[#allocation1 + $0x28] sm:$0xff pattern:$0x73625140]
    %v3090 = vld.sshfl [vmem:[#allocation1 + $0x30] sm:$0xff pattern:$0x73625140]
    %v3091 = vld.sshfl [vmem:[#allocation1 + $0x38] sm:$0xff pattern:$0x73625140]
    %3092 = vst [vmem:[%s3080] ss:$4 sm:$0xff] %v3072
    %3093 = vst [vmem:[%s3082] ss:$4 sm:$0xff] %v3073
    %v3094 = vld.sshfl [vmem:[#allocation1] sm:$0xff pattern:$0x73625140]
    %v3095 = vld.sshfl [vmem:[#allocation1 + $0x8] sm:$0xff pattern:$0x73625140]
    %v3096 = vld.sshfl [vmem:[#allocation1 + $0x10] sm:$0xff pattern:$0x73625140]
    %v3097 = vld.sshfl [vmem:[#allocation1 + $0x18] sm:$0xff pattern:$0x73625140]
    %v3098 = vld.sshfl [vmem:[#allocation1 + $0x20] sm:$0xff pattern:$0x73625140]
    %v3099 = vld.sshfl [vmem:[#allocation1 + $0x28] sm:$0xff pattern:$0x73625140]
    %v3100 = vld.sshfl [vmem:[#allocation1 + $0x30] sm:$0xff pattern:$0x73625140]
    %v3101 = vld.sshfl [vmem:[#allocation1 + $0x38] sm:$0xff pattern:$0x73625140]
    %3102 = vst [vmem:[%s3080] ss:$4 sm:$0xff] %v3074
    %v3103 = vld.sshfl [vmem:[#allocation1] sm:$0xff pattern:$0x73625140]
    %3104 = vrot.lane.b32.xlu0 %v3084, 126
    %v3105 = vpop.permute.xlu0 %3104
    %3106 = vrot.lane.b32.xlu0 %v3085, 126
    %v3107 = vpop.permute.xlu0 %3106
    %3108 = vrot.lane.b32.xlu0 %v3086, 126
    %v3109 = vpop.permute.xlu0 %3108
    %3110 = vrot.lane.b32.xlu0 %v3087, 126
    %v3111 = vpop.permute.xlu0 %3110
    %3112 = vrot.lane.b32.xlu0 %v3088, 126
    %v3113 = vpop.permute.xlu0 %3112
    %3114 = vrot.lane.b32.xlu0 %v3089, 126
    %v3115 = vpop.permute.xlu0 %3114
    %3116 = vrot.lane.b32.xlu0 %v3090, 126
    %v3117 = vpop.permute.xlu0 %3116
    %3118 = vrot.lane.b32.xlu0 %v3091, 126
    %v3119 = vpop.permute.xlu0 %3118
    %3120 = vrot.lane.b32.xlu0 %v3094, 126
    %v3121 = vpop.permute.xlu0 %3120
    %3122 = vrot.lane.b32.xlu0 %v3095, 126
    %v3123 = vpop.permute.xlu0 %3122
    %3124 = vrot.lane.b32.xlu0 %v3096, 126
    %v3125 = vpop.permute.xlu0 %3124
    %3126 = vrot.lane.b32.xlu0 %v3097, 126
    %v3127 = vpop.permute.xlu0 %3126
    %3128 = vrot.lane.b32.xlu0 %v3098, 126
    %v3129 = vpop.permute.xlu0 %3128
    %3130 = vrot.lane.b32.xlu0 %v3099, 126
    %v3131 = vpop.permute.xlu0 %3130
    %3132 = vrot.lane.b32.xlu0 %v3100, 126
    %v3133 = vpop.permute.xlu0 %3132
    %3134 = vrot.lane.b32.xlu0 %v3101, 126
    %v3135 = vpop.permute.xlu0 %3134
    %3136 = vrot.lane.b32.xlu0 %v3103, 126
    %v3137 = vpop.permute.xlu0 %3136
    %v3138 = vsel %vm644, %v3105, %v3107
    %v3139 = vsel %vm644, %v3107, %v3109
    %v3140 = vsel %vm644, %v3109, %v3111
    %v3141 = vsel %vm644, %v3111, %v3113
    %v3142 = vsel %vm644, %v3113, %v3115
    %v3143 = vsel %vm644, %v3115, %v3117
    %v3144 = vsel %vm644, %v3117, %v3119
    %v3145 = vsel %vm644, %v3119, %v3121
    %v3146 = vsel %vm644, %v3121, %v3123
    %v3147 = vsel %vm644, %v3123, %v3125
    %v3148 = vsel %vm644, %v3125, %v3127
    %v3149 = vsel %vm644, %v3127, %v3129
    %v3150 = vsel %vm644, %v3129, %v3131
    %v3151 = vsel %vm644, %v3131, %v3133
    %v3152 = vsel %vm644, %v3133, %v3135
    %v3153 = vsel %vm644, %v3135, %v3137
    %3170 = vst [vmem:[#allocation7] sm:$0x30] %v3138
    %3171 = vst [vmem:[#allocation7 + $0x8] sm:$0x30] %v3139
    %3172 = vst [vmem:[#allocation7 + $0x10] sm:$0x30] %v3140
    %3173 = vst [vmem:[#allocation7 + $0x18] sm:$0x30] %v3141
    %3174 = vst [vmem:[#allocation7 + $0x20] sm:$0x30] %v3142
    %3175 = vst [vmem:[#allocation7 + $0x28] sm:$0x30] %v3143
    %3176 = vst [vmem:[#allocation7 + $0x30] sm:$0x30] %v3144
    %3177 = vst [vmem:[#allocation7 + $0x38] sm:$0x30] %v3145
    %3178 = vst [vmem:[#allocation7 + $0x40] sm:$0x30] %v3146
    %3179 = vst [vmem:[#allocation7 + $0x48] sm:$0x30] %v3147
    %3180 = vst [vmem:[#allocation7 + $0x50] sm:$0x30] %v3148
    %3181 = vst [vmem:[#allocation7 + $0x58] sm:$0x30] %v3149
    %3182 = vst [vmem:[#allocation7 + $0x60] sm:$0x30] %v3150
    %3183 = vst [vmem:[#allocation7 + $0x68] sm:$0x30] %v3151
    %3184 = vst [vmem:[#allocation7 + $0x70] sm:$0x30] %v3152
    %3185 = vst [vmem:[#allocation7 + $0x78] sm:$0x30] %v3153
    %v3186 = vld [vmem:[#allocation6] sm:$0xff]
    %v3187 = vld [vmem:[#allocation6 + $0x8] sm:$0xff]
    %v3188 = vld [vmem:[#allocation6 + $0x10] sm:$0xff]
    %v3189 = vld [vmem:[#allocation6 + $0x18] sm:$0xff]
    %v3190 = vld [vmem:[#allocation6 + $0x20] sm:$0x3]
    %s3196 = scalar_lea.vmem [#allocation1], 3
    %3197 = vst [vmem:[%s3196] ss:$4 sm:$0xff] %v3186
    %s3198 = scalar_lea.vmem [#allocation1], 35
    %3199 = vst [vmem:[%s3198] ss:$4 sm:$0xff] %v3187
    %v3200 = vld.sshfl [vmem:[#allocation1] sm:$0xff pattern:$0x73625140]
    %v3201 = vld.sshfl [vmem:[#allocation1 + $0x8] sm:$0xff pattern:$0x73625140]
    %v3202 = vld.sshfl [vmem:[#allocation1 + $0x10] sm:$0xff pattern:$0x73625140]
    %v3203 = vld.sshfl [vmem:[#allocation1 + $0x18] sm:$0xff pattern:$0x73625140]
    %v3204 = vld.sshfl [vmem:[#allocation1 + $0x20] sm:$0xff pattern:$0x73625140]
    %v3205 = vld.sshfl [vmem:[#allocation1 + $0x28] sm:$0xff pattern:$0x73625140]
    %v3206 = vld.sshfl [vmem:[#allocation1 + $0x30] sm:$0xff pattern:$0x73625140]
    %v3207 = vld.sshfl [vmem:[#allocation1 + $0x38] sm:$0xff pattern:$0x73625140]
    %3208 = vst [vmem:[%s3196] ss:$4 sm:$0xff] %v3188
    %3209 = vst [vmem:[%s3198] ss:$4 sm:$0xff] %v3189
    %v3210 = vld.sshfl [vmem:[#allocation1] sm:$0xff pattern:$0x73625140]
    %v3211 = vld.sshfl [vmem:[#allocation1 + $0x8] sm:$0xff pattern:$0x73625140]
    %v3212 = vld.sshfl [vmem:[#allocation1 + $0x10] sm:$0xff pattern:$0x73625140]
    %v3213 = vld.sshfl [vmem:[#allocation1 + $0x18] sm:$0xff pattern:$0x73625140]
    %v3214 = vld.sshfl [vmem:[#allocation1 + $0x20] sm:$0xff pattern:$0x73625140]
    %v3215 = vld.sshfl [vmem:[#allocation1 + $0x28] sm:$0xff pattern:$0x73625140]
    %v3216 = vld.sshfl [vmem:[#allocation1 + $0x30] sm:$0xff pattern:$0x73625140]
    %v3217 = vld.sshfl [vmem:[#allocation1 + $0x38] sm:$0xff pattern:$0x73625140]
    %3218 = vst [vmem:[%s3196] ss:$4 sm:$0xff] %v3190
    %v3219 = vld.sshfl [vmem:[#allocation1] sm:$0xff pattern:$0x73625140]
    %3220 = vrot.lane.b32.xlu0 %v3200, 125
    %v3221 = vpop.permute.xlu0 %3220
    %3222 = vrot.lane.b32.xlu0 %v3201, 125
    %v3223 = vpop.permute.xlu0 %3222
    %3224 = vrot.lane.b32.xlu0 %v3202, 125
    %v3225 = vpop.permute.xlu0 %3224
    %3226 = vrot.lane.b32.xlu0 %v3203, 125
    %v3227 = vpop.permute.xlu0 %3226
    %3228 = vrot.lane.b32.xlu0 %v3204, 125
    %v3229 = vpop.permute.xlu0 %3228
    %3230 = vrot.lane.b32.xlu0 %v3205, 125
    %v3231 = vpop.permute.xlu0 %3230
    %3232 = vrot.lane.b32.xlu0 %v3206, 125
    %v3233 = vpop.permute.xlu0 %3232
    %3234 = vrot.lane.b32.xlu0 %v3207, 125
    %v3235 = vpop.permute.xlu0 %3234
    %3236 = vrot.lane.b32.xlu0 %v3210, 125
    %v3237 = vpop.permute.xlu0 %3236
    %3238 = vrot.lane.b32.xlu0 %v3211, 125
    %v3239 = vpop.permute.xlu0 %3238
    %3240 = vrot.lane.b32.xlu0 %v3212, 125
    %v3241 = vpop.permute.xlu0 %3240
    %3242 = vrot.lane.b32.xlu0 %v3213, 125
    %v3243 = vpop.permute.xlu0 %3242
    %3244 = vrot.lane.b32.xlu0 %v3214, 125
    %v3245 = vpop.permute.xlu0 %3244
    %3246 = vrot.lane.b32.xlu0 %v3215, 125
    %v3247 = vpop.permute.xlu0 %3246
    %3248 = vrot.lane.b32.xlu0 %v3216, 125
    %v3249 = vpop.permute.xlu0 %3248
    %3250 = vrot.lane.b32.xlu0 %v3217, 125
    %v3251 = vpop.permute.xlu0 %3250
    %3252 = vrot.lane.b32.xlu0 %v3219, 125
    %v3253 = vpop.permute.xlu0 %3252
    %v3254 = vsel %vm692, %v3221, %v3223
    %v3255 = vsel %vm692, %v3223, %v3225
    %v3256 = vsel %vm692, %v3225, %v3227
    %v3257 = vsel %vm692, %v3227, %v3229
    %v3258 = vsel %vm692, %v3229, %v3231
    %v3259 = vsel %vm692, %v3231, %v3233
    %v3260 = vsel %vm692, %v3233, %v3235
    %v3261 = vsel %vm692, %v3235, %v3237
    %v3262 = vsel %vm692, %v3237, %v3239
    %v3263 = vsel %vm692, %v3239, %v3241
    %v3264 = vsel %vm692, %v3241, %v3243
    %v3265 = vsel %vm692, %v3243, %v3245
    %v3266 = vsel %vm692, %v3245, %v3247
    %v3267 = vsel %vm692, %v3247, %v3249
    %v3268 = vsel %vm692, %v3249, %v3251
    %v3269 = vsel %vm692, %v3251, %v3253
    %3286 = vst [vmem:[#allocation7] sm:$0xc0] %v3254
    %3287 = vst [vmem:[#allocation7 + $0x8] sm:$0xc0] %v3255
    %3288 = vst [vmem:[#allocation7 + $0x10] sm:$0xc0] %v3256
    %3289 = vst [vmem:[#allocation7 + $0x18] sm:$0xc0] %v3257
    %3290 = vst [vmem:[#allocation7 + $0x20] sm:$0xc0] %v3258
    %3291 = vst [vmem:[#allocation7 + $0x28] sm:$0xc0] %v3259
    %3292 = vst [vmem:[#allocation7 + $0x30] sm:$0xc0] %v3260
    %3293 = vst [vmem:[#allocation7 + $0x38] sm:$0xc0] %v3261
    %3294 = vst [vmem:[#allocation7 + $0x40] sm:$0xc0] %v3262
    %3295 = vst [vmem:[#allocation7 + $0x48] sm:$0xc0] %v3263
    %3296 = vst [vmem:[#allocation7 + $0x50] sm:$0xc0] %v3264
    %3297 = vst [vmem:[#allocation7 + $0x58] sm:$0xc0] %v3265
    %3298 = vst [vmem:[#allocation7 + $0x60] sm:$0xc0] %v3266
    %3299 = vst [vmem:[#allocation7 + $0x68] sm:$0xc0] %v3267
    %3300 = vst [vmem:[#allocation7 + $0x70] sm:$0xc0] %v3268
    %3301 = vst [vmem:[#allocation7 + $0x78] sm:$0xc0] %v3269
    %v3302 = vld [vmem:[#allocation6] sm:$0xff]
    %v3303 = vld [vmem:[#allocation6 + $0x8] sm:$0xff]
    %v3304 = vld [vmem:[#allocation6 + $0x10] sm:$0xff]
    %v3305 = vld [vmem:[#allocation6 + $0x18] sm:$0xff]
    %v3306 = vld [vmem:[#allocation6 + $0x20] sm:$0x3]
    %3312 = vst [vmem:[#allocation1] ss:$4 sm:$0xff] %v3302
    %s3313 = scalar_lea.vmem [#allocation1], 32
    %3314 = vst [vmem:[%s3313] ss:$4 sm:$0xff] %v3303
    %v3315 = vld.sshfl [vmem:[#allocation1] sm:$0xff pattern:$0x73625140]
    %v3316 = vld.sshfl [vmem:[#allocation1 + $0x8] sm:$0xff pattern:$0x73625140]
    %v3317 = vld.sshfl [vmem:[#allocation1 + $0x10] sm:$0xff pattern:$0x73625140]
    %v3318 = vld.sshfl [vmem:[#allocation1 + $0x18] sm:$0xff pattern:$0x73625140]
    %v3319 = vld.sshfl [vmem:[#allocation1 + $0x20] sm:$0xff pattern:$0x73625140]
    %v3320 = vld.sshfl [vmem:[#allocation1 + $0x28] sm:$0xff pattern:$0x73625140]
    %v3321 = vld.sshfl [vmem:[#allocation1 + $0x30] sm:$0xff pattern:$0x73625140]
    %v3322 = vld.sshfl [vmem:[#allocation1 + $0x38] sm:$0xff pattern:$0x73625140]
    %3323 = vst [vmem:[#allocation1] ss:$4 sm:$0xff] %v3304
    %3324 = vst [vmem:[%s3313] ss:$4 sm:$0xff] %v3305
    %v3325 = vld.sshfl [vmem:[#allocation1] sm:$0xff pattern:$0x73625140]
    %v3326 = vld.sshfl [vmem:[#allocation1 + $0x8] sm:$0xff pattern:$0x73625140]
    %v3327 = vld.sshfl [vmem:[#allocation1 + $0x10] sm:$0xff pattern:$0x73625140]
    %v3328 = vld.sshfl [vmem:[#allocation1 + $0x18] sm:$0xff pattern:$0x73625140]
    %v3329 = vld.sshfl [vmem:[#allocation1 + $0x20] sm:$0xff pattern:$0x73625140]
    %v3330 = vld.sshfl [vmem:[#allocation1 + $0x28] sm:$0xff pattern:$0x73625140]
    %v3331 = vld.sshfl [vmem:[#allocation1 + $0x30] sm:$0xff pattern:$0x73625140]
    %v3332 = vld.sshfl [vmem:[#allocation1 + $0x38] sm:$0xff pattern:$0x73625140]
    %3333 = vst [vmem:[#allocation1] ss:$4 sm:$0xff] %v3306
    %v3334 = vld.sshfl [vmem:[#allocation1] sm:$0xff pattern:$0x73625140]
    %3335 = vrot.lane.b32.xlu0 %v3315, 124
    %v3336 = vpop.permute.xlu0 %3335
    %3337 = vrot.lane.b32.xlu0 %v3316, 124
    %v3338 = vpop.permute.xlu0 %3337
    %3339 = vrot.lane.b32.xlu0 %v3317, 124
    %v3340 = vpop.permute.xlu0 %3339
    %3341 = vrot.lane.b32.xlu0 %v3318, 124
    %v3342 = vpop.permute.xlu0 %3341
    %3343 = vrot.lane.b32.xlu0 %v3319, 124
    %v3344 = vpop.permute.xlu0 %3343
    %3345 = vrot.lane.b32.xlu0 %v3320, 124
    %v3346 = vpop.permute.xlu0 %3345
    %3347 = vrot.lane.b32.xlu0 %v3321, 124
    %v3348 = vpop.permute.xlu0 %3347
    %3349 = vrot.lane.b32.xlu0 %v3322, 124
    %v3350 = vpop.permute.xlu0 %3349
    %3351 = vrot.lane.b32.xlu0 %v3325, 124
    %v3352 = vpop.permute.xlu0 %3351
    %3353 = vrot.lane.b32.xlu0 %v3326, 124
    %v3354 = vpop.permute.xlu0 %3353
    %3355 = vrot.lane.b32.xlu0 %v3327, 124
    %v3356 = vpop.permute.xlu0 %3355
    %3357 = vrot.lane.b32.xlu0 %v3328, 124
    %v3358 = vpop.permute.xlu0 %3357
    %3359 = vrot.lane.b32.xlu0 %v3329, 124
    %v3360 = vpop.permute.xlu0 %3359
    %3361 = vrot.lane.b32.xlu0 %v3330, 124
    %v3362 = vpop.permute.xlu0 %3361
    %3363 = vrot.lane.b32.xlu0 %v3331, 124
    %v3364 = vpop.permute.xlu0 %3363
    %3365 = vrot.lane.b32.xlu0 %v3332, 124
    %v3366 = vpop.permute.xlu0 %3365
    %3367 = vrot.lane.b32.xlu0 %v3334, 124
    %v3368 = vpop.permute.xlu0 %3367
    %v3369 = vsel %vm739, %v3336, %v3338
    %v3370 = vsel %vm739, %v3338, %v3340
    %v3371 = vsel %vm739, %v3340, %v3342
    %v3372 = vsel %vm739, %v3342, %v3344
    %v3373 = vsel %vm739, %v3344, %v3346
    %v3374 = vsel %vm739, %v3346, %v3348
    %v3375 = vsel %vm739, %v3348, %v3350
    %v3376 = vsel %vm739, %v3350, %v3352
    %v3377 = vsel %vm739, %v3352, %v3354
    %v3378 = vsel %vm739, %v3354, %v3356
    %v3379 = vsel %vm739, %v3356, %v3358
    %v3380 = vsel %vm739, %v3358, %v3360
    %v3381 = vsel %vm739, %v3360, %v3362
    %v3382 = vsel %vm739, %v3362, %v3364
    %v3383 = vsel %vm739, %v3364, %v3366
    %v3384 = vsel %vm739, %v3366, %v3368
    %3401 = vst [vmem:[#allocation7 + $0x80] sm:$0x3] %v3369
    %3402 = vst [vmem:[#allocation7 + $0x88] sm:$0x3] %v3370
    %3403 = vst [vmem:[#allocation7 + $0x90] sm:$0x3] %v3371
    %3404 = vst [vmem:[#allocation7 + $0x98] sm:$0x3] %v3372
    %3405 = vst [vmem:[#allocation7 + $0xa0] sm:$0x3] %v3373
    %3406 = vst [vmem:[#allocation7 + $0xa8] sm:$0x3] %v3374
    %3407 = vst [vmem:[#allocation7 + $0xb0] sm:$0x3] %v3375
    %3408 = vst [vmem:[#allocation7 + $0xb8] sm:$0x3] %v3376
    %3409 = vst [vmem:[#allocation7 + $0xc0] sm:$0x3] %v3377
    %3410 = vst [vmem:[#allocation7 + $0xc8] sm:$0x3] %v3378
    %3411 = vst [vmem:[#allocation7 + $0xd0] sm:$0x3] %v3379
    %3412 = vst [vmem:[#allocation7 + $0xd8] sm:$0x3] %v3380
    %3413 = vst [vmem:[#allocation7 + $0xe0] sm:$0x3] %v3381
    %3414 = vst [vmem:[#allocation7 + $0xe8] sm:$0x3] %v3382
    %3415 = vst [vmem:[#allocation7 + $0xf0] sm:$0x3] %v3383
    %3416 = vst [vmem:[#allocation7 + $0xf8] sm:$0x3] %v3384
    %v3417 = vld [vmem:[#allocation6] sm:$0xff]
    %v3418 = vld [vmem:[#allocation6 + $0x8] sm:$0xff]
    %v3419 = vld [vmem:[#allocation6 + $0x10] sm:$0xff]
    %v3420 = vld [vmem:[#allocation6 + $0x18] sm:$0xff]
    %v3421 = vld [vmem:[#allocation6 + $0x20] sm:$0x3]
    %s3427 = scalar_lea.vmem [#allocation1], 1
    %3428 = vst [vmem:[%s3427] ss:$4 sm:$0xff] %v3417
    %s3429 = scalar_lea.vmem [#allocation1], 33
    %3430 = vst [vmem:[%s3429] ss:$4 sm:$0xff] %v3418
    %v3431 = vld.sshfl [vmem:[#allocation1] sm:$0xff pattern:$0x73625140]
    %v3432 = vld.sshfl [vmem:[#allocation1 + $0x8] sm:$0xff pattern:$0x73625140]
    %v3433 = vld.sshfl [vmem:[#allocation1 + $0x10] sm:$0xff pattern:$0x73625140]
    %v3434 = vld.sshfl [vmem:[#allocation1 + $0x18] sm:$0xff pattern:$0x73625140]
    %v3435 = vld.sshfl [vmem:[#allocation1 + $0x20] sm:$0xff pattern:$0x73625140]
    %v3436 = vld.sshfl [vmem:[#allocation1 + $0x28] sm:$0xff pattern:$0x73625140]
    %v3437 = vld.sshfl [vmem:[#allocation1 + $0x30] sm:$0xff pattern:$0x73625140]
    %v3438 = vld.sshfl [vmem:[#allocation1 + $0x38] sm:$0xff pattern:$0x73625140]
    %3439 = vst [vmem:[%s3427] ss:$4 sm:$0xff] %v3419
    %3440 = vst [vmem:[%s3429] ss:$4 sm:$0xff] %v3420
    %v3441 = vld.sshfl [vmem:[#allocation1] sm:$0xff pattern:$0x73625140]
    %v3442 = vld.sshfl [vmem:[#allocation1 + $0x8] sm:$0xff pattern:$0x73625140]
    %v3443 = vld.sshfl [vmem:[#allocation1 + $0x10] sm:$0xff pattern:$0x73625140]
    %v3444 = vld.sshfl [vmem:[#allocation1 + $0x18] sm:$0xff pattern:$0x73625140]
    %v3445 = vld.sshfl [vmem:[#allocation1 + $0x20] sm:$0xff pattern:$0x73625140]
    %v3446 = vld.sshfl [vmem:[#allocation1 + $0x28] sm:$0xff pattern:$0x73625140]
    %v3447 = vld.sshfl [vmem:[#allocation1 + $0x30] sm:$0xff pattern:$0x73625140]
    %v3448 = vld.sshfl [vmem:[#allocation1 + $0x38] sm:$0xff pattern:$0x73625140]
    %3449 = vst [vmem:[%s3427] ss:$4 sm:$0xff] %v3421
    %v3450 = vld.sshfl [vmem:[#allocation1] sm:$0xff pattern:$0x73625140]
    %3451 = vrot.lane.b32.xlu0 %v3431, 96
    %v3452 = vpop.permute.xlu0 %3451
    %3453 = vrot.lane.b32.xlu0 %v3432, 96
    %v3454 = vpop.permute.xlu0 %3453
    %3455 = vrot.lane.b32.xlu0 %v3433, 96
    %v3456 = vpop.permute.xlu0 %3455
    %3457 = vrot.lane.b32.xlu0 %v3434, 96
    %v3458 = vpop.permute.xlu0 %3457
    %3459 = vrot.lane.b32.xlu0 %v3435, 96
    %v3460 = vpop.permute.xlu0 %3459
    %3461 = vrot.lane.b32.xlu0 %v3436, 96
    %v3462 = vpop.permute.xlu0 %3461
    %3463 = vrot.lane.b32.xlu0 %v3437, 96
    %v3464 = vpop.permute.xlu0 %3463
    %3465 = vrot.lane.b32.xlu0 %v3438, 96
    %v3466 = vpop.permute.xlu0 %3465
    %3467 = vrot.lane.b32.xlu0 %v3441, 96
    %v3468 = vpop.permute.xlu0 %3467
    %3469 = vrot.lane.b32.xlu0 %v3442, 96
    %v3470 = vpop.permute.xlu0 %3469
    %3471 = vrot.lane.b32.xlu0 %v3443, 96
    %v3472 = vpop.permute.xlu0 %3471
    %3473 = vrot.lane.b32.xlu0 %v3444, 96
    %v3474 = vpop.permute.xlu0 %3473
    %3475 = vrot.lane.b32.xlu0 %v3445, 96
    %v3476 = vpop.permute.xlu0 %3475
    %3477 = vrot.lane.b32.xlu0 %v3446, 96
    %v3478 = vpop.permute.xlu0 %3477
    %3479 = vrot.lane.b32.xlu0 %v3447, 96
    %v3480 = vpop.permute.xlu0 %3479
    %3481 = vrot.lane.b32.xlu0 %v3448, 96
    %v3482 = vpop.permute.xlu0 %3481
    %3483 = vrot.lane.b32.xlu0 %v3450, 96
    %v3484 = vpop.permute.xlu0 %3483
    %vm3485 = vcmask 785408
    %v3486 = vsel %vm3485, %v3452, %v3454
    %v3487 = vsel %vm3485, %v3454, %v3456
    %v3488 = vsel %vm3485, %v3456, %v3458
    %v3489 = vsel %vm3485, %v3458, %v3460
    %v3490 = vsel %vm3485, %v3460, %v3462
    %v3491 = vsel %vm3485, %v3462, %v3464
    %v3492 = vsel %vm3485, %v3464, %v3466
    %v3493 = vsel %vm3485, %v3466, %v3468
    %v3494 = vsel %vm3485, %v3468, %v3470
    %v3495 = vsel %vm3485, %v3470, %v3472
    %v3496 = vsel %vm3485, %v3472, %v3474
    %v3497 = vsel %vm3485, %v3474, %v3476
    %v3498 = vsel %vm3485, %v3476, %v3478
    %v3499 = vsel %vm3485, %v3478, %v3480
    %v3500 = vsel %vm3485, %v3480, %v3482
    %v3501 = vsel %vm3485, %v3482, %v3484
    %3518 = vst [vmem:[#allocation7 + $0x80] sm:$0xc] %v3486
    %3519 = vst [vmem:[#allocation7 + $0x88] sm:$0xc] %v3487
    %3520 = vst [vmem:[#allocation7 + $0x90] sm:$0xc] %v3488
    %3521 = vst [vmem:[#allocation7 + $0x98] sm:$0xc] %v3489
    %3522 = vst [vmem:[#allocation7 + $0xa0] sm:$0xc] %v3490
    %3523 = vst [vmem:[#allocation7 + $0xa8] sm:$0xc] %v3491
    %3524 = vst [vmem:[#allocation7 + $0xb0] sm:$0xc] %v3492
    %3525 = vst [vmem:[#allocation7 + $0xb8] sm:$0xc] %v3493
    %3526 = vst [vmem:[#allocation7 + $0xc0] sm:$0xc] %v3494
    %3527 = vst [vmem:[#allocation7 + $0xc8] sm:$0xc] %v3495
    %3528 = vst [vmem:[#allocation7 + $0xd0] sm:$0xc] %v3496
    %3529 = vst [vmem:[#allocation7 + $0xd8] sm:$0xc] %v3497
    %3530 = vst [vmem:[#allocation7 + $0xe0] sm:$0xc] %v3498
    %3531 = vst [vmem:[#allocation7 + $0xe8] sm:$0xc] %v3499
    %3532 = vst [vmem:[#allocation7 + $0xf0] sm:$0xc] %v3500
    %3533 = vst [vmem:[#allocation7 + $0xf8] sm:$0xc] %v3501
    %v3534 = vld [vmem:[#allocation6] sm:$0xff]
    %v3535 = vld [vmem:[#allocation6 + $0x8] sm:$0xff]
    %v3536 = vld [vmem:[#allocation6 + $0x10] sm:$0xff]
    %v3537 = vld [vmem:[#allocation6 + $0x18] sm:$0xff]
    %v3538 = vld [vmem:[#allocation6 + $0x20] sm:$0x3]
    %s3544 = scalar_lea.vmem [#allocation1], 2
    %3545 = vst [vmem:[%s3544] ss:$4 sm:$0xff] %v3534
    %s3546 = scalar_lea.vmem [#allocation1], 34
    %3547 = vst [vmem:[%s3546] ss:$4 sm:$0xff] %v3535
    %v3548 = vld.sshfl [vmem:[#allocation1] sm:$0xff pattern:$0x73625140]
    %v3549 = vld.sshfl [vmem:[#allocation1 + $0x8] sm:$0xff pattern:$0x73625140]
    %v3550 = vld.sshfl [vmem:[#allocation1 + $0x10] sm:$0xff pattern:$0x73625140]
    %v3551 = vld.sshfl [vmem:[#allocation1 + $0x18] sm:$0xff pattern:$0x73625140]
    %v3552 = vld.sshfl [vmem:[#allocation1 + $0x20] sm:$0xff pattern:$0x73625140]
    %v3553 = vld.sshfl [vmem:[#allocation1 + $0x28] sm:$0xff pattern:$0x73625140]
    %v3554 = vld.sshfl [vmem:[#allocation1 + $0x30] sm:$0xff pattern:$0x73625140]
    %v3555 = vld.sshfl [vmem:[#allocation1 + $0x38] sm:$0xff pattern:$0x73625140]
    %3556 = vst [vmem:[%s3544] ss:$4 sm:$0xff] %v3536
    %3557 = vst [vmem:[%s3546] ss:$4 sm:$0xff] %v3537
    %v3558 = vld.sshfl [vmem:[#allocation1] sm:$0xff pattern:$0x73625140]
    %v3559 = vld.sshfl [vmem:[#allocation1 + $0x8] sm:$0xff pattern:$0x73625140]
    %v3560 = vld.sshfl [vmem:[#allocation1 + $0x10] sm:$0xff pattern:$0x73625140]
    %v3561 = vld.sshfl [vmem:[#allocation1 + $0x18] sm:$0xff pattern:$0x73625140]
    %v3562 = vld.sshfl [vmem:[#allocation1 + $0x20] sm:$0xff pattern:$0x73625140]
    %v3563 = vld.sshfl [vmem:[#allocation1 + $0x28] sm:$0xff pattern:$0x73625140]
    %v3564 = vld.sshfl [vmem:[#allocation1 + $0x30] sm:$0xff pattern:$0x73625140]
    %v3565 = vld.sshfl [vmem:[#allocation1 + $0x38] sm:$0xff pattern:$0x73625140]
    %3566 = vst [vmem:[%s3544] ss:$4 sm:$0xff] %v3538
    %v3567 = vld.sshfl [vmem:[#allocation1] sm:$0xff pattern:$0x73625140]
    %3568 = vrot.lane.b32.xlu0 %v3548, 95
    %v3569 = vpop.permute.xlu0 %3568
    %3570 = vrot.lane.b32.xlu0 %v3549, 95
    %v3571 = vpop.permute.xlu0 %3570
    %3572 = vrot.lane.b32.xlu0 %v3550, 95
    %v3573 = vpop.permute.xlu0 %3572
    %3574 = vrot.lane.b32.xlu0 %v3551, 95
    %v3575 = vpop.permute.xlu0 %3574
    %3576 = vrot.lane.b32.xlu0 %v3552, 95
    %v3577 = vpop.permute.xlu0 %3576
    %3578 = vrot.lane.b32.xlu0 %v3553, 95
    %v3579 = vpop.permute.xlu0 %3578
    %3580 = vrot.lane.b32.xlu0 %v3554, 95
    %v3581 = vpop.permute.xlu0 %3580
    %3582 = vrot.lane.b32.xlu0 %v3555, 95
    %v3583 = vpop.permute.xlu0 %3582
    %3584 = vrot.lane.b32.xlu0 %v3558, 95
    %v3585 = vpop.permute.xlu0 %3584
    %3586 = vrot.lane.b32.xlu0 %v3559, 95
    %v3587 = vpop.permute.xlu0 %3586
    %3588 = vrot.lane.b32.xlu0 %v3560, 95
    %v3589 = vpop.permute.xlu0 %3588
    %3590 = vrot.lane.b32.xlu0 %v3561, 95
    %v3591 = vpop.permute.xlu0 %3590
    %3592 = vrot.lane.b32.xlu0 %v3562, 95
    %v3593 = vpop.permute.xlu0 %3592
    %3594 = vrot.lane.b32.xlu0 %v3563, 95
    %v3595 = vpop.permute.xlu0 %3594
    %3596 = vrot.lane.b32.xlu0 %v3564, 95
    %v3597 = vpop.permute.xlu0 %3596
    %3598 = vrot.lane.b32.xlu0 %v3565, 95
    %v3599 = vpop.permute.xlu0 %3598
    %3600 = vrot.lane.b32.xlu0 %v3567, 95
    %v3601 = vpop.permute.xlu0 %3600
    %vm3602 = vcmask 777216
    %v3603 = vsel %vm3602, %v3569, %v3571
    %v3604 = vsel %vm3602, %v3571, %v3573
    %v3605 = vsel %vm3602, %v3573, %v3575
    %v3606 = vsel %vm3602, %v3575, %v3577
    %v3607 = vsel %vm3602, %v3577, %v3579
    %v3608 = vsel %vm3602, %v3579, %v3581
    %v3609 = vsel %vm3602, %v3581, %v3583
    %v3610 = vsel %vm3602, %v3583, %v3585
    %v3611 = vsel %vm3602, %v3585, %v3587
    %v3612 = vsel %vm3602, %v3587, %v3589
    %v3613 = vsel %vm3602, %v3589, %v3591
    %v3614 = vsel %vm3602, %v3591, %v3593
    %v3615 = vsel %vm3602, %v3593, %v3595
    %v3616 = vsel %vm3602, %v3595, %v3597
    %v3617 = vsel %vm3602, %v3597, %v3599
    %v3618 = vsel %vm3602, %v3599, %v3601
    %3635 = vst [vmem:[#allocation7 + $0x80] sm:$0x30] %v3603
    %3636 = vst [vmem:[#allocation7 + $0x88] sm:$0x30] %v3604
    %3637 = vst [vmem:[#allocation7 + $0x90] sm:$0x30] %v3605
    %3638 = vst [vmem:[#allocation7 + $0x98] sm:$0x30] %v3606
    %3639 = vst [vmem:[#allocation7 + $0xa0] sm:$0x30] %v3607
    %3640 = vst [vmem:[#allocation7 + $0xa8] sm:$0x30] %v3608
    %3641 = vst [vmem:[#allocation7 + $0xb0] sm:$0x30] %v3609
    %3642 = vst [vmem:[#allocation7 + $0xb8] sm:$0x30] %v3610
    %3643 = vst [vmem:[#allocation7 + $0xc0] sm:$0x30] %v3611
    %3644 = vst [vmem:[#allocation7 + $0xc8] sm:$0x30] %v3612
    %3645 = vst [vmem:[#allocation7 + $0xd0] sm:$0x30] %v3613
    %3646 = vst [vmem:[#allocation7 + $0xd8] sm:$0x30] %v3614
    %3647 = vst [vmem:[#allocation7 + $0xe0] sm:$0x30] %v3615
    %3648 = vst [vmem:[#allocation7 + $0xe8] sm:$0x30] %v3616
    %3649 = vst [vmem:[#allocation7 + $0xf0] sm:$0x30] %v3617
    %3650 = vst [vmem:[#allocation7 + $0xf8] sm:$0x30] %v3618
    %v3651 = vld [vmem:[#allocation6] sm:$0xff]
    %v3652 = vld [vmem:[#allocation6 + $0x8] sm:$0xff]
    %v3653 = vld [vmem:[#allocation6 + $0x10] sm:$0xff]
    %v3654 = vld [vmem:[#allocation6 + $0x18] sm:$0xff]
    %v3655 = vld [vmem:[#allocation6 + $0x20] sm:$0x3]
    %s3661 = scalar_lea.vmem [#allocation1], 3
    %3662 = vst [vmem:[%s3661] ss:$4 sm:$0xff] %v3651
    %s3663 = scalar_lea.vmem [#allocation1], 35
    %3664 = vst [vmem:[%s3663] ss:$4 sm:$0xff] %v3652
    %v3665 = vld.sshfl [vmem:[#allocation1] sm:$0xff pattern:$0x73625140]
    %v3666 = vld.sshfl [vmem:[#allocation1 + $0x8] sm:$0xff pattern:$0x73625140]
    %v3667 = vld.sshfl [vmem:[#allocation1 + $0x10] sm:$0xff pattern:$0x73625140]
    %v3668 = vld.sshfl [vmem:[#allocation1 + $0x18] sm:$0xff pattern:$0x73625140]
    %v3669 = vld.sshfl [vmem:[#allocation1 + $0x20] sm:$0xff pattern:$0x73625140]
    %v3670 = vld.sshfl [vmem:[#allocation1 + $0x28] sm:$0xff pattern:$0x73625140]
    %v3671 = vld.sshfl [vmem:[#allocation1 + $0x30] sm:$0xff pattern:$0x73625140]
    %v3672 = vld.sshfl [vmem:[#allocation1 + $0x38] sm:$0xff pattern:$0x73625140]
    %3673 = vst [vmem:[%s3661] ss:$4 sm:$0xff] %v3653
    %3674 = vst [vmem:[%s3663] ss:$4 sm:$0xff] %v3654
    %v3675 = vld.sshfl [vmem:[#allocation1] sm:$0xff pattern:$0x73625140]
    %v3676 = vld.sshfl [vmem:[#allocation1 + $0x8] sm:$0xff pattern:$0x73625140]
    %v3677 = vld.sshfl [vmem:[#allocation1 + $0x10] sm:$0xff pattern:$0x73625140]
    %v3678 = vld.sshfl [vmem:[#allocation1 + $0x18] sm:$0xff pattern:$0x73625140]
    %v3679 = vld.sshfl [vmem:[#allocation1 + $0x20] sm:$0xff pattern:$0x73625140]
    %v3680 = vld.sshfl [vmem:[#allocation1 + $0x28] sm:$0xff pattern:$0x73625140]
    %v3681 = vld.sshfl [vmem:[#allocation1 + $0x30] sm:$0xff pattern:$0x73625140]
    %v3682 = vld.sshfl [vmem:[#allocation1 + $0x38] sm:$0xff pattern:$0x73625140]
    %3683 = vst [vmem:[%s3661] ss:$4 sm:$0xff] %v3655
    %v3684 = vld.sshfl [vmem:[#allocation1] sm:$0xff pattern:$0x73625140]
    %3685 = vrot.lane.b32.xlu0 %v3665, 94
    %v3686 = vpop.permute.xlu0 %3685
    %3687 = vrot.lane.b32.xlu0 %v3666, 94
    %v3688 = vpop.permute.xlu0 %3687
    %3689 = vrot.lane.b32.xlu0 %v3667, 94
    %v3690 = vpop.permute.xlu0 %3689
    %3691 = vrot.lane.b32.xlu0 %v3668, 94
    %v3692 = vpop.permute.xlu0 %3691
    %3693 = vrot.lane.b32.xlu0 %v3669, 94
    %v3694 = vpop.permute.xlu0 %3693
    %3695 = vrot.lane.b32.xlu0 %v3670, 94
    %v3696 = vpop.permute.xlu0 %3695
    %3697 = vrot.lane.b32.xlu0 %v3671, 94
    %v3698 = vpop.permute.xlu0 %3697
    %3699 = vrot.lane.b32.xlu0 %v3672, 94
    %v3700 = vpop.permute.xlu0 %3699
    %3701 = vrot.lane.b32.xlu0 %v3675, 94
    %v3702 = vpop.permute.xlu0 %3701
    %3703 = vrot.lane.b32.xlu0 %v3676, 94
    %v3704 = vpop.permute.xlu0 %3703
    %3705 = vrot.lane.b32.xlu0 %v3677, 94
    %v3706 = vpop.permute.xlu0 %3705
    %3707 = vrot.lane.b32.xlu0 %v3678, 94
    %v3708 = vpop.permute.xlu0 %3707
    %3709 = vrot.lane.b32.xlu0 %v3679, 94
    %v3710 = vpop.permute.xlu0 %3709
    %3711 = vrot.lane.b32.xlu0 %v3680, 94
    %v3712 = vpop.permute.xlu0 %3711
    %3713 = vrot.lane.b32.xlu0 %v3681, 94
    %v3714 = vpop.permute.xlu0 %3713
    %3715 = vrot.lane.b32.xlu0 %v3682, 94
    %v3716 = vpop.permute.xlu0 %3715
    %3717 = vrot.lane.b32.xlu0 %v3684, 94
    %v3718 = vpop.permute.xlu0 %3717
    %vm3719 = vcmask 769024
    %v3720 = vsel %vm3719, %v3686, %v3688
    %v3721 = vsel %vm3719, %v3688, %v3690
    %v3722 = vsel %vm3719, %v3690, %v3692
    %v3723 = vsel %vm3719, %v3692, %v3694
    %v3724 = vsel %vm3719, %v3694, %v3696
    %v3725 = vsel %vm3719, %v3696, %v3698
    %v3726 = vsel %vm3719, %v3698, %v3700
    %v3727 = vsel %vm3719, %v3700, %v3702
    %v3728 = vsel %vm3719, %v3702, %v3704
    %v3729 = vsel %vm3719, %v3704, %v3706
    %v3730 = vsel %vm3719, %v3706, %v3708
    %v3731 = vsel %vm3719, %v3708, %v3710
    %v3732 = vsel %vm3719, %v3710, %v3712
    %v3733 = vsel %vm3719, %v3712, %v3714
    %v3734 = vsel %vm3719, %v3714, %v3716
    %v3735 = vsel %vm3719, %v3716, %v3718
    %3752 = vst [vmem:[#allocation7 + $0x80] sm:$0xc0] %v3720
    %3753 = vst [vmem:[#allocation7 + $0x88] sm:$0xc0] %v3721
    %3754 = vst [vmem:[#allocation7 + $0x90] sm:$0xc0] %v3722
    %3755 = vst [vmem:[#allocation7 + $0x98] sm:$0xc0] %v3723
    %3756 = vst [vmem:[#allocation7 + $0xa0] sm:$0xc0] %v3724
    %3757 = vst [vmem:[#allocation7 + $0xa8] sm:$0xc0] %v3725
    %3758 = vst [vmem:[#allocation7 + $0xb0] sm:$0xc0] %v3726
    %3759 = vst [vmem:[#allocation7 + $0xb8] sm:$0xc0] %v3727
    %3760 = vst [vmem:[#allocation7 + $0xc0] sm:$0xc0] %v3728
    %3761 = vst [vmem:[#allocation7 + $0xc8] sm:$0xc0] %v3729
    %3762 = vst [vmem:[#allocation7 + $0xd0] sm:$0xc0] %v3730
    %3763 = vst [vmem:[#allocation7 + $0xd8] sm:$0xc0] %v3731
    %3764 = vst [vmem:[#allocation7 + $0xe0] sm:$0xc0] %v3732
    %3765 = vst [vmem:[#allocation7 + $0xe8] sm:$0xc0] %v3733
    %3766 = vst [vmem:[#allocation7 + $0xf0] sm:$0xc0] %v3734
    %3767 = vst [vmem:[#allocation7 + $0xf8] sm:$0xc0] %v3735
    %v3768 = vld [vmem:[#allocation6] sm:$0xff]
    %v3769 = vld [vmem:[#allocation6 + $0x8] sm:$0xff]
    %v3770 = vld [vmem:[#allocation6 + $0x10] sm:$0xff]
    %v3771 = vld [vmem:[#allocation6 + $0x18] sm:$0xff]
    %v3772 = vld [vmem:[#allocation6 + $0x20] sm:$0x3]
    %3778 = vst [vmem:[#allocation1] ss:$4 sm:$0xff] %v3768
    %s3779 = scalar_lea.vmem [#allocation1], 32
    %3780 = vst [vmem:[%s3779] ss:$4 sm:$0xff] %v3769
    %v3781 = vld.sshfl [vmem:[#allocation1] sm:$0xff pattern:$0x73625140]
    %v3782 = vld.sshfl [vmem:[#allocation1 + $0x8] sm:$0xff pattern:$0x73625140]
    %v3783 = vld.sshfl [vmem:[#allocation1 + $0x10] sm:$0xff pattern:$0x73625140]
    %v3784 = vld.sshfl [vmem:[#allocation1 + $0x18] sm:$0xff pattern:$0x73625140]
    %v3785 = vld.sshfl [vmem:[#allocation1 + $0x20] sm:$0xff pattern:$0x73625140]
    %v3786 = vld.sshfl [vmem:[#allocation1 + $0x28] sm:$0xff pattern:$0x73625140]
    %v3787 = vld.sshfl [vmem:[#allocation1 + $0x30] sm:$0xff pattern:$0x73625140]
    %v3788 = vld.sshfl [vmem:[#allocation1 + $0x38] sm:$0xff pattern:$0x73625140]
    %3789 = vst [vmem:[#allocation1] ss:$4 sm:$0xff] %v3770
    %3790 = vst [vmem:[%s3779] ss:$4 sm:$0xff] %v3771
    %v3791 = vld.sshfl [vmem:[#allocation1] sm:$0xff pattern:$0x73625140]
    %v3792 = vld.sshfl [vmem:[#allocation1 + $0x8] sm:$0xff pattern:$0x73625140]
    %v3793 = vld.sshfl [vmem:[#allocation1 + $0x10] sm:$0xff pattern:$0x73625140]
    %v3794 = vld.sshfl [vmem:[#allocation1 + $0x18] sm:$0xff pattern:$0x73625140]
    %v3795 = vld.sshfl [vmem:[#allocation1 + $0x20] sm:$0xff pattern:$0x73625140]
    %v3796 = vld.sshfl [vmem:[#allocation1 + $0x28] sm:$0xff pattern:$0x73625140]
    %v3797 = vld.sshfl [vmem:[#allocation1 + $0x30] sm:$0xff pattern:$0x73625140]
    %v3798 = vld.sshfl [vmem:[#allocation1 + $0x38] sm:$0xff pattern:$0x73625140]
    %3799 = vst [vmem:[#allocation1] ss:$4 sm:$0xff] %v3772
    %v3800 = vld.sshfl [vmem:[#allocation1] sm:$0xff pattern:$0x73625140]
    %3801 = vrot.lane.b32.xlu0 %v3781, 93
    %v3802 = vpop.permute.xlu0 %3801
    %3803 = vrot.lane.b32.xlu0 %v3782, 93
    %v3804 = vpop.permute.xlu0 %3803
    %3805 = vrot.lane.b32.xlu0 %v3783, 93
    %v3806 = vpop.permute.xlu0 %3805
    %3807 = vrot.lane.b32.xlu0 %v3784, 93
    %v3808 = vpop.permute.xlu0 %3807
    %3809 = vrot.lane.b32.xlu0 %v3785, 93
    %v3810 = vpop.permute.xlu0 %3809
    %3811 = vrot.lane.b32.xlu0 %v3786, 93
    %v3812 = vpop.permute.xlu0 %3811
    %3813 = vrot.lane.b32.xlu0 %v3787, 93
    %v3814 = vpop.permute.xlu0 %3813
    %3815 = vrot.lane.b32.xlu0 %v3788, 93
    %v3816 = vpop.permute.xlu0 %3815
    %3817 = vrot.lane.b32.xlu0 %v3791, 93
    %v3818 = vpop.permute.xlu0 %3817
    %3819 = vrot.lane.b32.xlu0 %v3792, 93
    %v3820 = vpop.permute.xlu0 %3819
    %3821 = vrot.lane.b32.xlu0 %v3793, 93
    %v3822 = vpop.permute.xlu0 %3821
    %3823 = vrot.lane.b32.xlu0 %v3794, 93
    %v3824 = vpop.permute.xlu0 %3823
    %3825 = vrot.lane.b32.xlu0 %v3795, 93
    %v3826 = vpop.permute.xlu0 %3825
    %3827 = vrot.lane.b32.xlu0 %v3796, 93
    %v3828 = vpop.permute.xlu0 %3827
    %3829 = vrot.lane.b32.xlu0 %v3797, 93
    %v3830 = vpop.permute.xlu0 %3829
    %3831 = vrot.lane.b32.xlu0 %v3798, 93
    %v3832 = vpop.permute.xlu0 %3831
    %3833 = vrot.lane.b32.xlu0 %v3800, 93
    %v3834 = vpop.permute.xlu0 %3833
    %vm3835 = vcmask 760832
    %v3836 = vsel %vm3835, %v3802, %v3804
    %v3837 = vsel %vm3835, %v3804, %v3806
    %v3838 = vsel %vm3835, %v3806, %v3808
    %v3839 = vsel %vm3835, %v3808, %v3810
    %v3840 = vsel %vm3835, %v3810, %v3812
    %v3841 = vsel %vm3835, %v3812, %v3814
    %v3842 = vsel %vm3835, %v3814, %v3816
    %v3843 = vsel %vm3835, %v3816, %v3818
    %v3844 = vsel %vm3835, %v3818, %v3820
    %v3845 = vsel %vm3835, %v3820, %v3822
    %v3846 = vsel %vm3835, %v3822, %v3824
    %v3847 = vsel %vm3835, %v3824, %v3826
    %v3848 = vsel %vm3835, %v3826, %v3828
    %v3849 = vsel %vm3835, %v3828, %v3830
    %v3850 = vsel %vm3835, %v3830, %v3832
    %v3851 = vsel %vm3835, %v3832, %v3834
    %3868 = vst [vmem:[#allocation7 + $0x100] sm:$0x3] %v3836
    %3869 = vst [vmem:[#allocation7 + $0x108] sm:$0x3] %v3837
    %3870 = vst [vmem:[#allocation7 + $0x110] sm:$0x3] %v3838
    %3871 = vst [vmem:[#allocation7 + $0x118] sm:$0x3] %v3839
    %3872 = vst [vmem:[#allocation7 + $0x120] sm:$0x3] %v3840
    %3873 = vst [vmem:[#allocation7 + $0x128] sm:$0x3] %v3841
    %3874 = vst [vmem:[#allocation7 + $0x130] sm:$0x3] %v3842
    %3875 = vst [vmem:[#allocation7 + $0x138] sm:$0x3] %v3843
    %3876 = vst [vmem:[#allocation7 + $0x140] sm:$0x3] %v3844
    %3877 = vst [vmem:[#allocation7 + $0x148] sm:$0x3] %v3845
    %3878 = vst [vmem:[#allocation7 + $0x150] sm:$0x3] %v3846
    %3879 = vst [vmem:[#allocation7 + $0x158] sm:$0x3] %v3847
    %3880 = vst [vmem:[#allocation7 + $0x160] sm:$0x3] %v3848
    %3881 = vst [vmem:[#allocation7 + $0x168] sm:$0x3] %v3849
    %3882 = vst [vmem:[#allocation7 + $0x170] sm:$0x3] %v3850
    %3883 = vst [vmem:[#allocation7 + $0x178] sm:$0x3] %v3851
    %v3884 = vld [vmem:[#allocation6] sm:$0xff]
    %v3885 = vld [vmem:[#allocation6 + $0x8] sm:$0xff]
    %v3886 = vld [vmem:[#allocation6 + $0x10] sm:$0xff]
    %v3887 = vld [vmem:[#allocation6 + $0x18] sm:$0xff]
    %v3888 = vld [vmem:[#allocation6 + $0x20] sm:$0x3]
    %s3894 = scalar_lea.vmem [#allocation1], 1
    %3895 = vst [vmem:[%s3894] ss:$4 sm:$0xff] %v3884
    %s3896 = scalar_lea.vmem [#allocation1], 33
    %3897 = vst [vmem:[%s3896] ss:$4 sm:$0xff] %v3885
    %v3898 = vld.sshfl [vmem:[#allocation1] sm:$0xff pattern:$0x73625140]
    %v3899 = vld.sshfl [vmem:[#allocation1 + $0x8] sm:$0xff pattern:$0x73625140]
    %v3900 = vld.sshfl [vmem:[#allocation1 + $0x10] sm:$0xff pattern:$0x73625140]
    %v3901 = vld.sshfl [vmem:[#allocation1 + $0x18] sm:$0xff pattern:$0x73625140]
    %v3902 = vld.sshfl [vmem:[#allocation1 + $0x20] sm:$0xff pattern:$0x73625140]
    %v3903 = vld.sshfl [vmem:[#allocation1 + $0x28] sm:$0xff pattern:$0x73625140]
    %v3904 = vld.sshfl [vmem:[#allocation1 + $0x30] sm:$0xff pattern:$0x73625140]
    %v3905 = vld.sshfl [vmem:[#allocation1 + $0x38] sm:$0xff pattern:$0x73625140]
    %3906 = vst [vmem:[%s3894] ss:$4 sm:$0xff] %v3886
    %3907 = vst [vmem:[%s3896] ss:$4 sm:$0xff] %v3887
    %v3908 = vld.sshfl [vmem:[#allocation1] sm:$0xff pattern:$0x73625140]
    %v3909 = vld.sshfl [vmem:[#allocation1 + $0x8] sm:$0xff pattern:$0x73625140]
    %v3910 = vld.sshfl [vmem:[#allocation1 + $0x10] sm:$0xff pattern:$0x73625140]
    %v3911 = vld.sshfl [vmem:[#allocation1 + $0x18] sm:$0xff pattern:$0x73625140]
    %v3912 = vld.sshfl [vmem:[#allocation1 + $0x20] sm:$0xff pattern:$0x73625140]
    %v3913 = vld.sshfl [vmem:[#allocation1 + $0x28] sm:$0xff pattern:$0x73625140]
    %v3914 = vld.sshfl [vmem:[#allocation1 + $0x30] sm:$0xff pattern:$0x73625140]
    %v3915 = vld.sshfl [vmem:[#allocation1 + $0x38] sm:$0xff pattern:$0x73625140]
    %3916 = vst [vmem:[%s3894] ss:$4 sm:$0xff] %v3888
    %v3917 = vld.sshfl [vmem:[#allocation1] sm:$0xff pattern:$0x73625140]
    %3918 = vrot.lane.b32.xlu0 %v3898, 92
    %v3919 = vpop.permute.xlu0 %3918
    %3920 = vrot.lane.b32.xlu0 %v3899, 92
    %v3921 = vpop.permute.xlu0 %3920
    %3922 = vrot.lane.b32.xlu0 %v3900, 92
    %v3923 = vpop.permute.xlu0 %3922
    %3924 = vrot.lane.b32.xlu0 %v3901, 92
    %v3925 = vpop.permute.xlu0 %3924
    %3926 = vrot.lane.b32.xlu0 %v3902, 92
    %v3927 = vpop.permute.xlu0 %3926
    %3928 = vrot.lane.b32.xlu0 %v3903, 92
    %v3929 = vpop.permute.xlu0 %3928
    %3930 = vrot.lane.b32.xlu0 %v3904, 92
    %v3931 = vpop.permute.xlu0 %3930
    %3932 = vrot.lane.b32.xlu0 %v3905, 92
    %v3933 = vpop.permute.xlu0 %3932
    %3934 = vrot.lane.b32.xlu0 %v3908, 92
    %v3935 = vpop.permute.xlu0 %3934
    %3936 = vrot.lane.b32.xlu0 %v3909, 92
    %v3937 = vpop.permute.xlu0 %3936
    %3938 = vrot.lane.b32.xlu0 %v3910, 92
    %v3939 = vpop.permute.xlu0 %3938
    %3940 = vrot.lane.b32.xlu0 %v3911, 92
    %v3941 = vpop.permute.xlu0 %3940
    %3942 = vrot.lane.b32.xlu0 %v3912, 92
    %v3943 = vpop.permute.xlu0 %3942
    %3944 = vrot.lane.b32.xlu0 %v3913, 92
    %v3945 = vpop.permute.xlu0 %3944
    %3946 = vrot.lane.b32.xlu0 %v3914, 92
    %v3947 = vpop.permute.xlu0 %3946
    %3948 = vrot.lane.b32.xlu0 %v3915, 92
    %v3949 = vpop.permute.xlu0 %3948
    %3950 = vrot.lane.b32.xlu0 %v3917, 92
    %v3951 = vpop.permute.xlu0 %3950
    %v3952 = vsel %vm1023, %v3919, %v3921
    %v3953 = vsel %vm1023, %v3921, %v3923
    %v3954 = vsel %vm1023, %v3923, %v3925
    %v3955 = vsel %vm1023, %v3925, %v3927
    %v3956 = vsel %vm1023, %v3927, %v3929
    %v3957 = vsel %vm1023, %v3929, %v3931
    %v3958 = vsel %vm1023, %v3931, %v3933
    %v3959 = vsel %vm1023, %v3933, %v3935
    %v3960 = vsel %vm1023, %v3935, %v3937
    %v3961 = vsel %vm1023, %v3937, %v3939
    %v3962 = vsel %vm1023, %v3939, %v3941
    %v3963 = vsel %vm1023, %v3941, %v3943
    %v3964 = vsel %vm1023, %v3943, %v3945
    %v3965 = vsel %vm1023, %v3945, %v3947
    %v3966 = vsel %vm1023, %v3947, %v3949
    %v3967 = vsel %vm1023, %v3949, %v3951
    %3984 = vst [vmem:[#allocation7 + $0x100] sm:$0xc] %v3952
    %3985 = vst [vmem:[#allocation7 + $0x108] sm:$0xc] %v3953
    %3986 = vst [vmem:[#allocation7 + $0x110] sm:$0xc] %v3954
    %3987 = vst [vmem:[#allocation7 + $0x118] sm:$0xc] %v3955
    %3988 = vst [vmem:[#allocation7 + $0x120] sm:$0xc] %v3956
    %3989 = vst [vmem:[#allocation7 + $0x128] sm:$0xc] %v3957
    %3990 = vst [vmem:[#allocation7 + $0x130] sm:$0xc] %v3958
    %3991 = vst [vmem:[#allocation7 + $0x138] sm:$0xc] %v3959
    %3992 = vst [vmem:[#allocation7 + $0x140] sm:$0xc] %v3960
    %3993 = vst [vmem:[#allocation7 + $0x148] sm:$0xc] %v3961
    %3994 = vst [vmem:[#allocation7 + $0x150] sm:$0xc] %v3962
    %3995 = vst [vmem:[#allocation7 + $0x158] sm:$0xc] %v3963
    %3996 = vst [vmem:[#allocation7 + $0x160] sm:$0xc] %v3964
    %3997 = vst [vmem:[#allocation7 + $0x168] sm:$0xc] %v3965
    %3998 = vst [vmem:[#allocation7 + $0x170] sm:$0xc] %v3966
    %3999 = vst [vmem:[#allocation7 + $0x178] sm:$0xc] %v3967
    %v4000 = vld [vmem:[#allocation6] sm:$0xff]
    %v4001 = vld [vmem:[#allocation6 + $0x8] sm:$0xff]
    %v4002 = vld [vmem:[#allocation6 + $0x10] sm:$0xff]
    %v4003 = vld [vmem:[#allocation6 + $0x18] sm:$0xff]
    %v4004 = vld [vmem:[#allocation6 + $0x20] sm:$0x3]
    %s4010 = scalar_lea.vmem [#allocation1], 2
    %4011 = vst [vmem:[%s4010] ss:$4 sm:$0xff] %v4000
    %s4012 = scalar_lea.vmem [#allocation1], 34
    %4013 = vst [vmem:[%s4012] ss:$4 sm:$0xff] %v4001
    %v4014 = vld.sshfl [vmem:[#allocation1] sm:$0xff pattern:$0x73625140]
    %v4015 = vld.sshfl [vmem:[#allocation1 + $0x8] sm:$0xff pattern:$0x73625140]
    %v4016 = vld.sshfl [vmem:[#allocation1 + $0x10] sm:$0xff pattern:$0x73625140]
    %v4017 = vld.sshfl [vmem:[#allocation1 + $0x18] sm:$0xff pattern:$0x73625140]
    %v4018 = vld.sshfl [vmem:[#allocation1 + $0x20] sm:$0xff pattern:$0x73625140]
    %v4019 = vld.sshfl [vmem:[#allocation1 + $0x28] sm:$0xff pattern:$0x73625140]
    %v4020 = vld.sshfl [vmem:[#allocation1 + $0x30] sm:$0xff pattern:$0x73625140]
    %v4021 = vld.sshfl [vmem:[#allocation1 + $0x38] sm:$0xff pattern:$0x73625140]
    %4022 = vst [vmem:[%s4010] ss:$4 sm:$0xff] %v4002
    %4023 = vst [vmem:[%s4012] ss:$4 sm:$0xff] %v4003
    %v4024 = vld.sshfl [vmem:[#allocation1] sm:$0xff pattern:$0x73625140]
    %v4025 = vld.sshfl [vmem:[#allocation1 + $0x8] sm:$0xff pattern:$0x73625140]
    %v4026 = vld.sshfl [vmem:[#allocation1 + $0x10] sm:$0xff pattern:$0x73625140]
    %v4027 = vld.sshfl [vmem:[#allocation1 + $0x18] sm:$0xff pattern:$0x73625140]
    %v4028 = vld.sshfl [vmem:[#allocation1 + $0x20] sm:$0xff pattern:$0x73625140]
    %v4029 = vld.sshfl [vmem:[#allocation1 + $0x28] sm:$0xff pattern:$0x73625140]
    %v4030 = vld.sshfl [vmem:[#allocation1 + $0x30] sm:$0xff pattern:$0x73625140]
    %v4031 = vld.sshfl [vmem:[#allocation1 + $0x38] sm:$0xff pattern:$0x73625140]
    %4032 = vst [vmem:[%s4010] ss:$4 sm:$0xff] %v4004
    %v4033 = vld.sshfl [vmem:[#allocation1] sm:$0xff pattern:$0x73625140]
    %4034 = vrot.lane.b32.xlu0 %v4014, 64
    %v4035 = vpop.permute.xlu0 %4034
    %4036 = vrot.lane.b32.xlu0 %v4015, 64
    %v4037 = vpop.permute.xlu0 %4036
    %4038 = vrot.lane.b32.xlu0 %v4016, 64
    %v4039 = vpop.permute.xlu0 %4038
    %4040 = vrot.lane.b32.xlu0 %v4017, 64
    %v4041 = vpop.permute.xlu0 %4040
    %4042 = vrot.lane.b32.xlu0 %v4018, 64
    %v4043 = vpop.permute.xlu0 %4042
    %4044 = vrot.lane.b32.xlu0 %v4019, 64
    %v4045 = vpop.permute.xlu0 %4044
    %4046 = vrot.lane.b32.xlu0 %v4020, 64
    %v4047 = vpop.permute.xlu0 %4046
    %4048 = vrot.lane.b32.xlu0 %v4021, 64
    %v4049 = vpop.permute.xlu0 %4048
    %4050 = vrot.lane.b32.xlu0 %v4024, 64
    %v4051 = vpop.permute.xlu0 %4050
    %4052 = vrot.lane.b32.xlu0 %v4025, 64
    %v4053 = vpop.permute.xlu0 %4052
    %4054 = vrot.lane.b32.xlu0 %v4026, 64
    %v4055 = vpop.permute.xlu0 %4054
    %4056 = vrot.lane.b32.xlu0 %v4027, 64
    %v4057 = vpop.permute.xlu0 %4056
    %4058 = vrot.lane.b32.xlu0 %v4028, 64
    %v4059 = vpop.permute.xlu0 %4058
    %4060 = vrot.lane.b32.xlu0 %v4029, 64
    %v4061 = vpop.permute.xlu0 %4060
    %4062 = vrot.lane.b32.xlu0 %v4030, 64
    %v4063 = vpop.permute.xlu0 %4062
    %4064 = vrot.lane.b32.xlu0 %v4031, 64
    %v4065 = vpop.permute.xlu0 %4064
    %4066 = vrot.lane.b32.xlu0 %v4033, 64
    %v4067 = vpop.permute.xlu0 %4066
    %vm4068 = vcmask 523264
    %v4069 = vsel %vm4068, %v4035, %v4037
    %v4070 = vsel %vm4068, %v4037, %v4039
    %v4071 = vsel %vm4068, %v4039, %v4041
    %v4072 = vsel %vm4068, %v4041, %v4043
    %v4073 = vsel %vm4068, %v4043, %v4045
    %v4074 = vsel %vm4068, %v4045, %v4047
    %v4075 = vsel %vm4068, %v4047, %v4049
    %v4076 = vsel %vm4068, %v4049, %v4051
    %v4077 = vsel %vm4068, %v4051, %v4053
    %v4078 = vsel %vm4068, %v4053, %v4055
    %v4079 = vsel %vm4068, %v4055, %v4057
    %v4080 = vsel %vm4068, %v4057, %v4059
    %v4081 = vsel %vm4068, %v4059, %v4061
    %v4082 = vsel %vm4068, %v4061, %v4063
    %v4083 = vsel %vm4068, %v4063, %v4065
    %v4084 = vsel %vm4068, %v4065, %v4067
    %4101 = vst [vmem:[#allocation7 + $0x100] sm:$0x30] %v4069
    %4102 = vst [vmem:[#allocation7 + $0x108] sm:$0x30] %v4070
    %4103 = vst [vmem:[#allocation7 + $0x110] sm:$0x30] %v4071
    %4104 = vst [vmem:[#allocation7 + $0x118] sm:$0x30] %v4072
    %4105 = vst [vmem:[#allocation7 + $0x120] sm:$0x30] %v4073
    %4106 = vst [vmem:[#allocation7 + $0x128] sm:$0x30] %v4074
    %4107 = vst [vmem:[#allocation7 + $0x130] sm:$0x30] %v4075
    %4108 = vst [vmem:[#allocation7 + $0x138] sm:$0x30] %v4076
    %4109 = vst [vmem:[#allocation7 + $0x140] sm:$0x30] %v4077
    %4110 = vst [vmem:[#allocation7 + $0x148] sm:$0x30] %v4078
    %4111 = vst [vmem:[#allocation7 + $0x150] sm:$0x30] %v4079
    %4112 = vst [vmem:[#allocation7 + $0x158] sm:$0x30] %v4080
    %4113 = vst [vmem:[#allocation7 + $0x160] sm:$0x30] %v4081
    %4114 = vst [vmem:[#allocation7 + $0x168] sm:$0x30] %v4082
    %4115 = vst [vmem:[#allocation7 + $0x170] sm:$0x30] %v4083
    %4116 = vst [vmem:[#allocation7 + $0x178] sm:$0x30] %v4084
    %v4117 = vld [vmem:[#allocation6] sm:$0xff]
    %v4118 = vld [vmem:[#allocation6 + $0x8] sm:$0xff]
    %v4119 = vld [vmem:[#allocation6 + $0x10] sm:$0xff]
    %v4120 = vld [vmem:[#allocation6 + $0x18] sm:$0xff]
    %v4121 = vld [vmem:[#allocation6 + $0x20] sm:$0x3]
    %s4127 = scalar_lea.vmem [#allocation1], 3
    %4128 = vst [vmem:[%s4127] ss:$4 sm:$0xff] %v4117
    %s4129 = scalar_lea.vmem [#allocation1], 35
    %4130 = vst [vmem:[%s4129] ss:$4 sm:$0xff] %v4118
    %v4131 = vld.sshfl [vmem:[#allocation1] sm:$0xff pattern:$0x73625140]
    %v4132 = vld.sshfl [vmem:[#allocation1 + $0x8] sm:$0xff pattern:$0x73625140]
    %v4133 = vld.sshfl [vmem:[#allocation1 + $0x10] sm:$0xff pattern:$0x73625140]
    %v4134 = vld.sshfl [vmem:[#allocation1 + $0x18] sm:$0xff pattern:$0x73625140]
    %v4135 = vld.sshfl [vmem:[#allocation1 + $0x20] sm:$0xff pattern:$0x73625140]
    %v4136 = vld.sshfl [vmem:[#allocation1 + $0x28] sm:$0xff pattern:$0x73625140]
    %v4137 = vld.sshfl [vmem:[#allocation1 + $0x30] sm:$0xff pattern:$0x73625140]
    %v4138 = vld.sshfl [vmem:[#allocation1 + $0x38] sm:$0xff pattern:$0x73625140]
    %4139 = vst [vmem:[%s4127] ss:$4 sm:$0xff] %v4119
    %4140 = vst [vmem:[%s4129] ss:$4 sm:$0xff] %v4120
    %v4141 = vld.sshfl [vmem:[#allocation1] sm:$0xff pattern:$0x73625140]
    %v4142 = vld.sshfl [vmem:[#allocation1 + $0x8] sm:$0xff pattern:$0x73625140]
    %v4143 = vld.sshfl [vmem:[#allocation1 + $0x10] sm:$0xff pattern:$0x73625140]
    %v4144 = vld.sshfl [vmem:[#allocation1 + $0x18] sm:$0xff pattern:$0x73625140]
    %v4145 = vld.sshfl [vmem:[#allocation1 + $0x20] sm:$0xff pattern:$0x73625140]
    %v4146 = vld.sshfl [vmem:[#allocation1 + $0x28] sm:$0xff pattern:$0x73625140]
    %v4147 = vld.sshfl [vmem:[#allocation1 + $0x30] sm:$0xff pattern:$0x73625140]
    %v4148 = vld.sshfl [vmem:[#allocation1 + $0x38] sm:$0xff pattern:$0x73625140]
    %4149 = vst [vmem:[%s4127] ss:$4 sm:$0xff] %v4121
    %v4150 = vld.sshfl [vmem:[#allocation1] sm:$0xff pattern:$0x73625140]
    %4151 = vrot.lane.b32.xlu0 %v4131, 63
    %v4152 = vpop.permute.xlu0 %4151
    %4153 = vrot.lane.b32.xlu0 %v4132, 63
    %v4154 = vpop.permute.xlu0 %4153
    %4155 = vrot.lane.b32.xlu0 %v4133, 63
    %v4156 = vpop.permute.xlu0 %4155
    %4157 = vrot.lane.b32.xlu0 %v4134, 63
    %v4158 = vpop.permute.xlu0 %4157
    %4159 = vrot.lane.b32.xlu0 %v4135, 63
    %v4160 = vpop.permute.xlu0 %4159
    %4161 = vrot.lane.b32.xlu0 %v4136, 63
    %v4162 = vpop.permute.xlu0 %4161
    %4163 = vrot.lane.b32.xlu0 %v4137, 63
    %v4164 = vpop.permute.xlu0 %4163
    %4165 = vrot.lane.b32.xlu0 %v4138, 63
    %v4166 = vpop.permute.xlu0 %4165
    %4167 = vrot.lane.b32.xlu0 %v4141, 63
    %v4168 = vpop.permute.xlu0 %4167
    %4169 = vrot.lane.b32.xlu0 %v4142, 63
    %v4170 = vpop.permute.xlu0 %4169
    %4171 = vrot.lane.b32.xlu0 %v4143, 63
    %v4172 = vpop.permute.xlu0 %4171
    %4173 = vrot.lane.b32.xlu0 %v4144, 63
    %v4174 = vpop.permute.xlu0 %4173
    %4175 = vrot.lane.b32.xlu0 %v4145, 63
    %v4176 = vpop.permute.xlu0 %4175
    %4177 = vrot.lane.b32.xlu0 %v4146, 63
    %v4178 = vpop.permute.xlu0 %4177
    %4179 = vrot.lane.b32.xlu0 %v4147, 63
    %v4180 = vpop.permute.xlu0 %4179
    %4181 = vrot.lane.b32.xlu0 %v4148, 63
    %v4182 = vpop.permute.xlu0 %4181
    %4183 = vrot.lane.b32.xlu0 %v4150, 63
    %v4184 = vpop.permute.xlu0 %4183
    %vm4185 = vcmask 515072
    %v4186 = vsel %vm4185, %v4152, %v4154
    %v4187 = vsel %vm4185, %v4154, %v4156
    %v4188 = vsel %vm4185, %v4156, %v4158
    %v4189 = vsel %vm4185, %v4158, %v4160
    %v4190 = vsel %vm4185, %v4160, %v4162
    %v4191 = vsel %vm4185, %v4162, %v4164
    %v4192 = vsel %vm4185, %v4164, %v4166
    %v4193 = vsel %vm4185, %v4166, %v4168
    %v4194 = vsel %vm4185, %v4168, %v4170
    %v4195 = vsel %vm4185, %v4170, %v4172
    %v4196 = vsel %vm4185, %v4172, %v4174
    %v4197 = vsel %vm4185, %v4174, %v4176
    %v4198 = vsel %vm4185, %v4176, %v4178
    %v4199 = vsel %vm4185, %v4178, %v4180
    %v4200 = vsel %vm4185, %v4180, %v4182
    %v4201 = vsel %vm4185, %v4182, %v4184
    %4218 = vst [vmem:[#allocation7 + $0x100] sm:$0xc0] %v4186
    %4219 = vst [vmem:[#allocation7 + $0x108] sm:$0xc0] %v4187
    %4220 = vst [vmem:[#allocation7 + $0x110] sm:$0xc0] %v4188
    %4221 = vst [vmem:[#allocation7 + $0x118] sm:$0xc0] %v4189
    %4222 = vst [vmem:[#allocation7 + $0x120] sm:$0xc0] %v4190
    %4223 = vst [vmem:[#allocation7 + $0x128] sm:$0xc0] %v4191
    %4224 = vst [vmem:[#allocation7 + $0x130] sm:$0xc0] %v4192
    %4225 = vst [vmem:[#allocation7 + $0x138] sm:$0xc0] %v4193
    %4226 = vst [vmem:[#allocation7 + $0x140] sm:$0xc0] %v4194
    %4227 = vst [vmem:[#allocation7 + $0x148] sm:$0xc0] %v4195
    %4228 = vst [vmem:[#allocation7 + $0x150] sm:$0xc0] %v4196
    %4229 = vst [vmem:[#allocation7 + $0x158] sm:$0xc0] %v4197
    %4230 = vst [vmem:[#allocation7 + $0x160] sm:$0xc0] %v4198
    %4231 = vst [vmem:[#allocation7 + $0x168] sm:$0xc0] %v4199
    %4232 = vst [vmem:[#allocation7 + $0x170] sm:$0xc0] %v4200
    %4233 = vst [vmem:[#allocation7 + $0x178] sm:$0xc0] %v4201
    %v4234 = vld [vmem:[#allocation6] sm:$0xff]
    %v4235 = vld [vmem:[#allocation6 + $0x8] sm:$0xff]
    %v4236 = vld [vmem:[#allocation6 + $0x10] sm:$0xff]
    %v4237 = vld [vmem:[#allocation6 + $0x18] sm:$0xff]
    %v4238 = vld [vmem:[#allocation6 + $0x20] sm:$0x3]
    %4244 = vst [vmem:[#allocation1] ss:$4 sm:$0xff] %v4234
    %s4245 = scalar_lea.vmem [#allocation1], 32
    %4246 = vst [vmem:[%s4245] ss:$4 sm:$0xff] %v4235
    %v4247 = vld.sshfl [vmem:[#allocation1] sm:$0xff pattern:$0x73625140]
    %v4248 = vld.sshfl [vmem:[#allocation1 + $0x8] sm:$0xff pattern:$0x73625140]
    %v4249 = vld.sshfl [vmem:[#allocation1 + $0x10] sm:$0xff pattern:$0x73625140]
    %v4250 = vld.sshfl [vmem:[#allocation1 + $0x18] sm:$0xff pattern:$0x73625140]
    %v4251 = vld.sshfl [vmem:[#allocation1 + $0x20] sm:$0xff pattern:$0x73625140]
    %v4252 = vld.sshfl [vmem:[#allocation1 + $0x28] sm:$0xff pattern:$0x73625140]
    %v4253 = vld.sshfl [vmem:[#allocation1 + $0x30] sm:$0xff pattern:$0x73625140]
    %v4254 = vld.sshfl [vmem:[#allocation1 + $0x38] sm:$0xff pattern:$0x73625140]
    %4255 = vst [vmem:[#allocation1] ss:$4 sm:$0xff] %v4236
    %4256 = vst [vmem:[%s4245] ss:$4 sm:$0xff] %v4237
    %v4257 = vld.sshfl [vmem:[#allocation1] sm:$0xff pattern:$0x73625140]
    %v4258 = vld.sshfl [vmem:[#allocation1 + $0x8] sm:$0xff pattern:$0x73625140]
    %v4259 = vld.sshfl [vmem:[#allocation1 + $0x10] sm:$0xff pattern:$0x73625140]
    %v4260 = vld.sshfl [vmem:[#allocation1 + $0x18] sm:$0xff pattern:$0x73625140]
    %v4261 = vld.sshfl [vmem:[#allocation1 + $0x20] sm:$0xff pattern:$0x73625140]
    %v4262 = vld.sshfl [vmem:[#allocation1 + $0x28] sm:$0xff pattern:$0x73625140]
    %v4263 = vld.sshfl [vmem:[#allocation1 + $0x30] sm:$0xff pattern:$0x73625140]
    %v4264 = vld.sshfl [vmem:[#allocation1 + $0x38] sm:$0xff pattern:$0x73625140]
    %4265 = vst [vmem:[#allocation1] ss:$4 sm:$0xff] %v4238
    %v4266 = vld.sshfl [vmem:[#allocation1] sm:$0xff pattern:$0x73625140]
    %4267 = vrot.lane.b32.xlu0 %v4247, 62
    %v4268 = vpop.permute.xlu0 %4267
    %4269 = vrot.lane.b32.xlu0 %v4248, 62
    %v4270 = vpop.permute.xlu0 %4269
    %4271 = vrot.lane.b32.xlu0 %v4249, 62
    %v4272 = vpop.permute.xlu0 %4271
    %4273 = vrot.lane.b32.xlu0 %v4250, 62
    %v4274 = vpop.permute.xlu0 %4273
    %4275 = vrot.lane.b32.xlu0 %v4251, 62
    %v4276 = vpop.permute.xlu0 %4275
    %4277 = vrot.lane.b32.xlu0 %v4252, 62
    %v4278 = vpop.permute.xlu0 %4277
    %4279 = vrot.lane.b32.xlu0 %v4253, 62
    %v4280 = vpop.permute.xlu0 %4279
    %4281 = vrot.lane.b32.xlu0 %v4254, 62
    %v4282 = vpop.permute.xlu0 %4281
    %4283 = vrot.lane.b32.xlu0 %v4257, 62
    %v4284 = vpop.permute.xlu0 %4283
    %4285 = vrot.lane.b32.xlu0 %v4258, 62
    %v4286 = vpop.permute.xlu0 %4285
    %4287 = vrot.lane.b32.xlu0 %v4259, 62
    %v4288 = vpop.permute.xlu0 %4287
    %4289 = vrot.lane.b32.xlu0 %v4260, 62
    %v4290 = vpop.permute.xlu0 %4289
    %4291 = vrot.lane.b32.xlu0 %v4261, 62
    %v4292 = vpop.permute.xlu0 %4291
    %4293 = vrot.lane.b32.xlu0 %v4262, 62
    %v4294 = vpop.permute.xlu0 %4293
    %4295 = vrot.lane.b32.xlu0 %v4263, 62
    %v4296 = vpop.permute.xlu0 %4295
    %4297 = vrot.lane.b32.xlu0 %v4264, 62
    %v4298 = vpop.permute.xlu0 %4297
    %4299 = vrot.lane.b32.xlu0 %v4266, 62
    %v4300 = vpop.permute.xlu0 %4299
    %vm4301 = vcmask 506880
    %v4302 = vsel %vm4301, %v4268, %v4270
    %v4303 = vsel %vm4301, %v4270, %v4272
    %v4304 = vsel %vm4301, %v4272, %v4274
    %v4305 = vsel %vm4301, %v4274, %v4276
    %v4306 = vsel %vm4301, %v4276, %v4278
    %v4307 = vsel %vm4301, %v4278, %v4280
    %v4308 = vsel %vm4301, %v4280, %v4282
    %v4309 = vsel %vm4301, %v4282, %v4284
    %v4310 = vsel %vm4301, %v4284, %v4286
    %v4311 = vsel %vm4301, %v4286, %v4288
    %v4312 = vsel %vm4301, %v4288, %v4290
    %v4313 = vsel %vm4301, %v4290, %v4292
    %v4314 = vsel %vm4301, %v4292, %v4294
    %v4315 = vsel %vm4301, %v4294, %v4296
    %v4316 = vsel %vm4301, %v4296, %v4298
    %v4317 = vsel %vm4301, %v4298, %v4300
    %4334 = vst [vmem:[#allocation7 + $0x180] sm:$0x3] %v4302
    %4335 = vst [vmem:[#allocation7 + $0x188] sm:$0x3] %v4303
    %4336 = vst [vmem:[#allocation7 + $0x190] sm:$0x3] %v4304
    %4337 = vst [vmem:[#allocation7 + $0x198] sm:$0x3] %v4305
    %4338 = vst [vmem:[#allocation7 + $0x1a0] sm:$0x3] %v4306
    %4339 = vst [vmem:[#allocation7 + $0x1a8] sm:$0x3] %v4307
    %4340 = vst [vmem:[#allocation7 + $0x1b0] sm:$0x3] %v4308
    %4341 = vst [vmem:[#allocation7 + $0x1b8] sm:$0x3] %v4309
    %4342 = vst [vmem:[#allocation7 + $0x1c0] sm:$0x3] %v4310
    %4343 = vst [vmem:[#allocation7 + $0x1c8] sm:$0x3] %v4311
    %4344 = vst [vmem:[#allocation7 + $0x1d0] sm:$0x3] %v4312
    %4345 = vst [vmem:[#allocation7 + $0x1d8] sm:$0x3] %v4313
    %4346 = vst [vmem:[#allocation7 + $0x1e0] sm:$0x3] %v4314
    %4347 = vst [vmem:[#allocation7 + $0x1e8] sm:$0x3] %v4315
    %4348 = vst [vmem:[#allocation7 + $0x1f0] sm:$0x3] %v4316
    %4349 = vst [vmem:[#allocation7 + $0x1f8] sm:$0x3] %v4317
    %v4350 = vld [vmem:[#allocation6] sm:$0xff]
    %v4351 = vld [vmem:[#allocation6 + $0x8] sm:$0xff]
    %v4352 = vld [vmem:[#allocation6 + $0x10] sm:$0xff]
    %v4353 = vld [vmem:[#allocation6 + $0x18] sm:$0xff]
    %v4354 = vld [vmem:[#allocation6 + $0x20] sm:$0x3]
    %s4360 = scalar_lea.vmem [#allocation1], 1
    %4361 = vst [vmem:[%s4360] ss:$4 sm:$0xff] %v4350
    %s4362 = scalar_lea.vmem [#allocation1], 33
    %4363 = vst [vmem:[%s4362] ss:$4 sm:$0xff] %v4351
    %v4364 = vld.sshfl [vmem:[#allocation1] sm:$0xff pattern:$0x73625140]
    %v4365 = vld.sshfl [vmem:[#allocation1 + $0x8] sm:$0xff pattern:$0x73625140]
    %v4366 = vld.sshfl [vmem:[#allocation1 + $0x10] sm:$0xff pattern:$0x73625140]
    %v4367 = vld.sshfl [vmem:[#allocation1 + $0x18] sm:$0xff pattern:$0x73625140]
    %v4368 = vld.sshfl [vmem:[#allocation1 + $0x20] sm:$0xff pattern:$0x73625140]
    %v4369 = vld.sshfl [vmem:[#allocation1 + $0x28] sm:$0xff pattern:$0x73625140]
    %v4370 = vld.sshfl [vmem:[#allocation1 + $0x30] sm:$0xff pattern:$0x73625140]
    %v4371 = vld.sshfl [vmem:[#allocation1 + $0x38] sm:$0xff pattern:$0x73625140]
    %4372 = vst [vmem:[%s4360] ss:$4 sm:$0xff] %v4352
    %4373 = vst [vmem:[%s4362] ss:$4 sm:$0xff] %v4353
    %v4374 = vld.sshfl [vmem:[#allocation1] sm:$0xff pattern:$0x73625140]
    %v4375 = vld.sshfl [vmem:[#allocation1 + $0x8] sm:$0xff pattern:$0x73625140]
    %v4376 = vld.sshfl [vmem:[#allocation1 + $0x10] sm:$0xff pattern:$0x73625140]
    %v4377 = vld.sshfl [vmem:[#allocation1 + $0x18] sm:$0xff pattern:$0x73625140]
    %v4378 = vld.sshfl [vmem:[#allocation1 + $0x20] sm:$0xff pattern:$0x73625140]
    %v4379 = vld.sshfl [vmem:[#allocation1 + $0x28] sm:$0xff pattern:$0x73625140]
    %v4380 = vld.sshfl [vmem:[#allocation1 + $0x30] sm:$0xff pattern:$0x73625140]
    %v4381 = vld.sshfl [vmem:[#allocation1 + $0x38] sm:$0xff pattern:$0x73625140]
    %4382 = vst [vmem:[%s4360] ss:$4 sm:$0xff] %v4354
    %v4383 = vld.sshfl [vmem:[#allocation1] sm:$0xff pattern:$0x73625140]
    %4384 = vrot.lane.b32.xlu0 %v4364, 61
    %v4385 = vpop.permute.xlu0 %4384
    %4386 = vrot.lane.b32.xlu0 %v4365, 61
    %v4387 = vpop.permute.xlu0 %4386
    %4388 = vrot.lane.b32.xlu0 %v4366, 61
    %v4389 = vpop.permute.xlu0 %4388
    %4390 = vrot.lane.b32.xlu0 %v4367, 61
    %v4391 = vpop.permute.xlu0 %4390
    %4392 = vrot.lane.b32.xlu0 %v4368, 61
    %v4393 = vpop.permute.xlu0 %4392
    %4394 = vrot.lane.b32.xlu0 %v4369, 61
    %v4395 = vpop.permute.xlu0 %4394
    %4396 = vrot.lane.b32.xlu0 %v4370, 61
    %v4397 = vpop.permute.xlu0 %4396
    %4398 = vrot.lane.b32.xlu0 %v4371, 61
    %v4399 = vpop.permute.xlu0 %4398
    %4400 = vrot.lane.b32.xlu0 %v4374, 61
    %v4401 = vpop.permute.xlu0 %4400
    %4402 = vrot.lane.b32.xlu0 %v4375, 61
    %v4403 = vpop.permute.xlu0 %4402
    %4404 = vrot.lane.b32.xlu0 %v4376, 61
    %v4405 = vpop.permute.xlu0 %4404
    %4406 = vrot.lane.b32.xlu0 %v4377, 61
    %v4407 = vpop.permute.xlu0 %4406
    %4408 = vrot.lane.b32.xlu0 %v4378, 61
    %v4409 = vpop.permute.xlu0 %4408
    %4410 = vrot.lane.b32.xlu0 %v4379, 61
    %v4411 = vpop.permute.xlu0 %4410
    %4412 = vrot.lane.b32.xlu0 %v4380, 61
    %v4413 = vpop.permute.xlu0 %4412
    %4414 = vrot.lane.b32.xlu0 %v4381, 61
    %v4415 = vpop.permute.xlu0 %4414
    %4416 = vrot.lane.b32.xlu0 %v4383, 61
    %v4417 = vpop.permute.xlu0 %4416
    %vm4418 = vcmask 498688
    %v4419 = vsel %vm4418, %v4385, %v4387
    %v4420 = vsel %vm4418, %v4387, %v4389
    %v4421 = vsel %vm4418, %v4389, %v4391
    %v4422 = vsel %vm4418, %v4391, %v4393
    %v4423 = vsel %vm4418, %v4393, %v4395
    %v4424 = vsel %vm4418, %v4395, %v4397
    %v4425 = vsel %vm4418, %v4397, %v4399
    %v4426 = vsel %vm4418, %v4399, %v4401
    %v4427 = vsel %vm4418, %v4401, %v4403
    %v4428 = vsel %vm4418, %v4403, %v4405
    %v4429 = vsel %vm4418, %v4405, %v4407
    %v4430 = vsel %vm4418, %v4407, %v4409
    %v4431 = vsel %vm4418, %v4409, %v4411
    %v4432 = vsel %vm4418, %v4411, %v4413
    %v4433 = vsel %vm4418, %v4413, %v4415
    %v4434 = vsel %vm4418, %v4415, %v4417
    %4451 = vst [vmem:[#allocation7 + $0x180] sm:$0xc] %v4419
    %4452 = vst [vmem:[#allocation7 + $0x188] sm:$0xc] %v4420
    %4453 = vst [vmem:[#allocation7 + $0x190] sm:$0xc] %v4421
    %4454 = vst [vmem:[#allocation7 + $0x198] sm:$0xc] %v4422
    %4455 = vst [vmem:[#allocation7 + $0x1a0] sm:$0xc] %v4423
    %4456 = vst [vmem:[#allocation7 + $0x1a8] sm:$0xc] %v4424
    %4457 = vst [vmem:[#allocation7 + $0x1b0] sm:$0xc] %v4425
    %4458 = vst [vmem:[#allocation7 + $0x1b8] sm:$0xc] %v4426
    %4459 = vst [vmem:[#allocation7 + $0x1c0] sm:$0xc] %v4427
    %4460 = vst [vmem:[#allocation7 + $0x1c8] sm:$0xc] %v4428
    %4461 = vst [vmem:[#allocation7 + $0x1d0] sm:$0xc] %v4429
    %4462 = vst [vmem:[#allocation7 + $0x1d8] sm:$0xc] %v4430
    %4463 = vst [vmem:[#allocation7 + $0x1e0] sm:$0xc] %v4431
    %4464 = vst [vmem:[#allocation7 + $0x1e8] sm:$0xc] %v4432
    %4465 = vst [vmem:[#allocation7 + $0x1f0] sm:$0xc] %v4433
    %4466 = vst [vmem:[#allocation7 + $0x1f8] sm:$0xc] %v4434
    %v4467 = vld [vmem:[#allocation6] sm:$0xff]
    %v4468 = vld [vmem:[#allocation6 + $0x8] sm:$0xff]
    %v4469 = vld [vmem:[#allocation6 + $0x10] sm:$0xff]
    %v4470 = vld [vmem:[#allocation6 + $0x18] sm:$0xff]
    %v4471 = vld [vmem:[#allocation6 + $0x20] sm:$0x3]
    %s4477 = scalar_lea.vmem [#allocation1], 2
    %4478 = vst [vmem:[%s4477] ss:$4 sm:$0xff] %v4467
    %s4479 = scalar_lea.vmem [#allocation1], 34
    %4480 = vst [vmem:[%s4479] ss:$4 sm:$0xff] %v4468
    %v4481 = vld.sshfl [vmem:[#allocation1] sm:$0xff pattern:$0x73625140]
    %v4482 = vld.sshfl [vmem:[#allocation1 + $0x8] sm:$0xff pattern:$0x73625140]
    %v4483 = vld.sshfl [vmem:[#allocation1 + $0x10] sm:$0xff pattern:$0x73625140]
    %v4484 = vld.sshfl [vmem:[#allocation1 + $0x18] sm:$0xff pattern:$0x73625140]
    %v4485 = vld.sshfl [vmem:[#allocation1 + $0x20] sm:$0xff pattern:$0x73625140]
    %v4486 = vld.sshfl [vmem:[#allocation1 + $0x28] sm:$0xff pattern:$0x73625140]
    %v4487 = vld.sshfl [vmem:[#allocation1 + $0x30] sm:$0xff pattern:$0x73625140]
    %v4488 = vld.sshfl [vmem:[#allocation1 + $0x38] sm:$0xff pattern:$0x73625140]
    %4489 = vst [vmem:[%s4477] ss:$4 sm:$0xff] %v4469
    %4490 = vst [vmem:[%s4479] ss:$4 sm:$0xff] %v4470
    %v4491 = vld.sshfl [vmem:[#allocation1] sm:$0xff pattern:$0x73625140]
    %v4492 = vld.sshfl [vmem:[#allocation1 + $0x8] sm:$0xff pattern:$0x73625140]
    %v4493 = vld.sshfl [vmem:[#allocation1 + $0x10] sm:$0xff pattern:$0x73625140]
    %v4494 = vld.sshfl [vmem:[#allocation1 + $0x18] sm:$0xff pattern:$0x73625140]
    %v4495 = vld.sshfl [vmem:[#allocation1 + $0x20] sm:$0xff pattern:$0x73625140]
    %v4496 = vld.sshfl [vmem:[#allocation1 + $0x28] sm:$0xff pattern:$0x73625140]
    %v4497 = vld.sshfl [vmem:[#allocation1 + $0x30] sm:$0xff pattern:$0x73625140]
    %v4498 = vld.sshfl [vmem:[#allocation1 + $0x38] sm:$0xff pattern:$0x73625140]
    %4499 = vst [vmem:[%s4477] ss:$4 sm:$0xff] %v4471
    %v4500 = vld.sshfl [vmem:[#allocation1] sm:$0xff pattern:$0x73625140]
    %4501 = vrot.lane.b32.xlu0 %v4481, 60
    %v4502 = vpop.permute.xlu0 %4501
    %4503 = vrot.lane.b32.xlu0 %v4482, 60
    %v4504 = vpop.permute.xlu0 %4503
    %4505 = vrot.lane.b32.xlu0 %v4483, 60
    %v4506 = vpop.permute.xlu0 %4505
    %4507 = vrot.lane.b32.xlu0 %v4484, 60
    %v4508 = vpop.permute.xlu0 %4507
    %4509 = vrot.lane.b32.xlu0 %v4485, 60
    %v4510 = vpop.permute.xlu0 %4509
    %4511 = vrot.lane.b32.xlu0 %v4486, 60
    %v4512 = vpop.permute.xlu0 %4511
    %4513 = vrot.lane.b32.xlu0 %v4487, 60
    %v4514 = vpop.permute.xlu0 %4513
    %4515 = vrot.lane.b32.xlu0 %v4488, 60
    %v4516 = vpop.permute.xlu0 %4515
    %4517 = vrot.lane.b32.xlu0 %v4491, 60
    %v4518 = vpop.permute.xlu0 %4517
    %4519 = vrot.lane.b32.xlu0 %v4492, 60
    %v4520 = vpop.permute.xlu0 %4519
    %4521 = vrot.lane.b32.xlu0 %v4493, 60
    %v4522 = vpop.permute.xlu0 %4521
    %4523 = vrot.lane.b32.xlu0 %v4494, 60
    %v4524 = vpop.permute.xlu0 %4523
    %4525 = vrot.lane.b32.xlu0 %v4495, 60
    %v4526 = vpop.permute.xlu0 %4525
    %4527 = vrot.lane.b32.xlu0 %v4496, 60
    %v4528 = vpop.permute.xlu0 %4527
    %4529 = vrot.lane.b32.xlu0 %v4497, 60
    %v4530 = vpop.permute.xlu0 %4529
    %4531 = vrot.lane.b32.xlu0 %v4498, 60
    %v4532 = vpop.permute.xlu0 %4531
    %4533 = vrot.lane.b32.xlu0 %v4500, 60
    %v4534 = vpop.permute.xlu0 %4533
    %v4535 = vsel %vm1963, %v4502, %v4504
    %v4536 = vsel %vm1963, %v4504, %v4506
    %v4537 = vsel %vm1963, %v4506, %v4508
    %v4538 = vsel %vm1963, %v4508, %v4510
    %v4539 = vsel %vm1963, %v4510, %v4512
    %v4540 = vsel %vm1963, %v4512, %v4514
    %v4541 = vsel %vm1963, %v4514, %v4516
    %v4542 = vsel %vm1963, %v4516, %v4518
    %v4543 = vsel %vm1963, %v4518, %v4520
    %v4544 = vsel %vm1963, %v4520, %v4522
    %v4545 = vsel %vm1963, %v4522, %v4524
    %v4546 = vsel %vm1963, %v4524, %v4526
    %v4547 = vsel %vm1963, %v4526, %v4528
    %v4548 = vsel %vm1963, %v4528, %v4530
    %v4549 = vsel %vm1963, %v4530, %v4532
    %v4550 = vsel %vm1963, %v4532, %v4534
    %4567 = vst [vmem:[#allocation7 + $0x180] sm:$0x30] %v4535
    %4568 = vst [vmem:[#allocation7 + $0x188] sm:$0x30] %v4536
    %4569 = vst [vmem:[#allocation7 + $0x190] sm:$0x30] %v4537
    %4570 = vst [vmem:[#allocation7 + $0x198] sm:$0x30] %v4538
    %4571 = vst [vmem:[#allocation7 + $0x1a0] sm:$0x30] %v4539
    %4572 = vst [vmem:[#allocation7 + $0x1a8] sm:$0x30] %v4540
    %4573 = vst [vmem:[#allocation7 + $0x1b0] sm:$0x30] %v4541
    %4574 = vst [vmem:[#allocation7 + $0x1b8] sm:$0x30] %v4542
    %4575 = vst [vmem:[#allocation7 + $0x1c0] sm:$0x30] %v4543
    %4576 = vst [vmem:[#allocation7 + $0x1c8] sm:$0x30] %v4544
    %4577 = vst [vmem:[#allocation7 + $0x1d0] sm:$0x30] %v4545
    %4578 = vst [vmem:[#allocation7 + $0x1d8] sm:$0x30] %v4546
    %4579 = vst [vmem:[#allocation7 + $0x1e0] sm:$0x30] %v4547
    %4580 = vst [vmem:[#allocation7 + $0x1e8] sm:$0x30] %v4548
    %4581 = vst [vmem:[#allocation7 + $0x1f0] sm:$0x30] %v4549
    %4582 = vst [vmem:[#allocation7 + $0x1f8] sm:$0x30] %v4550
    %v4583 = vld [vmem:[#allocation6] sm:$0xff]
    %v4584 = vld [vmem:[#allocation6 + $0x8] sm:$0xff]
    %v4585 = vld [vmem:[#allocation6 + $0x10] sm:$0xff]
    %v4586 = vld [vmem:[#allocation6 + $0x18] sm:$0xff]
    %v4587 = vld [vmem:[#allocation6 + $0x20] sm:$0x3]
    %s4593 = scalar_lea.vmem [#allocation1], 3
    %4594 = vst [vmem:[%s4593] ss:$4 sm:$0xff] %v4583
    %s4595 = scalar_lea.vmem [#allocation1], 35
    %4596 = vst [vmem:[%s4595] ss:$4 sm:$0xff] %v4584
    %v4597 = vld.sshfl [vmem:[#allocation1] sm:$0xff pattern:$0x73625140]
    %v4598 = vld.sshfl [vmem:[#allocation1 + $0x8] sm:$0xff pattern:$0x73625140]
    %v4599 = vld.sshfl [vmem:[#allocation1 + $0x10] sm:$0xff pattern:$0x73625140]
    %v4600 = vld.sshfl [vmem:[#allocation1 + $0x18] sm:$0xff pattern:$0x73625140]
    %v4601 = vld.sshfl [vmem:[#allocation1 + $0x20] sm:$0xff pattern:$0x73625140]
    %v4602 = vld.sshfl [vmem:[#allocation1 + $0x28] sm:$0xff pattern:$0x73625140]
    %v4603 = vld.sshfl [vmem:[#allocation1 + $0x30] sm:$0xff pattern:$0x73625140]
    %v4604 = vld.sshfl [vmem:[#allocation1 + $0x38] sm:$0xff pattern:$0x73625140]
    %4605 = vst [vmem:[%s4593] ss:$4 sm:$0xff] %v4585
    %4606 = vst [vmem:[%s4595] ss:$4 sm:$0xff] %v4586
    %v4607 = vld.sshfl [vmem:[#allocation1] sm:$0xff pattern:$0x73625140]
    %v4608 = vld.sshfl [vmem:[#allocation1 + $0x8] sm:$0xff pattern:$0x73625140]
    %v4609 = vld.sshfl [vmem:[#allocation1 + $0x10] sm:$0xff pattern:$0x73625140]
    %v4610 = vld.sshfl [vmem:[#allocation1 + $0x18] sm:$0xff pattern:$0x73625140]
    %v4611 = vld.sshfl [vmem:[#allocation1 + $0x20] sm:$0xff pattern:$0x73625140]
    %v4612 = vld.sshfl [vmem:[#allocation1 + $0x28] sm:$0xff pattern:$0x73625140]
    %v4613 = vld.sshfl [vmem:[#allocation1 + $0x30] sm:$0xff pattern:$0x73625140]
    %v4614 = vld.sshfl [vmem:[#allocation1 + $0x38] sm:$0xff pattern:$0x73625140]
    %4615 = vst [vmem:[%s4593] ss:$4 sm:$0xff] %v4587
    %v4616 = vld.sshfl [vmem:[#allocation1] sm:$0xff pattern:$0x73625140]
    %4617 = vrot.lane.b32.xlu0 %v4597, 32
    %v4618 = vpop.permute.xlu0 %4617
    %4619 = vrot.lane.b32.xlu0 %v4598, 32
    %v4620 = vpop.permute.xlu0 %4619
    %4621 = vrot.lane.b32.xlu0 %v4599, 32
    %v4622 = vpop.permute.xlu0 %4621
    %4623 = vrot.lane.b32.xlu0 %v4600, 32
    %v4624 = vpop.permute.xlu0 %4623
    %4625 = vrot.lane.b32.xlu0 %v4601, 32
    %v4626 = vpop.permute.xlu0 %4625
    %4627 = vrot.lane.b32.xlu0 %v4602, 32
    %v4628 = vpop.permute.xlu0 %4627
    %4629 = vrot.lane.b32.xlu0 %v4603, 32
    %v4630 = vpop.permute.xlu0 %4629
    %4631 = vrot.lane.b32.xlu0 %v4604, 32
    %v4632 = vpop.permute.xlu0 %4631
    %4633 = vrot.lane.b32.xlu0 %v4607, 32
    %v4634 = vpop.permute.xlu0 %4633
    %4635 = vrot.lane.b32.xlu0 %v4608, 32
    %v4636 = vpop.permute.xlu0 %4635
    %4637 = vrot.lane.b32.xlu0 %v4609, 32
    %v4638 = vpop.permute.xlu0 %4637
    %4639 = vrot.lane.b32.xlu0 %v4610, 32
    %v4640 = vpop.permute.xlu0 %4639
    %4641 = vrot.lane.b32.xlu0 %v4611, 32
    %v4642 = vpop.permute.xlu0 %4641
    %4643 = vrot.lane.b32.xlu0 %v4612, 32
    %v4644 = vpop.permute.xlu0 %4643
    %4645 = vrot.lane.b32.xlu0 %v4613, 32
    %v4646 = vpop.permute.xlu0 %4645
    %4647 = vrot.lane.b32.xlu0 %v4614, 32
    %v4648 = vpop.permute.xlu0 %4647
    %4649 = vrot.lane.b32.xlu0 %v4616, 32
    %v4650 = vpop.permute.xlu0 %4649
    %v4651 = vsel %vm259, %v4618, %v4620
    %v4652 = vsel %vm259, %v4620, %v4622
    %v4653 = vsel %vm259, %v4622, %v4624
    %v4654 = vsel %vm259, %v4624, %v4626
    %v4655 = vsel %vm259, %v4626, %v4628
    %v4656 = vsel %vm259, %v4628, %v4630
    %v4657 = vsel %vm259, %v4630, %v4632
    %v4658 = vsel %vm259, %v4632, %v4634
    %v4659 = vsel %vm259, %v4634, %v4636
    %v4660 = vsel %vm259, %v4636, %v4638
    %v4661 = vsel %vm259, %v4638, %v4640
    %v4662 = vsel %vm259, %v4640, %v4642
    %v4663 = vsel %vm259, %v4642, %v4644
    %v4664 = vsel %vm259, %v4644, %v4646
    %v4665 = vsel %vm259, %v4646, %v4648
    %v4666 = vsel %vm259, %v4648, %v4650
    %4683 = vst [vmem:[#allocation7 + $0x180] sm:$0xc0] %v4651
    %4684 = vst [vmem:[#allocation7 + $0x188] sm:$0xc0] %v4652
    %4685 = vst [vmem:[#allocation7 + $0x190] sm:$0xc0] %v4653
    %4686 = vst [vmem:[#allocation7 + $0x198] sm:$0xc0] %v4654
    %4687 = vst [vmem:[#allocation7 + $0x1a0] sm:$0xc0] %v4655
    %4688 = vst [vmem:[#allocation7 + $0x1a8] sm:$0xc0] %v4656
    %4689 = vst [vmem:[#allocation7 + $0x1b0] sm:$0xc0] %v4657
    %4690 = vst [vmem:[#allocation7 + $0x1b8] sm:$0xc0] %v4658
    %4691 = vst [vmem:[#allocation7 + $0x1c0] sm:$0xc0] %v4659
    %4692 = vst [vmem:[#allocation7 + $0x1c8] sm:$0xc0] %v4660
    %4693 = vst [vmem:[#allocation7 + $0x1d0] sm:$0xc0] %v4661
    %4694 = vst [vmem:[#allocation7 + $0x1d8] sm:$0xc0] %v4662
    %4695 = vst [vmem:[#allocation7 + $0x1e0] sm:$0xc0] %v4663
    %4696 = vst [vmem:[#allocation7 + $0x1e8] sm:$0xc0] %v4664
    %4697 = vst [vmem:[#allocation7 + $0x1f0] sm:$0xc0] %v4665
    %4698 = vst [vmem:[#allocation7 + $0x1f8] sm:$0xc0] %v4666
    %v4699 = vld [vmem:[#allocation6] sm:$0xff]
    %v4700 = vld [vmem:[#allocation6 + $0x8] sm:$0xff]
    %v4701 = vld [vmem:[#allocation6 + $0x10] sm:$0xff]
    %v4702 = vld [vmem:[#allocation6 + $0x18] sm:$0xff]
    %v4703 = vld [vmem:[#allocation6 + $0x20] sm:$0x3]
    %4709 = vst [vmem:[#allocation1] ss:$4 sm:$0xff] %v4699
    %s4710 = scalar_lea.vmem [#allocation1], 32
    %4711 = vst [vmem:[%s4710] ss:$4 sm:$0xff] %v4700
    %v4712 = vld.sshfl [vmem:[#allocation1] sm:$0xff pattern:$0x73625140]
    %v4713 = vld.sshfl [vmem:[#allocation1 + $0x8] sm:$0xff pattern:$0x73625140]
    %v4714 = vld.sshfl [vmem:[#allocation1 + $0x10] sm:$0xff pattern:$0x73625140]
    %v4715 = vld.sshfl [vmem:[#allocation1 + $0x18] sm:$0xff pattern:$0x73625140]
    %v4716 = vld.sshfl [vmem:[#allocation1 + $0x20] sm:$0xff pattern:$0x73625140]
    %v4717 = vld.sshfl [vmem:[#allocation1 + $0x28] sm:$0xff pattern:$0x73625140]
    %v4718 = vld.sshfl [vmem:[#allocation1 + $0x30] sm:$0xff pattern:$0x73625140]
    %v4719 = vld.sshfl [vmem:[#allocation1 + $0x38] sm:$0xff pattern:$0x73625140]
    %4720 = vst [vmem:[#allocation1] ss:$4 sm:$0xff] %v4701
    %4721 = vst [vmem:[%s4710] ss:$4 sm:$0xff] %v4702
    %v4722 = vld.sshfl [vmem:[#allocation1] sm:$0xff pattern:$0x73625140]
    %v4723 = vld.sshfl [vmem:[#allocation1 + $0x8] sm:$0xff pattern:$0x73625140]
    %v4724 = vld.sshfl [vmem:[#allocation1 + $0x10] sm:$0xff pattern:$0x73625140]
    %v4725 = vld.sshfl [vmem:[#allocation1 + $0x18] sm:$0xff pattern:$0x73625140]
    %v4726 = vld.sshfl [vmem:[#allocation1 + $0x20] sm:$0xff pattern:$0x73625140]
    %v4727 = vld.sshfl [vmem:[#allocation1 + $0x28] sm:$0xff pattern:$0x73625140]
    %v4728 = vld.sshfl [vmem:[#allocation1 + $0x30] sm:$0xff pattern:$0x73625140]
    %v4729 = vld.sshfl [vmem:[#allocation1 + $0x38] sm:$0xff pattern:$0x73625140]
    %4730 = vst [vmem:[#allocation1] ss:$4 sm:$0xff] %v4703
    %v4731 = vld.sshfl [vmem:[#allocation1] sm:$0xff pattern:$0x73625140]
    %4732 = vrot.lane.b32.xlu0 %v4712, 31
    %v4733 = vpop.permute.xlu0 %4732
    %4734 = vrot.lane.b32.xlu0 %v4713, 31
    %v4735 = vpop.permute.xlu0 %4734
    %4736 = vrot.lane.b32.xlu0 %v4714, 31
    %v4737 = vpop.permute.xlu0 %4736
    %4738 = vrot.lane.b32.xlu0 %v4715, 31
    %v4739 = vpop.permute.xlu0 %4738
    %4740 = vrot.lane.b32.xlu0 %v4716, 31
    %v4741 = vpop.permute.xlu0 %4740
    %4742 = vrot.lane.b32.xlu0 %v4717, 31
    %v4743 = vpop.permute.xlu0 %4742
    %4744 = vrot.lane.b32.xlu0 %v4718, 31
    %v4745 = vpop.permute.xlu0 %4744
    %4746 = vrot.lane.b32.xlu0 %v4719, 31
    %v4747 = vpop.permute.xlu0 %4746
    %4748 = vrot.lane.b32.xlu0 %v4722, 31
    %v4749 = vpop.permute.xlu0 %4748
    %4750 = vrot.lane.b32.xlu0 %v4723, 31
    %v4751 = vpop.permute.xlu0 %4750
    %4752 = vrot.lane.b32.xlu0 %v4724, 31
    %v4753 = vpop.permute.xlu0 %4752
    %4754 = vrot.lane.b32.xlu0 %v4725, 31
    %v4755 = vpop.permute.xlu0 %4754
    %4756 = vrot.lane.b32.xlu0 %v4726, 31
    %v4757 = vpop.permute.xlu0 %4756
    %4758 = vrot.lane.b32.xlu0 %v4727, 31
    %v4759 = vpop.permute.xlu0 %4758
    %4760 = vrot.lane.b32.xlu0 %v4728, 31
    %v4761 = vpop.permute.xlu0 %4760
    %4762 = vrot.lane.b32.xlu0 %v4729, 31
    %v4763 = vpop.permute.xlu0 %4762
    %4764 = vrot.lane.b32.xlu0 %v4731, 31
    %v4765 = vpop.permute.xlu0 %4764
    %vm4766 = vcmask 252928
    %v4767 = vsel %vm4766, %v4733, %v4735
    %v4768 = vsel %vm4766, %v4735, %v4737
    %v4769 = vsel %vm4766, %v4737, %v4739
    %v4770 = vsel %vm4766, %v4739, %v4741
    %v4771 = vsel %vm4766, %v4741, %v4743
    %v4772 = vsel %vm4766, %v4743, %v4745
    %v4773 = vsel %vm4766, %v4745, %v4747
    %v4774 = vsel %vm4766, %v4747, %v4749
    %v4775 = vsel %vm4766, %v4749, %v4751
    %v4776 = vsel %vm4766, %v4751, %v4753
    %v4777 = vsel %vm4766, %v4753, %v4755
    %v4778 = vsel %vm4766, %v4755, %v4757
    %v4779 = vsel %vm4766, %v4757, %v4759
    %v4780 = vsel %vm4766, %v4759, %v4761
    %v4781 = vsel %vm4766, %v4761, %v4763
    %v4782 = vsel %vm4766, %v4763, %v4765
    %4799 = vst [vmem:[#allocation7 + $0x200] sm:$0x3] %v4767
    %4800 = vst [vmem:[#allocation7 + $0x208] sm:$0x3] %v4768
    %4801 = vst [vmem:[#allocation7 + $0x210] sm:$0x3] %v4769
    %4802 = vst [vmem:[#allocation7 + $0x218] sm:$0x3] %v4770
    %4803 = vst [vmem:[#allocation7 + $0x220] sm:$0x3] %v4771
    %4804 = vst [vmem:[#allocation7 + $0x228] sm:$0x3] %v4772
    %4805 = vst [vmem:[#allocation7 + $0x230] sm:$0x3] %v4773
    %4806 = vst [vmem:[#allocation7 + $0x238] sm:$0x3] %v4774
    %4807 = vst [vmem:[#allocation7 + $0x240] sm:$0x3] %v4775
    %4808 = vst [vmem:[#allocation7 + $0x248] sm:$0x3] %v4776
    %4809 = vst [vmem:[#allocation7 + $0x250] sm:$0x3] %v4777
    %4810 = vst [vmem:[#allocation7 + $0x258] sm:$0x3] %v4778
    %4811 = vst [vmem:[#allocation7 + $0x260] sm:$0x3] %v4779
    %4812 = vst [vmem:[#allocation7 + $0x268] sm:$0x3] %v4780
    %4813 = vst [vmem:[#allocation7 + $0x270] sm:$0x3] %v4781
    %4814 = vst [vmem:[#allocation7 + $0x278] sm:$0x3] %v4782
    %v4815 = vld [vmem:[#allocation6] sm:$0xff]
    %v4816 = vld [vmem:[#allocation6 + $0x8] sm:$0xff]
    %v4817 = vld [vmem:[#allocation6 + $0x10] sm:$0xff]
    %v4818 = vld [vmem:[#allocation6 + $0x18] sm:$0xff]
    %v4819 = vld [vmem:[#allocation6 + $0x20] sm:$0x3]
    %s4825 = scalar_lea.vmem [#allocation1], 1
    %4826 = vst [vmem:[%s4825] ss:$4 sm:$0xff] %v4815
    %s4827 = scalar_lea.vmem [#allocation1], 33
    %4828 = vst [vmem:[%s4827] ss:$4 sm:$0xff] %v4816
    %v4829 = vld.sshfl [vmem:[#allocation1] sm:$0xff pattern:$0x73625140]
    %v4830 = vld.sshfl [vmem:[#allocation1 + $0x8] sm:$0xff pattern:$0x73625140]
    %v4831 = vld.sshfl [vmem:[#allocation1 + $0x10] sm:$0xff pattern:$0x73625140]
    %v4832 = vld.sshfl [vmem:[#allocation1 + $0x18] sm:$0xff pattern:$0x73625140]
    %v4833 = vld.sshfl [vmem:[#allocation1 + $0x20] sm:$0xff pattern:$0x73625140]
    %v4834 = vld.sshfl [vmem:[#allocation1 + $0x28] sm:$0xff pattern:$0x73625140]
    %v4835 = vld.sshfl [vmem:[#allocation1 + $0x30] sm:$0xff pattern:$0x73625140]
    %v4836 = vld.sshfl [vmem:[#allocation1 + $0x38] sm:$0xff pattern:$0x73625140]
    %4837 = vst [vmem:[%s4825] ss:$4 sm:$0xff] %v4817
    %4838 = vst [vmem:[%s4827] ss:$4 sm:$0xff] %v4818
    %v4839 = vld.sshfl [vmem:[#allocation1] sm:$0xff pattern:$0x73625140]
    %v4840 = vld.sshfl [vmem:[#allocation1 + $0x8] sm:$0xff pattern:$0x73625140]
    %v4841 = vld.sshfl [vmem:[#allocation1 + $0x10] sm:$0xff pattern:$0x73625140]
    %v4842 = vld.sshfl [vmem:[#allocation1 + $0x18] sm:$0xff pattern:$0x73625140]
    %v4843 = vld.sshfl [vmem:[#allocation1 + $0x20] sm:$0xff pattern:$0x73625140]
    %v4844 = vld.sshfl [vmem:[#allocation1 + $0x28] sm:$0xff pattern:$0x73625140]
    %v4845 = vld.sshfl [vmem:[#allocation1 + $0x30] sm:$0xff pattern:$0x73625140]
    %v4846 = vld.sshfl [vmem:[#allocation1 + $0x38] sm:$0xff pattern:$0x73625140]
    %4847 = vst [vmem:[%s4825] ss:$4 sm:$0xff] %v4819
    %v4848 = vld.sshfl [vmem:[#allocation1] sm:$0xff pattern:$0x73625140]
    %4849 = vrot.lane.b32.xlu0 %v4829, 30
    %v4850 = vpop.permute.xlu0 %4849
    %4851 = vrot.lane.b32.xlu0 %v4830, 30
    %v4852 = vpop.permute.xlu0 %4851
    %4853 = vrot.lane.b32.xlu0 %v4831, 30
    %v4854 = vpop.permute.xlu0 %4853
    %4855 = vrot.lane.b32.xlu0 %v4832, 30
    %v4856 = vpop.permute.xlu0 %4855
    %4857 = vrot.lane.b32.xlu0 %v4833, 30
    %v4858 = vpop.permute.xlu0 %4857
    %4859 = vrot.lane.b32.xlu0 %v4834, 30
    %v4860 = vpop.permute.xlu0 %4859
    %4861 = vrot.lane.b32.xlu0 %v4835, 30
    %v4862 = vpop.permute.xlu0 %4861
    %4863 = vrot.lane.b32.xlu0 %v4836, 30
    %v4864 = vpop.permute.xlu0 %4863
    %4865 = vrot.lane.b32.xlu0 %v4839, 30
    %v4866 = vpop.permute.xlu0 %4865
    %4867 = vrot.lane.b32.xlu0 %v4840, 30
    %v4868 = vpop.permute.xlu0 %4867
    %4869 = vrot.lane.b32.xlu0 %v4841, 30
    %v4870 = vpop.permute.xlu0 %4869
    %4871 = vrot.lane.b32.xlu0 %v4842, 30
    %v4872 = vpop.permute.xlu0 %4871
    %4873 = vrot.lane.b32.xlu0 %v4843, 30
    %v4874 = vpop.permute.xlu0 %4873
    %4875 = vrot.lane.b32.xlu0 %v4844, 30
    %v4876 = vpop.permute.xlu0 %4875
    %4877 = vrot.lane.b32.xlu0 %v4845, 30
    %v4878 = vpop.permute.xlu0 %4877
    %4879 = vrot.lane.b32.xlu0 %v4846, 30
    %v4880 = vpop.permute.xlu0 %4879
    %4881 = vrot.lane.b32.xlu0 %v4848, 30
    %v4882 = vpop.permute.xlu0 %4881
    %v4883 = vsel %vm377, %v4850, %v4852
    %v4884 = vsel %vm377, %v4852, %v4854
    %v4885 = vsel %vm377, %v4854, %v4856
    %v4886 = vsel %vm377, %v4856, %v4858
    %v4887 = vsel %vm377, %v4858, %v4860
    %v4888 = vsel %vm377, %v4860, %v4862
    %v4889 = vsel %vm377, %v4862, %v4864
    %v4890 = vsel %vm377, %v4864, %v4866
    %v4891 = vsel %vm377, %v4866, %v4868
    %v4892 = vsel %vm377, %v4868, %v4870
    %v4893 = vsel %vm377, %v4870, %v4872
    %v4894 = vsel %vm377, %v4872, %v4874
    %v4895 = vsel %vm377, %v4874, %v4876
    %v4896 = vsel %vm377, %v4876, %v4878
    %v4897 = vsel %vm377, %v4878, %v4880
    %v4898 = vsel %vm377, %v4880, %v4882
    %4915 = vst [vmem:[#allocation7 + $0x200] sm:$0xc] %v4883
    %4916 = vst [vmem:[#allocation7 + $0x208] sm:$0xc] %v4884
    %4917 = vst [vmem:[#allocation7 + $0x210] sm:$0xc] %v4885
    %4918 = vst [vmem:[#allocation7 + $0x218] sm:$0xc] %v4886
    %4919 = vst [vmem:[#allocation7 + $0x220] sm:$0xc] %v4887
    %4920 = vst [vmem:[#allocation7 + $0x228] sm:$0xc] %v4888
    %4921 = vst [vmem:[#allocation7 + $0x230] sm:$0xc] %v4889
    %4922 = vst [vmem:[#allocation7 + $0x238] sm:$0xc] %v4890
    %4923 = vst [vmem:[#allocation7 + $0x240] sm:$0xc] %v4891
    %4924 = vst [vmem:[#allocation7 + $0x248] sm:$0xc] %v4892
    %4925 = vst [vmem:[#allocation7 + $0x250] sm:$0xc] %v4893
    %4926 = vst [vmem:[#allocation7 + $0x258] sm:$0xc] %v4894
    %4927 = vst [vmem:[#allocation7 + $0x260] sm:$0xc] %v4895
    %4928 = vst [vmem:[#allocation7 + $0x268] sm:$0xc] %v4896
    %4929 = vst [vmem:[#allocation7 + $0x270] sm:$0xc] %v4897
    %4930 = vst [vmem:[#allocation7 + $0x278] sm:$0xc] %v4898
    %v4931 = vld [vmem:[#allocation6] sm:$0xff]
    %v4932 = vld [vmem:[#allocation6 + $0x8] sm:$0xff]
    %v4933 = vld [vmem:[#allocation6 + $0x10] sm:$0xff]
    %v4934 = vld [vmem:[#allocation6 + $0x18] sm:$0xff]
    %v4935 = vld [vmem:[#allocation6 + $0x20] sm:$0x3]
    %s4941 = scalar_lea.vmem [#allocation1], 2
    %4942 = vst [vmem:[%s4941] ss:$4 sm:$0xff] %v4931
    %s4943 = scalar_lea.vmem [#allocation1], 34
    %4944 = vst [vmem:[%s4943] ss:$4 sm:$0xff] %v4932
    %v4945 = vld.sshfl [vmem:[#allocation1] sm:$0xff pattern:$0x73625140]
    %v4946 = vld.sshfl [vmem:[#allocation1 + $0x8] sm:$0xff pattern:$0x73625140]
    %v4947 = vld.sshfl [vmem:[#allocation1 + $0x10] sm:$0xff pattern:$0x73625140]
    %v4948 = vld.sshfl [vmem:[#allocation1 + $0x18] sm:$0xff pattern:$0x73625140]
    %v4949 = vld.sshfl [vmem:[#allocation1 + $0x20] sm:$0xff pattern:$0x73625140]
    %v4950 = vld.sshfl [vmem:[#allocation1 + $0x28] sm:$0xff pattern:$0x73625140]
    %v4951 = vld.sshfl [vmem:[#allocation1 + $0x30] sm:$0xff pattern:$0x73625140]
    %v4952 = vld.sshfl [vmem:[#allocation1 + $0x38] sm:$0xff pattern:$0x73625140]
    %4953 = vst [vmem:[%s4941] ss:$4 sm:$0xff] %v4933
    %4954 = vst [vmem:[%s4943] ss:$4 sm:$0xff] %v4934
    %v4955 = vld.sshfl [vmem:[#allocation1] sm:$0xff pattern:$0x73625140]
    %v4956 = vld.sshfl [vmem:[#allocation1 + $0x8] sm:$0xff pattern:$0x73625140]
    %v4957 = vld.sshfl [vmem:[#allocation1 + $0x10] sm:$0xff pattern:$0x73625140]
    %v4958 = vld.sshfl [vmem:[#allocation1 + $0x18] sm:$0xff pattern:$0x73625140]
    %v4959 = vld.sshfl [vmem:[#allocation1 + $0x20] sm:$0xff pattern:$0x73625140]
    %v4960 = vld.sshfl [vmem:[#allocation1 + $0x28] sm:$0xff pattern:$0x73625140]
    %v4961 = vld.sshfl [vmem:[#allocation1 + $0x30] sm:$0xff pattern:$0x73625140]
    %v4962 = vld.sshfl [vmem:[#allocation1 + $0x38] sm:$0xff pattern:$0x73625140]
    %4963 = vst [vmem:[%s4941] ss:$4 sm:$0xff] %v4935
    %v4964 = vld.sshfl [vmem:[#allocation1] sm:$0xff pattern:$0x73625140]
    %4965 = vrot.lane.b32.xlu0 %v4945, 29
    %v4966 = vpop.permute.xlu0 %4965
    %4967 = vrot.lane.b32.xlu0 %v4946, 29
    %v4968 = vpop.permute.xlu0 %4967
    %4969 = vrot.lane.b32.xlu0 %v4947, 29
    %v4970 = vpop.permute.xlu0 %4969
    %4971 = vrot.lane.b32.xlu0 %v4948, 29
    %v4972 = vpop.permute.xlu0 %4971
    %4973 = vrot.lane.b32.xlu0 %v4949, 29
    %v4974 = vpop.permute.xlu0 %4973
    %4975 = vrot.lane.b32.xlu0 %v4950, 29
    %v4976 = vpop.permute.xlu0 %4975
    %4977 = vrot.lane.b32.xlu0 %v4951, 29
    %v4978 = vpop.permute.xlu0 %4977
    %4979 = vrot.lane.b32.xlu0 %v4952, 29
    %v4980 = vpop.permute.xlu0 %4979
    %4981 = vrot.lane.b32.xlu0 %v4955, 29
    %v4982 = vpop.permute.xlu0 %4981
    %4983 = vrot.lane.b32.xlu0 %v4956, 29
    %v4984 = vpop.permute.xlu0 %4983
    %4985 = vrot.lane.b32.xlu0 %v4957, 29
    %v4986 = vpop.permute.xlu0 %4985
    %4987 = vrot.lane.b32.xlu0 %v4958, 29
    %v4988 = vpop.permute.xlu0 %4987
    %4989 = vrot.lane.b32.xlu0 %v4959, 29
    %v4990 = vpop.permute.xlu0 %4989
    %4991 = vrot.lane.b32.xlu0 %v4960, 29
    %v4992 = vpop.permute.xlu0 %4991
    %4993 = vrot.lane.b32.xlu0 %v4961, 29
    %v4994 = vpop.permute.xlu0 %4993
    %4995 = vrot.lane.b32.xlu0 %v4962, 29
    %v4996 = vpop.permute.xlu0 %4995
    %4997 = vrot.lane.b32.xlu0 %v4964, 29
    %v4998 = vpop.permute.xlu0 %4997
    %vm4999 = vcmask 236544
    %v5000 = vsel %vm4999, %v4966, %v4968
    %v5001 = vsel %vm4999, %v4968, %v4970
    %v5002 = vsel %vm4999, %v4970, %v4972
    %v5003 = vsel %vm4999, %v4972, %v4974
    %v5004 = vsel %vm4999, %v4974, %v4976
    %v5005 = vsel %vm4999, %v4976, %v4978
    %v5006 = vsel %vm4999, %v4978, %v4980
    %v5007 = vsel %vm4999, %v4980, %v4982
    %v5008 = vsel %vm4999, %v4982, %v4984
    %v5009 = vsel %vm4999, %v4984, %v4986
    %v5010 = vsel %vm4999, %v4986, %v4988
    %v5011 = vsel %vm4999, %v4988, %v4990
    %v5012 = vsel %vm4999, %v4990, %v4992
    %v5013 = vsel %vm4999, %v4992, %v4994
    %v5014 = vsel %vm4999, %v4994, %v4996
    %v5015 = vsel %vm4999, %v4996, %v4998
    %5032 = vst [vmem:[#allocation7 + $0x200] sm:$0x30] %v5000
    %5033 = vst [vmem:[#allocation7 + $0x208] sm:$0x30] %v5001
    %5034 = vst [vmem:[#allocation7 + $0x210] sm:$0x30] %v5002
    %5035 = vst [vmem:[#allocation7 + $0x218] sm:$0x30] %v5003
    %5036 = vst [vmem:[#allocation7 + $0x220] sm:$0x30] %v5004
    %5037 = vst [vmem:[#allocation7 + $0x228] sm:$0x30] %v5005
    %5038 = vst [vmem:[#allocation7 + $0x230] sm:$0x30] %v5006
    %5039 = vst [vmem:[#allocation7 + $0x238] sm:$0x30] %v5007
    %5040 = vst [vmem:[#allocation7 + $0x240] sm:$0x30] %v5008
    %5041 = vst [vmem:[#allocation7 + $0x248] sm:$0x30] %v5009
    %5042 = vst [vmem:[#allocation7 + $0x250] sm:$0x30] %v5010
    %5043 = vst [vmem:[#allocation7 + $0x258] sm:$0x30] %v5011
    %5044 = vst [vmem:[#allocation7 + $0x260] sm:$0x30] %v5012
    %5045 = vst [vmem:[#allocation7 + $0x268] sm:$0x30] %v5013
    %5046 = vst [vmem:[#allocation7 + $0x270] sm:$0x30] %v5014
    %5047 = vst [vmem:[#allocation7 + $0x278] sm:$0x30] %v5015
    %v5048 = vld [vmem:[#allocation6] sm:$0xff]
    %v5049 = vld [vmem:[#allocation6 + $0x8] sm:$0xff]
    %v5050 = vld [vmem:[#allocation6 + $0x10] sm:$0xff]
    %v5051 = vld [vmem:[#allocation6 + $0x18] sm:$0xff]
    %v5052 = vld [vmem:[#allocation6 + $0x20] sm:$0x3]
    %s5058 = scalar_lea.vmem [#allocation1], 3
    %5059 = vst [vmem:[%s5058] ss:$4 sm:$0xff] %v5048
    %s5060 = scalar_lea.vmem [#allocation1], 35
    %5061 = vst [vmem:[%s5060] ss:$4 sm:$0xff] %v5049
    %v5062 = vld.sshfl [vmem:[#allocation1] sm:$0xff pattern:$0x73625140]
    %v5063 = vld.sshfl [vmem:[#allocation1 + $0x8] sm:$0xff pattern:$0x73625140]
    %v5064 = vld.sshfl [vmem:[#allocation1 + $0x10] sm:$0xff pattern:$0x73625140]
    %v5065 = vld.sshfl [vmem:[#allocation1 + $0x18] sm:$0xff pattern:$0x73625140]
    %v5066 = vld.sshfl [vmem:[#allocation1 + $0x20] sm:$0xff pattern:$0x73625140]
    %v5067 = vld.sshfl [vmem:[#allocation1 + $0x28] sm:$0xff pattern:$0x73625140]
    %v5068 = vld.sshfl [vmem:[#allocation1 + $0x30] sm:$0xff pattern:$0x73625140]
    %v5069 = vld.sshfl [vmem:[#allocation1 + $0x38] sm:$0xff pattern:$0x73625140]
    %5070 = vst [vmem:[%s5058] ss:$4 sm:$0xff] %v5050
    %5071 = vst [vmem:[%s5060] ss:$4 sm:$0xff] %v5051
    %v5072 = vld.sshfl [vmem:[#allocation1] sm:$0xff pattern:$0x73625140]
    %v5073 = vld.sshfl [vmem:[#allocation1 + $0x8] sm:$0xff pattern:$0x73625140]
    %v5074 = vld.sshfl [vmem:[#allocation1 + $0x10] sm:$0xff pattern:$0x73625140]
    %v5075 = vld.sshfl [vmem:[#allocation1 + $0x18] sm:$0xff pattern:$0x73625140]
    %v5076 = vld.sshfl [vmem:[#allocation1 + $0x20] sm:$0xff pattern:$0x73625140]
    %v5077 = vld.sshfl [vmem:[#allocation1 + $0x28] sm:$0xff pattern:$0x73625140]
    %v5078 = vld.sshfl [vmem:[#allocation1 + $0x30] sm:$0xff pattern:$0x73625140]
    %v5079 = vld.sshfl [vmem:[#allocation1 + $0x38] sm:$0xff pattern:$0x73625140]
    %5080 = vst [vmem:[%s5058] ss:$4 sm:$0xff] %v5052
    %v5081 = vld.sshfl [vmem:[#allocation1] sm:$0xff pattern:$0x73625140]
    %5082 = vrot.lane.b32.xlu0 %v5062, 28
    %v5083 = vpop.permute.xlu0 %5082
    %5084 = vrot.lane.b32.xlu0 %v5063, 28
    %v5085 = vpop.permute.xlu0 %5084
    %5086 = vrot.lane.b32.xlu0 %v5064, 28
    %v5087 = vpop.permute.xlu0 %5086
    %5088 = vrot.lane.b32.xlu0 %v5065, 28
    %v5089 = vpop.permute.xlu0 %5088
    %5090 = vrot.lane.b32.xlu0 %v5066, 28
    %v5091 = vpop.permute.xlu0 %5090
    %5092 = vrot.lane.b32.xlu0 %v5067, 28
    %v5093 = vpop.permute.xlu0 %5092
    %5094 = vrot.lane.b32.xlu0 %v5068, 28
    %v5095 = vpop.permute.xlu0 %5094
    %5096 = vrot.lane.b32.xlu0 %v5069, 28
    %v5097 = vpop.permute.xlu0 %5096
    %5098 = vrot.lane.b32.xlu0 %v5072, 28
    %v5099 = vpop.permute.xlu0 %5098
    %5100 = vrot.lane.b32.xlu0 %v5073, 28
    %v5101 = vpop.permute.xlu0 %5100
    %5102 = vrot.lane.b32.xlu0 %v5074, 28
    %v5103 = vpop.permute.xlu0 %5102
    %5104 = vrot.lane.b32.xlu0 %v5075, 28
    %v5105 = vpop.permute.xlu0 %5104
    %5106 = vrot.lane.b32.xlu0 %v5076, 28
    %v5107 = vpop.permute.xlu0 %5106
    %5108 = vrot.lane.b32.xlu0 %v5077, 28
    %v5109 = vpop.permute.xlu0 %5108
    %5110 = vrot.lane.b32.xlu0 %v5078, 28
    %v5111 = vpop.permute.xlu0 %5110
    %5112 = vrot.lane.b32.xlu0 %v5079, 28
    %v5113 = vpop.permute.xlu0 %5112
    %5114 = vrot.lane.b32.xlu0 %v5081, 28
    %v5115 = vpop.permute.xlu0 %5114
    %vm5116 = vcmask 228352
    %v5117 = vsel %vm5116, %v5083, %v5085
    %v5118 = vsel %vm5116, %v5085, %v5087
    %v5119 = vsel %vm5116, %v5087, %v5089
    %v5120 = vsel %vm5116, %v5089, %v5091
    %v5121 = vsel %vm5116, %v5091, %v5093
    %v5122 = vsel %vm5116, %v5093, %v5095
    %v5123 = vsel %vm5116, %v5095, %v5097
    %v5124 = vsel %vm5116, %v5097, %v5099
    %v5125 = vsel %vm5116, %v5099, %v5101
    %v5126 = vsel %vm5116, %v5101, %v5103
    %v5127 = vsel %vm5116, %v5103, %v5105
    %v5128 = vsel %vm5116, %v5105, %v5107
    %v5129 = vsel %vm5116, %v5107, %v5109
    %v5130 = vsel %vm5116, %v5109, %v5111
    %v5131 = vsel %vm5116, %v5111, %v5113
    %v5132 = vsel %vm5116, %v5113, %v5115
    %5149 = vst [vmem:[#allocation7 + $0x200] sm:$0xc0] %v5117
    %5150 = vst [vmem:[#allocation7 + $0x208] sm:$0xc0] %v5118
    %5151 = vst [vmem:[#allocation7 + $0x210] sm:$0xc0] %v5119
    %5152 = vst [vmem:[#allocation7 + $0x218] sm:$0xc0] %v5120
    %5153 = vst [vmem:[#allocation7 + $0x220] sm:$0xc0] %v5121
    %5154 = vst [vmem:[#allocation7 + $0x228] sm:$0xc0] %v5122
    %5155 = vst [vmem:[#allocation7 + $0x230] sm:$0xc0] %v5123
    %5156 = vst [vmem:[#allocation7 + $0x238] sm:$0xc0] %v5124
    %5157 = vst [vmem:[#allocation7 + $0x240] sm:$0xc0] %v5125
    %5158 = vst [vmem:[#allocation7 + $0x248] sm:$0xc0] %v5126
    %5159 = vst [vmem:[#allocation7 + $0x250] sm:$0xc0] %v5127
    %5160 = vst [vmem:[#allocation7 + $0x258] sm:$0xc0] %v5128
    %5161 = vst [vmem:[#allocation7 + $0x260] sm:$0xc0] %v5129
    %5162 = vst [vmem:[#allocation7 + $0x268] sm:$0xc0] %v5130
    %5163 = vst [vmem:[#allocation7 + $0x270] sm:$0xc0] %v5131
    %5164 = vst [vmem:[#allocation7 + $0x278] sm:$0xc0] %v5132
    %v5165 = vld [vmem:[#allocation6 + $0x2] sm:$0xff]
    %v5166 = vld [vmem:[#allocation6 + $0xa] sm:$0xff]
    %v5167 = vld [vmem:[#allocation6 + $0x12] sm:$0xff]
    %v5168 = vld [vmem:[#allocation6 + $0x1a] sm:$0xff]
    %5173 = vst [vmem:[#allocation1] ss:$4 sm:$0xff] %v5165
    %s5174 = scalar_lea.vmem [#allocation1], 32
    %5175 = vst [vmem:[%s5174] ss:$4 sm:$0xff] %v5166
    %v5176 = vld.sshfl [vmem:[#allocation1] sm:$0xff pattern:$0x73625140]
    %v5177 = vld.sshfl [vmem:[#allocation1 + $0x8] sm:$0xff pattern:$0x73625140]
    %v5178 = vld.sshfl [vmem:[#allocation1 + $0x10] sm:$0xff pattern:$0x73625140]
    %v5179 = vld.sshfl [vmem:[#allocation1 + $0x18] sm:$0xff pattern:$0x73625140]
    %v5180 = vld.sshfl [vmem:[#allocation1 + $0x20] sm:$0xff pattern:$0x73625140]
    %v5181 = vld.sshfl [vmem:[#allocation1 + $0x28] sm:$0xff pattern:$0x73625140]
    %v5182 = vld.sshfl [vmem:[#allocation1 + $0x30] sm:$0xff pattern:$0x73625140]
    %v5183 = vld.sshfl [vmem:[#allocation1 + $0x38] sm:$0xff pattern:$0x73625140]
    %5184 = vst [vmem:[#allocation1] ss:$4 sm:$0xff] %v5167
    %5185 = vst [vmem:[%s5174] ss:$4 sm:$0xff] %v5168
    %v5186 = vld.sshfl [vmem:[#allocation1] sm:$0xff pattern:$0x73625140]
    %v5187 = vld.sshfl [vmem:[#allocation1 + $0x8] sm:$0xff pattern:$0x73625140]
    %v5188 = vld.sshfl [vmem:[#allocation1 + $0x10] sm:$0xff pattern:$0x73625140]
    %v5189 = vld.sshfl [vmem:[#allocation1 + $0x18] sm:$0xff pattern:$0x73625140]
    %v5190 = vld.sshfl [vmem:[#allocation1 + $0x20] sm:$0xff pattern:$0x73625140]
    %v5191 = vld.sshfl [vmem:[#allocation1 + $0x28] sm:$0xff pattern:$0x73625140]
    %v5192 = vld.sshfl [vmem:[#allocation1 + $0x30] sm:$0xff pattern:$0x73625140]
    %v5193 = vld.sshfl [vmem:[#allocation1 + $0x38] sm:$0xff pattern:$0x73625140]
    %5210 = vst [vmem:[#allocation7 + $0x280] sm:$0x3] %v5176
    %5211 = vst [vmem:[#allocation7 + $0x288] sm:$0x3] %v5177
    %5212 = vst [vmem:[#allocation7 + $0x290] sm:$0x3] %v5178
    %5213 = vst [vmem:[#allocation7 + $0x298] sm:$0x3] %v5179
    %5214 = vst [vmem:[#allocation7 + $0x2a0] sm:$0x3] %v5180
    %5215 = vst [vmem:[#allocation7 + $0x2a8] sm:$0x3] %v5181
    %5216 = vst [vmem:[#allocation7 + $0x2b0] sm:$0x3] %v5182
    %5217 = vst [vmem:[#allocation7 + $0x2b8] sm:$0x3] %v5183
    %5218 = vst [vmem:[#allocation7 + $0x2c0] sm:$0x3] %v5186
    %5219 = vst [vmem:[#allocation7 + $0x2c8] sm:$0x3] %v5187
    %5220 = vst [vmem:[#allocation7 + $0x2d0] sm:$0x3] %v5188
    %5221 = vst [vmem:[#allocation7 + $0x2d8] sm:$0x3] %v5189
    %5222 = vst [vmem:[#allocation7 + $0x2e0] sm:$0x3] %v5190
    %5223 = vst [vmem:[#allocation7 + $0x2e8] sm:$0x3] %v5191
    %5224 = vst [vmem:[#allocation7 + $0x2f0] sm:$0x3] %v5192
    %5225 = vst [vmem:[#allocation7 + $0x2f8] sm:$0x3] %v5193
    %v5226 = vld [vmem:[#allocation6 + $0x2] sm:$0xff]
    %v5227 = vld [vmem:[#allocation6 + $0xa] sm:$0xff]
    %v5228 = vld [vmem:[#allocation6 + $0x12] sm:$0xff]
    %v5229 = vld [vmem:[#allocation6 + $0x1a] sm:$0xff]
    %v5230 = vld [vmem:[#allocation6 + $0x22] sm:$0x3]
    %s5236 = scalar_lea.vmem [#allocation1], 1
    %5237 = vst [vmem:[%s5236] ss:$4 sm:$0xff] %v5226
    %s5238 = scalar_lea.vmem [#allocation1], 33
    %5239 = vst [vmem:[%s5238] ss:$4 sm:$0xff] %v5227
    %v5240 = vld.sshfl [vmem:[#allocation1] sm:$0xff pattern:$0x73625140]
    %v5241 = vld.sshfl [vmem:[#allocation1 + $0x8] sm:$0xff pattern:$0x73625140]
    %v5242 = vld.sshfl [vmem:[#allocation1 + $0x10] sm:$0xff pattern:$0x73625140]
    %v5243 = vld.sshfl [vmem:[#allocation1 + $0x18] sm:$0xff pattern:$0x73625140]
    %v5244 = vld.sshfl [vmem:[#allocation1 + $0x20] sm:$0xff pattern:$0x73625140]
    %v5245 = vld.sshfl [vmem:[#allocation1 + $0x28] sm:$0xff pattern:$0x73625140]
    %v5246 = vld.sshfl [vmem:[#allocation1 + $0x30] sm:$0xff pattern:$0x73625140]
    %v5247 = vld.sshfl [vmem:[#allocation1 + $0x38] sm:$0xff pattern:$0x73625140]
    %5248 = vst [vmem:[%s5236] ss:$4 sm:$0xff] %v5228
    %5249 = vst [vmem:[%s5238] ss:$4 sm:$0xff] %v5229
    %v5250 = vld.sshfl [vmem:[#allocation1] sm:$0xff pattern:$0x73625140]
    %v5251 = vld.sshfl [vmem:[#allocation1 + $0x8] sm:$0xff pattern:$0x73625140]
    %v5252 = vld.sshfl [vmem:[#allocation1 + $0x10] sm:$0xff pattern:$0x73625140]
    %v5253 = vld.sshfl [vmem:[#allocation1 + $0x18] sm:$0xff pattern:$0x73625140]
    %v5254 = vld.sshfl [vmem:[#allocation1 + $0x20] sm:$0xff pattern:$0x73625140]
    %v5255 = vld.sshfl [vmem:[#allocation1 + $0x28] sm:$0xff pattern:$0x73625140]
    %v5256 = vld.sshfl [vmem:[#allocation1 + $0x30] sm:$0xff pattern:$0x73625140]
    %v5257 = vld.sshfl [vmem:[#allocation1 + $0x38] sm:$0xff pattern:$0x73625140]
    %5258 = vst [vmem:[%s5236] ss:$4 sm:$0xff] %v5230
    %v5259 = vld.sshfl [vmem:[#allocation1] sm:$0xff pattern:$0x73625140]
    %5260 = vrot.lane.b32.xlu0 %v5240, 127
    %v5261 = vpop.permute.xlu0 %5260
    %5262 = vrot.lane.b32.xlu0 %v5241, 127
    %v5263 = vpop.permute.xlu0 %5262
    %5264 = vrot.lane.b32.xlu0 %v5242, 127
    %v5265 = vpop.permute.xlu0 %5264
    %5266 = vrot.lane.b32.xlu0 %v5243, 127
    %v5267 = vpop.permute.xlu0 %5266
    %5268 = vrot.lane.b32.xlu0 %v5244, 127
    %v5269 = vpop.permute.xlu0 %5268
    %5270 = vrot.lane.b32.xlu0 %v5245, 127
    %v5271 = vpop.permute.xlu0 %5270
    %5272 = vrot.lane.b32.xlu0 %v5246, 127
    %v5273 = vpop.permute.xlu0 %5272
    %5274 = vrot.lane.b32.xlu0 %v5247, 127
    %v5275 = vpop.permute.xlu0 %5274
    %5276 = vrot.lane.b32.xlu0 %v5250, 127
    %v5277 = vpop.permute.xlu0 %5276
    %5278 = vrot.lane.b32.xlu0 %v5251, 127
    %v5279 = vpop.permute.xlu0 %5278
    %5280 = vrot.lane.b32.xlu0 %v5252, 127
    %v5281 = vpop.permute.xlu0 %5280
    %5282 = vrot.lane.b32.xlu0 %v5253, 127
    %v5283 = vpop.permute.xlu0 %5282
    %5284 = vrot.lane.b32.xlu0 %v5254, 127
    %v5285 = vpop.permute.xlu0 %5284
    %5286 = vrot.lane.b32.xlu0 %v5255, 127
    %v5287 = vpop.permute.xlu0 %5286
    %5288 = vrot.lane.b32.xlu0 %v5256, 127
    %v5289 = vpop.permute.xlu0 %5288
    %5290 = vrot.lane.b32.xlu0 %v5257, 127
    %v5291 = vpop.permute.xlu0 %5290
    %5292 = vrot.lane.b32.xlu0 %v5259, 127
    %v5293 = vpop.permute.xlu0 %5292
    %v5294 = vsel %vm596, %v5261, %v5263
    %v5295 = vsel %vm596, %v5263, %v5265
    %v5296 = vsel %vm596, %v5265, %v5267
    %v5297 = vsel %vm596, %v5267, %v5269
    %v5298 = vsel %vm596, %v5269, %v5271
    %v5299 = vsel %vm596, %v5271, %v5273
    %v5300 = vsel %vm596, %v5273, %v5275
    %v5301 = vsel %vm596, %v5275, %v5277
    %v5302 = vsel %vm596, %v5277, %v5279
    %v5303 = vsel %vm596, %v5279, %v5281
    %v5304 = vsel %vm596, %v5281, %v5283
    %v5305 = vsel %vm596, %v5283, %v5285
    %v5306 = vsel %vm596, %v5285, %v5287
    %v5307 = vsel %vm596, %v5287, %v5289
    %v5308 = vsel %vm596, %v5289, %v5291
    %v5309 = vsel %vm596, %v5291, %v5293
    %5326 = vst [vmem:[#allocation7 + $0x280] sm:$0xc] %v5294
    %5327 = vst [vmem:[#allocation7 + $0x288] sm:$0xc] %v5295
    %5328 = vst [vmem:[#allocation7 + $0x290] sm:$0xc] %v5296
    %5329 = vst [vmem:[#allocation7 + $0x298] sm:$0xc] %v5297
    %5330 = vst [vmem:[#allocation7 + $0x2a0] sm:$0xc] %v5298
    %5331 = vst [vmem:[#allocation7 + $0x2a8] sm:$0xc] %v5299
    %5332 = vst [vmem:[#allocation7 + $0x2b0] sm:$0xc] %v5300
    %5333 = vst [vmem:[#allocation7 + $0x2b8] sm:$0xc] %v5301
    %5334 = vst [vmem:[#allocation7 + $0x2c0] sm:$0xc] %v5302
    %5335 = vst [vmem:[#allocation7 + $0x2c8] sm:$0xc] %v5303
    %5336 = vst [vmem:[#allocation7 + $0x2d0] sm:$0xc] %v5304
    %5337 = vst [vmem:[#allocation7 + $0x2d8] sm:$0xc] %v5305
    %5338 = vst [vmem:[#allocation7 + $0x2e0] sm:$0xc] %v5306
    %5339 = vst [vmem:[#allocation7 + $0x2e8] sm:$0xc] %v5307
    %5340 = vst [vmem:[#allocation7 + $0x2f0] sm:$0xc] %v5308
    %5341 = vst [vmem:[#allocation7 + $0x2f8] sm:$0xc] %v5309
    %v5342 = vld [vmem:[#allocation6 + $0x2] sm:$0xff]
    %v5343 = vld [vmem:[#allocation6 + $0xa] sm:$0xff]
    %v5344 = vld [vmem:[#allocation6 + $0x12] sm:$0xff]
    %v5345 = vld [vmem:[#allocation6 + $0x1a] sm:$0xff]
    %v5346 = vld [vmem:[#allocation6 + $0x22] sm:$0x3]
    %s5352 = scalar_lea.vmem [#allocation1], 2
    %5353 = vst [vmem:[%s5352] ss:$4 sm:$0xff] %v5342
    %s5354 = scalar_lea.vmem [#allocation1], 34
    %5355 = vst [vmem:[%s5354] ss:$4 sm:$0xff] %v5343
    %v5356 = vld.sshfl [vmem:[#allocation1] sm:$0xff pattern:$0x73625140]
    %v5357 = vld.sshfl [vmem:[#allocation1 + $0x8] sm:$0xff pattern:$0x73625140]
    %v5358 = vld.sshfl [vmem:[#allocation1 + $0x10] sm:$0xff pattern:$0x73625140]
    %v5359 = vld.sshfl [vmem:[#allocation1 + $0x18] sm:$0xff pattern:$0x73625140]
    %v5360 = vld.sshfl [vmem:[#allocation1 + $0x20] sm:$0xff pattern:$0x73625140]
    %v5361 = vld.sshfl [vmem:[#allocation1 + $0x28] sm:$0xff pattern:$0x73625140]
    %v5362 = vld.sshfl [vmem:[#allocation1 + $0x30] sm:$0xff pattern:$0x73625140]
    %v5363 = vld.sshfl [vmem:[#allocation1 + $0x38] sm:$0xff pattern:$0x73625140]
    %5364 = vst [vmem:[%s5352] ss:$4 sm:$0xff] %v5344
    %5365 = vst [vmem:[%s5354] ss:$4 sm:$0xff] %v5345
    %v5366 = vld.sshfl [vmem:[#allocation1] sm:$0xff pattern:$0x73625140]
    %v5367 = vld.sshfl [vmem:[#allocation1 + $0x8] sm:$0xff pattern:$0x73625140]
    %v5368 = vld.sshfl [vmem:[#allocation1 + $0x10] sm:$0xff pattern:$0x73625140]
    %v5369 = vld.sshfl [vmem:[#allocation1 + $0x18] sm:$0xff pattern:$0x73625140]
    %v5370 = vld.sshfl [vmem:[#allocation1 + $0x20] sm:$0xff pattern:$0x73625140]
    %v5371 = vld.sshfl [vmem:[#allocation1 + $0x28] sm:$0xff pattern:$0x73625140]
    %v5372 = vld.sshfl [vmem:[#allocation1 + $0x30] sm:$0xff pattern:$0x73625140]
    %v5373 = vld.sshfl [vmem:[#allocation1 + $0x38] sm:$0xff pattern:$0x73625140]
    %5374 = vst [vmem:[%s5352] ss:$4 sm:$0xff] %v5346
    %v5375 = vld.sshfl [vmem:[#allocation1] sm:$0xff pattern:$0x73625140]
    %5376 = vrot.lane.b32.xlu0 %v5356, 126
    %v5377 = vpop.permute.xlu0 %5376
    %5378 = vrot.lane.b32.xlu0 %v5357, 126
    %v5379 = vpop.permute.xlu0 %5378
    %5380 = vrot.lane.b32.xlu0 %v5358, 126
    %v5381 = vpop.permute.xlu0 %5380
    %5382 = vrot.lane.b32.xlu0 %v5359, 126
    %v5383 = vpop.permute.xlu0 %5382
    %5384 = vrot.lane.b32.xlu0 %v5360, 126
    %v5385 = vpop.permute.xlu0 %5384
    %5386 = vrot.lane.b32.xlu0 %v5361, 126
    %v5387 = vpop.permute.xlu0 %5386
    %5388 = vrot.lane.b32.xlu0 %v5362, 126
    %v5389 = vpop.permute.xlu0 %5388
    %5390 = vrot.lane.b32.xlu0 %v5363, 126
    %v5391 = vpop.permute.xlu0 %5390
    %5392 = vrot.lane.b32.xlu0 %v5366, 126
    %v5393 = vpop.permute.xlu0 %5392
    %5394 = vrot.lane.b32.xlu0 %v5367, 126
    %v5395 = vpop.permute.xlu0 %5394
    %5396 = vrot.lane.b32.xlu0 %v5368, 126
    %v5397 = vpop.permute.xlu0 %5396
    %5398 = vrot.lane.b32.xlu0 %v5369, 126
    %v5399 = vpop.permute.xlu0 %5398
    %5400 = vrot.lane.b32.xlu0 %v5370, 126
    %v5401 = vpop.permute.xlu0 %5400
    %5402 = vrot.lane.b32.xlu0 %v5371, 126
    %v5403 = vpop.permute.xlu0 %5402
    %5404 = vrot.lane.b32.xlu0 %v5372, 126
    %v5405 = vpop.permute.xlu0 %5404
    %5406 = vrot.lane.b32.xlu0 %v5373, 126
    %v5407 = vpop.permute.xlu0 %5406
    %5408 = vrot.lane.b32.xlu0 %v5375, 126
    %v5409 = vpop.permute.xlu0 %5408
    %v5410 = vsel %vm644, %v5377, %v5379
    %v5411 = vsel %vm644, %v5379, %v5381
    %v5412 = vsel %vm644, %v5381, %v5383
    %v5413 = vsel %vm644, %v5383, %v5385
    %v5414 = vsel %vm644, %v5385, %v5387
    %v5415 = vsel %vm644, %v5387, %v5389
    %v5416 = vsel %vm644, %v5389, %v5391
    %v5417 = vsel %vm644, %v5391, %v5393
    %v5418 = vsel %vm644, %v5393, %v5395
    %v5419 = vsel %vm644, %v5395, %v5397
    %v5420 = vsel %vm644, %v5397, %v5399
    %v5421 = vsel %vm644, %v5399, %v5401
    %v5422 = vsel %vm644, %v5401, %v5403
    %v5423 = vsel %vm644, %v5403, %v5405
    %v5424 = vsel %vm644, %v5405, %v5407
    %v5425 = vsel %vm644, %v5407, %v5409
    %5442 = vst [vmem:[#allocation7 + $0x280] sm:$0x30] %v5410
    %5443 = vst [vmem:[#allocation7 + $0x288] sm:$0x30] %v5411
    %5444 = vst [vmem:[#allocation7 + $0x290] sm:$0x30] %v5412
    %5445 = vst [vmem:[#allocation7 + $0x298] sm:$0x30] %v5413
    %5446 = vst [vmem:[#allocation7 + $0x2a0] sm:$0x30] %v5414
    %5447 = vst [vmem:[#allocation7 + $0x2a8] sm:$0x30] %v5415
    %5448 = vst [vmem:[#allocation7 + $0x2b0] sm:$0x30] %v5416
    %5449 = vst [vmem:[#allocation7 + $0x2b8] sm:$0x30] %v5417
    %5450 = vst [vmem:[#allocation7 + $0x2c0] sm:$0x30] %v5418
    %5451 = vst [vmem:[#allocation7 + $0x2c8] sm:$0x30] %v5419
    %5452 = vst [vmem:[#allocation7 + $0x2d0] sm:$0x30] %v5420
    %5453 = vst [vmem:[#allocation7 + $0x2d8] sm:$0x30] %v5421
    %5454 = vst [vmem:[#allocation7 + $0x2e0] sm:$0x30] %v5422
    %5455 = vst [vmem:[#allocation7 + $0x2e8] sm:$0x30] %v5423
    %5456 = vst [vmem:[#allocation7 + $0x2f0] sm:$0x30] %v5424
    %5457 = vst [vmem:[#allocation7 + $0x2f8] sm:$0x30] %v5425
    %v5458 = vld [vmem:[#allocation6 + $0x2] sm:$0xff]
    %v5459 = vld [vmem:[#allocation6 + $0xa] sm:$0xff]
    %v5460 = vld [vmem:[#allocation6 + $0x12] sm:$0xff]
    %v5461 = vld [vmem:[#allocation6 + $0x1a] sm:$0xff]
    %v5462 = vld [vmem:[#allocation6 + $0x22] sm:$0x3]
    %s5468 = scalar_lea.vmem [#allocation1], 3
    %5469 = vst [vmem:[%s5468] ss:$4 sm:$0xff] %v5458
    %s5470 = scalar_lea.vmem [#allocation1], 35
    %5471 = vst [vmem:[%s5470] ss:$4 sm:$0xff] %v5459
    %v5472 = vld.sshfl [vmem:[#allocation1] sm:$0xff pattern:$0x73625140]
    %v5473 = vld.sshfl [vmem:[#allocation1 + $0x8] sm:$0xff pattern:$0x73625140]
    %v5474 = vld.sshfl [vmem:[#allocation1 + $0x10] sm:$0xff pattern:$0x73625140]
    %v5475 = vld.sshfl [vmem:[#allocation1 + $0x18] sm:$0xff pattern:$0x73625140]
    %v5476 = vld.sshfl [vmem:[#allocation1 + $0x20] sm:$0xff pattern:$0x73625140]
    %v5477 = vld.sshfl [vmem:[#allocation1 + $0x28] sm:$0xff pattern:$0x73625140]
    %v5478 = vld.sshfl [vmem:[#allocation1 + $0x30] sm:$0xff pattern:$0x73625140]
    %v5479 = vld.sshfl [vmem:[#allocation1 + $0x38] sm:$0xff pattern:$0x73625140]
    %5480 = vst [vmem:[%s5468] ss:$4 sm:$0xff] %v5460
    %5481 = vst [vmem:[%s5470] ss:$4 sm:$0xff] %v5461
    %v5482 = vld.sshfl [vmem:[#allocation1] sm:$0xff pattern:$0x73625140]
    %v5483 = vld.sshfl [vmem:[#allocation1 + $0x8] sm:$0xff pattern:$0x73625140]
    %v5484 = vld.sshfl [vmem:[#allocation1 + $0x10] sm:$0xff pattern:$0x73625140]
    %v5485 = vld.sshfl [vmem:[#allocation1 + $0x18] sm:$0xff pattern:$0x73625140]
    %v5486 = vld.sshfl [vmem:[#allocation1 + $0x20] sm:$0xff pattern:$0x73625140]
    %v5487 = vld.sshfl [vmem:[#allocation1 + $0x28] sm:$0xff pattern:$0x73625140]
    %v5488 = vld.sshfl [vmem:[#allocation1 + $0x30] sm:$0xff pattern:$0x73625140]
    %v5489 = vld.sshfl [vmem:[#allocation1 + $0x38] sm:$0xff pattern:$0x73625140]
    %5490 = vst [vmem:[%s5468] ss:$4 sm:$0xff] %v5462
    %v5491 = vld.sshfl [vmem:[#allocation1] sm:$0xff pattern:$0x73625140]
    %5492 = vrot.lane.b32.xlu0 %v5472, 125
    %v5493 = vpop.permute.xlu0 %5492
    %5494 = vrot.lane.b32.xlu0 %v5473, 125
    %v5495 = vpop.permute.xlu0 %5494
    %5496 = vrot.lane.b32.xlu0 %v5474, 125
    %v5497 = vpop.permute.xlu0 %5496
    %5498 = vrot.lane.b32.xlu0 %v5475, 125
    %v5499 = vpop.permute.xlu0 %5498
    %5500 = vrot.lane.b32.xlu0 %v5476, 125
    %v5501 = vpop.permute.xlu0 %5500
    %5502 = vrot.lane.b32.xlu0 %v5477, 125
    %v5503 = vpop.permute.xlu0 %5502
    %5504 = vrot.lane.b32.xlu0 %v5478, 125
    %v5505 = vpop.permute.xlu0 %5504
    %5506 = vrot.lane.b32.xlu0 %v5479, 125
    %v5507 = vpop.permute.xlu0 %5506
    %5508 = vrot.lane.b32.xlu0 %v5482, 125
    %v5509 = vpop.permute.xlu0 %5508
    %5510 = vrot.lane.b32.xlu0 %v5483, 125
    %v5511 = vpop.permute.xlu0 %5510
    %5512 = vrot.lane.b32.xlu0 %v5484, 125
    %v5513 = vpop.permute.xlu0 %5512
    %5514 = vrot.lane.b32.xlu0 %v5485, 125
    %v5515 = vpop.permute.xlu0 %5514
    %5516 = vrot.lane.b32.xlu0 %v5486, 125
    %v5517 = vpop.permute.xlu0 %5516
    %5518 = vrot.lane.b32.xlu0 %v5487, 125
    %v5519 = vpop.permute.xlu0 %5518
    %5520 = vrot.lane.b32.xlu0 %v5488, 125
    %v5521 = vpop.permute.xlu0 %5520
    %5522 = vrot.lane.b32.xlu0 %v5489, 125
    %v5523 = vpop.permute.xlu0 %5522
    %5524 = vrot.lane.b32.xlu0 %v5491, 125
    %v5525 = vpop.permute.xlu0 %5524
    %v5526 = vsel %vm692, %v5493, %v5495
    %v5527 = vsel %vm692, %v5495, %v5497
    %v5528 = vsel %vm692, %v5497, %v5499
    %v5529 = vsel %vm692, %v5499, %v5501
    %v5530 = vsel %vm692, %v5501, %v5503
    %v5531 = vsel %vm692, %v5503, %v5505
    %v5532 = vsel %vm692, %v5505, %v5507
    %v5533 = vsel %vm692, %v5507, %v5509
    %v5534 = vsel %vm692, %v5509, %v5511
    %v5535 = vsel %vm692, %v5511, %v5513
    %v5536 = vsel %vm692, %v5513, %v5515
    %v5537 = vsel %vm692, %v5515, %v5517
    %v5538 = vsel %vm692, %v5517, %v5519
    %v5539 = vsel %vm692, %v5519, %v5521
    %v5540 = vsel %vm692, %v5521, %v5523
    %v5541 = vsel %vm692, %v5523, %v5525
    %5558 = vst [vmem:[#allocation7 + $0x280] sm:$0xc0] %v5526
    %5559 = vst [vmem:[#allocation7 + $0x288] sm:$0xc0] %v5527
    %5560 = vst [vmem:[#allocation7 + $0x290] sm:$0xc0] %v5528
    %5561 = vst [vmem:[#allocation7 + $0x298] sm:$0xc0] %v5529
    %5562 = vst [vmem:[#allocation7 + $0x2a0] sm:$0xc0] %v5530
    %5563 = vst [vmem:[#allocation7 + $0x2a8] sm:$0xc0] %v5531
    %5564 = vst [vmem:[#allocation7 + $0x2b0] sm:$0xc0] %v5532
    %5565 = vst [vmem:[#allocation7 + $0x2b8] sm:$0xc0] %v5533
    %5566 = vst [vmem:[#allocation7 + $0x2c0] sm:$0xc0] %v5534
    %5567 = vst [vmem:[#allocation7 + $0x2c8] sm:$0xc0] %v5535
    %5568 = vst [vmem:[#allocation7 + $0x2d0] sm:$0xc0] %v5536
    %5569 = vst [vmem:[#allocation7 + $0x2d8] sm:$0xc0] %v5537
    %5570 = vst [vmem:[#allocation7 + $0x2e0] sm:$0xc0] %v5538
    %5571 = vst [vmem:[#allocation7 + $0x2e8] sm:$0xc0] %v5539
    %5572 = vst [vmem:[#allocation7 + $0x2f0] sm:$0xc0] %v5540
    %5573 = vst [vmem:[#allocation7 + $0x2f8] sm:$0xc0] %v5541
    %v5574 = vld [vmem:[#allocation6 + $0x2] sm:$0xff]
    %v5575 = vld [vmem:[#allocation6 + $0xa] sm:$0xff]
    %v5576 = vld [vmem:[#allocation6 + $0x12] sm:$0xff]
    %v5577 = vld [vmem:[#allocation6 + $0x1a] sm:$0xff]
    %v5578 = vld [vmem:[#allocation6 + $0x22] sm:$0x3]
    %5584 = vst [vmem:[#allocation1] ss:$4 sm:$0xff] %v5574
    %s5585 = scalar_lea.vmem [#allocation1], 32
    %5586 = vst [vmem:[%s5585] ss:$4 sm:$0xff] %v5575
    %v5587 = vld.sshfl [vmem:[#allocation1] sm:$0xff pattern:$0x73625140]
    %v5588 = vld.sshfl [vmem:[#allocation1 + $0x8] sm:$0xff pattern:$0x73625140]
    %v5589 = vld.sshfl [vmem:[#allocation1 + $0x10] sm:$0xff pattern:$0x73625140]
    %v5590 = vld.sshfl [vmem:[#allocation1 + $0x18] sm:$0xff pattern:$0x73625140]
    %v5591 = vld.sshfl [vmem:[#allocation1 + $0x20] sm:$0xff pattern:$0x73625140]
    %v5592 = vld.sshfl [vmem:[#allocation1 + $0x28] sm:$0xff pattern:$0x73625140]
    %v5593 = vld.sshfl [vmem:[#allocation1 + $0x30] sm:$0xff pattern:$0x73625140]
    %v5594 = vld.sshfl [vmem:[#allocation1 + $0x38] sm:$0xff pattern:$0x73625140]
    %5595 = vst [vmem:[#allocation1] ss:$4 sm:$0xff] %v5576
    %5596 = vst [vmem:[%s5585] ss:$4 sm:$0xff] %v5577
    %v5597 = vld.sshfl [vmem:[#allocation1] sm:$0xff pattern:$0x73625140]
    %v5598 = vld.sshfl [vmem:[#allocation1 + $0x8] sm:$0xff pattern:$0x73625140]
    %v5599 = vld.sshfl [vmem:[#allocation1 + $0x10] sm:$0xff pattern:$0x73625140]
    %v5600 = vld.sshfl [vmem:[#allocation1 + $0x18] sm:$0xff pattern:$0x73625140]
    %v5601 = vld.sshfl [vmem:[#allocation1 + $0x20] sm:$0xff pattern:$0x73625140]
    %v5602 = vld.sshfl [vmem:[#allocation1 + $0x28] sm:$0xff pattern:$0x73625140]
    %v5603 = vld.sshfl [vmem:[#allocation1 + $0x30] sm:$0xff pattern:$0x73625140]
    %v5604 = vld.sshfl [vmem:[#allocation1 + $0x38] sm:$0xff pattern:$0x73625140]
    %5605 = vst [vmem:[#allocation1] ss:$4 sm:$0xff] %v5578
    %v5606 = vld.sshfl [vmem:[#allocation1] sm:$0xff pattern:$0x73625140]
    %5607 = vrot.lane.b32.xlu0 %v5587, 124
    %v5608 = vpop.permute.xlu0 %5607
    %5609 = vrot.lane.b32.xlu0 %v5588, 124
    %v5610 = vpop.permute.xlu0 %5609
    %5611 = vrot.lane.b32.xlu0 %v5589, 124
    %v5612 = vpop.permute.xlu0 %5611
    %5613 = vrot.lane.b32.xlu0 %v5590, 124
    %v5614 = vpop.permute.xlu0 %5613
    %5615 = vrot.lane.b32.xlu0 %v5591, 124
    %v5616 = vpop.permute.xlu0 %5615
    %5617 = vrot.lane.b32.xlu0 %v5592, 124
    %v5618 = vpop.permute.xlu0 %5617
    %5619 = vrot.lane.b32.xlu0 %v5593, 124
    %v5620 = vpop.permute.xlu0 %5619
    %5621 = vrot.lane.b32.xlu0 %v5594, 124
    %v5622 = vpop.permute.xlu0 %5621
    %5623 = vrot.lane.b32.xlu0 %v5597, 124
    %v5624 = vpop.permute.xlu0 %5623
    %5625 = vrot.lane.b32.xlu0 %v5598, 124
    %v5626 = vpop.permute.xlu0 %5625
    %5627 = vrot.lane.b32.xlu0 %v5599, 124
    %v5628 = vpop.permute.xlu0 %5627
    %5629 = vrot.lane.b32.xlu0 %v5600, 124
    %v5630 = vpop.permute.xlu0 %5629
    %5631 = vrot.lane.b32.xlu0 %v5601, 124
    %v5632 = vpop.permute.xlu0 %5631
    %5633 = vrot.lane.b32.xlu0 %v5602, 124
    %v5634 = vpop.permute.xlu0 %5633
    %5635 = vrot.lane.b32.xlu0 %v5603, 124
    %v5636 = vpop.permute.xlu0 %5635
    %5637 = vrot.lane.b32.xlu0 %v5604, 124
    %v5638 = vpop.permute.xlu0 %5637
    %5639 = vrot.lane.b32.xlu0 %v5606, 124
    %v5640 = vpop.permute.xlu0 %5639
    %v5641 = vsel %vm739, %v5608, %v5610
    %v5642 = vsel %vm739, %v5610, %v5612
    %v5643 = vsel %vm739, %v5612, %v5614
    %v5644 = vsel %vm739, %v5614, %v5616
    %v5645 = vsel %vm739, %v5616, %v5618
    %v5646 = vsel %vm739, %v5618, %v5620
    %v5647 = vsel %vm739, %v5620, %v5622
    %v5648 = vsel %vm739, %v5622, %v5624
    %v5649 = vsel %vm739, %v5624, %v5626
    %v5650 = vsel %vm739, %v5626, %v5628
    %v5651 = vsel %vm739, %v5628, %v5630
    %v5652 = vsel %vm739, %v5630, %v5632
    %v5653 = vsel %vm739, %v5632, %v5634
    %v5654 = vsel %vm739, %v5634, %v5636
    %v5655 = vsel %vm739, %v5636, %v5638
    %v5656 = vsel %vm739, %v5638, %v5640
    %5673 = vst [vmem:[#allocation7 + $0x300] sm:$0x3] %v5641
    %5674 = vst [vmem:[#allocation7 + $0x308] sm:$0x3] %v5642
    %5675 = vst [vmem:[#allocation7 + $0x310] sm:$0x3] %v5643
    %5676 = vst [vmem:[#allocation7 + $0x318] sm:$0x3] %v5644
    %5677 = vst [vmem:[#allocation7 + $0x320] sm:$0x3] %v5645
    %5678 = vst [vmem:[#allocation7 + $0x328] sm:$0x3] %v5646
    %5679 = vst [vmem:[#allocation7 + $0x330] sm:$0x3] %v5647
    %5680 = vst [vmem:[#allocation7 + $0x338] sm:$0x3] %v5648
    %5681 = vst [vmem:[#allocation7 + $0x340] sm:$0x3] %v5649
    %5682 = vst [vmem:[#allocation7 + $0x348] sm:$0x3] %v5650
    %5683 = vst [vmem:[#allocation7 + $0x350] sm:$0x3] %v5651
    %5684 = vst [vmem:[#allocation7 + $0x358] sm:$0x3] %v5652
    %5685 = vst [vmem:[#allocation7 + $0x360] sm:$0x3] %v5653
    %5686 = vst [vmem:[#allocation7 + $0x368] sm:$0x3] %v5654
    %5687 = vst [vmem:[#allocation7 + $0x370] sm:$0x3] %v5655
    %5688 = vst [vmem:[#allocation7 + $0x378] sm:$0x3] %v5656
    %v5689 = vld [vmem:[#allocation23] sm:$0x1]
    %v5690 = vld [vmem:[#allocation7] sm:$0xff]
    %v5691 = vld [vmem:[#allocation7 + $0x8] sm:$0xff]
    %v5692 = vld [vmem:[#allocation7 + $0x10] sm:$0xff]
    %v5693 = vld [vmem:[#allocation7 + $0x18] sm:$0xff]
    %v5694 = vld [vmem:[#allocation7 + $0x20] sm:$0xff]
    %v5695 = vld [vmem:[#allocation7 + $0x28] sm:$0xff]
    %v5696 = vld [vmem:[#allocation7 + $0x30] sm:$0xff]
    %v5697 = vld [vmem:[#allocation7 + $0x38] sm:$0xff]
    %v5698 = vld [vmem:[#allocation7 + $0x40] sm:$0xff]
    %v5699 = vld [vmem:[#allocation7 + $0x48] sm:$0xff]
    %v5700 = vld [vmem:[#allocation7 + $0x50] sm:$0xff]
    %v5701 = vld [vmem:[#allocation7 + $0x58] sm:$0xff]
    %v5702 = vld [vmem:[#allocation7 + $0x60] sm:$0xff]
    %v5703 = vld [vmem:[#allocation7 + $0x68] sm:$0xff]
    %v5704 = vld [vmem:[#allocation7 + $0x70] sm:$0xff]
    %v5705 = vld [vmem:[#allocation7 + $0x78] sm:$0xff]
    %v5706 = vld [vmem:[#allocation7 + $0x80] sm:$0xff]
    %v5707 = vld [vmem:[#allocation7 + $0x88] sm:$0xff]
    %v5708 = vld [vmem:[#allocation7 + $0x90] sm:$0xff]
    %v5709 = vld [vmem:[#allocation7 + $0x98] sm:$0xff]
    %v5710 = vld [vmem:[#allocation7 + $0xa0] sm:$0xff]
    %v5711 = vld [vmem:[#allocation7 + $0xa8] sm:$0xff]
    %v5712 = vld [vmem:[#allocation7 + $0xb0] sm:$0xff]
    %v5713 = vld [vmem:[#allocation7 + $0xb8] sm:$0xff]
    %v5714 = vld [vmem:[#allocation7 + $0xc0] sm:$0xff]
    %v5715 = vld [vmem:[#allocation7 + $0xc8] sm:$0xff]
    %v5716 = vld [vmem:[#allocation7 + $0xd0] sm:$0xff]
    %v5717 = vld [vmem:[#allocation7 + $0xd8] sm:$0xff]
    %v5718 = vld [vmem:[#allocation7 + $0xe0] sm:$0xff]
    %v5719 = vld [vmem:[#allocation7 + $0xe8] sm:$0xff]
    %v5720 = vld [vmem:[#allocation7 + $0xf0] sm:$0xff]
    %v5721 = vld [vmem:[#allocation7 + $0xf8] sm:$0xff]
    %v5722 = vld [vmem:[#allocation7 + $0x100] sm:$0xff]
    %v5723 = vld [vmem:[#allocation7 + $0x108] sm:$0xff]
    %v5724 = vld [vmem:[#allocation7 + $0x110] sm:$0xff]
    %v5725 = vld [vmem:[#allocation7 + $0x118] sm:$0xff]
    %v5726 = vld [vmem:[#allocation7 + $0x120] sm:$0xff]
    %v5727 = vld [vmem:[#allocation7 + $0x128] sm:$0xff]
    %v5728 = vld [vmem:[#allocation7 + $0x130] sm:$0xff]
    %v5729 = vld [vmem:[#allocation7 + $0x138] sm:$0xff]
    %v5730 = vld [vmem:[#allocation7 + $0x140] sm:$0xff]
    %v5731 = vld [vmem:[#allocation7 + $0x148] sm:$0xff]
    %v5732 = vld [vmem:[#allocation7 + $0x150] sm:$0xff]
    %v5733 = vld [vmem:[#allocation7 + $0x158] sm:$0xff]
    %v5734 = vld [vmem:[#allocation7 + $0x160] sm:$0xff]
    %v5735 = vld [vmem:[#allocation7 + $0x168] sm:$0xff]
    %v5736 = vld [vmem:[#allocation7 + $0x170] sm:$0xff]
    %v5737 = vld [vmem:[#allocation7 + $0x178] sm:$0xff]
    %v5738 = vld [vmem:[#allocation7 + $0x180] sm:$0xff]
    %v5739 = vld [vmem:[#allocation7 + $0x188] sm:$0xff]
    %v5740 = vld [vmem:[#allocation7 + $0x190] sm:$0xff]
    %v5741 = vld [vmem:[#allocation7 + $0x198] sm:$0xff]
    %v5742 = vld [vmem:[#allocation7 + $0x1a0] sm:$0xff]
    %v5743 = vld [vmem:[#allocation7 + $0x1a8] sm:$0xff]
    %v5744 = vld [vmem:[#allocation7 + $0x1b0] sm:$0xff]
    %v5745 = vld [vmem:[#allocation7 + $0x1b8] sm:$0xff]
    %v5746 = vld [vmem:[#allocation7 + $0x1c0] sm:$0xff]
    %v5747 = vld [vmem:[#allocation7 + $0x1c8] sm:$0xff]
    %v5748 = vld [vmem:[#allocation7 + $0x1d0] sm:$0xff]
    %v5749 = vld [vmem:[#allocation7 + $0x1d8] sm:$0xff]
    %v5750 = vld [vmem:[#allocation7 + $0x1e0] sm:$0xff]
    %v5751 = vld [vmem:[#allocation7 + $0x1e8] sm:$0xff]
    %v5752 = vld [vmem:[#allocation7 + $0x1f0] sm:$0xff]
    %v5753 = vld [vmem:[#allocation7 + $0x1f8] sm:$0xff]
    %v5754 = vld [vmem:[#allocation7 + $0x200] sm:$0xff]
    %v5755 = vld [vmem:[#allocation7 + $0x208] sm:$0xff]
    %v5756 = vld [vmem:[#allocation7 + $0x210] sm:$0xff]
    %v5757 = vld [vmem:[#allocation7 + $0x218] sm:$0xff]
    %v5758 = vld [vmem:[#allocation7 + $0x220] sm:$0xff]
    %v5759 = vld [vmem:[#allocation7 + $0x228] sm:$0xff]
    %v5760 = vld [vmem:[#allocation7 + $0x230] sm:$0xff]
    %v5761 = vld [vmem:[#allocation7 + $0x238] sm:$0xff]
    %v5762 = vld [vmem:[#allocation7 + $0x240] sm:$0xff]
    %v5763 = vld [vmem:[#allocation7 + $0x248] sm:$0xff]
    %v5764 = vld [vmem:[#allocation7 + $0x250] sm:$0xff]
    %v5765 = vld [vmem:[#allocation7 + $0x258] sm:$0xff]
    %v5766 = vld [vmem:[#allocation7 + $0x260] sm:$0xff]
    %v5767 = vld [vmem:[#allocation7 + $0x268] sm:$0xff]
    %v5768 = vld [vmem:[#allocation7 + $0x270] sm:$0xff]
    %v5769 = vld [vmem:[#allocation7 + $0x278] sm:$0xff]
    %v5770 = vld [vmem:[#allocation7 + $0x280] sm:$0xff]
    %v5771 = vld [vmem:[#allocation7 + $0x288] sm:$0xff]
    %v5772 = vld [vmem:[#allocation7 + $0x290] sm:$0xff]
    %v5773 = vld [vmem:[#allocation7 + $0x298] sm:$0xff]
    %v5774 = vld [vmem:[#allocation7 + $0x2a0] sm:$0xff]
    %v5775 = vld [vmem:[#allocation7 + $0x2a8] sm:$0xff]
    %v5776 = vld [vmem:[#allocation7 + $0x2b0] sm:$0xff]
    %v5777 = vld [vmem:[#allocation7 + $0x2b8] sm:$0xff]
    %v5778 = vld [vmem:[#allocation7 + $0x2c0] sm:$0xff]
    %v5779 = vld [vmem:[#allocation7 + $0x2c8] sm:$0xff]
    %v5780 = vld [vmem:[#allocation7 + $0x2d0] sm:$0xff]
    %v5781 = vld [vmem:[#allocation7 + $0x2d8] sm:$0xff]
    %v5782 = vld [vmem:[#allocation7 + $0x2e0] sm:$0xff]
    %v5783 = vld [vmem:[#allocation7 + $0x2e8] sm:$0xff]
    %v5784 = vld [vmem:[#allocation7 + $0x2f0] sm:$0xff]
    %v5785 = vld [vmem:[#allocation7 + $0x2f8] sm:$0xff]
    %v5786 = vld [vmem:[#allocation7 + $0x300] sm:$0x3]
    %v5787 = vld [vmem:[#allocation7 + $0x308] sm:$0x3]
    %v5788 = vld [vmem:[#allocation7 + $0x310] sm:$0x3]
    %v5789 = vld [vmem:[#allocation7 + $0x318] sm:$0x3]
    %v5790 = vld [vmem:[#allocation7 + $0x320] sm:$0x3]
    %v5791 = vld [vmem:[#allocation7 + $0x328] sm:$0x3]
    %v5792 = vld [vmem:[#allocation7 + $0x330] sm:$0x3]
    %v5793 = vld [vmem:[#allocation7 + $0x338] sm:$0x3]
    %v5794 = vld [vmem:[#allocation7 + $0x340] sm:$0x3]
    %v5795 = vld [vmem:[#allocation7 + $0x348] sm:$0x3]
    %v5796 = vld [vmem:[#allocation7 + $0x350] sm:$0x3]
    %v5797 = vld [vmem:[#allocation7 + $0x358] sm:$0x3]
    %v5798 = vld [vmem:[#allocation7 + $0x360] sm:$0x3]
    %v5799 = vld [vmem:[#allocation7 + $0x368] sm:$0x3]
    %v5800 = vld [vmem:[#allocation7 + $0x370] sm:$0x3]
    %v5801 = vld [vmem:[#allocation7 + $0x378] sm:$0x3]
    %v5802 = vld [vmem:[#allocation8] sm:$0x1]
    %5804 = vset.pattern.permute.xlu0 0
    %5805 = vperm.xlu0 %5804, %v5802
    %v5806 = vpop.permute.xlu0 %5805
    %v5808 = vperm.slane %v5806, 0
    %vm5809 = vcmask 408576
    %v5811 = vsel %vm5809, %v5689, 0
    %v5814 = vsel %vm303, %v5786, 0
    %v5817 = vsel %vm303, %v5787, 0
    %v5820 = vsel %vm303, %v5788, 0
    %v5823 = vsel %vm303, %v5789, 0
    %v5826 = vsel %vm303, %v5790, 0
    %v5829 = vsel %vm303, %v5791, 0
    %v5832 = vsel %vm303, %v5792, 0
    %v5835 = vsel %vm303, %v5793, 0
    %v5838 = vsel %vm303, %v5794, 0
    %v5841 = vsel %vm303, %v5795, 0
    %v5844 = vsel %vm303, %v5796, 0
    %v5847 = vsel %vm303, %v5797, 0
    %v5850 = vsel %vm303, %v5798, 0
    %v5853 = vsel %vm303, %v5799, 0
    %v5856 = vsel %vm303, %v5800, 0
    %v5859 = vsel %vm303, %v5801, 0
    %5861 = vmatpush.msra.mxu0 0.0
    %5862 = vmatpush.msra.mxu0 0.0
    %5863 = vmatpush.msra.mxu0 0.0
    %5864 = vmatpush.msra.mxu0 0.0
    %5865 = vmatpush.msra.mxu0 0.0
    %5866 = vmatpush.msra.mxu0 0.0
    %5867 = vmatpush.msra.mxu0 0.0
    %5868 = vmatpush.msra.mxu0 0.0
    %5869 = vmatpush.msra.mxu0 0.0
    %5870 = vmatpush.msra.mxu0 %v5814
    %5871 = vmatpush.msra.mxu0 %v5770
    %5872 = vmatpush.msra.mxu0 %v5754
    %5873 = vmatpush.msra.mxu0 %v5738
    %5874 = vmatpush.msra.mxu0 %v5722
    %5875 = vmatpush.msra.mxu0 %v5706
    %5876 = vmatpush.msra.mxu0 %v5690
    %5877 = vmatmul.f32.gmra.mxu0 %v5811
    %v5878 = vpop.f32.mrf.mxu0
    %v5879 = vadd.f32 %v5808, %v5878
    %5880 = vdwg.mxu0
    %5881 = vmatpush.msra.mxu0 0.0
    %5882 = vmatpush.msra.mxu0 0.0
    %5883 = vmatpush.msra.mxu0 0.0
    %5884 = vmatpush.msra.mxu0 0.0
    %5885 = vmatpush.msra.mxu0 0.0
    %5886 = vmatpush.msra.mxu0 0.0
    %5887 = vmatpush.msra.mxu0 0.0
    %5888 = vmatpush.msra.mxu0 0.0
    %5889 = vmatpush.msra.mxu0 0.0
    %5890 = vmatpush.msra.mxu0 %v5817
    %5891 = vmatpush.msra.mxu0 %v5771
    %5892 = vmatpush.msra.mxu0 %v5755
    %5893 = vmatpush.msra.mxu0 %v5739
    %5894 = vmatpush.msra.mxu0 %v5723
    %5895 = vmatpush.msra.mxu0 %v5707
    %5896 = vmatpush.msra.mxu0 %v5691
    %5897 = vmatmul.f32.gmra.mxu0 %v5811
    %v5898 = vpop.f32.mrf.mxu0
    %v5899 = vadd.f32 %v5808, %v5898
    %5900 = vdwg.mxu0
    %5901 = vmatpush.msra.mxu0 0.0
    %5902 = vmatpush.msra.mxu0 0.0
    %5903 = vmatpush.msra.mxu0 0.0
    %5904 = vmatpush.msra.mxu0 0.0
    %5905 = vmatpush.msra.mxu0 0.0
    %5906 = vmatpush.msra.mxu0 0.0
    %5907 = vmatpush.msra.mxu0 0.0
    %5908 = vmatpush.msra.mxu0 0.0
    %5909 = vmatpush.msra.mxu0 0.0
    %5910 = vmatpush.msra.mxu0 %v5820
    %5911 = vmatpush.msra.mxu0 %v5772
    %5912 = vmatpush.msra.mxu0 %v5756
    %5913 = vmatpush.msra.mxu0 %v5740
    %5914 = vmatpush.msra.mxu0 %v5724
    %5915 = vmatpush.msra.mxu0 %v5708
    %5916 = vmatpush.msra.mxu0 %v5692
    %5917 = vmatmul.f32.gmra.mxu0 %v5811
    %v5918 = vpop.f32.mrf.mxu0
    %v5919 = vadd.f32 %v5808, %v5918
    %5920 = vdwg.mxu0
    %5921 = vmatpush.msra.mxu0 0.0
    %5922 = vmatpush.msra.mxu0 0.0
    %5923 = vmatpush.msra.mxu0 0.0
    %5924 = vmatpush.msra.mxu0 0.0
    %5925 = vmatpush.msra.mxu0 0.0
    %5926 = vmatpush.msra.mxu0 0.0
    %5927 = vmatpush.msra.mxu0 0.0
    %5928 = vmatpush.msra.mxu0 0.0
    %5929 = vmatpush.msra.mxu0 0.0
    %5930 = vmatpush.msra.mxu0 %v5823
    %5931 = vmatpush.msra.mxu0 %v5773
    %5932 = vmatpush.msra.mxu0 %v5757
    %5933 = vmatpush.msra.mxu0 %v5741
    %5934 = vmatpush.msra.mxu0 %v5725
    %5935 = vmatpush.msra.mxu0 %v5709
    %5936 = vmatpush.msra.mxu0 %v5693
    %5937 = vmatmul.f32.gmra.mxu0 %v5811
    %v5938 = vpop.f32.mrf.mxu0
    %v5939 = vadd.f32 %v5808, %v5938
    %5940 = vdwg.mxu0
    %5941 = vmatpush.msra.mxu0 0.0
    %5942 = vmatpush.msra.mxu0 0.0
    %5943 = vmatpush.msra.mxu0 0.0
    %5944 = vmatpush.msra.mxu0 0.0
    %5945 = vmatpush.msra.mxu0 0.0
    %5946 = vmatpush.msra.mxu0 0.0
    %5947 = vmatpush.msra.mxu0 0.0
    %5948 = vmatpush.msra.mxu0 0.0
    %5949 = vmatpush.msra.mxu0 0.0
    %5950 = vmatpush.msra.mxu0 %v5826
    %5951 = vmatpush.msra.mxu0 %v5774
    %5952 = vmatpush.msra.mxu0 %v5758
    %5953 = vmatpush.msra.mxu0 %v5742
    %5954 = vmatpush.msra.mxu0 %v5726
    %5955 = vmatpush.msra.mxu0 %v5710
    %5956 = vmatpush.msra.mxu0 %v5694
    %5957 = vmatmul.f32.gmra.mxu0 %v5811
    %v5958 = vpop.f32.mrf.mxu0
    %v5959 = vadd.f32 %v5808, %v5958
    %5960 = vdwg.mxu0
    %5961 = vmatpush.msra.mxu0 0.0
    %5962 = vmatpush.msra.mxu0 0.0
    %5963 = vmatpush.msra.mxu0 0.0
    %5964 = vmatpush.msra.mxu0 0.0
    %5965 = vmatpush.msra.mxu0 0.0
    %5966 = vmatpush.msra.mxu0 0.0
    %5967 = vmatpush.msra.mxu0 0.0
    %5968 = vmatpush.msra.mxu0 0.0
    %5969 = vmatpush.msra.mxu0 0.0
    %5970 = vmatpush.msra.mxu0 %v5829
    %5971 = vmatpush.msra.mxu0 %v5775
    %5972 = vmatpush.msra.mxu0 %v5759
    %5973 = vmatpush.msra.mxu0 %v5743
    %5974 = vmatpush.msra.mxu0 %v5727
    %5975 = vmatpush.msra.mxu0 %v5711
    %5976 = vmatpush.msra.mxu0 %v5695
    %5977 = vmatmul.f32.gmra.mxu0 %v5811
    %v5978 = vpop.f32.mrf.mxu0
    %v5979 = vadd.f32 %v5808, %v5978
    %5980 = vdwg.mxu0
    %5981 = vmatpush.msra.mxu0 0.0
    %5982 = vmatpush.msra.mxu0 0.0
    %5983 = vmatpush.msra.mxu0 0.0
    %5984 = vmatpush.msra.mxu0 0.0
    %5985 = vmatpush.msra.mxu0 0.0
    %5986 = vmatpush.msra.mxu0 0.0
    %5987 = vmatpush.msra.mxu0 0.0
    %5988 = vmatpush.msra.mxu0 0.0
    %5989 = vmatpush.msra.mxu0 0.0
    %5990 = vmatpush.msra.mxu0 %v5832
    %5991 = vmatpush.msra.mxu0 %v5776
    %5992 = vmatpush.msra.mxu0 %v5760
    %5993 = vmatpush.msra.mxu0 %v5744
    %5994 = vmatpush.msra.mxu0 %v5728
    %5995 = vmatpush.msra.mxu0 %v5712
    %5996 = vmatpush.msra.mxu0 %v5696
    %5997 = vmatmul.f32.gmra.mxu0 %v5811
    %v5998 = vpop.f32.mrf.mxu0
    %v5999 = vadd.f32 %v5808, %v5998
    %6000 = vdwg.mxu0
    %6001 = vmatpush.msra.mxu0 0.0
    %6002 = vmatpush.msra.mxu0 0.0
    %6003 = vmatpush.msra.mxu0 0.0
    %6004 = vmatpush.msra.mxu0 0.0
    %6005 = vmatpush.msra.mxu0 0.0
    %6006 = vmatpush.msra.mxu0 0.0
    %6007 = vmatpush.msra.mxu0 0.0
    %6008 = vmatpush.msra.mxu0 0.0
    %6009 = vmatpush.msra.mxu0 0.0
    %6010 = vmatpush.msra.mxu0 %v5835
    %6011 = vmatpush.msra.mxu0 %v5777
    %6012 = vmatpush.msra.mxu0 %v5761
    %6013 = vmatpush.msra.mxu0 %v5745
    %6014 = vmatpush.msra.mxu0 %v5729
    %6015 = vmatpush.msra.mxu0 %v5713
    %6016 = vmatpush.msra.mxu0 %v5697
    %6017 = vmatmul.f32.gmra.mxu0 %v5811
    %v6018 = vpop.f32.mrf.mxu0
    %v6019 = vadd.f32 %v5808, %v6018
    %6020 = vdwg.mxu0
    %6021 = vmatpush.msra.mxu0 0.0
    %6022 = vmatpush.msra.mxu0 0.0
    %6023 = vmatpush.msra.mxu0 0.0
    %6024 = vmatpush.msra.mxu0 0.0
    %6025 = vmatpush.msra.mxu0 0.0
    %6026 = vmatpush.msra.mxu0 0.0
    %6027 = vmatpush.msra.mxu0 0.0
    %6028 = vmatpush.msra.mxu0 0.0
    %6029 = vmatpush.msra.mxu0 0.0
    %6030 = vmatpush.msra.mxu0 %v5838
    %6031 = vmatpush.msra.mxu0 %v5778
    %6032 = vmatpush.msra.mxu0 %v5762
    %6033 = vmatpush.msra.mxu0 %v5746
    %6034 = vmatpush.msra.mxu0 %v5730
    %6035 = vmatpush.msra.mxu0 %v5714
    %6036 = vmatpush.msra.mxu0 %v5698
    %6037 = vmatmul.f32.gmra.mxu0 %v5811
    %v6038 = vpop.f32.mrf.mxu0
    %v6039 = vadd.f32 %v5808, %v6038
    %6040 = vdwg.mxu0
    %6041 = vmatpush.msra.mxu0 0.0
    %6042 = vmatpush.msra.mxu0 0.0
    %6043 = vmatpush.msra.mxu0 0.0
    %6044 = vmatpush.msra.mxu0 0.0
    %6045 = vmatpush.msra.mxu0 0.0
    %6046 = vmatpush.msra.mxu0 0.0
    %6047 = vmatpush.msra.mxu0 0.0
    %6048 = vmatpush.msra.mxu0 0.0
    %6049 = vmatpush.msra.mxu0 0.0
    %6050 = vmatpush.msra.mxu0 %v5841
    %6051 = vmatpush.msra.mxu0 %v5779
    %6052 = vmatpush.msra.mxu0 %v5763
    %6053 = vmatpush.msra.mxu0 %v5747
    %6054 = vmatpush.msra.mxu0 %v5731
    %6055 = vmatpush.msra.mxu0 %v5715
    %6056 = vmatpush.msra.mxu0 %v5699
    %6057 = vmatmul.f32.gmra.mxu0 %v5811
    %v6058 = vpop.f32.mrf.mxu0
    %v6059 = vadd.f32 %v5808, %v6058
    %6060 = vdwg.mxu0
    %6061 = vmatpush.msra.mxu0 0.0
    %6062 = vmatpush.msra.mxu0 0.0
    %6063 = vmatpush.msra.mxu0 0.0
    %6064 = vmatpush.msra.mxu0 0.0
    %6065 = vmatpush.msra.mxu0 0.0
    %6066 = vmatpush.msra.mxu0 0.0
    %6067 = vmatpush.msra.mxu0 0.0
    %6068 = vmatpush.msra.mxu0 0.0
    %6069 = vmatpush.msra.mxu0 0.0
    %6070 = vmatpush.msra.mxu0 %v5844
    %6071 = vmatpush.msra.mxu0 %v5780
    %6072 = vmatpush.msra.mxu0 %v5764
    %6073 = vmatpush.msra.mxu0 %v5748
    %6074 = vmatpush.msra.mxu0 %v5732
    %6075 = vmatpush.msra.mxu0 %v5716
    %6076 = vmatpush.msra.mxu0 %v5700
    %6077 = vmatmul.f32.gmra.mxu0 %v5811
    %v6078 = vpop.f32.mrf.mxu0
    %v6079 = vadd.f32 %v5808, %v6078
    %6080 = vdwg.mxu0
    %6081 = vmatpush.msra.mxu0 0.0
    %6082 = vmatpush.msra.mxu0 0.0
    %6083 = vmatpush.msra.mxu0 0.0
    %6084 = vmatpush.msra.mxu0 0.0
    %6085 = vmatpush.msra.mxu0 0.0
    %6086 = vmatpush.msra.mxu0 0.0
    %6087 = vmatpush.msra.mxu0 0.0
    %6088 = vmatpush.msra.mxu0 0.0
    %6089 = vmatpush.msra.mxu0 0.0
    %6090 = vmatpush.msra.mxu0 %v5847
    %6091 = vmatpush.msra.mxu0 %v5781
    %6092 = vmatpush.msra.mxu0 %v5765
    %6093 = vmatpush.msra.mxu0 %v5749
    %6094 = vmatpush.msra.mxu0 %v5733
    %6095 = vmatpush.msra.mxu0 %v5717
    %6096 = vmatpush.msra.mxu0 %v5701
    %6097 = vmatmul.f32.gmra.mxu0 %v5811
    %v6098 = vpop.f32.mrf.mxu0
    %v6099 = vadd.f32 %v5808, %v6098
    %6100 = vdwg.mxu0
    %6101 = vmatpush.msra.mxu0 0.0
    %6102 = vmatpush.msra.mxu0 0.0
    %6103 = vmatpush.msra.mxu0 0.0
    %6104 = vmatpush.msra.mxu0 0.0
    %6105 = vmatpush.msra.mxu0 0.0
    %6106 = vmatpush.msra.mxu0 0.0
    %6107 = vmatpush.msra.mxu0 0.0
    %6108 = vmatpush.msra.mxu0 0.0
    %6109 = vmatpush.msra.mxu0 0.0
    %6110 = vmatpush.msra.mxu0 %v5850
    %6111 = vmatpush.msra.mxu0 %v5782
    %6112 = vmatpush.msra.mxu0 %v5766
    %6113 = vmatpush.msra.mxu0 %v5750
    %6114 = vmatpush.msra.mxu0 %v5734
    %6115 = vmatpush.msra.mxu0 %v5718
    %6116 = vmatpush.msra.mxu0 %v5702
    %6117 = vmatmul.f32.gmra.mxu0 %v5811
    %v6118 = vpop.f32.mrf.mxu0
    %v6119 = vadd.f32 %v5808, %v6118
    %6120 = vdwg.mxu0
    %6121 = vmatpush.msra.mxu0 0.0
    %6122 = vmatpush.msra.mxu0 0.0
    %6123 = vmatpush.msra.mxu0 0.0
    %6124 = vmatpush.msra.mxu0 0.0
    %6125 = vmatpush.msra.mxu0 0.0
    %6126 = vmatpush.msra.mxu0 0.0
    %6127 = vmatpush.msra.mxu0 0.0
    %6128 = vmatpush.msra.mxu0 0.0
    %6129 = vmatpush.msra.mxu0 0.0
    %6130 = vmatpush.msra.mxu0 %v5853
    %6131 = vmatpush.msra.mxu0 %v5783
    %6132 = vmatpush.msra.mxu0 %v5767
    %6133 = vmatpush.msra.mxu0 %v5751
    %6134 = vmatpush.msra.mxu0 %v5735
    %6135 = vmatpush.msra.mxu0 %v5719
    %6136 = vmatpush.msra.mxu0 %v5703
    %6137 = vmatmul.f32.gmra.mxu0 %v5811
    %v6138 = vpop.f32.mrf.mxu0
    %v6139 = vadd.f32 %v5808, %v6138
    %6140 = vdwg.mxu0
    %6141 = vmatpush.msra.mxu0 0.0
    %6142 = vmatpush.msra.mxu0 0.0
    %6143 = vmatpush.msra.mxu0 0.0
    %6144 = vmatpush.msra.mxu0 0.0
    %6145 = vmatpush.msra.mxu0 0.0
    %6146 = vmatpush.msra.mxu0 0.0
    %6147 = vmatpush.msra.mxu0 0.0
    %6148 = vmatpush.msra.mxu0 0.0
    %6149 = vmatpush.msra.mxu0 0.0
    %6150 = vmatpush.msra.mxu0 %v5856
    %6151 = vmatpush.msra.mxu0 %v5784
    %6152 = vmatpush.msra.mxu0 %v5768
    %6153 = vmatpush.msra.mxu0 %v5752
    %6154 = vmatpush.msra.mxu0 %v5736
    %6155 = vmatpush.msra.mxu0 %v5720
    %6156 = vmatpush.msra.mxu0 %v5704
    %6157 = vmatmul.f32.gmra.mxu0 %v5811
    %v6158 = vpop.f32.mrf.mxu0
    %v6159 = vadd.f32 %v5808, %v6158
    %6160 = vdwg.mxu0
    %6161 = vmatpush.msra.mxu0 0.0
    %6162 = vmatpush.msra.mxu0 0.0
    %6163 = vmatpush.msra.mxu0 0.0
    %6164 = vmatpush.msra.mxu0 0.0
    %6165 = vmatpush.msra.mxu0 0.0
    %6166 = vmatpush.msra.mxu0 0.0
    %6167 = vmatpush.msra.mxu0 0.0
    %6168 = vmatpush.msra.mxu0 0.0
    %6169 = vmatpush.msra.mxu0 0.0
    %6170 = vmatpush.msra.mxu0 %v5859
    %6171 = vmatpush.msra.mxu0 %v5785
    %6172 = vmatpush.msra.mxu0 %v5769
    %6173 = vmatpush.msra.mxu0 %v5753
    %6174 = vmatpush.msra.mxu0 %v5737
    %6175 = vmatpush.msra.mxu0 %v5721
    %6176 = vmatpush.msra.mxu0 %v5705
    %6177 = vmatmul.f32.gmra.mxu0 %v5811
    %v6178 = vpop.f32.mrf.mxu0
    %v6179 = vadd.f32 %v5808, %v6178
    %6180 = vdwg.mxu0
    %v6181 = vxor.u32 %v5879, 2147483648
    %v6182 = vxor.u32 %v5899, 2147483648
    %v6183 = vxor.u32 %v5919, 2147483648
    %v6184 = vxor.u32 %v5939, 2147483648
    %v6185 = vxor.u32 %v5959, 2147483648
    %v6186 = vxor.u32 %v5979, 2147483648
    %v6187 = vxor.u32 %v5999, 2147483648
    %v6188 = vxor.u32 %v6019, 2147483648
    %v6189 = vxor.u32 %v6039, 2147483648
    %v6190 = vxor.u32 %v6059, 2147483648
    %v6191 = vxor.u32 %v6079, 2147483648
    %v6192 = vxor.u32 %v6099, 2147483648
    %v6193 = vxor.u32 %v6119, 2147483648
    %v6194 = vxor.u32 %v6139, 2147483648
    %v6195 = vxor.u32 %v6159, 2147483648
    %v6196 = vxor.u32 %v6179, 2147483648
    %v6197 = vmul.f32 %v6181, 1.442695
    %v6198 = vpow.pop %v6197
    %v6199 = vmul.f32 %v6182, 1.442695
    %v6200 = vpow.pop %v6199
    %v6201 = vmul.f32 %v6183, 1.442695
    %v6202 = vpow.pop %v6201
    %v6203 = vmul.f32 %v6184, 1.442695
    %v6204 = vpow.pop %v6203
    %v6205 = vmul.f32 %v6185, 1.442695
    %v6206 = vpow.pop %v6205
    %v6207 = vmul.f32 %v6186, 1.442695
    %v6208 = vpow.pop %v6207
    %v6209 = vmul.f32 %v6187, 1.442695
    %v6210 = vpow.pop %v6209
    %v6211 = vmul.f32 %v6188, 1.442695
    %v6212 = vpow.pop %v6211
    %v6213 = vmul.f32 %v6189, 1.442695
    %v6214 = vpow.pop %v6213
    %v6215 = vmul.f32 %v6190, 1.442695
    %v6216 = vpow.pop %v6215
    %v6217 = vmul.f32 %v6191, 1.442695
    %v6218 = vpow.pop %v6217
    %v6219 = vmul.f32 %v6192, 1.442695
    %v6220 = vpow.pop %v6219
    %v6221 = vmul.f32 %v6193, 1.442695
    %v6222 = vpow.pop %v6221
    %v6223 = vmul.f32 %v6194, 1.442695
    %v6224 = vpow.pop %v6223
    %v6225 = vmul.f32 %v6195, 1.442695
    %v6226 = vpow.pop %v6225
    %v6227 = vmul.f32 %v6196, 1.442695
    %v6228 = vpow.pop %v6227
    %v6229 = vadd.f32 %v6198, 1.0
    %v6230 = vadd.f32 %v6200, 1.0
    %v6231 = vadd.f32 %v6202, 1.0
    %v6232 = vadd.f32 %v6204, 1.0
    %v6233 = vadd.f32 %v6206, 1.0
    %v6234 = vadd.f32 %v6208, 1.0
    %v6235 = vadd.f32 %v6210, 1.0
    %v6236 = vadd.f32 %v6212, 1.0
    %v6237 = vadd.f32 %v6214, 1.0
    %v6238 = vadd.f32 %v6216, 1.0
    %v6239 = vadd.f32 %v6218, 1.0
    %v6240 = vadd.f32 %v6220, 1.0
    %v6241 = vadd.f32 %v6222, 1.0
    %v6242 = vadd.f32 %v6224, 1.0
    %v6243 = vadd.f32 %v6226, 1.0
    %v6244 = vadd.f32 %v6228, 1.0
    %v6245 = vrcp.pop %v6229
    %v6246 = vmul.f32 %v6229, %v6245
    %v6247 = vsub.f32 1.0, %v6246
    %v6248 = vmul.f32 %v6245, %v6247
    %v6249 = vadd.f32 %v6245, %v6248
    %vm6250 = vweird.f32 %v6229
    %vm6251 = vweird.f32 %v6245
    %vm6252 = vmor %vm6250, %vm6251
    %v6253 = vsel %vm6252, %v6245, %v6249
    %v6254 = vand.u32 2147483647, %v6229
    %vm6255 = vcmp.eq.f32.partialorder %v6254, 8.507059e+37
    %v6256 = vand.u32 %v6229, 2147483648
    %v6257 = vor.u32 1.1754944e-38, %v6256
    %v6258 = vsel %vm6255, %v6257, %v6253
    %v6259 = vmul.f32 1.0, %v6258
    %v6260 = vrcp.pop %v6230
    %v6261 = vmul.f32 %v6230, %v6260
    %v6262 = vsub.f32 1.0, %v6261
    %v6263 = vmul.f32 %v6260, %v6262
    %v6264 = vadd.f32 %v6260, %v6263
    %vm6265 = vweird.f32 %v6230
    %vm6266 = vweird.f32 %v6260
    %vm6267 = vmor %vm6265, %vm6266
    %v6268 = vsel %vm6267, %v6260, %v6264
    %v6269 = vand.u32 2147483647, %v6230
    %vm6270 = vcmp.eq.f32.partialorder %v6269, 8.507059e+37
    %v6271 = vand.u32 %v6230, 2147483648
    %v6272 = vor.u32 1.1754944e-38, %v6271
    %v6273 = vsel %vm6270, %v6272, %v6268
    %v6274 = vmul.f32 1.0, %v6273
    %v6275 = vrcp.pop %v6231
    %v6276 = vmul.f32 %v6231, %v6275
    %v6277 = vsub.f32 1.0, %v6276
    %v6278 = vmul.f32 %v6275, %v6277
    %v6279 = vadd.f32 %v6275, %v6278
    %vm6280 = vweird.f32 %v6231
    %vm6281 = vweird.f32 %v6275
    %vm6282 = vmor %vm6280, %vm6281
    %v6283 = vsel %vm6282, %v6275, %v6279
    %v6284 = vand.u32 2147483647, %v6231
    %vm6285 = vcmp.eq.f32.partialorder %v6284, 8.507059e+37
    %v6286 = vand.u32 %v6231, 2147483648
    %v6287 = vor.u32 1.1754944e-38, %v6286
    %v6288 = vsel %vm6285, %v6287, %v6283
    %v6289 = vmul.f32 1.0, %v6288
    %v6290 = vrcp.pop %v6232
    %v6291 = vmul.f32 %v6232, %v6290
    %v6292 = vsub.f32 1.0, %v6291
    %v6293 = vmul.f32 %v6290, %v6292
    %v6294 = vadd.f32 %v6290, %v6293
    %vm6295 = vweird.f32 %v6232
    %vm6296 = vweird.f32 %v6290
    %vm6297 = vmor %vm6295, %vm6296
    %v6298 = vsel %vm6297, %v6290, %v6294
    %v6299 = vand.u32 2147483647, %v6232
    %vm6300 = vcmp.eq.f32.partialorder %v6299, 8.507059e+37
    %v6301 = vand.u32 %v6232, 2147483648
    %v6302 = vor.u32 1.1754944e-38, %v6301
    %v6303 = vsel %vm6300, %v6302, %v6298
    %v6304 = vmul.f32 1.0, %v6303
    %v6305 = vrcp.pop %v6233
    %v6306 = vmul.f32 %v6233, %v6305
    %v6307 = vsub.f32 1.0, %v6306
    %v6308 = vmul.f32 %v6305, %v6307
    %v6309 = vadd.f32 %v6305, %v6308
    %vm6310 = vweird.f32 %v6233
    %vm6311 = vweird.f32 %v6305
    %vm6312 = vmor %vm6310, %vm6311
    %v6313 = vsel %vm6312, %v6305, %v6309
    %v6314 = vand.u32 2147483647, %v6233
    %vm6315 = vcmp.eq.f32.partialorder %v6314, 8.507059e+37
    %v6316 = vand.u32 %v6233, 2147483648
    %v6317 = vor.u32 1.1754944e-38, %v6316
    %v6318 = vsel %vm6315, %v6317, %v6313
    %v6319 = vmul.f32 1.0, %v6318
    %v6320 = vrcp.pop %v6234
    %v6321 = vmul.f32 %v6234, %v6320
    %v6322 = vsub.f32 1.0, %v6321
    %v6323 = vmul.f32 %v6320, %v6322
    %v6324 = vadd.f32 %v6320, %v6323
    %vm6325 = vweird.f32 %v6234
    %vm6326 = vweird.f32 %v6320
    %vm6327 = vmor %vm6325, %vm6326
    %v6328 = vsel %vm6327, %v6320, %v6324
    %v6329 = vand.u32 2147483647, %v6234
    %vm6330 = vcmp.eq.f32.partialorder %v6329, 8.507059e+37
    %v6331 = vand.u32 %v6234, 2147483648
    %v6332 = vor.u32 1.1754944e-38, %v6331
    %v6333 = vsel %vm6330, %v6332, %v6328
    %v6334 = vmul.f32 1.0, %v6333
    %v6335 = vrcp.pop %v6235
    %v6336 = vmul.f32 %v6235, %v6335
    %v6337 = vsub.f32 1.0, %v6336
    %v6338 = vmul.f32 %v6335, %v6337
    %v6339 = vadd.f32 %v6335, %v6338
    %vm6340 = vweird.f32 %v6235
    %vm6341 = vweird.f32 %v6335
    %vm6342 = vmor %vm6340, %vm6341
    %v6343 = vsel %vm6342, %v6335, %v6339
    %v6344 = vand.u32 2147483647, %v6235
    %vm6345 = vcmp.eq.f32.partialorder %v6344, 8.507059e+37
    %v6346 = vand.u32 %v6235, 2147483648
    %v6347 = vor.u32 1.1754944e-38, %v6346
    %v6348 = vsel %vm6345, %v6347, %v6343
    %v6349 = vmul.f32 1.0, %v6348
    %v6350 = vrcp.pop %v6236
    %v6351 = vmul.f32 %v6236, %v6350
    %v6352 = vsub.f32 1.0, %v6351
    %v6353 = vmul.f32 %v6350, %v6352
    %v6354 = vadd.f32 %v6350, %v6353
    %vm6355 = vweird.f32 %v6236
    %vm6356 = vweird.f32 %v6350
    %vm6357 = vmor %vm6355, %vm6356
    %v6358 = vsel %vm6357, %v6350, %v6354
    %v6359 = vand.u32 2147483647, %v6236
    %vm6360 = vcmp.eq.f32.partialorder %v6359, 8.507059e+37
    %v6361 = vand.u32 %v6236, 2147483648
    %v6362 = vor.u32 1.1754944e-38, %v6361
    %v6363 = vsel %vm6360, %v6362, %v6358
    %v6364 = vmul.f32 1.0, %v6363
    %v6365 = vrcp.pop %v6237
    %v6366 = vmul.f32 %v6237, %v6365
    %v6367 = vsub.f32 1.0, %v6366
    %v6368 = vmul.f32 %v6365, %v6367
    %v6369 = vadd.f32 %v6365, %v6368
    %vm6370 = vweird.f32 %v6237
    %vm6371 = vweird.f32 %v6365
    %vm6372 = vmor %vm6370, %vm6371
    %v6373 = vsel %vm6372, %v6365, %v6369
    %v6374 = vand.u32 2147483647, %v6237
    %vm6375 = vcmp.eq.f32.partialorder %v6374, 8.507059e+37
    %v6376 = vand.u32 %v6237, 2147483648
    %v6377 = vor.u32 1.1754944e-38, %v6376
    %v6378 = vsel %vm6375, %v6377, %v6373
    %v6379 = vmul.f32 1.0, %v6378
    %v6380 = vrcp.pop %v6238
    %v6381 = vmul.f32 %v6238, %v6380
    %v6382 = vsub.f32 1.0, %v6381
    %v6383 = vmul.f32 %v6380, %v6382
    %v6384 = vadd.f32 %v6380, %v6383
    %vm6385 = vweird.f32 %v6238
    %vm6386 = vweird.f32 %v6380
    %vm6387 = vmor %vm6385, %vm6386
    %v6388 = vsel %vm6387, %v6380, %v6384
    %v6389 = vand.u32 2147483647, %v6238
    %vm6390 = vcmp.eq.f32.partialorder %v6389, 8.507059e+37
    %v6391 = vand.u32 %v6238, 2147483648
    %v6392 = vor.u32 1.1754944e-38, %v6391
    %v6393 = vsel %vm6390, %v6392, %v6388
    %v6394 = vmul.f32 1.0, %v6393
    %v6395 = vrcp.pop %v6239
    %v6396 = vmul.f32 %v6239, %v6395
    %v6397 = vsub.f32 1.0, %v6396
    %v6398 = vmul.f32 %v6395, %v6397
    %v6399 = vadd.f32 %v6395, %v6398
    %vm6400 = vweird.f32 %v6239
    %vm6401 = vweird.f32 %v6395
    %vm6402 = vmor %vm6400, %vm6401
    %v6403 = vsel %vm6402, %v6395, %v6399
    %v6404 = vand.u32 2147483647, %v6239
    %vm6405 = vcmp.eq.f32.partialorder %v6404, 8.507059e+37
    %v6406 = vand.u32 %v6239, 2147483648
    %v6407 = vor.u32 1.1754944e-38, %v6406
    %v6408 = vsel %vm6405, %v6407, %v6403
    %v6409 = vmul.f32 1.0, %v6408
    %v6410 = vrcp.pop %v6240
    %v6411 = vmul.f32 %v6240, %v6410
    %v6412 = vsub.f32 1.0, %v6411
    %v6413 = vmul.f32 %v6410, %v6412
    %v6414 = vadd.f32 %v6410, %v6413
    %vm6415 = vweird.f32 %v6240
    %vm6416 = vweird.f32 %v6410
    %vm6417 = vmor %vm6415, %vm6416
    %v6418 = vsel %vm6417, %v6410, %v6414
    %v6419 = vand.u32 2147483647, %v6240
    %vm6420 = vcmp.eq.f32.partialorder %v6419, 8.507059e+37
    %v6421 = vand.u32 %v6240, 2147483648
    %v6422 = vor.u32 1.1754944e-38, %v6421
    %v6423 = vsel %vm6420, %v6422, %v6418
    %v6424 = vmul.f32 1.0, %v6423
    %v6425 = vrcp.pop %v6241
    %v6426 = vmul.f32 %v6241, %v6425
    %v6427 = vsub.f32 1.0, %v6426
    %v6428 = vmul.f32 %v6425, %v6427
    %v6429 = vadd.f32 %v6425, %v6428
    %vm6430 = vweird.f32 %v6241
    %vm6431 = vweird.f32 %v6425
    %vm6432 = vmor %vm6430, %vm6431
    %v6433 = vsel %vm6432, %v6425, %v6429
    %v6434 = vand.u32 2147483647, %v6241
    %vm6435 = vcmp.eq.f32.partialorder %v6434, 8.507059e+37
    %v6436 = vand.u32 %v6241, 2147483648
    %v6437 = vor.u32 1.1754944e-38, %v6436
    %v6438 = vsel %vm6435, %v6437, %v6433
    %v6439 = vmul.f32 1.0, %v6438
    %v6440 = vrcp.pop %v6242
    %v6441 = vmul.f32 %v6242, %v6440
    %v6442 = vsub.f32 1.0, %v6441
    %v6443 = vmul.f32 %v6440, %v6442
    %v6444 = vadd.f32 %v6440, %v6443
    %vm6445 = vweird.f32 %v6242
    %vm6446 = vweird.f32 %v6440
    %vm6447 = vmor %vm6445, %vm6446
    %v6448 = vsel %vm6447, %v6440, %v6444
    %v6449 = vand.u32 2147483647, %v6242
    %vm6450 = vcmp.eq.f32.partialorder %v6449, 8.507059e+37
    %v6451 = vand.u32 %v6242, 2147483648
    %v6452 = vor.u32 1.1754944e-38, %v6451
    %v6453 = vsel %vm6450, %v6452, %v6448
    %v6454 = vmul.f32 1.0, %v6453
    %v6455 = vrcp.pop %v6243
    %v6456 = vmul.f32 %v6243, %v6455
    %v6457 = vsub.f32 1.0, %v6456
    %v6458 = vmul.f32 %v6455, %v6457
    %v6459 = vadd.f32 %v6455, %v6458
    %vm6460 = vweird.f32 %v6243
    %vm6461 = vweird.f32 %v6455
    %vm6462 = vmor %vm6460, %vm6461
    %v6463 = vsel %vm6462, %v6455, %v6459
    %v6464 = vand.u32 2147483647, %v6243
    %vm6465 = vcmp.eq.f32.partialorder %v6464, 8.507059e+37
    %v6466 = vand.u32 %v6243, 2147483648
    %v6467 = vor.u32 1.1754944e-38, %v6466
    %v6468 = vsel %vm6465, %v6467, %v6463
    %v6469 = vmul.f32 1.0, %v6468
    %v6470 = vrcp.pop %v6244
    %v6471 = vmul.f32 %v6244, %v6470
    %v6472 = vsub.f32 1.0, %v6471
    %v6473 = vmul.f32 %v6470, %v6472
    %v6474 = vadd.f32 %v6470, %v6473
    %vm6475 = vweird.f32 %v6244
    %vm6476 = vweird.f32 %v6470
    %vm6477 = vmor %vm6475, %vm6476
    %v6478 = vsel %vm6477, %v6470, %v6474
    %v6479 = vand.u32 2147483647, %v6244
    %vm6480 = vcmp.eq.f32.partialorder %v6479, 8.507059e+37
    %v6481 = vand.u32 %v6244, 2147483648
    %v6482 = vor.u32 1.1754944e-38, %v6481
    %v6483 = vsel %vm6480, %v6482, %v6478
    %v6484 = vmul.f32 1.0, %v6483
    %v6501 = vrot.slane %v6274, 7
    %v6502 = vrot.slane %v6289, 6
    %v6503 = vrot.slane %v6304, 5
    %v6504 = vrot.slane %v6319, 4
    %v6505 = vrot.slane %v6334, 3
    %v6506 = vrot.slane %v6349, 2
    %v6507 = vrot.slane %v6364, 1
    %v6508 = vrot.slane %v6394, 7
    %v6509 = vrot.slane %v6409, 6
    %v6510 = vrot.slane %v6424, 5
    %v6511 = vrot.slane %v6439, 4
    %v6512 = vrot.slane %v6454, 3
    %v6513 = vrot.slane %v6469, 2
    %v6514 = vrot.slane %v6484, 1
    %v6515 = vsel %vm416, %v6259, %v6501
    %vm6516 = vcmask 1042434
    %v6517 = vsel %vm6516, %v6502, %v6503
    %v6518 = vsel %vm303, %v6515, %v6517
    %vm6519 = vcmask 1044484
    %v6520 = vsel %vm6519, %v6504, %v6505
    %vm6521 = vcmask 1046534
    %v6522 = vsel %vm6521, %v6506, %v6507
    %v6523 = vsel %vm2839, %v6520, %v6522
    %v6524 = vsel %vm182, %v6518, %v6523
    %v6525 = vsel %vm416, %v6379, %v6508
    %v6526 = vsel %vm6516, %v6509, %v6510
    %v6527 = vsel %vm303, %v6525, %v6526
    %v6528 = vsel %vm6519, %v6511, %v6512
    %v6529 = vsel %vm6521, %v6513, %v6514
    %v6530 = vsel %vm2839, %v6528, %v6529
    %v6531 = vsel %vm182, %v6527, %v6530
    %6534 = vst [vmem:[#allocation24] sm:$0xff] %v6524
    %6535 = vst [vmem:[#allocation24 + $0x8] sm:$0xff] %v6531
    // Predicated region
    $region82: #{tpu_custom_call.1} parent=1 // pred_check
      _
    $region83: #{tpu_custom_call.1} parent=1 // pred_check_branch
      %6537 = sbr.rel (0) target = $region85
    $region84: #{tpu_custom_call.1} parent=1 // pred_region
      %6539 = vsyncadd [#allocation11], 0
      %s6541 = sshll.u32 [#allocation24], 4
      %s6542 = int_to_ptr.vmem [resolvable:$true] %s6541
      %s6543 = sshll.u32 %s11, 4
      %s6544 = int_to_ptr.hbm [resolvable:$true] %s6543
      %6546 = dma.vmem_to_hbm [thread:$0]  %s6542, 256, %s6544, [#allocation11]
    $region85: #{tpu_custom_call.1} parent=1 // pred_fallthru
      _
    // Predicated region
    $region86: #{tpu_custom_call.1} parent=1 // pred_check
      _
    $region87: #{tpu_custom_call.1} parent=1 // pred_check_branch
      %6548 = sbr.rel (0) target = $region89
    $region88: #{tpu_custom_call.1} parent=1 // pred_region
      %6550 = dma.done [#allocation11], 256
    $region89: #{tpu_custom_call.1} parent=1 // pred_fallthru
      _
    %6551 = vsyncpa [#allocation10], 1
    %6552 = vsyncpa [#allocation13], 1
    %6553 = vsyncpa [#allocation16], 1
    %6554 = vsyncpa [#allocation19], 1
    %6555 = vsyncpa [#allocation22], 1
    %6556 = vsyncpa [#allocation11], 1

</llo_original>
